<compile_context>
chip_gen: v6e
topology: v6e:2x2x1
jax: 0.10.0
libtpu: 0.0.40
codegen_flags: <defaults>
</compile_context>

<pallas_src>
import functools

import jax
import jax.numpy as jnp
from jax.experimental import pallas as pl
from jax.experimental.pallas import tpu as pltpu

_EPS = 1e-5  # PyTorch BatchNorm1d default


def _round_up(x, m):
    return ((x + m - 1) // m) * m


# ---------------------------------------------------------------------------
# Fused Pallas kernel
# ---------------------------------------------------------------------------
def _pool2(y, m, cout, pool_ref):
    """MaxPool1d(2,2) over the (batch*time)-folded rows of y.

    y is staged into a shared VMEM scratch and the even/odd time rows are read
    back with stride-2 sublane slices (no (M//2,2,C) relayout)."""
    pool_ref[0:m, 0:cout] = y
    return jnp.maximum(pool_ref[pl.ds(0, m // 2, 2), 0:cout],
                       pool_ref[pl.ds(1, m // 2, 2), 0:cout])


def _conv_bn_relu_pool(a, nb, t_in, w_ref, bias, pool_ref, *, pad):
    """k=3 Conv1d (BN scale pre-folded into w) + ReLU + MaxPool1d(2,2).

    a: (nb*t_in, cin) batch-folded activation; w_ref: (3*cin, cout) with rows
    ordered [tap d][cin]; bias: (1, cout).  Returns (nb*t_out//2, cout)."""
    cin = a.shape[-1]
    cout = w_ref.shape[-1]
    a3 = a.reshape(nb, t_in, cin)
    if pad:                                  # padding=1 -> zero halo, t_out = t_in
        t_out = t_in
        zero = jnp.zeros((nb, 1, cin), jnp.float32)
        ah = jnp.concatenate([zero, a3, zero], axis=1)        # (nb, t_in+2, cin)
    else:                                    # padding=0 -> t_out = t_in - 2
        t_out = t_in - 2
        ah = a3
    # Wide-K tap matrix: ONE (nb*t_out, 3*cin) x (3*cin, cout) MXU matmul.
    taps = jnp.concatenate([ah[:, d:d + t_out, :] for d in range(3)], axis=-1)
    y = jnp.dot(taps.reshape(nb * t_out, 3 * cin), w_ref[...],
                preferred_element_type=jnp.float32)
    y = jnp.maximum(y + bias, 0.0)                            # folded BN bias + ReLU
    return _pool2(y, nb * t_out, cout, pool_ref)


def _wdcnn_kernel(x_ref, w1_ref, b1_ref, w2_ref, b2_ref, w3_ref, b3_ref,
                  w4_ref, b4_ref, w5_ref, b5_ref, wf1_ref, bf1_ref,
                  wf2_ref, bf2_ref, out_ref, pool_ref, *, nb):
    f32 = jnp.float32

    # ---- layer1: Conv1d(1,16,64,stride=16,pad=24) + BN + ReLU + Pool -------
    # x_ref: (nb, 131, 16) = zero-padded (2096,) signal viewed as 16-wide rows.
    # Window t covers rows t..t+3; lane-concatenating the 4 shifted slices
    # gives a (nb*128, 64) tap matrix -> one K=64 matmul.
    t1 = 128
    taps1 = jnp.concatenate([x_ref[:, s:s + t1, :] for s in range(4)], axis=-1)
    y = jnp.dot(taps1.reshape(nb * t1, 64), w1_ref[...],
                preferred_element_type=f32)
    y = jnp.maximum(y + b1_ref[...], 0.0)
    a = _pool2(y, nb * t1, 16, pool_ref)                              # (nb*64, 16)

    # ---- layers 2-5: k=3 convs + BN + ReLU + Pool ---------------------------
    a = _conv_bn_relu_pool(a, nb, 64, w2_ref, b2_ref[...], pool_ref, pad=True)   # (nb*32, 32)
    a = _conv_bn_relu_pool(a, nb, 32, w3_ref, b3_ref[...], pool_ref, pad=True)   # (nb*16, 64)
    a = _conv_bn_relu_pool(a, nb, 16, w4_ref, b4_ref[...], pool_ref, pad=True)   # (nb*8, 64)
    a = _conv_bn_relu_pool(a, nb, 8,  w5_ref, b5_ref[...], pool_ref, pad=False)  # (nb*3, 64)

    # ---- layer6: Flatten (PyTorch NCL order folded into wf1 rows) + MLP -----
    a = a.reshape(nb, 3, 64)
    flat = jnp.concatenate([a[:, l, :] for l in range(3)], axis=-1)   # (nb, 192)
    h = jnp.dot(flat, wf1_ref[...], preferred_element_type=f32) + bf1_ref[...]
    h = jnp.maximum(h, 0.0)
    out_ref[0] = (jnp.dot(h, wf2_ref[...], preferred_element_type=f32)
                  + bf2_ref[...])


# ---------------------------------------------------------------------------
# Host-side parameter folding / layout
# ---------------------------------------------------------------------------
def _fold_bn(b, gamma, beta, mean, var):
    scale = gamma / jnp.sqrt(var + _EPS)
    bias = beta + (b - mean) * scale
    return scale, bias[None, :].astype(jnp.float32)


def _prep_params(params):
    """Fold BN into the conv weights/biases and lay everything out for the kernel."""
    ins = []
    # conv1: (16,1,64) -> (64,16); tap-lane order q = 16*s + r matches j directly.
    w, b, g, bt, mu, var = params["conv1"]
    s, bias = _fold_bn(b, g, bt, mu, var)
    ins += [(w[:, 0, :].T * s[None, :]).astype(jnp.float32), bias]
    # conv2-5: (cout,cin,3) -> (3*cin, cout) with row order [tap d][cin].
    for name in ("conv2", "conv3", "conv4", "conv5"):
        w, b, g, bt, mu, var = params[name]
        s, bias = _fold_bn(b, g, bt, mu, var)
        cout, cin, _ = w.shape
        wt = (jnp.transpose(w, (2, 1, 0)) * s[None, None, :]).reshape(3 * cin, cout)
        ins += [wt.astype(jnp.float32), bias]
    # fc1: permute Linear(192,100) rows from PyTorch's channel-major flatten
    # order (index c*3+l) into the kernel's [l block of 64 channels] order.
    w1, b1, w2, b2 = params["fc"]
    wf1 = jnp.transpose(w1.T.reshape(64, 3, 100), (1, 0, 2)).reshape(192, 100)
    ins += [wf1.astype(jnp.float32), b1[None, :].astype(jnp.float32),
            w2.T.astype(jnp.float32), b2[None, :].astype(jnp.float32)]
    return ins


def _pick_batch_block(n):
    """Samples folded into the matmul M dim per grid step.

    Up to 32 samples/step (VMEM-safe on all of v5e/v6e/v7x with the raised
    vmem limit); keep >= 2 grid steps when possible so the 'parallel' batch
    axis can split across v7x's two TensorCores."""
    if n >= 64:
        return 32
    if n >= 16:
        return _round_up(n, 16) // 2
    return _round_up(max(n, 1), 8)


def _const_spec(arr):
    zeros = (0,) * arr.ndim
    return pl.BlockSpec(arr.shape, lambda i, _z=zeros: _z)


# ---------------------------------------------------------------------------
# WDCNN forward
# ---------------------------------------------------------------------------
def wdcnn_forward(x_ncl, params, nb=None):
    """x_ncl: (N, 1, 2048) float32, PyTorch NCL layout. Returns (N, 10)."""
    n = x_ncl.shape[0]
    if nb is None:
        nb = _pick_batch_block(n)
    n_pad = _round_up(n, nb)
    gn = n_pad // nb

    # Zero-pad the batch to a multiple of nb and the signal by 24 on each side
    # (conv1 padding); view each padded signal as (131, 16) so conv1's
    # stride-16 / k=64 windows are 4 sublane-shifted slices inside the kernel.
    xp = jnp.pad(x_ncl[:, 0, :].astype(jnp.float32),
                 ((0, n_pad - n), (24, 24)))                     # (n_pad, 2096)
    x3 = xp.reshape(n_pad, 131, 16)

    weights = _prep_params(params)
    inputs = [x3] + weights

    in_specs = [pl.BlockSpec((nb, 131, 16), lambda i: (i, 0, 0))]
    in_specs += [_const_spec(w) for w in weights]

    mkn = [(128, 64, 16), (64, 48, 32), (32, 96, 64), (16, 192, 64),
           (6, 192, 64), (1, 192, 100), (1, 100, 10)]
    flops = 2 * n_pad * sum(m * k * c for m, k, c in mkn)
    bytes_accessed = sum(int(a.size) * 4 for a in inputs) + n_pad * 10 * 4

    out = pl.pallas_call(
        functools.partial(_wdcnn_kernel, nb=nb),
        out_shape=jax.ShapeDtypeStruct((gn, nb, 10), jnp.float32),
        grid=(gn,),
        in_specs=in_specs,
        out_specs=pl.BlockSpec((1, nb, 10), lambda i: (i, 0, 0)),
        scratch_shapes=[pltpu.VMEM((nb * 128, 64), jnp.float32)],
        compiler_params=pltpu.CompilerParams(
            dimension_semantics=("parallel",),
            vmem_limit_bytes=48 * 1024 * 1024),
        cost_estimate=pl.CostEstimate(flops=flops, transcendentals=0,
                                      bytes_accessed=bytes_accessed),
    )(*inputs)
    return out.reshape(n_pad, 10)[:n]


# ---------------------------------------------------------------------------
# Pure-JAX reference (for in-script validation)
# ---------------------------------------------------------------------------
def _ref_forward(x_ncl, params):
    hp = jax.lax.Precision.HIGHEST
    x = x_ncl
    cfg = [(16, 24), (1, 1), (1, 1), (1, 1), (1, 0)]          # (stride, pad)
    for i, (stride, pad) in enumerate(cfg):
        w, b, g, bt, mu, var = params[f"conv{i + 1}"]
        y = jax.lax.conv_general_dilated(
            x, w, window_strides=(stride,), padding=[(pad, pad)],
            dimension_numbers=("NCH", "OIH", "NCH"), precision=hp)
        y = y + b[None, :, None]
        scale = g / jnp.sqrt(var + _EPS)
        y = (y - mu[None, :, None]) * scale[None, :, None] + bt[None, :, None]
        y = jnp.maximum(y, 0.0)
        nb_, c, l = y.shape
        x = jnp.max(y.reshape(nb_, c, l // 2, 2), axis=-1)     # MaxPool1d(2,2)
    w1, b1, w2, b2 = params["fc"]
    flat = x.reshape(x.shape[0], -1)                           # NCL flatten
    h = jnp.maximum(jnp.dot(flat, w1.T, precision=hp) + b1, 0.0)
    return jnp.dot(h, w2.T, precision=hp) + b2


# ---------------------------------------------------------------------------
# Deterministic synthetic parameters
# ---------------------------------------------------------------------------
def init_params(key):
    conv_specs = [(16, 1, 64), (32, 16, 3), (64, 32, 3), (64, 64, 3), (64, 64, 3)]
    params = {}
    keys = jax.random.split(key, len(conv_specs) * 6 + 4)
    ki = iter(keys)
    for i, (cout, cin, k) in enumerate(conv_specs):
        w = 0.05 * jax.random.normal(next(ki), (cout, cin, k), jnp.float32)
        b = 0.01 * jax.random.normal(next(ki), (cout,), jnp.float32)
        gamma = 1.0 + 0.1 * jax.random.normal(next(ki), (cout,), jnp.float32)
        beta = 0.01 * jax.random.normal(next(ki), (cout,), jnp.float32)
        mean = 0.01 * jax.random.normal(next(ki), (cout,), jnp.float32)
        var = 1.0 + 0.1 * jnp.abs(jax.random.normal(next(ki), (cout,), jnp.float32))
        params[f"conv{i + 1}"] = (w, b, gamma, beta, mean, var)
    w1 = 0.05 * jax.random.normal(next(ki), (100, 192), jnp.float32)
    b1 = 0.01 * jax.random.normal(next(ki), (100,), jnp.float32)
    w2 = 0.05 * jax.random.normal(next(ki), (10, 100), jnp.float32)
    b2 = 0.01 * jax.random.normal(next(ki), (10,), jnp.float32)
    params["fc"] = (w1, b1, w2, b2)
    return params


if __name__ == "__main__":
    key = jax.random.PRNGKey(0)
    pkey, xkey = jax.random.split(key)
    params = init_params(pkey)
    # Smallest input length consistent with Linear(192, 100) is L = 2048.
    x = jax.random.normal(xkey, (4, 1, 2048), dtype=jnp.float32)

    fwd = jax.jit(wdcnn_forward)
    out = jax.block_until_ready(fwd(x, params))
    ref = jax.block_until_ready(jax.jit(_ref_forward)(x, params))

    assert out.shape == (4, 10), out.shape
    assert bool(jnp.all(jnp.isfinite(out)))
    err = float(jnp.max(jnp.abs(out - ref)))
    assert err < 2e-3, f"mismatch vs reference: {err}"
    print("KERNEL_OK")
</pallas_src>

<mosaic_0001>
module attributes {stable_mosaic.version = 11 : i64} {
  func.func @_wdcnn_kernel(%arg0: i32, %arg1: memref<8x131x16xf32, #tpu.memory_space<vmem>>, %arg2: memref<64x16xf32, #tpu.memory_space<vmem>>, %arg3: memref<1x16xf32, #tpu.memory_space<vmem>>, %arg4: memref<48x32xf32, #tpu.memory_space<vmem>>, %arg5: memref<1x32xf32, #tpu.memory_space<vmem>>, %arg6: memref<96x64xf32, #tpu.memory_space<vmem>>, %arg7: memref<1x64xf32, #tpu.memory_space<vmem>>, %arg8: memref<192x64xf32, #tpu.memory_space<vmem>>, %arg9: memref<1x64xf32, #tpu.memory_space<vmem>>, %arg10: memref<192x64xf32, #tpu.memory_space<vmem>>, %arg11: memref<1x64xf32, #tpu.memory_space<vmem>>, %arg12: memref<192x100xf32, #tpu.memory_space<vmem>>, %arg13: memref<1x100xf32, #tpu.memory_space<vmem>>, %arg14: memref<100x10xf32, #tpu.memory_space<vmem>>, %arg15: memref<1x10xf32, #tpu.memory_space<vmem>>, %arg16: memref<1x8x10xf32, #tpu.memory_space<vmem>>, %arg17: memref<1024x64xf32, #tpu.memory_space<vmem>>) attributes {dimension_semantics = [#tpu.dimension_semantics<parallel>], iteration_bounds = array<i64: 1>, scalar_prefetch = 0 : i64, scratch_operands = 1 : i64, tpu.core_type = #tpu.core_type<tc>, window_params = [{transform_indices = @transform_0, window_bounds = array<i64: 8, 131, 16>}, {pipeline_mode = #tpu.pipeline_mode<synchronous>, transform_indices = @transform_1, window_bounds = array<i64: 64, 16>}, {pipeline_mode = #tpu.pipeline_mode<synchronous>, transform_indices = @transform_2, window_bounds = array<i64: 1, 16>}, {pipeline_mode = #tpu.pipeline_mode<synchronous>, transform_indices = @transform_3, window_bounds = array<i64: 48, 32>}, {pipeline_mode = #tpu.pipeline_mode<synchronous>, transform_indices = @transform_4, window_bounds = array<i64: 1, 32>}, {pipeline_mode = #tpu.pipeline_mode<synchronous>, transform_indices = @transform_5, window_bounds = array<i64: 96, 64>}, {pipeline_mode = #tpu.pipeline_mode<synchronous>, transform_indices = @transform_6, window_bounds = array<i64: 1, 64>}, {pipeline_mode = #tpu.pipeline_mode<synchronous>, transform_indices = @transform_7, window_bounds = array<i64: 192, 64>}, {pipeline_mode = #tpu.pipeline_mode<synchronous>, transform_indices = @transform_8, window_bounds = array<i64: 1, 64>}, {pipeline_mode = #tpu.pipeline_mode<synchronous>, transform_indices = @transform_9, window_bounds = array<i64: 192, 64>}, {pipeline_mode = #tpu.pipeline_mode<synchronous>, transform_indices = @transform_10, window_bounds = array<i64: 1, 64>}, {pipeline_mode = #tpu.pipeline_mode<synchronous>, transform_indices = @transform_11, window_bounds = array<i64: 192, 100>}, {pipeline_mode = #tpu.pipeline_mode<synchronous>, transform_indices = @transform_12, window_bounds = array<i64: 1, 100>}, {pipeline_mode = #tpu.pipeline_mode<synchronous>, transform_indices = @transform_13, window_bounds = array<i64: 100, 10>}, {pipeline_mode = #tpu.pipeline_mode<synchronous>, transform_indices = @transform_14, window_bounds = array<i64: 1, 10>}, {transform_indices = @transform_15, window_bounds = array<i64: 1, 8, 10>}]} {
    %c0 = arith.constant 0 : index
    %c0_0 = arith.constant 0 : index
    %c0_1 = arith.constant 0 : index
    %0 = vector.load %arg1[%c0, %c0_0, %c0_1] : memref<8x131x16xf32, #tpu.memory_space<vmem>>, vector<8x128x16xf32>
    %c0_2 = arith.constant 0 : index
    %c1 = arith.constant 1 : index
    %c0_3 = arith.constant 0 : index
    %1 = vector.load %arg1[%c0_2, %c1, %c0_3] : memref<8x131x16xf32, #tpu.memory_space<vmem>>, vector<8x128x16xf32>
    %c0_4 = arith.constant 0 : index
    %c2 = arith.constant 2 : index
    %c0_5 = arith.constant 0 : index
    %2 = vector.load %arg1[%c0_4, %c2, %c0_5] : memref<8x131x16xf32, #tpu.memory_space<vmem>>, vector<8x128x16xf32>
    %c0_6 = arith.constant 0 : index
    %c3 = arith.constant 3 : index
    %c0_7 = arith.constant 0 : index
    %3 = vector.load %arg1[%c0_6, %c3, %c0_7] : memref<8x131x16xf32, #tpu.memory_space<vmem>>, vector<8x128x16xf32>
    %4 = tpu.concatenate %0, %1, %2, %3 in 2 : vector<8x128x16xf32>, vector<8x128x16xf32>, vector<8x128x16xf32>, vector<8x128x16xf32> -> vector<8x128x64xf32>
    %5 = vector.shape_cast %4 : vector<8x128x64xf32> to vector<1024x64xf32>
    %c0_8 = arith.constant 0 : index
    %c0_9 = arith.constant 0 : index
    %6 = vector.load %arg2[%c0_8, %c0_9] : memref<64x16xf32, #tpu.memory_space<vmem>>, vector<64x16xf32>
    %cst = arith.constant dense<0.000000e+00> : vector<1024x16xf32>
    %7 = tpu.matmul %5, %6, %cst {dimension_numbers = #tpu.dot_dimension_numbers<[1], [0], [0], [1], [0, 0, 1, 1], [], []>} : vector<1024x64xf32>, vector<64x16xf32>, vector<1024x16xf32> -> vector<1024x16xf32>
    %c0_10 = arith.constant 0 : index
    %c0_11 = arith.constant 0 : index
    %8 = vector.load %arg3[%c0_10, %c0_11] : memref<1x16xf32, #tpu.memory_space<vmem>>, vector<1x16xf32>
    %9 = vector.broadcast %8 : vector<1x16xf32> to vector<1024x16xf32>
    %10 = arith.addf %7, %9 : vector<1024x16xf32>
    %cst_12 = arith.constant 0.000000e+00 : f32
    %11 = vector.broadcast %cst_12 : f32 to vector<1024x16xf32>
    %12 = arith.maximumf %10, %11 : vector<1024x16xf32>
    %c0_13 = arith.constant 0 : index
    %c0_14 = arith.constant 0 : index
    %13 = vector.load %arg17[%c0_13, %c0_14] : memref<1024x64xf32, #tpu.memory_space<vmem>>, vector<1024x16xf32>
    tpu.vector_store %arg17[%c0_13, %c0_14], %12 {strides = array<i32>} : memref<1024x64xf32, #tpu.memory_space<vmem>>, vector<1024x16xf32>,
    %c0_15 = arith.constant 0 : index
    %c0_16 = arith.constant 0 : index
    %14 = tpu.strided_load %arg17[%c0_15, %c0_16] {strides = array<i32: 2, 1>} : memref<1024x64xf32, #tpu.memory_space<vmem>>, vector<512x16xf32>
    %c1_17 = arith.constant 1 : index
    %c0_18 = arith.constant 0 : index
    %15 = tpu.strided_load %arg17[%c1_17, %c0_18] {strides = array<i32: 2, 1>} : memref<1024x64xf32, #tpu.memory_space<vmem>>, vector<512x16xf32>
    %16 = arith.maximumf %14, %15 : vector<512x16xf32>
    %c0_19 = arith.constant 0 : index
    %c0_20 = arith.constant 0 : index
    %17 = vector.load %arg5[%c0_19, %c0_20] : memref<1x32xf32, #tpu.memory_space<vmem>>, vector<1x32xf32>
    %18 = vector.shape_cast %16 : vector<512x16xf32> to vector<8x64x16xf32>
    %cst_21 = arith.constant 0.000000e+00 : f32
    %19 = vector.broadcast %cst_21 : f32 to vector<8x1x16xf32>
    %20 = tpu.concatenate %19, %18, %19 in 1 : vector<8x1x16xf32>, vector<8x64x16xf32>, vector<8x1x16xf32> -> vector<8x66x16xf32>
    %21 = vector.extract_strided_slice %20 {offsets = [0, 0, 0], sizes = [8, 64, 16], strides = [1, 1, 1]} : vector<8x66x16xf32> to vector<8x64x16xf32>
    %22 = vector.extract_strided_slice %20 {offsets = [0, 1, 0], sizes = [8, 64, 16], strides = [1, 1, 1]} : vector<8x66x16xf32> to vector<8x64x16xf32>
    %23 = vector.extract_strided_slice %20 {offsets = [0, 2, 0], sizes = [8, 64, 16], strides = [1, 1, 1]} : vector<8x66x16xf32> to vector<8x64x16xf32>
    %24 = tpu.concatenate %21, %22, %23 in 2 : vector<8x64x16xf32>, vector<8x64x16xf32>, vector<8x64x16xf32> -> vector<8x64x48xf32>
    %25 = vector.shape_cast %24 : vector<8x64x48xf32> to vector<512x48xf32>
    %c0_22 = arith.constant 0 : index
    %c0_23 = arith.constant 0 : index
    %26 = vector.load %arg4[%c0_22, %c0_23] : memref<48x32xf32, #tpu.memory_space<vmem>>, vector<48x32xf32>
    %cst_24 = arith.constant dense<0.000000e+00> : vector<512x32xf32>
    %27 = tpu.matmul %25, %26, %cst_24 {dimension_numbers = #tpu.dot_dimension_numbers<[1], [0], [0], [1], [0, 0, 1, 1], [], []>} : vector<512x48xf32>, vector<48x32xf32>, vector<512x32xf32> -> vector<512x32xf32>
    %28 = vector.broadcast %17 : vector<1x32xf32> to vector<512x32xf32>
    %29 = arith.addf %27, %28 : vector<512x32xf32>
    %cst_25 = arith.constant 0.000000e+00 : f32
    %30 = vector.broadcast %cst_25 : f32 to vector<512x32xf32>
    %31 = arith.maximumf %29, %30 : vector<512x32xf32>
    %c0_26 = arith.constant 0 : index
    %c0_27 = arith.constant 0 : index
    %32 = vector.load %arg17[%c0_26, %c0_27] : memref<1024x64xf32, #tpu.memory_space<vmem>>, vector<512x32xf32>
    tpu.vector_store %arg17[%c0_26, %c0_27], %31 {strides = array<i32>} : memref<1024x64xf32, #tpu.memory_space<vmem>>, vector<512x32xf32>,
    %c0_28 = arith.constant 0 : index
    %c0_29 = arith.constant 0 : index
    %33 = tpu.strided_load %arg17[%c0_28, %c0_29] {strides = array<i32: 2, 1>} : memref<1024x64xf32, #tpu.memory_space<vmem>>, vector<256x32xf32>
    %c1_30 = arith.constant 1 : index
    %c0_31 = arith.constant 0 : index
    %34 = tpu.strided_load %arg17[%c1_30, %c0_31] {strides = array<i32: 2, 1>} : memref<1024x64xf32, #tpu.memory_space<vmem>>, vector<256x32xf32>
    %35 = arith.maximumf %33, %34 : vector<256x32xf32>
    %c0_32 = arith.constant 0 : index
    %c0_33 = arith.constant 0 : index
    %36 = vector.load %arg7[%c0_32, %c0_33] : memref<1x64xf32, #tpu.memory_space<vmem>>, vector<1x64xf32>
    %37 = vector.shape_cast %35 : vector<256x32xf32> to vector<8x32x32xf32>
    %cst_34 = arith.constant 0.000000e+00 : f32
    %38 = vector.broadcast %cst_34 : f32 to vector<8x1x32xf32>
    %39 = tpu.concatenate %38, %37, %38 in 1 : vector<8x1x32xf32>, vector<8x32x32xf32>, vector<8x1x32xf32> -> vector<8x34x32xf32>
    %40 = vector.extract_strided_slice %39 {offsets = [0, 0, 0], sizes = [8, 32, 32], strides = [1, 1, 1]} : vector<8x34x32xf32> to vector<8x32x32xf32>
    %41 = vector.extract_strided_slice %39 {offsets = [0, 1, 0], sizes = [8, 32, 32], strides = [1, 1, 1]} : vector<8x34x32xf32> to vector<8x32x32xf32>
    %42 = vector.extract_strided_slice %39 {offsets = [0, 2, 0], sizes = [8, 32, 32], strides = [1, 1, 1]} : vector<8x34x32xf32> to vector<8x32x32xf32>
    %43 = tpu.concatenate %40, %41, %42 in 2 : vector<8x32x32xf32>, vector<8x32x32xf32>, vector<8x32x32xf32> -> vector<8x32x96xf32>
    %44 = vector.shape_cast %43 : vector<8x32x96xf32> to vector<256x96xf32>
    %c0_35 = arith.constant 0 : index
    %c0_36 = arith.constant 0 : index
    %45 = vector.load %arg6[%c0_35, %c0_36] : memref<96x64xf32, #tpu.memory_space<vmem>>, vector<96x64xf32>
    %cst_37 = arith.constant dense<0.000000e+00> : vector<256x64xf32>
    %46 = tpu.matmul %44, %45, %cst_37 {dimension_numbers = #tpu.dot_dimension_numbers<[1], [0], [0], [1], [0, 0, 1, 1], [], []>} : vector<256x96xf32>, vector<96x64xf32>, vector<256x64xf32> -> vector<256x64xf32>
    %47 = vector.broadcast %36 : vector<1x64xf32> to vector<256x64xf32>
    %48 = arith.addf %46, %47 : vector<256x64xf32>
    %cst_38 = arith.constant 0.000000e+00 : f32
    %49 = vector.broadcast %cst_38 : f32 to vector<256x64xf32>
    %50 = arith.maximumf %48, %49 : vector<256x64xf32>
    %c0_39 = arith.constant 0 : index
    %c0_40 = arith.constant 0 : index
    %51 = vector.load %arg17[%c0_39, %c0_40] : memref<1024x64xf32, #tpu.memory_space<vmem>>, vector<256x64xf32>
    tpu.vector_store %arg17[%c0_39, %c0_40], %50 {strides = array<i32>} : memref<1024x64xf32, #tpu.memory_space<vmem>>, vector<256x64xf32>,
    %c0_41 = arith.constant 0 : index
    %c0_42 = arith.constant 0 : index
    %52 = tpu.strided_load %arg17[%c0_41, %c0_42] {strides = array<i32: 2, 1>} : memref<1024x64xf32, #tpu.memory_space<vmem>>, vector<128x64xf32>
    %c1_43 = arith.constant 1 : index
    %c0_44 = arith.constant 0 : index
    %53 = tpu.strided_load %arg17[%c1_43, %c0_44] {strides = array<i32: 2, 1>} : memref<1024x64xf32, #tpu.memory_space<vmem>>, vector<128x64xf32>
    %54 = arith.maximumf %52, %53 : vector<128x64xf32>
    %c0_45 = arith.constant 0 : index
    %c0_46 = arith.constant 0 : index
    %55 = vector.load %arg9[%c0_45, %c0_46] : memref<1x64xf32, #tpu.memory_space<vmem>>, vector<1x64xf32>
    %56 = vector.shape_cast %54 : vector<128x64xf32> to vector<8x16x64xf32>
    %cst_47 = arith.constant 0.000000e+00 : f32
    %57 = vector.broadcast %cst_47 : f32 to vector<8x1x64xf32>
    %58 = tpu.concatenate %57, %56, %57 in 1 : vector<8x1x64xf32>, vector<8x16x64xf32>, vector<8x1x64xf32> -> vector<8x18x64xf32>
    %59 = vector.extract_strided_slice %58 {offsets = [0, 0, 0], sizes = [8, 16, 64], strides = [1, 1, 1]} : vector<8x18x64xf32> to vector<8x16x64xf32>
    %60 = vector.extract_strided_slice %58 {offsets = [0, 1, 0], sizes = [8, 16, 64], strides = [1, 1, 1]} : vector<8x18x64xf32> to vector<8x16x64xf32>
    %61 = vector.extract_strided_slice %58 {offsets = [0, 2, 0], sizes = [8, 16, 64], strides = [1, 1, 1]} : vector<8x18x64xf32> to vector<8x16x64xf32>
    %62 = tpu.concatenate %59, %60, %61 in 2 : vector<8x16x64xf32>, vector<8x16x64xf32>, vector<8x16x64xf32> -> vector<8x16x192xf32>
    %63 = vector.shape_cast %62 : vector<8x16x192xf32> to vector<128x192xf32>
    %c0_48 = arith.constant 0 : index
    %c0_49 = arith.constant 0 : index
    %64 = vector.load %arg8[%c0_48, %c0_49] : memref<192x64xf32, #tpu.memory_space<vmem>>, vector<192x64xf32>
    %cst_50 = arith.constant dense<0.000000e+00> : vector<128x64xf32>
    %65 = tpu.matmul %63, %64, %cst_50 {dimension_numbers = #tpu.dot_dimension_numbers<[1], [0], [0], [1], [0, 0, 1, 1], [], []>} : vector<128x192xf32>, vector<192x64xf32>, vector<128x64xf32> -> vector<128x64xf32>
    %66 = vector.broadcast %55 : vector<1x64xf32> to vector<128x64xf32>
    %67 = arith.addf %65, %66 : vector<128x64xf32>
    %cst_51 = arith.constant 0.000000e+00 : f32
    %68 = vector.broadcast %cst_51 : f32 to vector<128x64xf32>
    %69 = arith.maximumf %67, %68 : vector<128x64xf32>
    %c0_52 = arith.constant 0 : index
    %c0_53 = arith.constant 0 : index
    %70 = vector.load %arg17[%c0_52, %c0_53] : memref<1024x64xf32, #tpu.memory_space<vmem>>, vector<128x64xf32>
    tpu.vector_store %arg17[%c0_52, %c0_53], %69 {strides = array<i32>} : memref<1024x64xf32, #tpu.memory_space<vmem>>, vector<128x64xf32>,
    %c0_54 = arith.constant 0 : index
    %c0_55 = arith.constant 0 : index
    %71 = tpu.strided_load %arg17[%c0_54, %c0_55] {strides = array<i32: 2, 1>} : memref<1024x64xf32, #tpu.memory_space<vmem>>, vector<64x64xf32>
    %c1_56 = arith.constant 1 : index
    %c0_57 = arith.constant 0 : index
    %72 = tpu.strided_load %arg17[%c1_56, %c0_57] {strides = array<i32: 2, 1>} : memref<1024x64xf32, #tpu.memory_space<vmem>>, vector<64x64xf32>
    %73 = arith.maximumf %71, %72 : vector<64x64xf32>
    %c0_58 = arith.constant 0 : index
    %c0_59 = arith.constant 0 : index
    %74 = vector.load %arg11[%c0_58, %c0_59] : memref<1x64xf32, #tpu.memory_space<vmem>>, vector<1x64xf32>
    %75 = vector.shape_cast %73 : vector<64x64xf32> to vector<8x8x64xf32>
    %76 = vector.extract_strided_slice %75 {offsets = [0, 0, 0], sizes = [8, 6, 64], strides = [1, 1, 1]} : vector<8x8x64xf32> to vector<8x6x64xf32>
    %77 = vector.extract_strided_slice %75 {offsets = [0, 1, 0], sizes = [8, 6, 64], strides = [1, 1, 1]} : vector<8x8x64xf32> to vector<8x6x64xf32>
    %78 = vector.extract_strided_slice %75 {offsets = [0, 2, 0], sizes = [8, 6, 64], strides = [1, 1, 1]} : vector<8x8x64xf32> to vector<8x6x64xf32>
    %79 = tpu.concatenate %76, %77, %78 in 2 : vector<8x6x64xf32>, vector<8x6x64xf32>, vector<8x6x64xf32> -> vector<8x6x192xf32>
    %80 = vector.shape_cast %79 : vector<8x6x192xf32> to vector<48x192xf32>
    %c0_60 = arith.constant 0 : index
    %c0_61 = arith.constant 0 : index
    %81 = vector.load %arg10[%c0_60, %c0_61] : memref<192x64xf32, #tpu.memory_space<vmem>>, vector<192x64xf32>
    %cst_62 = arith.constant dense<0.000000e+00> : vector<48x64xf32>
    %82 = tpu.matmul %80, %81, %cst_62 {dimension_numbers = #tpu.dot_dimension_numbers<[1], [0], [0], [1], [0, 0, 1, 1], [], []>} : vector<48x192xf32>, vector<192x64xf32>, vector<48x64xf32> -> vector<48x64xf32>
    %83 = vector.broadcast %74 : vector<1x64xf32> to vector<48x64xf32>
    %84 = arith.addf %82, %83 : vector<48x64xf32>
    %cst_63 = arith.constant 0.000000e+00 : f32
    %85 = vector.broadcast %cst_63 : f32 to vector<48x64xf32>
    %86 = arith.maximumf %84, %85 : vector<48x64xf32>
    %c0_64 = arith.constant 0 : index
    %c0_65 = arith.constant 0 : index
    %87 = vector.load %arg17[%c0_64, %c0_65] : memref<1024x64xf32, #tpu.memory_space<vmem>>, vector<48x64xf32>
    tpu.vector_store %arg17[%c0_64, %c0_65], %86 {strides = array<i32>} : memref<1024x64xf32, #tpu.memory_space<vmem>>, vector<48x64xf32>,
    %c0_66 = arith.constant 0 : index
    %c0_67 = arith.constant 0 : index
    %88 = tpu.strided_load %arg17[%c0_66, %c0_67] {strides = array<i32: 2, 1>} : memref<1024x64xf32, #tpu.memory_space<vmem>>, vector<24x64xf32>
    %c1_68 = arith.constant 1 : index
    %c0_69 = arith.constant 0 : index
    %89 = tpu.strided_load %arg17[%c1_68, %c0_69] {strides = array<i32: 2, 1>} : memref<1024x64xf32, #tpu.memory_space<vmem>>, vector<24x64xf32>
    %90 = arith.maximumf %88, %89 : vector<24x64xf32>
    %91 = vector.shape_cast %90 : vector<24x64xf32> to vector<8x3x64xf32>
    %92 = vector.extract_strided_slice %91 {offsets = [0, 0, 0], sizes = [8, 1, 64], strides = [1, 1, 1]} : vector<8x3x64xf32> to vector<8x1x64xf32>
    %93 = vector.shape_cast %92 : vector<8x1x64xf32> to vector<8x64xf32>
    %94 = vector.extract_strided_slice %91 {offsets = [0, 1, 0], sizes = [8, 1, 64], strides = [1, 1, 1]} : vector<8x3x64xf32> to vector<8x1x64xf32>
    %95 = vector.shape_cast %94 : vector<8x1x64xf32> to vector<8x64xf32>
    %96 = vector.extract_strided_slice %91 {offsets = [0, 2, 0], sizes = [8, 1, 64], strides = [1, 1, 1]} : vector<8x3x64xf32> to vector<8x1x64xf32>
    %97 = vector.shape_cast %96 : vector<8x1x64xf32> to vector<8x64xf32>
    %98 = tpu.concatenate %93, %95, %97 in 1 : vector<8x64xf32>, vector<8x64xf32>, vector<8x64xf32> -> vector<8x192xf32>
    %c0_70 = arith.constant 0 : index
    %c0_71 = arith.constant 0 : index
    %99 = vector.load %arg12[%c0_70, %c0_71] : memref<192x100xf32, #tpu.memory_space<vmem>>, vector<192x100xf32>
    %cst_72 = arith.constant dense<0.000000e+00> : vector<8x100xf32>
    %100 = tpu.matmul %98, %99, %cst_72 {dimension_numbers = #tpu.dot_dimension_numbers<[1], [0], [0], [1], [0, 0, 1, 1], [], []>} : vector<8x192xf32>, vector<192x100xf32>, vector<8x100xf32> -> vector<8x100xf32>
    %c0_73 = arith.constant 0 : index
    %c0_74 = arith.constant 0 : index
    %101 = vector.load %arg13[%c0_73, %c0_74] : memref<1x100xf32, #tpu.memory_space<vmem>>, vector<1x100xf32>
    %102 = vector.broadcast %101 : vector<1x100xf32> to vector<8x100xf32>
    %103 = arith.addf %100, %102 : vector<8x100xf32>
    %cst_75 = arith.constant 0.000000e+00 : f32
    %104 = vector.broadcast %cst_75 : f32 to vector<8x100xf32>
    %105 = arith.maximumf %103, %104 : vector<8x100xf32>
    %c0_76 = arith.constant 0 : index
    %c0_77 = arith.constant 0 : index
    %106 = vector.load %arg14[%c0_76, %c0_77] : memref<100x10xf32, #tpu.memory_space<vmem>>, vector<100x10xf32>
    %cst_78 = arith.constant dense<0.000000e+00> : vector<8x10xf32>
    %107 = tpu.matmul %105, %106, %cst_78 {dimension_numbers = #tpu.dot_dimension_numbers<[1], [0], [0], [1], [0, 0, 1, 1], [], []>} : vector<8x100xf32>, vector<100x10xf32>, vector<8x10xf32> -> vector<8x10xf32>
    %c0_79 = arith.constant 0 : index
    %c0_80 = arith.constant 0 : index
    %108 = vector.load %arg15[%c0_79, %c0_80] : memref<1x10xf32, #tpu.memory_space<vmem>>, vector<1x10xf32>
    %109 = vector.broadcast %108 : vector<1x10xf32> to vector<8x10xf32>
    %110 = arith.addf %107, %109 : vector<8x10xf32>
    %c0_81 = arith.constant 0 : index
    %c0_82 = arith.constant 0 : index
    %c0_83 = arith.constant 0 : index
    %111 = vector.load %arg16[%c0_81, %c0_82, %c0_83] : memref<1x8x10xf32, #tpu.memory_space<vmem>>, vector<1x8x10xf32>
    %112 = vector.shape_cast %111 : vector<1x8x10xf32> to vector<8x10xf32>
    %113 = vector.shape_cast %110 : vector<8x10xf32> to vector<1x8x10xf32>
    tpu.vector_store %arg16[%c0_81, %c0_82, %c0_83], %113 {strides = array<i32>} : memref<1x8x10xf32, #tpu.memory_space<vmem>>, vector<1x8x10xf32>,
    return
  }
  func.func @transform_0(%arg0: i32) -> (i32, i32, i32) {
    %c0_i32 = arith.constant 0 : i32
    %c0_i32_0 = arith.constant 0 : i32
    %c0_i32_1 = arith.constant 0 : i32
    return %arg0, %c0_i32, %c0_i32_0 : i32, i32, i32
  }
  func.func @transform_1(%arg0: i32) -> (i32, i32) {
    %c0_i32 = arith.constant 0 : i32
    %c0_i32_0 = arith.constant 0 : i32
    %c0_i32_1 = arith.constant 0 : i32
    return %c0_i32, %c0_i32_0 : i32, i32
  }
  func.func @transform_2(%arg0: i32) -> (i32, i32) {
    %c0_i32 = arith.constant 0 : i32
    %c0_i32_0 = arith.constant 0 : i32
    %c0_i32_1 = arith.constant 0 : i32
    return %c0_i32, %c0_i32_0 : i32, i32
  }
  func.func @transform_3(%arg0: i32) -> (i32, i32) {
    %c0_i32 = arith.constant 0 : i32
    %c0_i32_0 = arith.constant 0 : i32
    %c0_i32_1 = arith.constant 0 : i32
    return %c0_i32, %c0_i32_0 : i32, i32
  }
  func.func @transform_4(%arg0: i32) -> (i32, i32) {
    %c0_i32 = arith.constant 0 : i32
    %c0_i32_0 = arith.constant 0 : i32
    %c0_i32_1 = arith.constant 0 : i32
    return %c0_i32, %c0_i32_0 : i32, i32
  }
  func.func @transform_5(%arg0: i32) -> (i32, i32) {
    %c0_i32 = arith.constant 0 : i32
    %c0_i32_0 = arith.constant 0 : i32
    %c0_i32_1 = arith.constant 0 : i32
    return %c0_i32, %c0_i32_0 : i32, i32
  }
  func.func @transform_6(%arg0: i32) -> (i32, i32) {
    %c0_i32 = arith.constant 0 : i32
    %c0_i32_0 = arith.constant 0 : i32
    %c0_i32_1 = arith.constant 0 : i32
    return %c0_i32, %c0_i32_0 : i32, i32
  }
  func.func @transform_7(%arg0: i32) -> (i32, i32) {
    %c0_i32 = arith.constant 0 : i32
    %c0_i32_0 = arith.constant 0 : i32
    %c0_i32_1 = arith.constant 0 : i32
    return %c0_i32, %c0_i32_0 : i32, i32
  }
  func.func @transform_8(%arg0: i32) -> (i32, i32) {
    %c0_i32 = arith.constant 0 : i32
    %c0_i32_0 = arith.constant 0 : i32
    %c0_i32_1 = arith.constant 0 : i32
    return %c0_i32, %c0_i32_0 : i32, i32
  }
  func.func @transform_9(%arg0: i32) -> (i32, i32) {
    %c0_i32 = arith.constant 0 : i32
    %c0_i32_0 = arith.constant 0 : i32
    %c0_i32_1 = arith.constant 0 : i32
    return %c0_i32, %c0_i32_0 : i32, i32
  }
  func.func @transform_10(%arg0: i32) -> (i32, i32) {
    %c0_i32 = arith.constant 0 : i32
    %c0_i32_0 = arith.constant 0 : i32
    %c0_i32_1 = arith.constant 0 : i32
    return %c0_i32, %c0_i32_0 : i32, i32
  }
  func.func @transform_11(%arg0: i32) -> (i32, i32) {
    %c0_i32 = arith.constant 0 : i32
    %c0_i32_0 = arith.constant 0 : i32
    %c0_i32_1 = arith.constant 0 : i32
    return %c0_i32, %c0_i32_0 : i32, i32
  }
  func.func @transform_12(%arg0: i32) -> (i32, i32) {
    %c0_i32 = arith.constant 0 : i32
    %c0_i32_0 = arith.constant 0 : i32
    %c0_i32_1 = arith.constant 0 : i32
    return %c0_i32, %c0_i32_0 : i32, i32
  }
  func.func @transform_13(%arg0: i32) -> (i32, i32) {
    %c0_i32 = arith.constant 0 : i32
    %c0_i32_0 = arith.constant 0 : i32
    %c0_i32_1 = arith.constant 0 : i32
    return %c0_i32, %c0_i32_0 : i32, i32
  }
  func.func @transform_14(%arg0: i32) -> (i32, i32) {
    %c0_i32 = arith.constant 0 : i32
    %c0_i32_0 = arith.constant 0 : i32
    %c0_i32_1 = arith.constant 0 : i32
    return %c0_i32, %c0_i32_0 : i32, i32
  }
  func.func @transform_15(%arg0: i32) -> (i32, i32, i32) {
    %c0_i32 = arith.constant 0 : i32
    %c0_i32_0 = arith.constant 0 : i32
    %c0_i32_1 = arith.constant 0 : i32
    return %arg0, %c0_i32, %c0_i32_0 : i32, i32, i32
  }
}

</mosaic_0001>

<llo_original>
// kernel: wdcnn_forward.1
$region0: #{wdcnn_forward.1}
  #allocation0 [shape = 'u32[]', space=smem, size = 0x4, offset = 0x4, fixed_abs, tag = 'smem constant byte address 0x4 - core index']
  #allocation1 [shape = 'u32[144,128]{1,0:T(1,128)}', space=vmem, size = 0x12000, scoped, tag = 'internal scratch']
  #allocation2 [shape = 'f32[1024,64]{1,0:T(8,128)}', space=vmem, size = 0x80000, scoped, tag = 'scratch operand']
  %s0 = inlined_call_operand.vmem [shape: f32[8,131,16], index: 0, kind: input, shape index: {}]
  %s1 = inlined_call_operand.vmem [shape: f32[64,16], index: 1, kind: input, shape index: {}]
  %s2 = inlined_call_operand.vmem [shape: f32[1,16], index: 2, kind: input, shape index: {}]
  %s3 = inlined_call_operand.vmem [shape: f32[48,32], index: 3, kind: input, shape index: {}]
  %s4 = inlined_call_operand.vmem [shape: f32[1,32], index: 4, kind: input, shape index: {}]
  %s5 = inlined_call_operand.vmem [shape: f32[96,64], index: 5, kind: input, shape index: {}]
  %s6 = inlined_call_operand.vmem [shape: f32[1,64], index: 6, kind: input, shape index: {}]
  %s7 = inlined_call_operand.vmem [shape: f32[192,64], index: 7, kind: input, shape index: {}]
  %s8 = inlined_call_operand.vmem [shape: f32[1,64], index: 8, kind: input, shape index: {}]
  %s9 = inlined_call_operand.vmem [shape: f32[192,64], index: 9, kind: input, shape index: {}]
  %s10 = inlined_call_operand.vmem [shape: f32[1,64], index: 10, kind: input, shape index: {}]
  %s11 = inlined_call_operand.vmem [shape: f32[192,100], index: 11, kind: input, shape index: {}]
  %s12 = inlined_call_operand.vmem [shape: f32[1,100], index: 12, kind: input, shape index: {}]
  %s13 = inlined_call_operand.vmem [shape: f32[100,10], index: 13, kind: input, shape index: {}]
  %s14 = inlined_call_operand.vmem [shape: f32[1,10], index: 14, kind: input, shape index: {}]
  %s15 = inlined_call_operand.vmem [shape: f32[1,8,10], index: 15, kind: output, shape index: {}]
  %s16 = sld [smem:[#allocation0]]
  $region70: #{wdcnn_forward.1} parent=0
    _
  %s18 = ssub.s32 1, %s16
  %s19 = scalar_select 0, %s18, %s16
  // Predicated region
  $region2: #{wdcnn_forward.1} parent=0 // pred_check
    _
  $region3: #{wdcnn_forward.1} parent=0 // pred_check_branch
    %21 = sbr.rel (0) target = $region5
  $region4: #{wdcnn_forward.1} parent=0 // pred_region
    _
  $region5: #{wdcnn_forward.1} parent=0 // pred_fallthru
    _
  // Predicated region
  $region6: #{wdcnn_forward.1} parent=0 // pred_check
    _
  $region7: #{wdcnn_forward.1} parent=0 // pred_check_branch
    %23 = sbr.rel (0) target = $region9
  $region8: #{wdcnn_forward.1} parent=0 // pred_region
    _
  $region9: #{wdcnn_forward.1} parent=0 // pred_fallthru
    _
  // Predicated region
  $region10: #{wdcnn_forward.1} parent=0 // pred_check
    _
  $region11: #{wdcnn_forward.1} parent=0 // pred_check_branch
    %25 = sbr.rel (0) target = $region13
  $region12: #{wdcnn_forward.1} parent=0 // pred_region
    _
  $region13: #{wdcnn_forward.1} parent=0 // pred_fallthru
    _
  // Predicated region
  $region14: #{wdcnn_forward.1} parent=0 // pred_check
    _
  $region15: #{wdcnn_forward.1} parent=0 // pred_check_branch
    %27 = sbr.rel (0) target = $region17
  $region16: #{wdcnn_forward.1} parent=0 // pred_region
    _
  $region17: #{wdcnn_forward.1} parent=0 // pred_fallthru
    _
  // Predicated region
  $region18: #{wdcnn_forward.1} parent=0 // pred_check
    _
  $region19: #{wdcnn_forward.1} parent=0 // pred_check_branch
    %29 = sbr.rel (0) target = $region21
  $region20: #{wdcnn_forward.1} parent=0 // pred_region
    _
  $region21: #{wdcnn_forward.1} parent=0 // pred_fallthru
    _
  // Predicated region
  $region22: #{wdcnn_forward.1} parent=0 // pred_check
    _
  $region23: #{wdcnn_forward.1} parent=0 // pred_check_branch
    %31 = sbr.rel (0) target = $region25
  $region24: #{wdcnn_forward.1} parent=0 // pred_region
    _
  $region25: #{wdcnn_forward.1} parent=0 // pred_fallthru
    _
  // Predicated region
  $region26: #{wdcnn_forward.1} parent=0 // pred_check
    _
  $region27: #{wdcnn_forward.1} parent=0 // pred_check_branch
    %33 = sbr.rel (0) target = $region29
  $region28: #{wdcnn_forward.1} parent=0 // pred_region
    _
  $region29: #{wdcnn_forward.1} parent=0 // pred_fallthru
    _
  // Predicated region
  $region30: #{wdcnn_forward.1} parent=0 // pred_check
    _
  $region31: #{wdcnn_forward.1} parent=0 // pred_check_branch
    %35 = sbr.rel (0) target = $region33
  $region32: #{wdcnn_forward.1} parent=0 // pred_region
    _
  $region33: #{wdcnn_forward.1} parent=0 // pred_fallthru
    _
  // Predicated region
  $region34: #{wdcnn_forward.1} parent=0 // pred_check
    _
  $region35: #{wdcnn_forward.1} parent=0 // pred_check_branch
    %37 = sbr.rel (0) target = $region37
  $region36: #{wdcnn_forward.1} parent=0 // pred_region
    _
  $region37: #{wdcnn_forward.1} parent=0 // pred_fallthru
    _
  // Predicated region
  $region38: #{wdcnn_forward.1} parent=0 // pred_check
    _
  $region39: #{wdcnn_forward.1} parent=0 // pred_check_branch
    %39 = sbr.rel (0) target = $region41
  $region40: #{wdcnn_forward.1} parent=0 // pred_region
    _
  $region41: #{wdcnn_forward.1} parent=0 // pred_fallthru
    _
  // Predicated region
  $region42: #{wdcnn_forward.1} parent=0 // pred_check
    _
  $region43: #{wdcnn_forward.1} parent=0 // pred_check_branch
    %41 = sbr.rel (0) target = $region45
  $region44: #{wdcnn_forward.1} parent=0 // pred_region
    _
  $region45: #{wdcnn_forward.1} parent=0 // pred_fallthru
    _
  // Predicated region
  $region46: #{wdcnn_forward.1} parent=0 // pred_check
    _
  $region47: #{wdcnn_forward.1} parent=0 // pred_check_branch
    %43 = sbr.rel (0) target = $region49
  $region48: #{wdcnn_forward.1} parent=0 // pred_region
    _
  $region49: #{wdcnn_forward.1} parent=0 // pred_fallthru
    _
  // Predicated region
  $region50: #{wdcnn_forward.1} parent=0 // pred_check
    _
  $region51: #{wdcnn_forward.1} parent=0 // pred_check_branch
    %45 = sbr.rel (0) target = $region53
  $region52: #{wdcnn_forward.1} parent=0 // pred_region
    _
  $region53: #{wdcnn_forward.1} parent=0 // pred_fallthru
    _
  // Predicated region
  $region54: #{wdcnn_forward.1} parent=0 // pred_check
    _
  $region55: #{wdcnn_forward.1} parent=0 // pred_check_branch
    %47 = sbr.rel (0) target = $region57
  $region56: #{wdcnn_forward.1} parent=0 // pred_region
    _
  $region57: #{wdcnn_forward.1} parent=0 // pred_fallthru
    _
  // Predicated region
  $region58: #{wdcnn_forward.1} parent=0 // pred_check
    _
  $region59: #{wdcnn_forward.1} parent=0 // pred_check_branch
    %49 = sbr.rel (0) target = $region61
  $region60: #{wdcnn_forward.1} parent=0 // pred_region
    _
  $region61: #{wdcnn_forward.1} parent=0 // pred_fallthru
    _
  %v50 = vld [vmem:[%s0] sm:$0xff]
  %v51 = vld [vmem:[%s0 + $0x8] sm:$0xff]
  %v52 = vld [vmem:[%s0 + $0x10] sm:$0xff]
  %v53 = vld [vmem:[%s0 + $0x18] sm:$0xff]
  %v54 = vld [vmem:[%s0 + $0x20] sm:$0xff]
  %v55 = vld [vmem:[%s0 + $0x28] sm:$0xff]
  %v56 = vld [vmem:[%s0 + $0x30] sm:$0xff]
  %v57 = vld [vmem:[%s0 + $0x38] sm:$0xff]
  %v58 = vld [vmem:[%s0 + $0x40] sm:$0xff]
  %v59 = vld [vmem:[%s0 + $0x48] sm:$0xff]
  %v60 = vld [vmem:[%s0 + $0x50] sm:$0xff]
  %v61 = vld [vmem:[%s0 + $0x58] sm:$0xff]
  %v62 = vld [vmem:[%s0 + $0x60] sm:$0xff]
  %v63 = vld [vmem:[%s0 + $0x68] sm:$0xff]
  %v64 = vld [vmem:[%s0 + $0x70] sm:$0xff]
  %v65 = vld [vmem:[%s0 + $0x78] sm:$0xff]
  %v66 = vld [vmem:[%s0 + $0x88] sm:$0xff]
  %v67 = vld [vmem:[%s0 + $0x90] sm:$0xff]
  %v68 = vld [vmem:[%s0 + $0x98] sm:$0xff]
  %v69 = vld [vmem:[%s0 + $0xa0] sm:$0xff]
  %v70 = vld [vmem:[%s0 + $0xa8] sm:$0xff]
  %v71 = vld [vmem:[%s0 + $0xb0] sm:$0xff]
  %v72 = vld [vmem:[%s0 + $0xb8] sm:$0xff]
  %v73 = vld [vmem:[%s0 + $0xc0] sm:$0xff]
  %v74 = vld [vmem:[%s0 + $0xc8] sm:$0xff]
  %v75 = vld [vmem:[%s0 + $0xd0] sm:$0xff]
  %v76 = vld [vmem:[%s0 + $0xd8] sm:$0xff]
  %v77 = vld [vmem:[%s0 + $0xe0] sm:$0xff]
  %v78 = vld [vmem:[%s0 + $0xe8] sm:$0xff]
  %v79 = vld [vmem:[%s0 + $0xf0] sm:$0xff]
  %v80 = vld [vmem:[%s0 + $0xf8] sm:$0xff]
  %v81 = vld [vmem:[%s0 + $0x100] sm:$0xff]
  %v82 = vld [vmem:[%s0 + $0x110] sm:$0xff]
  %v83 = vld [vmem:[%s0 + $0x118] sm:$0xff]
  %v84 = vld [vmem:[%s0 + $0x120] sm:$0xff]
  %v85 = vld [vmem:[%s0 + $0x128] sm:$0xff]
  %v86 = vld [vmem:[%s0 + $0x130] sm:$0xff]
  %v87 = vld [vmem:[%s0 + $0x138] sm:$0xff]
  %v88 = vld [vmem:[%s0 + $0x140] sm:$0xff]
  %v89 = vld [vmem:[%s0 + $0x148] sm:$0xff]
  %v90 = vld [vmem:[%s0 + $0x150] sm:$0xff]
  %v91 = vld [vmem:[%s0 + $0x158] sm:$0xff]
  %v92 = vld [vmem:[%s0 + $0x160] sm:$0xff]
  %v93 = vld [vmem:[%s0 + $0x168] sm:$0xff]
  %v94 = vld [vmem:[%s0 + $0x170] sm:$0xff]
  %v95 = vld [vmem:[%s0 + $0x178] sm:$0xff]
  %v96 = vld [vmem:[%s0 + $0x180] sm:$0xff]
  %v97 = vld [vmem:[%s0 + $0x188] sm:$0xff]
  %v98 = vld [vmem:[%s0 + $0x198] sm:$0xff]
  %v99 = vld [vmem:[%s0 + $0x1a0] sm:$0xff]
  %v100 = vld [vmem:[%s0 + $0x1a8] sm:$0xff]
  %v101 = vld [vmem:[%s0 + $0x1b0] sm:$0xff]
  %v102 = vld [vmem:[%s0 + $0x1b8] sm:$0xff]
  %v103 = vld [vmem:[%s0 + $0x1c0] sm:$0xff]
  %v104 = vld [vmem:[%s0 + $0x1c8] sm:$0xff]
  %v105 = vld [vmem:[%s0 + $0x1d0] sm:$0xff]
  %v106 = vld [vmem:[%s0 + $0x1d8] sm:$0xff]
  %v107 = vld [vmem:[%s0 + $0x1e0] sm:$0xff]
  %v108 = vld [vmem:[%s0 + $0x1e8] sm:$0xff]
  %v109 = vld [vmem:[%s0 + $0x1f0] sm:$0xff]
  %v110 = vld [vmem:[%s0 + $0x1f8] sm:$0xff]
  %v111 = vld [vmem:[%s0 + $0x200] sm:$0xff]
  %v112 = vld [vmem:[%s0 + $0x208] sm:$0xff]
  %v113 = vld [vmem:[%s0 + $0x210] sm:$0xff]
  %v114 = vld [vmem:[%s0 + $0x220] sm:$0xff]
  %v115 = vld [vmem:[%s0 + $0x228] sm:$0xff]
  %v116 = vld [vmem:[%s0 + $0x230] sm:$0xff]
  %v117 = vld [vmem:[%s0 + $0x238] sm:$0xff]
  %v118 = vld [vmem:[%s0 + $0x240] sm:$0xff]
  %v119 = vld [vmem:[%s0 + $0x248] sm:$0xff]
  %v120 = vld [vmem:[%s0 + $0x250] sm:$0xff]
  %v121 = vld [vmem:[%s0 + $0x258] sm:$0xff]
  %v122 = vld [vmem:[%s0 + $0x260] sm:$0xff]
  %v123 = vld [vmem:[%s0 + $0x268] sm:$0xff]
  %v124 = vld [vmem:[%s0 + $0x270] sm:$0xff]
  %v125 = vld [vmem:[%s0 + $0x278] sm:$0xff]
  %v126 = vld [vmem:[%s0 + $0x280] sm:$0xff]
  %v127 = vld [vmem:[%s0 + $0x288] sm:$0xff]
  %v128 = vld [vmem:[%s0 + $0x290] sm:$0xff]
  %v129 = vld [vmem:[%s0 + $0x298] sm:$0xff]
  %v130 = vld [vmem:[%s0 + $0x2a8] sm:$0xff]
  %v131 = vld [vmem:[%s0 + $0x2b0] sm:$0xff]
  %v132 = vld [vmem:[%s0 + $0x2b8] sm:$0xff]
  %v133 = vld [vmem:[%s0 + $0x2c0] sm:$0xff]
  %v134 = vld [vmem:[%s0 + $0x2c8] sm:$0xff]
  %v135 = vld [vmem:[%s0 + $0x2d0] sm:$0xff]
  %v136 = vld [vmem:[%s0 + $0x2d8] sm:$0xff]
  %v137 = vld [vmem:[%s0 + $0x2e0] sm:$0xff]
  %v138 = vld [vmem:[%s0 + $0x2e8] sm:$0xff]
  %v139 = vld [vmem:[%s0 + $0x2f0] sm:$0xff]
  %v140 = vld [vmem:[%s0 + $0x2f8] sm:$0xff]
  %v141 = vld [vmem:[%s0 + $0x300] sm:$0xff]
  %v142 = vld [vmem:[%s0 + $0x308] sm:$0xff]
  %v143 = vld [vmem:[%s0 + $0x310] sm:$0xff]
  %v144 = vld [vmem:[%s0 + $0x318] sm:$0xff]
  %v145 = vld [vmem:[%s0 + $0x320] sm:$0xff]
  %v146 = vld [vmem:[%s0 + $0x330] sm:$0xff]
  %v147 = vld [vmem:[%s0 + $0x338] sm:$0xff]
  %v148 = vld [vmem:[%s0 + $0x340] sm:$0xff]
  %v149 = vld [vmem:[%s0 + $0x348] sm:$0xff]
  %v150 = vld [vmem:[%s0 + $0x350] sm:$0xff]
  %v151 = vld [vmem:[%s0 + $0x358] sm:$0xff]
  %v152 = vld [vmem:[%s0 + $0x360] sm:$0xff]
  %v153 = vld [vmem:[%s0 + $0x368] sm:$0xff]
  %v154 = vld [vmem:[%s0 + $0x370] sm:$0xff]
  %v155 = vld [vmem:[%s0 + $0x378] sm:$0xff]
  %v156 = vld [vmem:[%s0 + $0x380] sm:$0xff]
  %v157 = vld [vmem:[%s0 + $0x388] sm:$0xff]
  %v158 = vld [vmem:[%s0 + $0x390] sm:$0xff]
  %v159 = vld [vmem:[%s0 + $0x398] sm:$0xff]
  %v160 = vld [vmem:[%s0 + $0x3a0] sm:$0xff]
  %v161 = vld [vmem:[%s0 + $0x3a8] sm:$0xff]
  %v162 = vld [vmem:[%s0 + $0x3b8] sm:$0xff]
  %v163 = vld [vmem:[%s0 + $0x3c0] sm:$0xff]
  %v164 = vld [vmem:[%s0 + $0x3c8] sm:$0xff]
  %v165 = vld [vmem:[%s0 + $0x3d0] sm:$0xff]
  %v166 = vld [vmem:[%s0 + $0x3d8] sm:$0xff]
  %v167 = vld [vmem:[%s0 + $0x3e0] sm:$0xff]
  %v168 = vld [vmem:[%s0 + $0x3e8] sm:$0xff]
  %v169 = vld [vmem:[%s0 + $0x3f0] sm:$0xff]
  %v170 = vld [vmem:[%s0 + $0x3f8] sm:$0xff]
  %v171 = vld [vmem:[%s0 + $0x400] sm:$0xff]
  %v172 = vld [vmem:[%s0 + $0x408] sm:$0xff]
  %v173 = vld [vmem:[%s0 + $0x410] sm:$0xff]
  %v174 = vld [vmem:[%s0 + $0x418] sm:$0xff]
  %v175 = vld [vmem:[%s0 + $0x420] sm:$0xff]
  %v176 = vld [vmem:[%s0 + $0x428] sm:$0xff]
  %v177 = vld [vmem:[%s0 + $0x430] sm:$0xff]
  %v178 = vld [vmem:[%s0 + $0x1] sm:$0xff]
  %v179 = vld [vmem:[%s0 + $0x9] sm:$0xff]
  %v180 = vld [vmem:[%s0 + $0x11] sm:$0xff]
  %v181 = vld [vmem:[%s0 + $0x19] sm:$0xff]
  %v182 = vld [vmem:[%s0 + $0x21] sm:$0xff]
  %v183 = vld [vmem:[%s0 + $0x29] sm:$0xff]
  %v184 = vld [vmem:[%s0 + $0x31] sm:$0xff]
  %v185 = vld [vmem:[%s0 + $0x39] sm:$0xff]
  %v186 = vld [vmem:[%s0 + $0x41] sm:$0xff]
  %v187 = vld [vmem:[%s0 + $0x49] sm:$0xff]
  %v188 = vld [vmem:[%s0 + $0x51] sm:$0xff]
  %v189 = vld [vmem:[%s0 + $0x59] sm:$0xff]
  %v190 = vld [vmem:[%s0 + $0x61] sm:$0xff]
  %v191 = vld [vmem:[%s0 + $0x69] sm:$0xff]
  %v192 = vld [vmem:[%s0 + $0x71] sm:$0xff]
  %v193 = vld [vmem:[%s0 + $0x79] sm:$0xff]
  %v194 = vld [vmem:[%s0 + $0x89] sm:$0xff]
  %v195 = vld [vmem:[%s0 + $0x91] sm:$0xff]
  %v196 = vld [vmem:[%s0 + $0x99] sm:$0xff]
  %v197 = vld [vmem:[%s0 + $0xa1] sm:$0xff]
  %v198 = vld [vmem:[%s0 + $0xa9] sm:$0xff]
  %v199 = vld [vmem:[%s0 + $0xb1] sm:$0xff]
  %v200 = vld [vmem:[%s0 + $0xb9] sm:$0xff]
  %v201 = vld [vmem:[%s0 + $0xc1] sm:$0xff]
  %v202 = vld [vmem:[%s0 + $0xc9] sm:$0xff]
  %v203 = vld [vmem:[%s0 + $0xd1] sm:$0xff]
  %v204 = vld [vmem:[%s0 + $0xd9] sm:$0xff]
  %v205 = vld [vmem:[%s0 + $0xe1] sm:$0xff]
  %v206 = vld [vmem:[%s0 + $0xe9] sm:$0xff]
  %v207 = vld [vmem:[%s0 + $0xf1] sm:$0xff]
  %v208 = vld [vmem:[%s0 + $0xf9] sm:$0xff]
  %v209 = vld [vmem:[%s0 + $0x101] sm:$0xff]
  %v210 = vld [vmem:[%s0 + $0x111] sm:$0xff]
  %v211 = vld [vmem:[%s0 + $0x119] sm:$0xff]
  %v212 = vld [vmem:[%s0 + $0x121] sm:$0xff]
  %v213 = vld [vmem:[%s0 + $0x129] sm:$0xff]
  %v214 = vld [vmem:[%s0 + $0x131] sm:$0xff]
  %v215 = vld [vmem:[%s0 + $0x139] sm:$0xff]
  %v216 = vld [vmem:[%s0 + $0x141] sm:$0xff]
  %v217 = vld [vmem:[%s0 + $0x149] sm:$0xff]
  %v218 = vld [vmem:[%s0 + $0x151] sm:$0xff]
  %v219 = vld [vmem:[%s0 + $0x159] sm:$0xff]
  %v220 = vld [vmem:[%s0 + $0x161] sm:$0xff]
  %v221 = vld [vmem:[%s0 + $0x169] sm:$0xff]
  %v222 = vld [vmem:[%s0 + $0x171] sm:$0xff]
  %v223 = vld [vmem:[%s0 + $0x179] sm:$0xff]
  %v224 = vld [vmem:[%s0 + $0x181] sm:$0xff]
  %v225 = vld [vmem:[%s0 + $0x189] sm:$0xff]
  %v226 = vld [vmem:[%s0 + $0x199] sm:$0xff]
  %v227 = vld [vmem:[%s0 + $0x1a1] sm:$0xff]
  %v228 = vld [vmem:[%s0 + $0x1a9] sm:$0xff]
  %v229 = vld [vmem:[%s0 + $0x1b1] sm:$0xff]
  %v230 = vld [vmem:[%s0 + $0x1b9] sm:$0xff]
  %v231 = vld [vmem:[%s0 + $0x1c1] sm:$0xff]
  %v232 = vld [vmem:[%s0 + $0x1c9] sm:$0xff]
  %v233 = vld [vmem:[%s0 + $0x1d1] sm:$0xff]
  %v234 = vld [vmem:[%s0 + $0x1d9] sm:$0xff]
  %v235 = vld [vmem:[%s0 + $0x1e1] sm:$0xff]
  %v236 = vld [vmem:[%s0 + $0x1e9] sm:$0xff]
  %v237 = vld [vmem:[%s0 + $0x1f1] sm:$0xff]
  %v238 = vld [vmem:[%s0 + $0x1f9] sm:$0xff]
  %v239 = vld [vmem:[%s0 + $0x201] sm:$0xff]
  %v240 = vld [vmem:[%s0 + $0x209] sm:$0xff]
  %v241 = vld [vmem:[%s0 + $0x211] sm:$0xff]
  %v242 = vld [vmem:[%s0 + $0x221] sm:$0xff]
  %v243 = vld [vmem:[%s0 + $0x229] sm:$0xff]
  %v244 = vld [vmem:[%s0 + $0x231] sm:$0xff]
  %v245 = vld [vmem:[%s0 + $0x239] sm:$0xff]
  %v246 = vld [vmem:[%s0 + $0x241] sm:$0xff]
  %v247 = vld [vmem:[%s0 + $0x249] sm:$0xff]
  %v248 = vld [vmem:[%s0 + $0x251] sm:$0xff]
  %v249 = vld [vmem:[%s0 + $0x259] sm:$0xff]
  %v250 = vld [vmem:[%s0 + $0x261] sm:$0xff]
  %v251 = vld [vmem:[%s0 + $0x269] sm:$0xff]
  %v252 = vld [vmem:[%s0 + $0x271] sm:$0xff]
  %v253 = vld [vmem:[%s0 + $0x279] sm:$0xff]
  %v254 = vld [vmem:[%s0 + $0x281] sm:$0xff]
  %v255 = vld [vmem:[%s0 + $0x289] sm:$0xff]
  %v256 = vld [vmem:[%s0 + $0x291] sm:$0xff]
  %v257 = vld [vmem:[%s0 + $0x299] sm:$0xff]
  %v258 = vld [vmem:[%s0 + $0x2a9] sm:$0xff]
  %v259 = vld [vmem:[%s0 + $0x2b1] sm:$0xff]
  %v260 = vld [vmem:[%s0 + $0x2b9] sm:$0xff]
  %v261 = vld [vmem:[%s0 + $0x2c1] sm:$0xff]
  %v262 = vld [vmem:[%s0 + $0x2c9] sm:$0xff]
  %v263 = vld [vmem:[%s0 + $0x2d1] sm:$0xff]
  %v264 = vld [vmem:[%s0 + $0x2d9] sm:$0xff]
  %v265 = vld [vmem:[%s0 + $0x2e1] sm:$0xff]
  %v266 = vld [vmem:[%s0 + $0x2e9] sm:$0xff]
  %v267 = vld [vmem:[%s0 + $0x2f1] sm:$0xff]
  %v268 = vld [vmem:[%s0 + $0x2f9] sm:$0xff]
  %v269 = vld [vmem:[%s0 + $0x301] sm:$0xff]
  %v270 = vld [vmem:[%s0 + $0x309] sm:$0xff]
  %v271 = vld [vmem:[%s0 + $0x311] sm:$0xff]
  %v272 = vld [vmem:[%s0 + $0x319] sm:$0xff]
  %v273 = vld [vmem:[%s0 + $0x321] sm:$0xff]
  %v274 = vld [vmem:[%s0 + $0x331] sm:$0xff]
  %v275 = vld [vmem:[%s0 + $0x339] sm:$0xff]
  %v276 = vld [vmem:[%s0 + $0x341] sm:$0xff]
  %v277 = vld [vmem:[%s0 + $0x349] sm:$0xff]
  %v278 = vld [vmem:[%s0 + $0x351] sm:$0xff]
  %v279 = vld [vmem:[%s0 + $0x359] sm:$0xff]
  %v280 = vld [vmem:[%s0 + $0x361] sm:$0xff]
  %v281 = vld [vmem:[%s0 + $0x369] sm:$0xff]
  %v282 = vld [vmem:[%s0 + $0x371] sm:$0xff]
  %v283 = vld [vmem:[%s0 + $0x379] sm:$0xff]
  %v284 = vld [vmem:[%s0 + $0x381] sm:$0xff]
  %v285 = vld [vmem:[%s0 + $0x389] sm:$0xff]
  %v286 = vld [vmem:[%s0 + $0x391] sm:$0xff]
  %v287 = vld [vmem:[%s0 + $0x399] sm:$0xff]
  %v288 = vld [vmem:[%s0 + $0x3a1] sm:$0xff]
  %v289 = vld [vmem:[%s0 + $0x3a9] sm:$0xff]
  %v290 = vld [vmem:[%s0 + $0x3b9] sm:$0xff]
  %v291 = vld [vmem:[%s0 + $0x3c1] sm:$0xff]
  %v292 = vld [vmem:[%s0 + $0x3c9] sm:$0xff]
  %v293 = vld [vmem:[%s0 + $0x3d1] sm:$0xff]
  %v294 = vld [vmem:[%s0 + $0x3d9] sm:$0xff]
  %v295 = vld [vmem:[%s0 + $0x3e1] sm:$0xff]
  %v296 = vld [vmem:[%s0 + $0x3e9] sm:$0xff]
  %v297 = vld [vmem:[%s0 + $0x3f1] sm:$0xff]
  %v298 = vld [vmem:[%s0 + $0x3f9] sm:$0xff]
  %v299 = vld [vmem:[%s0 + $0x401] sm:$0xff]
  %v300 = vld [vmem:[%s0 + $0x409] sm:$0xff]
  %v301 = vld [vmem:[%s0 + $0x411] sm:$0xff]
  %v302 = vld [vmem:[%s0 + $0x419] sm:$0xff]
  %v303 = vld [vmem:[%s0 + $0x421] sm:$0xff]
  %v304 = vld [vmem:[%s0 + $0x429] sm:$0xff]
  %v305 = vld [vmem:[%s0 + $0x431] sm:$0xff]
  %v306 = vld [vmem:[%s0 + $0x2] sm:$0xff]
  %v307 = vld [vmem:[%s0 + $0xa] sm:$0xff]
  %v308 = vld [vmem:[%s0 + $0x12] sm:$0xff]
  %v309 = vld [vmem:[%s0 + $0x1a] sm:$0xff]
  %v310 = vld [vmem:[%s0 + $0x22] sm:$0xff]
  %v311 = vld [vmem:[%s0 + $0x2a] sm:$0xff]
  %v312 = vld [vmem:[%s0 + $0x32] sm:$0xff]
  %v313 = vld [vmem:[%s0 + $0x3a] sm:$0xff]
  %v314 = vld [vmem:[%s0 + $0x42] sm:$0xff]
  %v315 = vld [vmem:[%s0 + $0x4a] sm:$0xff]
  %v316 = vld [vmem:[%s0 + $0x52] sm:$0xff]
  %v317 = vld [vmem:[%s0 + $0x5a] sm:$0xff]
  %v318 = vld [vmem:[%s0 + $0x62] sm:$0xff]
  %v319 = vld [vmem:[%s0 + $0x6a] sm:$0xff]
  %v320 = vld [vmem:[%s0 + $0x72] sm:$0xff]
  %v321 = vld [vmem:[%s0 + $0x7a] sm:$0xff]
  %v322 = vld [vmem:[%s0 + $0x8a] sm:$0xff]
  %v323 = vld [vmem:[%s0 + $0x92] sm:$0xff]
  %v324 = vld [vmem:[%s0 + $0x9a] sm:$0xff]
  %v325 = vld [vmem:[%s0 + $0xa2] sm:$0xff]
  %v326 = vld [vmem:[%s0 + $0xaa] sm:$0xff]
  %v327 = vld [vmem:[%s0 + $0xb2] sm:$0xff]
  %v328 = vld [vmem:[%s0 + $0xba] sm:$0xff]
  %v329 = vld [vmem:[%s0 + $0xc2] sm:$0xff]
  %v330 = vld [vmem:[%s0 + $0xca] sm:$0xff]
  %v331 = vld [vmem:[%s0 + $0xd2] sm:$0xff]
  %v332 = vld [vmem:[%s0 + $0xda] sm:$0xff]
  %v333 = vld [vmem:[%s0 + $0xe2] sm:$0xff]
  %v334 = vld [vmem:[%s0 + $0xea] sm:$0xff]
  %v335 = vld [vmem:[%s0 + $0xf2] sm:$0xff]
  %v336 = vld [vmem:[%s0 + $0xfa] sm:$0xff]
  %v337 = vld [vmem:[%s0 + $0x102] sm:$0xff]
  %v338 = vld [vmem:[%s0 + $0x112] sm:$0xff]
  %v339 = vld [vmem:[%s0 + $0x11a] sm:$0xff]
  %v340 = vld [vmem:[%s0 + $0x122] sm:$0xff]
  %v341 = vld [vmem:[%s0 + $0x12a] sm:$0xff]
  %v342 = vld [vmem:[%s0 + $0x132] sm:$0xff]
  %v343 = vld [vmem:[%s0 + $0x13a] sm:$0xff]
  %v344 = vld [vmem:[%s0 + $0x142] sm:$0xff]
  %v345 = vld [vmem:[%s0 + $0x14a] sm:$0xff]
  %v346 = vld [vmem:[%s0 + $0x152] sm:$0xff]
  %v347 = vld [vmem:[%s0 + $0x15a] sm:$0xff]
  %v348 = vld [vmem:[%s0 + $0x162] sm:$0xff]
  %v349 = vld [vmem:[%s0 + $0x16a] sm:$0xff]
  %v350 = vld [vmem:[%s0 + $0x172] sm:$0xff]
  %v351 = vld [vmem:[%s0 + $0x17a] sm:$0xff]
  %v352 = vld [vmem:[%s0 + $0x182] sm:$0xff]
  %v353 = vld [vmem:[%s0 + $0x18a] sm:$0xff]
  %v354 = vld [vmem:[%s0 + $0x19a] sm:$0xff]
  %v355 = vld [vmem:[%s0 + $0x1a2] sm:$0xff]
  %v356 = vld [vmem:[%s0 + $0x1aa] sm:$0xff]
  %v357 = vld [vmem:[%s0 + $0x1b2] sm:$0xff]
  %v358 = vld [vmem:[%s0 + $0x1ba] sm:$0xff]
  %v359 = vld [vmem:[%s0 + $0x1c2] sm:$0xff]
  %v360 = vld [vmem:[%s0 + $0x1ca] sm:$0xff]
  %v361 = vld [vmem:[%s0 + $0x1d2] sm:$0xff]
  %v362 = vld [vmem:[%s0 + $0x1da] sm:$0xff]
  %v363 = vld [vmem:[%s0 + $0x1e2] sm:$0xff]
  %v364 = vld [vmem:[%s0 + $0x1ea] sm:$0xff]
  %v365 = vld [vmem:[%s0 + $0x1f2] sm:$0xff]
  %v366 = vld [vmem:[%s0 + $0x1fa] sm:$0xff]
  %v367 = vld [vmem:[%s0 + $0x202] sm:$0xff]
  %v368 = vld [vmem:[%s0 + $0x20a] sm:$0xff]
  %v369 = vld [vmem:[%s0 + $0x212] sm:$0xff]
  %v370 = vld [vmem:[%s0 + $0x222] sm:$0xff]
  %v371 = vld [vmem:[%s0 + $0x22a] sm:$0xff]
  %v372 = vld [vmem:[%s0 + $0x232] sm:$0xff]
  %v373 = vld [vmem:[%s0 + $0x23a] sm:$0xff]
  %v374 = vld [vmem:[%s0 + $0x242] sm:$0xff]
  %v375 = vld [vmem:[%s0 + $0x24a] sm:$0xff]
  %v376 = vld [vmem:[%s0 + $0x252] sm:$0xff]
  %v377 = vld [vmem:[%s0 + $0x25a] sm:$0xff]
  %v378 = vld [vmem:[%s0 + $0x262] sm:$0xff]
  %v379 = vld [vmem:[%s0 + $0x26a] sm:$0xff]
  %v380 = vld [vmem:[%s0 + $0x272] sm:$0xff]
  %v381 = vld [vmem:[%s0 + $0x27a] sm:$0xff]
  %v382 = vld [vmem:[%s0 + $0x282] sm:$0xff]
  %v383 = vld [vmem:[%s0 + $0x28a] sm:$0xff]
  %v384 = vld [vmem:[%s0 + $0x292] sm:$0xff]
  %v385 = vld [vmem:[%s0 + $0x29a] sm:$0xff]
  %v386 = vld [vmem:[%s0 + $0x2aa] sm:$0xff]
  %v387 = vld [vmem:[%s0 + $0x2b2] sm:$0xff]
  %v388 = vld [vmem:[%s0 + $0x2ba] sm:$0xff]
  %v389 = vld [vmem:[%s0 + $0x2c2] sm:$0xff]
  %v390 = vld [vmem:[%s0 + $0x2ca] sm:$0xff]
  %v391 = vld [vmem:[%s0 + $0x2d2] sm:$0xff]
  %v392 = vld [vmem:[%s0 + $0x2da] sm:$0xff]
  %v393 = vld [vmem:[%s0 + $0x2e2] sm:$0xff]
  %v394 = vld [vmem:[%s0 + $0x2ea] sm:$0xff]
  %v395 = vld [vmem:[%s0 + $0x2f2] sm:$0xff]
  %v396 = vld [vmem:[%s0 + $0x2fa] sm:$0xff]
  %v397 = vld [vmem:[%s0 + $0x302] sm:$0xff]
  %v398 = vld [vmem:[%s0 + $0x30a] sm:$0xff]
  %v399 = vld [vmem:[%s0 + $0x312] sm:$0xff]
  %v400 = vld [vmem:[%s0 + $0x31a] sm:$0xff]
  %v401 = vld [vmem:[%s0 + $0x322] sm:$0xff]
  %v402 = vld [vmem:[%s0 + $0x332] sm:$0xff]
  %v403 = vld [vmem:[%s0 + $0x33a] sm:$0xff]
  %v404 = vld [vmem:[%s0 + $0x342] sm:$0xff]
  %v405 = vld [vmem:[%s0 + $0x34a] sm:$0xff]
  %v406 = vld [vmem:[%s0 + $0x352] sm:$0xff]
  %v407 = vld [vmem:[%s0 + $0x35a] sm:$0xff]
  %v408 = vld [vmem:[%s0 + $0x362] sm:$0xff]
  %v409 = vld [vmem:[%s0 + $0x36a] sm:$0xff]
  %v410 = vld [vmem:[%s0 + $0x372] sm:$0xff]
  %v411 = vld [vmem:[%s0 + $0x37a] sm:$0xff]
  %v412 = vld [vmem:[%s0 + $0x382] sm:$0xff]
  %v413 = vld [vmem:[%s0 + $0x38a] sm:$0xff]
  %v414 = vld [vmem:[%s0 + $0x392] sm:$0xff]
  %v415 = vld [vmem:[%s0 + $0x39a] sm:$0xff]
  %v416 = vld [vmem:[%s0 + $0x3a2] sm:$0xff]
  %v417 = vld [vmem:[%s0 + $0x3aa] sm:$0xff]
  %v418 = vld [vmem:[%s0 + $0x3ba] sm:$0xff]
  %v419 = vld [vmem:[%s0 + $0x3c2] sm:$0xff]
  %v420 = vld [vmem:[%s0 + $0x3ca] sm:$0xff]
  %v421 = vld [vmem:[%s0 + $0x3d2] sm:$0xff]
  %v422 = vld [vmem:[%s0 + $0x3da] sm:$0xff]
  %v423 = vld [vmem:[%s0 + $0x3e2] sm:$0xff]
  %v424 = vld [vmem:[%s0 + $0x3ea] sm:$0xff]
  %v425 = vld [vmem:[%s0 + $0x3f2] sm:$0xff]
  %v426 = vld [vmem:[%s0 + $0x3fa] sm:$0xff]
  %v427 = vld [vmem:[%s0 + $0x402] sm:$0xff]
  %v428 = vld [vmem:[%s0 + $0x40a] sm:$0xff]
  %v429 = vld [vmem:[%s0 + $0x412] sm:$0xff]
  %v430 = vld [vmem:[%s0 + $0x41a] sm:$0xff]
  %v431 = vld [vmem:[%s0 + $0x422] sm:$0xff]
  %v432 = vld [vmem:[%s0 + $0x42a] sm:$0xff]
  %v433 = vld [vmem:[%s0 + $0x432] sm:$0xff]
  %v434 = vld [vmem:[%s0 + $0x3] sm:$0xff]
  %v435 = vld [vmem:[%s0 + $0xb] sm:$0xff]
  %v436 = vld [vmem:[%s0 + $0x13] sm:$0xff]
  %v437 = vld [vmem:[%s0 + $0x1b] sm:$0xff]
  %v438 = vld [vmem:[%s0 + $0x23] sm:$0xff]
  %v439 = vld [vmem:[%s0 + $0x2b] sm:$0xff]
  %v440 = vld [vmem:[%s0 + $0x33] sm:$0xff]
  %v441 = vld [vmem:[%s0 + $0x3b] sm:$0xff]
  %v442 = vld [vmem:[%s0 + $0x43] sm:$0xff]
  %v443 = vld [vmem:[%s0 + $0x4b] sm:$0xff]
  %v444 = vld [vmem:[%s0 + $0x53] sm:$0xff]
  %v445 = vld [vmem:[%s0 + $0x5b] sm:$0xff]
  %v446 = vld [vmem:[%s0 + $0x63] sm:$0xff]
  %v447 = vld [vmem:[%s0 + $0x6b] sm:$0xff]
  %v448 = vld [vmem:[%s0 + $0x73] sm:$0xff]
  %v449 = vld [vmem:[%s0 + $0x7b] sm:$0xff]
  %v450 = vld [vmem:[%s0 + $0x8b] sm:$0xff]
  %v451 = vld [vmem:[%s0 + $0x93] sm:$0xff]
  %v452 = vld [vmem:[%s0 + $0x9b] sm:$0xff]
  %v453 = vld [vmem:[%s0 + $0xa3] sm:$0xff]
  %v454 = vld [vmem:[%s0 + $0xab] sm:$0xff]
  %v455 = vld [vmem:[%s0 + $0xb3] sm:$0xff]
  %v456 = vld [vmem:[%s0 + $0xbb] sm:$0xff]
  %v457 = vld [vmem:[%s0 + $0xc3] sm:$0xff]
  %v458 = vld [vmem:[%s0 + $0xcb] sm:$0xff]
  %v459 = vld [vmem:[%s0 + $0xd3] sm:$0xff]
  %v460 = vld [vmem:[%s0 + $0xdb] sm:$0xff]
  %v461 = vld [vmem:[%s0 + $0xe3] sm:$0xff]
  %v462 = vld [vmem:[%s0 + $0xeb] sm:$0xff]
  %v463 = vld [vmem:[%s0 + $0xf3] sm:$0xff]
  %v464 = vld [vmem:[%s0 + $0xfb] sm:$0xff]
  %v465 = vld [vmem:[%s0 + $0x103] sm:$0xff]
  %v466 = vld [vmem:[%s0 + $0x113] sm:$0xff]
  %v467 = vld [vmem:[%s0 + $0x11b] sm:$0xff]
  %v468 = vld [vmem:[%s0 + $0x123] sm:$0xff]
  %v469 = vld [vmem:[%s0 + $0x12b] sm:$0xff]
  %v470 = vld [vmem:[%s0 + $0x133] sm:$0xff]
  %v471 = vld [vmem:[%s0 + $0x13b] sm:$0xff]
  %v472 = vld [vmem:[%s0 + $0x143] sm:$0xff]
  %v473 = vld [vmem:[%s0 + $0x14b] sm:$0xff]
  %v474 = vld [vmem:[%s0 + $0x153] sm:$0xff]
  %v475 = vld [vmem:[%s0 + $0x15b] sm:$0xff]
  %v476 = vld [vmem:[%s0 + $0x163] sm:$0xff]
  %v477 = vld [vmem:[%s0 + $0x16b] sm:$0xff]
  %v478 = vld [vmem:[%s0 + $0x173] sm:$0xff]
  %v479 = vld [vmem:[%s0 + $0x17b] sm:$0xff]
  %v480 = vld [vmem:[%s0 + $0x183] sm:$0xff]
  %v481 = vld [vmem:[%s0 + $0x18b] sm:$0xff]
  %v482 = vld [vmem:[%s0 + $0x19b] sm:$0xff]
  %v483 = vld [vmem:[%s0 + $0x1a3] sm:$0xff]
  %v484 = vld [vmem:[%s0 + $0x1ab] sm:$0xff]
  %v485 = vld [vmem:[%s0 + $0x1b3] sm:$0xff]
  %v486 = vld [vmem:[%s0 + $0x1bb] sm:$0xff]
  %v487 = vld [vmem:[%s0 + $0x1c3] sm:$0xff]
  %v488 = vld [vmem:[%s0 + $0x1cb] sm:$0xff]
  %v489 = vld [vmem:[%s0 + $0x1d3] sm:$0xff]
  %v490 = vld [vmem:[%s0 + $0x1db] sm:$0xff]
  %v491 = vld [vmem:[%s0 + $0x1e3] sm:$0xff]
  %v492 = vld [vmem:[%s0 + $0x1eb] sm:$0xff]
  %v493 = vld [vmem:[%s0 + $0x1f3] sm:$0xff]
  %v494 = vld [vmem:[%s0 + $0x1fb] sm:$0xff]
  %v495 = vld [vmem:[%s0 + $0x203] sm:$0xff]
  %v496 = vld [vmem:[%s0 + $0x20b] sm:$0xff]
  %v497 = vld [vmem:[%s0 + $0x213] sm:$0xff]
  %v498 = vld [vmem:[%s0 + $0x223] sm:$0xff]
  %v499 = vld [vmem:[%s0 + $0x22b] sm:$0xff]
  %v500 = vld [vmem:[%s0 + $0x233] sm:$0xff]
  %v501 = vld [vmem:[%s0 + $0x23b] sm:$0xff]
  %v502 = vld [vmem:[%s0 + $0x243] sm:$0xff]
  %v503 = vld [vmem:[%s0 + $0x24b] sm:$0xff]
  %v504 = vld [vmem:[%s0 + $0x253] sm:$0xff]
  %v505 = vld [vmem:[%s0 + $0x25b] sm:$0xff]
  %v506 = vld [vmem:[%s0 + $0x263] sm:$0xff]
  %v507 = vld [vmem:[%s0 + $0x26b] sm:$0xff]
  %v508 = vld [vmem:[%s0 + $0x273] sm:$0xff]
  %v509 = vld [vmem:[%s0 + $0x27b] sm:$0xff]
  %v510 = vld [vmem:[%s0 + $0x283] sm:$0xff]
  %v511 = vld [vmem:[%s0 + $0x28b] sm:$0xff]
  %v512 = vld [vmem:[%s0 + $0x293] sm:$0xff]
  %v513 = vld [vmem:[%s0 + $0x29b] sm:$0xff]
  %v514 = vld [vmem:[%s0 + $0x2ab] sm:$0xff]
  %v515 = vld [vmem:[%s0 + $0x2b3] sm:$0xff]
  %v516 = vld [vmem:[%s0 + $0x2bb] sm:$0xff]
  %v517 = vld [vmem:[%s0 + $0x2c3] sm:$0xff]
  %v518 = vld [vmem:[%s0 + $0x2cb] sm:$0xff]
  %v519 = vld [vmem:[%s0 + $0x2d3] sm:$0xff]
  %v520 = vld [vmem:[%s0 + $0x2db] sm:$0xff]
  %v521 = vld [vmem:[%s0 + $0x2e3] sm:$0xff]
  %v522 = vld [vmem:[%s0 + $0x2eb] sm:$0xff]
  %v523 = vld [vmem:[%s0 + $0x2f3] sm:$0xff]
  %v524 = vld [vmem:[%s0 + $0x2fb] sm:$0xff]
  %v525 = vld [vmem:[%s0 + $0x303] sm:$0xff]
  %v526 = vld [vmem:[%s0 + $0x30b] sm:$0xff]
  %v527 = vld [vmem:[%s0 + $0x313] sm:$0xff]
  %v528 = vld [vmem:[%s0 + $0x31b] sm:$0xff]
  %v529 = vld [vmem:[%s0 + $0x323] sm:$0xff]
  %v530 = vld [vmem:[%s0 + $0x333] sm:$0xff]
  %v531 = vld [vmem:[%s0 + $0x33b] sm:$0xff]
  %v532 = vld [vmem:[%s0 + $0x343] sm:$0xff]
  %v533 = vld [vmem:[%s0 + $0x34b] sm:$0xff]
  %v534 = vld [vmem:[%s0 + $0x353] sm:$0xff]
  %v535 = vld [vmem:[%s0 + $0x35b] sm:$0xff]
  %v536 = vld [vmem:[%s0 + $0x363] sm:$0xff]
  %v537 = vld [vmem:[%s0 + $0x36b] sm:$0xff]
  %v538 = vld [vmem:[%s0 + $0x373] sm:$0xff]
  %v539 = vld [vmem:[%s0 + $0x37b] sm:$0xff]
  %v540 = vld [vmem:[%s0 + $0x383] sm:$0xff]
  %v541 = vld [vmem:[%s0 + $0x38b] sm:$0xff]
  %v542 = vld [vmem:[%s0 + $0x393] sm:$0xff]
  %v543 = vld [vmem:[%s0 + $0x39b] sm:$0xff]
  %v544 = vld [vmem:[%s0 + $0x3a3] sm:$0xff]
  %v545 = vld [vmem:[%s0 + $0x3ab] sm:$0xff]
  %v546 = vld [vmem:[%s0 + $0x3bb] sm:$0xff]
  %v547 = vld [vmem:[%s0 + $0x3c3] sm:$0xff]
  %v548 = vld [vmem:[%s0 + $0x3cb] sm:$0xff]
  %v549 = vld [vmem:[%s0 + $0x3d3] sm:$0xff]
  %v550 = vld [vmem:[%s0 + $0x3db] sm:$0xff]
  %v551 = vld [vmem:[%s0 + $0x3e3] sm:$0xff]
  %v552 = vld [vmem:[%s0 + $0x3eb] sm:$0xff]
  %v553 = vld [vmem:[%s0 + $0x3f3] sm:$0xff]
  %v554 = vld [vmem:[%s0 + $0x3fb] sm:$0xff]
  %v555 = vld [vmem:[%s0 + $0x403] sm:$0xff]
  %v556 = vld [vmem:[%s0 + $0x40b] sm:$0xff]
  %v557 = vld [vmem:[%s0 + $0x413] sm:$0xff]
  %v558 = vld [vmem:[%s0 + $0x41b] sm:$0xff]
  %v559 = vld [vmem:[%s0 + $0x423] sm:$0xff]
  %v560 = vld [vmem:[%s0 + $0x42b] sm:$0xff]
  %v561 = vld [vmem:[%s0 + $0x433] sm:$0xff]
  %690 = vrot.lane.b32.xlu0 %v178, 16
  %v691 = vpop.permute.xlu0 %690
  %692 = vrot.lane.b32.xlu0 %v179, 16
  %v693 = vpop.permute.xlu0 %692
  %694 = vrot.lane.b32.xlu0 %v180, 16
  %v695 = vpop.permute.xlu0 %694
  %696 = vrot.lane.b32.xlu0 %v181, 16
  %v697 = vpop.permute.xlu0 %696
  %698 = vrot.lane.b32.xlu0 %v182, 16
  %v699 = vpop.permute.xlu0 %698
  %700 = vrot.lane.b32.xlu0 %v183, 16
  %v701 = vpop.permute.xlu0 %700
  %702 = vrot.lane.b32.xlu0 %v184, 16
  %v703 = vpop.permute.xlu0 %702
  %704 = vrot.lane.b32.xlu0 %v185, 16
  %v705 = vpop.permute.xlu0 %704
  %706 = vrot.lane.b32.xlu0 %v186, 16
  %v707 = vpop.permute.xlu0 %706
  %708 = vrot.lane.b32.xlu0 %v187, 16
  %v709 = vpop.permute.xlu0 %708
  %710 = vrot.lane.b32.xlu0 %v188, 16
  %v711 = vpop.permute.xlu0 %710
  %712 = vrot.lane.b32.xlu0 %v189, 16
  %v713 = vpop.permute.xlu0 %712
  %714 = vrot.lane.b32.xlu0 %v190, 16
  %v715 = vpop.permute.xlu0 %714
  %716 = vrot.lane.b32.xlu0 %v191, 16
  %v717 = vpop.permute.xlu0 %716
  %718 = vrot.lane.b32.xlu0 %v192, 16
  %v719 = vpop.permute.xlu0 %718
  %720 = vrot.lane.b32.xlu0 %v193, 16
  %v721 = vpop.permute.xlu0 %720
  %722 = vrot.lane.b32.xlu0 %v194, 16
  %v723 = vpop.permute.xlu0 %722
  %724 = vrot.lane.b32.xlu0 %v195, 16
  %v725 = vpop.permute.xlu0 %724
  %726 = vrot.lane.b32.xlu0 %v196, 16
  %v727 = vpop.permute.xlu0 %726
  %728 = vrot.lane.b32.xlu0 %v197, 16
  %v729 = vpop.permute.xlu0 %728
  %730 = vrot.lane.b32.xlu0 %v198, 16
  %v731 = vpop.permute.xlu0 %730
  %732 = vrot.lane.b32.xlu0 %v199, 16
  %v733 = vpop.permute.xlu0 %732
  %734 = vrot.lane.b32.xlu0 %v200, 16
  %v735 = vpop.permute.xlu0 %734
  %736 = vrot.lane.b32.xlu0 %v201, 16
  %v737 = vpop.permute.xlu0 %736
  %738 = vrot.lane.b32.xlu0 %v202, 16
  %v739 = vpop.permute.xlu0 %738
  %740 = vrot.lane.b32.xlu0 %v203, 16
  %v741 = vpop.permute.xlu0 %740
  %742 = vrot.lane.b32.xlu0 %v204, 16
  %v743 = vpop.permute.xlu0 %742
  %744 = vrot.lane.b32.xlu0 %v205, 16
  %v745 = vpop.permute.xlu0 %744
  %746 = vrot.lane.b32.xlu0 %v206, 16
  %v747 = vpop.permute.xlu0 %746
  %748 = vrot.lane.b32.xlu0 %v207, 16
  %v749 = vpop.permute.xlu0 %748
  %750 = vrot.lane.b32.xlu0 %v208, 16
  %v751 = vpop.permute.xlu0 %750
  %752 = vrot.lane.b32.xlu0 %v209, 16
  %v753 = vpop.permute.xlu0 %752
  %754 = vrot.lane.b32.xlu0 %v210, 16
  %v755 = vpop.permute.xlu0 %754
  %756 = vrot.lane.b32.xlu0 %v211, 16
  %v757 = vpop.permute.xlu0 %756
  %758 = vrot.lane.b32.xlu0 %v212, 16
  %v759 = vpop.permute.xlu0 %758
  %760 = vrot.lane.b32.xlu0 %v213, 16
  %v761 = vpop.permute.xlu0 %760
  %762 = vrot.lane.b32.xlu0 %v214, 16
  %v763 = vpop.permute.xlu0 %762
  %764 = vrot.lane.b32.xlu0 %v215, 16
  %v765 = vpop.permute.xlu0 %764
  %766 = vrot.lane.b32.xlu0 %v216, 16
  %v767 = vpop.permute.xlu0 %766
  %768 = vrot.lane.b32.xlu0 %v217, 16
  %v769 = vpop.permute.xlu0 %768
  %770 = vrot.lane.b32.xlu0 %v218, 16
  %v771 = vpop.permute.xlu0 %770
  %772 = vrot.lane.b32.xlu0 %v219, 16
  %v773 = vpop.permute.xlu0 %772
  %774 = vrot.lane.b32.xlu0 %v220, 16
  %v775 = vpop.permute.xlu0 %774
  %776 = vrot.lane.b32.xlu0 %v221, 16
  %v777 = vpop.permute.xlu0 %776
  %778 = vrot.lane.b32.xlu0 %v222, 16
  %v779 = vpop.permute.xlu0 %778
  %780 = vrot.lane.b32.xlu0 %v223, 16
  %v781 = vpop.permute.xlu0 %780
  %782 = vrot.lane.b32.xlu0 %v224, 16
  %v783 = vpop.permute.xlu0 %782
  %784 = vrot.lane.b32.xlu0 %v225, 16
  %v785 = vpop.permute.xlu0 %784
  %786 = vrot.lane.b32.xlu0 %v226, 16
  %v787 = vpop.permute.xlu0 %786
  %788 = vrot.lane.b32.xlu0 %v227, 16
  %v789 = vpop.permute.xlu0 %788
  %790 = vrot.lane.b32.xlu0 %v228, 16
  %v791 = vpop.permute.xlu0 %790
  %792 = vrot.lane.b32.xlu0 %v229, 16
  %v793 = vpop.permute.xlu0 %792
  %794 = vrot.lane.b32.xlu0 %v230, 16
  %v795 = vpop.permute.xlu0 %794
  %796 = vrot.lane.b32.xlu0 %v231, 16
  %v797 = vpop.permute.xlu0 %796
  %798 = vrot.lane.b32.xlu0 %v232, 16
  %v799 = vpop.permute.xlu0 %798
  %800 = vrot.lane.b32.xlu0 %v233, 16
  %v801 = vpop.permute.xlu0 %800
  %802 = vrot.lane.b32.xlu0 %v234, 16
  %v803 = vpop.permute.xlu0 %802
  %804 = vrot.lane.b32.xlu0 %v235, 16
  %v805 = vpop.permute.xlu0 %804
  %806 = vrot.lane.b32.xlu0 %v236, 16
  %v807 = vpop.permute.xlu0 %806
  %808 = vrot.lane.b32.xlu0 %v237, 16
  %v809 = vpop.permute.xlu0 %808
  %810 = vrot.lane.b32.xlu0 %v238, 16
  %v811 = vpop.permute.xlu0 %810
  %812 = vrot.lane.b32.xlu0 %v239, 16
  %v813 = vpop.permute.xlu0 %812
  %814 = vrot.lane.b32.xlu0 %v240, 16
  %v815 = vpop.permute.xlu0 %814
  %816 = vrot.lane.b32.xlu0 %v241, 16
  %v817 = vpop.permute.xlu0 %816
  %818 = vrot.lane.b32.xlu0 %v242, 16
  %v819 = vpop.permute.xlu0 %818
  %820 = vrot.lane.b32.xlu0 %v243, 16
  %v821 = vpop.permute.xlu0 %820
  %822 = vrot.lane.b32.xlu0 %v244, 16
  %v823 = vpop.permute.xlu0 %822
  %824 = vrot.lane.b32.xlu0 %v245, 16
  %v825 = vpop.permute.xlu0 %824
  %826 = vrot.lane.b32.xlu0 %v246, 16
  %v827 = vpop.permute.xlu0 %826
  %828 = vrot.lane.b32.xlu0 %v247, 16
  %v829 = vpop.permute.xlu0 %828
  %830 = vrot.lane.b32.xlu0 %v248, 16
  %v831 = vpop.permute.xlu0 %830
  %832 = vrot.lane.b32.xlu0 %v249, 16
  %v833 = vpop.permute.xlu0 %832
  %834 = vrot.lane.b32.xlu0 %v250, 16
  %v835 = vpop.permute.xlu0 %834
  %836 = vrot.lane.b32.xlu0 %v251, 16
  %v837 = vpop.permute.xlu0 %836
  %838 = vrot.lane.b32.xlu0 %v252, 16
  %v839 = vpop.permute.xlu0 %838
  %840 = vrot.lane.b32.xlu0 %v253, 16
  %v841 = vpop.permute.xlu0 %840
  %842 = vrot.lane.b32.xlu0 %v254, 16
  %v843 = vpop.permute.xlu0 %842
  %844 = vrot.lane.b32.xlu0 %v255, 16
  %v845 = vpop.permute.xlu0 %844
  %846 = vrot.lane.b32.xlu0 %v256, 16
  %v847 = vpop.permute.xlu0 %846
  %848 = vrot.lane.b32.xlu0 %v257, 16
  %v849 = vpop.permute.xlu0 %848
  %850 = vrot.lane.b32.xlu0 %v258, 16
  %v851 = vpop.permute.xlu0 %850
  %852 = vrot.lane.b32.xlu0 %v259, 16
  %v853 = vpop.permute.xlu0 %852
  %854 = vrot.lane.b32.xlu0 %v260, 16
  %v855 = vpop.permute.xlu0 %854
  %856 = vrot.lane.b32.xlu0 %v261, 16
  %v857 = vpop.permute.xlu0 %856
  %858 = vrot.lane.b32.xlu0 %v262, 16
  %v859 = vpop.permute.xlu0 %858
  %860 = vrot.lane.b32.xlu0 %v263, 16
  %v861 = vpop.permute.xlu0 %860
  %862 = vrot.lane.b32.xlu0 %v264, 16
  %v863 = vpop.permute.xlu0 %862
  %864 = vrot.lane.b32.xlu0 %v265, 16
  %v865 = vpop.permute.xlu0 %864
  %866 = vrot.lane.b32.xlu0 %v266, 16
  %v867 = vpop.permute.xlu0 %866
  %868 = vrot.lane.b32.xlu0 %v267, 16
  %v869 = vpop.permute.xlu0 %868
  %870 = vrot.lane.b32.xlu0 %v268, 16
  %v871 = vpop.permute.xlu0 %870
  %872 = vrot.lane.b32.xlu0 %v269, 16
  %v873 = vpop.permute.xlu0 %872
  %874 = vrot.lane.b32.xlu0 %v270, 16
  %v875 = vpop.permute.xlu0 %874
  %876 = vrot.lane.b32.xlu0 %v271, 16
  %v877 = vpop.permute.xlu0 %876
  %878 = vrot.lane.b32.xlu0 %v272, 16
  %v879 = vpop.permute.xlu0 %878
  %880 = vrot.lane.b32.xlu0 %v273, 16
  %v881 = vpop.permute.xlu0 %880
  %882 = vrot.lane.b32.xlu0 %v274, 16
  %v883 = vpop.permute.xlu0 %882
  %884 = vrot.lane.b32.xlu0 %v275, 16
  %v885 = vpop.permute.xlu0 %884
  %886 = vrot.lane.b32.xlu0 %v276, 16
  %v887 = vpop.permute.xlu0 %886
  %888 = vrot.lane.b32.xlu0 %v277, 16
  %v889 = vpop.permute.xlu0 %888
  %890 = vrot.lane.b32.xlu0 %v278, 16
  %v891 = vpop.permute.xlu0 %890
  %892 = vrot.lane.b32.xlu0 %v279, 16
  %v893 = vpop.permute.xlu0 %892
  %894 = vrot.lane.b32.xlu0 %v280, 16
  %v895 = vpop.permute.xlu0 %894
  %896 = vrot.lane.b32.xlu0 %v281, 16
  %v897 = vpop.permute.xlu0 %896
  %898 = vrot.lane.b32.xlu0 %v282, 16
  %v899 = vpop.permute.xlu0 %898
  %900 = vrot.lane.b32.xlu0 %v283, 16
  %v901 = vpop.permute.xlu0 %900
  %902 = vrot.lane.b32.xlu0 %v284, 16
  %v903 = vpop.permute.xlu0 %902
  %904 = vrot.lane.b32.xlu0 %v285, 16
  %v905 = vpop.permute.xlu0 %904
  %906 = vrot.lane.b32.xlu0 %v286, 16
  %v907 = vpop.permute.xlu0 %906
  %908 = vrot.lane.b32.xlu0 %v287, 16
  %v909 = vpop.permute.xlu0 %908
  %910 = vrot.lane.b32.xlu0 %v288, 16
  %v911 = vpop.permute.xlu0 %910
  %912 = vrot.lane.b32.xlu0 %v289, 16
  %v913 = vpop.permute.xlu0 %912
  %914 = vrot.lane.b32.xlu0 %v290, 16
  %v915 = vpop.permute.xlu0 %914
  %916 = vrot.lane.b32.xlu0 %v291, 16
  %v917 = vpop.permute.xlu0 %916
  %918 = vrot.lane.b32.xlu0 %v292, 16
  %v919 = vpop.permute.xlu0 %918
  %920 = vrot.lane.b32.xlu0 %v293, 16
  %v921 = vpop.permute.xlu0 %920
  %922 = vrot.lane.b32.xlu0 %v294, 16
  %v923 = vpop.permute.xlu0 %922
  %924 = vrot.lane.b32.xlu0 %v295, 16
  %v925 = vpop.permute.xlu0 %924
  %926 = vrot.lane.b32.xlu0 %v296, 16
  %v927 = vpop.permute.xlu0 %926
  %928 = vrot.lane.b32.xlu0 %v297, 16
  %v929 = vpop.permute.xlu0 %928
  %930 = vrot.lane.b32.xlu0 %v298, 16
  %v931 = vpop.permute.xlu0 %930
  %932 = vrot.lane.b32.xlu0 %v299, 16
  %v933 = vpop.permute.xlu0 %932
  %934 = vrot.lane.b32.xlu0 %v300, 16
  %v935 = vpop.permute.xlu0 %934
  %936 = vrot.lane.b32.xlu0 %v301, 16
  %v937 = vpop.permute.xlu0 %936
  %938 = vrot.lane.b32.xlu0 %v302, 16
  %v939 = vpop.permute.xlu0 %938
  %940 = vrot.lane.b32.xlu0 %v303, 16
  %v941 = vpop.permute.xlu0 %940
  %942 = vrot.lane.b32.xlu0 %v304, 16
  %v943 = vpop.permute.xlu0 %942
  %944 = vrot.lane.b32.xlu0 %v305, 16
  %v945 = vpop.permute.xlu0 %944
  %1202 = vrot.lane.b32.xlu0 %v306, 32
  %v1203 = vpop.permute.xlu0 %1202
  %1204 = vrot.lane.b32.xlu0 %v307, 32
  %v1205 = vpop.permute.xlu0 %1204
  %1206 = vrot.lane.b32.xlu0 %v308, 32
  %v1207 = vpop.permute.xlu0 %1206
  %1208 = vrot.lane.b32.xlu0 %v309, 32
  %v1209 = vpop.permute.xlu0 %1208
  %1210 = vrot.lane.b32.xlu0 %v310, 32
  %v1211 = vpop.permute.xlu0 %1210
  %1212 = vrot.lane.b32.xlu0 %v311, 32
  %v1213 = vpop.permute.xlu0 %1212
  %1214 = vrot.lane.b32.xlu0 %v312, 32
  %v1215 = vpop.permute.xlu0 %1214
  %1216 = vrot.lane.b32.xlu0 %v313, 32
  %v1217 = vpop.permute.xlu0 %1216
  %1218 = vrot.lane.b32.xlu0 %v314, 32
  %v1219 = vpop.permute.xlu0 %1218
  %1220 = vrot.lane.b32.xlu0 %v315, 32
  %v1221 = vpop.permute.xlu0 %1220
  %1222 = vrot.lane.b32.xlu0 %v316, 32
  %v1223 = vpop.permute.xlu0 %1222
  %1224 = vrot.lane.b32.xlu0 %v317, 32
  %v1225 = vpop.permute.xlu0 %1224
  %1226 = vrot.lane.b32.xlu0 %v318, 32
  %v1227 = vpop.permute.xlu0 %1226
  %1228 = vrot.lane.b32.xlu0 %v319, 32
  %v1229 = vpop.permute.xlu0 %1228
  %1230 = vrot.lane.b32.xlu0 %v320, 32
  %v1231 = vpop.permute.xlu0 %1230
  %1232 = vrot.lane.b32.xlu0 %v321, 32
  %v1233 = vpop.permute.xlu0 %1232
  %1234 = vrot.lane.b32.xlu0 %v322, 32
  %v1235 = vpop.permute.xlu0 %1234
  %1236 = vrot.lane.b32.xlu0 %v323, 32
  %v1237 = vpop.permute.xlu0 %1236
  %1238 = vrot.lane.b32.xlu0 %v324, 32
  %v1239 = vpop.permute.xlu0 %1238
  %1240 = vrot.lane.b32.xlu0 %v325, 32
  %v1241 = vpop.permute.xlu0 %1240
  %1242 = vrot.lane.b32.xlu0 %v326, 32
  %v1243 = vpop.permute.xlu0 %1242
  %1244 = vrot.lane.b32.xlu0 %v327, 32
  %v1245 = vpop.permute.xlu0 %1244
  %1246 = vrot.lane.b32.xlu0 %v328, 32
  %v1247 = vpop.permute.xlu0 %1246
  %1248 = vrot.lane.b32.xlu0 %v329, 32
  %v1249 = vpop.permute.xlu0 %1248
  %1250 = vrot.lane.b32.xlu0 %v330, 32
  %v1251 = vpop.permute.xlu0 %1250
  %1252 = vrot.lane.b32.xlu0 %v331, 32
  %v1253 = vpop.permute.xlu0 %1252
  %1254 = vrot.lane.b32.xlu0 %v332, 32
  %v1255 = vpop.permute.xlu0 %1254
  %1256 = vrot.lane.b32.xlu0 %v333, 32
  %v1257 = vpop.permute.xlu0 %1256
  %1258 = vrot.lane.b32.xlu0 %v334, 32
  %v1259 = vpop.permute.xlu0 %1258
  %1260 = vrot.lane.b32.xlu0 %v335, 32
  %v1261 = vpop.permute.xlu0 %1260
  %1262 = vrot.lane.b32.xlu0 %v336, 32
  %v1263 = vpop.permute.xlu0 %1262
  %1264 = vrot.lane.b32.xlu0 %v337, 32
  %v1265 = vpop.permute.xlu0 %1264
  %1266 = vrot.lane.b32.xlu0 %v338, 32
  %v1267 = vpop.permute.xlu0 %1266
  %1268 = vrot.lane.b32.xlu0 %v339, 32
  %v1269 = vpop.permute.xlu0 %1268
  %1270 = vrot.lane.b32.xlu0 %v340, 32
  %v1271 = vpop.permute.xlu0 %1270
  %1272 = vrot.lane.b32.xlu0 %v341, 32
  %v1273 = vpop.permute.xlu0 %1272
  %1274 = vrot.lane.b32.xlu0 %v342, 32
  %v1275 = vpop.permute.xlu0 %1274
  %1276 = vrot.lane.b32.xlu0 %v343, 32
  %v1277 = vpop.permute.xlu0 %1276
  %1278 = vrot.lane.b32.xlu0 %v344, 32
  %v1279 = vpop.permute.xlu0 %1278
  %1280 = vrot.lane.b32.xlu0 %v345, 32
  %v1281 = vpop.permute.xlu0 %1280
  %1282 = vrot.lane.b32.xlu0 %v346, 32
  %v1283 = vpop.permute.xlu0 %1282
  %1284 = vrot.lane.b32.xlu0 %v347, 32
  %v1285 = vpop.permute.xlu0 %1284
  %1286 = vrot.lane.b32.xlu0 %v348, 32
  %v1287 = vpop.permute.xlu0 %1286
  %1288 = vrot.lane.b32.xlu0 %v349, 32
  %v1289 = vpop.permute.xlu0 %1288
  %1290 = vrot.lane.b32.xlu0 %v350, 32
  %v1291 = vpop.permute.xlu0 %1290
  %1292 = vrot.lane.b32.xlu0 %v351, 32
  %v1293 = vpop.permute.xlu0 %1292
  %1294 = vrot.lane.b32.xlu0 %v352, 32
  %v1295 = vpop.permute.xlu0 %1294
  %1296 = vrot.lane.b32.xlu0 %v353, 32
  %v1297 = vpop.permute.xlu0 %1296
  %1298 = vrot.lane.b32.xlu0 %v354, 32
  %v1299 = vpop.permute.xlu0 %1298
  %1300 = vrot.lane.b32.xlu0 %v355, 32
  %v1301 = vpop.permute.xlu0 %1300
  %1302 = vrot.lane.b32.xlu0 %v356, 32
  %v1303 = vpop.permute.xlu0 %1302
  %1304 = vrot.lane.b32.xlu0 %v357, 32
  %v1305 = vpop.permute.xlu0 %1304
  %1306 = vrot.lane.b32.xlu0 %v358, 32
  %v1307 = vpop.permute.xlu0 %1306
  %1308 = vrot.lane.b32.xlu0 %v359, 32
  %v1309 = vpop.permute.xlu0 %1308
  %1310 = vrot.lane.b32.xlu0 %v360, 32
  %v1311 = vpop.permute.xlu0 %1310
  %1312 = vrot.lane.b32.xlu0 %v361, 32
  %v1313 = vpop.permute.xlu0 %1312
  %1314 = vrot.lane.b32.xlu0 %v362, 32
  %v1315 = vpop.permute.xlu0 %1314
  %1316 = vrot.lane.b32.xlu0 %v363, 32
  %v1317 = vpop.permute.xlu0 %1316
  %1318 = vrot.lane.b32.xlu0 %v364, 32
  %v1319 = vpop.permute.xlu0 %1318
  %1320 = vrot.lane.b32.xlu0 %v365, 32
  %v1321 = vpop.permute.xlu0 %1320
  %1322 = vrot.lane.b32.xlu0 %v366, 32
  %v1323 = vpop.permute.xlu0 %1322
  %1324 = vrot.lane.b32.xlu0 %v367, 32
  %v1325 = vpop.permute.xlu0 %1324
  %1326 = vrot.lane.b32.xlu0 %v368, 32
  %v1327 = vpop.permute.xlu0 %1326
  %1328 = vrot.lane.b32.xlu0 %v369, 32
  %v1329 = vpop.permute.xlu0 %1328
  %1330 = vrot.lane.b32.xlu0 %v370, 32
  %v1331 = vpop.permute.xlu0 %1330
  %1332 = vrot.lane.b32.xlu0 %v371, 32
  %v1333 = vpop.permute.xlu0 %1332
  %1334 = vrot.lane.b32.xlu0 %v372, 32
  %v1335 = vpop.permute.xlu0 %1334
  %1336 = vrot.lane.b32.xlu0 %v373, 32
  %v1337 = vpop.permute.xlu0 %1336
  %1338 = vrot.lane.b32.xlu0 %v374, 32
  %v1339 = vpop.permute.xlu0 %1338
  %1340 = vrot.lane.b32.xlu0 %v375, 32
  %v1341 = vpop.permute.xlu0 %1340
  %1342 = vrot.lane.b32.xlu0 %v376, 32
  %v1343 = vpop.permute.xlu0 %1342
  %1344 = vrot.lane.b32.xlu0 %v377, 32
  %v1345 = vpop.permute.xlu0 %1344
  %1346 = vrot.lane.b32.xlu0 %v378, 32
  %v1347 = vpop.permute.xlu0 %1346
  %1348 = vrot.lane.b32.xlu0 %v379, 32
  %v1349 = vpop.permute.xlu0 %1348
  %1350 = vrot.lane.b32.xlu0 %v380, 32
  %v1351 = vpop.permute.xlu0 %1350
  %1352 = vrot.lane.b32.xlu0 %v381, 32
  %v1353 = vpop.permute.xlu0 %1352
  %1354 = vrot.lane.b32.xlu0 %v382, 32
  %v1355 = vpop.permute.xlu0 %1354
  %1356 = vrot.lane.b32.xlu0 %v383, 32
  %v1357 = vpop.permute.xlu0 %1356
  %1358 = vrot.lane.b32.xlu0 %v384, 32
  %v1359 = vpop.permute.xlu0 %1358
  %1360 = vrot.lane.b32.xlu0 %v385, 32
  %v1361 = vpop.permute.xlu0 %1360
  %1362 = vrot.lane.b32.xlu0 %v386, 32
  %v1363 = vpop.permute.xlu0 %1362
  %1364 = vrot.lane.b32.xlu0 %v387, 32
  %v1365 = vpop.permute.xlu0 %1364
  %1366 = vrot.lane.b32.xlu0 %v388, 32
  %v1367 = vpop.permute.xlu0 %1366
  %1368 = vrot.lane.b32.xlu0 %v389, 32
  %v1369 = vpop.permute.xlu0 %1368
  %1370 = vrot.lane.b32.xlu0 %v390, 32
  %v1371 = vpop.permute.xlu0 %1370
  %1372 = vrot.lane.b32.xlu0 %v391, 32
  %v1373 = vpop.permute.xlu0 %1372
  %1374 = vrot.lane.b32.xlu0 %v392, 32
  %v1375 = vpop.permute.xlu0 %1374
  %1376 = vrot.lane.b32.xlu0 %v393, 32
  %v1377 = vpop.permute.xlu0 %1376
  %1378 = vrot.lane.b32.xlu0 %v394, 32
  %v1379 = vpop.permute.xlu0 %1378
  %1380 = vrot.lane.b32.xlu0 %v395, 32
  %v1381 = vpop.permute.xlu0 %1380
  %1382 = vrot.lane.b32.xlu0 %v396, 32
  %v1383 = vpop.permute.xlu0 %1382
  %1384 = vrot.lane.b32.xlu0 %v397, 32
  %v1385 = vpop.permute.xlu0 %1384
  %1386 = vrot.lane.b32.xlu0 %v398, 32
  %v1387 = vpop.permute.xlu0 %1386
  %1388 = vrot.lane.b32.xlu0 %v399, 32
  %v1389 = vpop.permute.xlu0 %1388
  %1390 = vrot.lane.b32.xlu0 %v400, 32
  %v1391 = vpop.permute.xlu0 %1390
  %1392 = vrot.lane.b32.xlu0 %v401, 32
  %v1393 = vpop.permute.xlu0 %1392
  %1394 = vrot.lane.b32.xlu0 %v402, 32
  %v1395 = vpop.permute.xlu0 %1394
  %1396 = vrot.lane.b32.xlu0 %v403, 32
  %v1397 = vpop.permute.xlu0 %1396
  %1398 = vrot.lane.b32.xlu0 %v404, 32
  %v1399 = vpop.permute.xlu0 %1398
  %1400 = vrot.lane.b32.xlu0 %v405, 32
  %v1401 = vpop.permute.xlu0 %1400
  %1402 = vrot.lane.b32.xlu0 %v406, 32
  %v1403 = vpop.permute.xlu0 %1402
  %1404 = vrot.lane.b32.xlu0 %v407, 32
  %v1405 = vpop.permute.xlu0 %1404
  %1406 = vrot.lane.b32.xlu0 %v408, 32
  %v1407 = vpop.permute.xlu0 %1406
  %1408 = vrot.lane.b32.xlu0 %v409, 32
  %v1409 = vpop.permute.xlu0 %1408
  %1410 = vrot.lane.b32.xlu0 %v410, 32
  %v1411 = vpop.permute.xlu0 %1410
  %1412 = vrot.lane.b32.xlu0 %v411, 32
  %v1413 = vpop.permute.xlu0 %1412
  %1414 = vrot.lane.b32.xlu0 %v412, 32
  %v1415 = vpop.permute.xlu0 %1414
  %1416 = vrot.lane.b32.xlu0 %v413, 32
  %v1417 = vpop.permute.xlu0 %1416
  %1418 = vrot.lane.b32.xlu0 %v414, 32
  %v1419 = vpop.permute.xlu0 %1418
  %1420 = vrot.lane.b32.xlu0 %v415, 32
  %v1421 = vpop.permute.xlu0 %1420
  %1422 = vrot.lane.b32.xlu0 %v416, 32
  %v1423 = vpop.permute.xlu0 %1422
  %1424 = vrot.lane.b32.xlu0 %v417, 32
  %v1425 = vpop.permute.xlu0 %1424
  %1426 = vrot.lane.b32.xlu0 %v418, 32
  %v1427 = vpop.permute.xlu0 %1426
  %1428 = vrot.lane.b32.xlu0 %v419, 32
  %v1429 = vpop.permute.xlu0 %1428
  %1430 = vrot.lane.b32.xlu0 %v420, 32
  %v1431 = vpop.permute.xlu0 %1430
  %1432 = vrot.lane.b32.xlu0 %v421, 32
  %v1433 = vpop.permute.xlu0 %1432
  %1434 = vrot.lane.b32.xlu0 %v422, 32
  %v1435 = vpop.permute.xlu0 %1434
  %1436 = vrot.lane.b32.xlu0 %v423, 32
  %v1437 = vpop.permute.xlu0 %1436
  %1438 = vrot.lane.b32.xlu0 %v424, 32
  %v1439 = vpop.permute.xlu0 %1438
  %1440 = vrot.lane.b32.xlu0 %v425, 32
  %v1441 = vpop.permute.xlu0 %1440
  %1442 = vrot.lane.b32.xlu0 %v426, 32
  %v1443 = vpop.permute.xlu0 %1442
  %1444 = vrot.lane.b32.xlu0 %v427, 32
  %v1445 = vpop.permute.xlu0 %1444
  %1446 = vrot.lane.b32.xlu0 %v428, 32
  %v1447 = vpop.permute.xlu0 %1446
  %1448 = vrot.lane.b32.xlu0 %v429, 32
  %v1449 = vpop.permute.xlu0 %1448
  %1450 = vrot.lane.b32.xlu0 %v430, 32
  %v1451 = vpop.permute.xlu0 %1450
  %1452 = vrot.lane.b32.xlu0 %v431, 32
  %v1453 = vpop.permute.xlu0 %1452
  %1454 = vrot.lane.b32.xlu0 %v432, 32
  %v1455 = vpop.permute.xlu0 %1454
  %1456 = vrot.lane.b32.xlu0 %v433, 32
  %v1457 = vpop.permute.xlu0 %1456
  %1714 = vrot.lane.b32.xlu0 %v434, 48
  %v1715 = vpop.permute.xlu0 %1714
  %1716 = vrot.lane.b32.xlu0 %v435, 48
  %v1717 = vpop.permute.xlu0 %1716
  %1718 = vrot.lane.b32.xlu0 %v436, 48
  %v1719 = vpop.permute.xlu0 %1718
  %1720 = vrot.lane.b32.xlu0 %v437, 48
  %v1721 = vpop.permute.xlu0 %1720
  %1722 = vrot.lane.b32.xlu0 %v438, 48
  %v1723 = vpop.permute.xlu0 %1722
  %1724 = vrot.lane.b32.xlu0 %v439, 48
  %v1725 = vpop.permute.xlu0 %1724
  %1726 = vrot.lane.b32.xlu0 %v440, 48
  %v1727 = vpop.permute.xlu0 %1726
  %1728 = vrot.lane.b32.xlu0 %v441, 48
  %v1729 = vpop.permute.xlu0 %1728
  %1730 = vrot.lane.b32.xlu0 %v442, 48
  %v1731 = vpop.permute.xlu0 %1730
  %1732 = vrot.lane.b32.xlu0 %v443, 48
  %v1733 = vpop.permute.xlu0 %1732
  %1734 = vrot.lane.b32.xlu0 %v444, 48
  %v1735 = vpop.permute.xlu0 %1734
  %1736 = vrot.lane.b32.xlu0 %v445, 48
  %v1737 = vpop.permute.xlu0 %1736
  %1738 = vrot.lane.b32.xlu0 %v446, 48
  %v1739 = vpop.permute.xlu0 %1738
  %1740 = vrot.lane.b32.xlu0 %v447, 48
  %v1741 = vpop.permute.xlu0 %1740
  %1742 = vrot.lane.b32.xlu0 %v448, 48
  %v1743 = vpop.permute.xlu0 %1742
  %1744 = vrot.lane.b32.xlu0 %v449, 48
  %v1745 = vpop.permute.xlu0 %1744
  %1746 = vrot.lane.b32.xlu0 %v450, 48
  %v1747 = vpop.permute.xlu0 %1746
  %1748 = vrot.lane.b32.xlu0 %v451, 48
  %v1749 = vpop.permute.xlu0 %1748
  %1750 = vrot.lane.b32.xlu0 %v452, 48
  %v1751 = vpop.permute.xlu0 %1750
  %1752 = vrot.lane.b32.xlu0 %v453, 48
  %v1753 = vpop.permute.xlu0 %1752
  %1754 = vrot.lane.b32.xlu0 %v454, 48
  %v1755 = vpop.permute.xlu0 %1754
  %1756 = vrot.lane.b32.xlu0 %v455, 48
  %v1757 = vpop.permute.xlu0 %1756
  %1758 = vrot.lane.b32.xlu0 %v456, 48
  %v1759 = vpop.permute.xlu0 %1758
  %1760 = vrot.lane.b32.xlu0 %v457, 48
  %v1761 = vpop.permute.xlu0 %1760
  %1762 = vrot.lane.b32.xlu0 %v458, 48
  %v1763 = vpop.permute.xlu0 %1762
  %1764 = vrot.lane.b32.xlu0 %v459, 48
  %v1765 = vpop.permute.xlu0 %1764
  %1766 = vrot.lane.b32.xlu0 %v460, 48
  %v1767 = vpop.permute.xlu0 %1766
  %1768 = vrot.lane.b32.xlu0 %v461, 48
  %v1769 = vpop.permute.xlu0 %1768
  %1770 = vrot.lane.b32.xlu0 %v462, 48
  %v1771 = vpop.permute.xlu0 %1770
  %1772 = vrot.lane.b32.xlu0 %v463, 48
  %v1773 = vpop.permute.xlu0 %1772
  %1774 = vrot.lane.b32.xlu0 %v464, 48
  %v1775 = vpop.permute.xlu0 %1774
  %1776 = vrot.lane.b32.xlu0 %v465, 48
  %v1777 = vpop.permute.xlu0 %1776
  %1778 = vrot.lane.b32.xlu0 %v466, 48
  %v1779 = vpop.permute.xlu0 %1778
  %1780 = vrot.lane.b32.xlu0 %v467, 48
  %v1781 = vpop.permute.xlu0 %1780
  %1782 = vrot.lane.b32.xlu0 %v468, 48
  %v1783 = vpop.permute.xlu0 %1782
  %1784 = vrot.lane.b32.xlu0 %v469, 48
  %v1785 = vpop.permute.xlu0 %1784
  %1786 = vrot.lane.b32.xlu0 %v470, 48
  %v1787 = vpop.permute.xlu0 %1786
  %1788 = vrot.lane.b32.xlu0 %v471, 48
  %v1789 = vpop.permute.xlu0 %1788
  %1790 = vrot.lane.b32.xlu0 %v472, 48
  %v1791 = vpop.permute.xlu0 %1790
  %1792 = vrot.lane.b32.xlu0 %v473, 48
  %v1793 = vpop.permute.xlu0 %1792
  %1794 = vrot.lane.b32.xlu0 %v474, 48
  %v1795 = vpop.permute.xlu0 %1794
  %1796 = vrot.lane.b32.xlu0 %v475, 48
  %v1797 = vpop.permute.xlu0 %1796
  %1798 = vrot.lane.b32.xlu0 %v476, 48
  %v1799 = vpop.permute.xlu0 %1798
  %1800 = vrot.lane.b32.xlu0 %v477, 48
  %v1801 = vpop.permute.xlu0 %1800
  %1802 = vrot.lane.b32.xlu0 %v478, 48
  %v1803 = vpop.permute.xlu0 %1802
  %1804 = vrot.lane.b32.xlu0 %v479, 48
  %v1805 = vpop.permute.xlu0 %1804
  %1806 = vrot.lane.b32.xlu0 %v480, 48
  %v1807 = vpop.permute.xlu0 %1806
  %1808 = vrot.lane.b32.xlu0 %v481, 48
  %v1809 = vpop.permute.xlu0 %1808
  %1810 = vrot.lane.b32.xlu0 %v482, 48
  %v1811 = vpop.permute.xlu0 %1810
  %1812 = vrot.lane.b32.xlu0 %v483, 48
  %v1813 = vpop.permute.xlu0 %1812
  %1814 = vrot.lane.b32.xlu0 %v484, 48
  %v1815 = vpop.permute.xlu0 %1814
  %1816 = vrot.lane.b32.xlu0 %v485, 48
  %v1817 = vpop.permute.xlu0 %1816
  %1818 = vrot.lane.b32.xlu0 %v486, 48
  %v1819 = vpop.permute.xlu0 %1818
  %1820 = vrot.lane.b32.xlu0 %v487, 48
  %v1821 = vpop.permute.xlu0 %1820
  %1822 = vrot.lane.b32.xlu0 %v488, 48
  %v1823 = vpop.permute.xlu0 %1822
  %1824 = vrot.lane.b32.xlu0 %v489, 48
  %v1825 = vpop.permute.xlu0 %1824
  %1826 = vrot.lane.b32.xlu0 %v490, 48
  %v1827 = vpop.permute.xlu0 %1826
  %1828 = vrot.lane.b32.xlu0 %v491, 48
  %v1829 = vpop.permute.xlu0 %1828
  %1830 = vrot.lane.b32.xlu0 %v492, 48
  %v1831 = vpop.permute.xlu0 %1830
  %1832 = vrot.lane.b32.xlu0 %v493, 48
  %v1833 = vpop.permute.xlu0 %1832
  %1834 = vrot.lane.b32.xlu0 %v494, 48
  %v1835 = vpop.permute.xlu0 %1834
  %1836 = vrot.lane.b32.xlu0 %v495, 48
  %v1837 = vpop.permute.xlu0 %1836
  %1838 = vrot.lane.b32.xlu0 %v496, 48
  %v1839 = vpop.permute.xlu0 %1838
  %1840 = vrot.lane.b32.xlu0 %v497, 48
  %v1841 = vpop.permute.xlu0 %1840
  %1842 = vrot.lane.b32.xlu0 %v498, 48
  %v1843 = vpop.permute.xlu0 %1842
  %1844 = vrot.lane.b32.xlu0 %v499, 48
  %v1845 = vpop.permute.xlu0 %1844
  %1846 = vrot.lane.b32.xlu0 %v500, 48
  %v1847 = vpop.permute.xlu0 %1846
  %1848 = vrot.lane.b32.xlu0 %v501, 48
  %v1849 = vpop.permute.xlu0 %1848
  %1850 = vrot.lane.b32.xlu0 %v502, 48
  %v1851 = vpop.permute.xlu0 %1850
  %1852 = vrot.lane.b32.xlu0 %v503, 48
  %v1853 = vpop.permute.xlu0 %1852
  %1854 = vrot.lane.b32.xlu0 %v504, 48
  %v1855 = vpop.permute.xlu0 %1854
  %1856 = vrot.lane.b32.xlu0 %v505, 48
  %v1857 = vpop.permute.xlu0 %1856
  %1858 = vrot.lane.b32.xlu0 %v506, 48
  %v1859 = vpop.permute.xlu0 %1858
  %1860 = vrot.lane.b32.xlu0 %v507, 48
  %v1861 = vpop.permute.xlu0 %1860
  %1862 = vrot.lane.b32.xlu0 %v508, 48
  %v1863 = vpop.permute.xlu0 %1862
  %1864 = vrot.lane.b32.xlu0 %v509, 48
  %v1865 = vpop.permute.xlu0 %1864
  %1866 = vrot.lane.b32.xlu0 %v510, 48
  %v1867 = vpop.permute.xlu0 %1866
  %1868 = vrot.lane.b32.xlu0 %v511, 48
  %v1869 = vpop.permute.xlu0 %1868
  %1870 = vrot.lane.b32.xlu0 %v512, 48
  %v1871 = vpop.permute.xlu0 %1870
  %1872 = vrot.lane.b32.xlu0 %v513, 48
  %v1873 = vpop.permute.xlu0 %1872
  %1874 = vrot.lane.b32.xlu0 %v514, 48
  %v1875 = vpop.permute.xlu0 %1874
  %1876 = vrot.lane.b32.xlu0 %v515, 48
  %v1877 = vpop.permute.xlu0 %1876
  %1878 = vrot.lane.b32.xlu0 %v516, 48
  %v1879 = vpop.permute.xlu0 %1878
  %1880 = vrot.lane.b32.xlu0 %v517, 48
  %v1881 = vpop.permute.xlu0 %1880
  %1882 = vrot.lane.b32.xlu0 %v518, 48
  %v1883 = vpop.permute.xlu0 %1882
  %1884 = vrot.lane.b32.xlu0 %v519, 48
  %v1885 = vpop.permute.xlu0 %1884
  %1886 = vrot.lane.b32.xlu0 %v520, 48
  %v1887 = vpop.permute.xlu0 %1886
  %1888 = vrot.lane.b32.xlu0 %v521, 48
  %v1889 = vpop.permute.xlu0 %1888
  %1890 = vrot.lane.b32.xlu0 %v522, 48
  %v1891 = vpop.permute.xlu0 %1890
  %1892 = vrot.lane.b32.xlu0 %v523, 48
  %v1893 = vpop.permute.xlu0 %1892
  %1894 = vrot.lane.b32.xlu0 %v524, 48
  %v1895 = vpop.permute.xlu0 %1894
  %1896 = vrot.lane.b32.xlu0 %v525, 48
  %v1897 = vpop.permute.xlu0 %1896
  %1898 = vrot.lane.b32.xlu0 %v526, 48
  %v1899 = vpop.permute.xlu0 %1898
  %1900 = vrot.lane.b32.xlu0 %v527, 48
  %v1901 = vpop.permute.xlu0 %1900
  %1902 = vrot.lane.b32.xlu0 %v528, 48
  %v1903 = vpop.permute.xlu0 %1902
  %1904 = vrot.lane.b32.xlu0 %v529, 48
  %v1905 = vpop.permute.xlu0 %1904
  %1906 = vrot.lane.b32.xlu0 %v530, 48
  %v1907 = vpop.permute.xlu0 %1906
  %1908 = vrot.lane.b32.xlu0 %v531, 48
  %v1909 = vpop.permute.xlu0 %1908
  %1910 = vrot.lane.b32.xlu0 %v532, 48
  %v1911 = vpop.permute.xlu0 %1910
  %1912 = vrot.lane.b32.xlu0 %v533, 48
  %v1913 = vpop.permute.xlu0 %1912
  %1914 = vrot.lane.b32.xlu0 %v534, 48
  %v1915 = vpop.permute.xlu0 %1914
  %1916 = vrot.lane.b32.xlu0 %v535, 48
  %v1917 = vpop.permute.xlu0 %1916
  %1918 = vrot.lane.b32.xlu0 %v536, 48
  %v1919 = vpop.permute.xlu0 %1918
  %1920 = vrot.lane.b32.xlu0 %v537, 48
  %v1921 = vpop.permute.xlu0 %1920
  %1922 = vrot.lane.b32.xlu0 %v538, 48
  %v1923 = vpop.permute.xlu0 %1922
  %1924 = vrot.lane.b32.xlu0 %v539, 48
  %v1925 = vpop.permute.xlu0 %1924
  %1926 = vrot.lane.b32.xlu0 %v540, 48
  %v1927 = vpop.permute.xlu0 %1926
  %1928 = vrot.lane.b32.xlu0 %v541, 48
  %v1929 = vpop.permute.xlu0 %1928
  %1930 = vrot.lane.b32.xlu0 %v542, 48
  %v1931 = vpop.permute.xlu0 %1930
  %1932 = vrot.lane.b32.xlu0 %v543, 48
  %v1933 = vpop.permute.xlu0 %1932
  %1934 = vrot.lane.b32.xlu0 %v544, 48
  %v1935 = vpop.permute.xlu0 %1934
  %1936 = vrot.lane.b32.xlu0 %v545, 48
  %v1937 = vpop.permute.xlu0 %1936
  %1938 = vrot.lane.b32.xlu0 %v546, 48
  %v1939 = vpop.permute.xlu0 %1938
  %1940 = vrot.lane.b32.xlu0 %v547, 48
  %v1941 = vpop.permute.xlu0 %1940
  %1942 = vrot.lane.b32.xlu0 %v548, 48
  %v1943 = vpop.permute.xlu0 %1942
  %1944 = vrot.lane.b32.xlu0 %v549, 48
  %v1945 = vpop.permute.xlu0 %1944
  %1946 = vrot.lane.b32.xlu0 %v550, 48
  %v1947 = vpop.permute.xlu0 %1946
  %1948 = vrot.lane.b32.xlu0 %v551, 48
  %v1949 = vpop.permute.xlu0 %1948
  %1950 = vrot.lane.b32.xlu0 %v552, 48
  %v1951 = vpop.permute.xlu0 %1950
  %1952 = vrot.lane.b32.xlu0 %v553, 48
  %v1953 = vpop.permute.xlu0 %1952
  %1954 = vrot.lane.b32.xlu0 %v554, 48
  %v1955 = vpop.permute.xlu0 %1954
  %1956 = vrot.lane.b32.xlu0 %v555, 48
  %v1957 = vpop.permute.xlu0 %1956
  %1958 = vrot.lane.b32.xlu0 %v556, 48
  %v1959 = vpop.permute.xlu0 %1958
  %1960 = vrot.lane.b32.xlu0 %v557, 48
  %v1961 = vpop.permute.xlu0 %1960
  %1962 = vrot.lane.b32.xlu0 %v558, 48
  %v1963 = vpop.permute.xlu0 %1962
  %1964 = vrot.lane.b32.xlu0 %v559, 48
  %v1965 = vpop.permute.xlu0 %1964
  %1966 = vrot.lane.b32.xlu0 %v560, 48
  %v1967 = vpop.permute.xlu0 %1966
  %1968 = vrot.lane.b32.xlu0 %v561, 48
  %v1969 = vpop.permute.xlu0 %1968
  %vm2098 = vcmask 130048
  %v2099 = vsel %vm2098, %v50, %v691
  %v2100 = vsel %vm2098, %v51, %v693
  %v2101 = vsel %vm2098, %v52, %v695
  %v2102 = vsel %vm2098, %v53, %v697
  %v2103 = vsel %vm2098, %v54, %v699
  %v2104 = vsel %vm2098, %v55, %v701
  %v2105 = vsel %vm2098, %v56, %v703
  %v2106 = vsel %vm2098, %v57, %v705
  %v2107 = vsel %vm2098, %v58, %v707
  %v2108 = vsel %vm2098, %v59, %v709
  %v2109 = vsel %vm2098, %v60, %v711
  %v2110 = vsel %vm2098, %v61, %v713
  %v2111 = vsel %vm2098, %v62, %v715
  %v2112 = vsel %vm2098, %v63, %v717
  %v2113 = vsel %vm2098, %v64, %v719
  %v2114 = vsel %vm2098, %v65, %v721
  %v2115 = vsel %vm2098, %v66, %v723
  %v2116 = vsel %vm2098, %v67, %v725
  %v2117 = vsel %vm2098, %v68, %v727
  %v2118 = vsel %vm2098, %v69, %v729
  %v2119 = vsel %vm2098, %v70, %v731
  %v2120 = vsel %vm2098, %v71, %v733
  %v2121 = vsel %vm2098, %v72, %v735
  %v2122 = vsel %vm2098, %v73, %v737
  %v2123 = vsel %vm2098, %v74, %v739
  %v2124 = vsel %vm2098, %v75, %v741
  %v2125 = vsel %vm2098, %v76, %v743
  %v2126 = vsel %vm2098, %v77, %v745
  %v2127 = vsel %vm2098, %v78, %v747
  %v2128 = vsel %vm2098, %v79, %v749
  %v2129 = vsel %vm2098, %v80, %v751
  %v2130 = vsel %vm2098, %v81, %v753
  %v2131 = vsel %vm2098, %v82, %v755
  %v2132 = vsel %vm2098, %v83, %v757
  %v2133 = vsel %vm2098, %v84, %v759
  %v2134 = vsel %vm2098, %v85, %v761
  %v2135 = vsel %vm2098, %v86, %v763
  %v2136 = vsel %vm2098, %v87, %v765
  %v2137 = vsel %vm2098, %v88, %v767
  %v2138 = vsel %vm2098, %v89, %v769
  %v2139 = vsel %vm2098, %v90, %v771
  %v2140 = vsel %vm2098, %v91, %v773
  %v2141 = vsel %vm2098, %v92, %v775
  %v2142 = vsel %vm2098, %v93, %v777
  %v2143 = vsel %vm2098, %v94, %v779
  %v2144 = vsel %vm2098, %v95, %v781
  %v2145 = vsel %vm2098, %v96, %v783
  %v2146 = vsel %vm2098, %v97, %v785
  %v2147 = vsel %vm2098, %v98, %v787
  %v2148 = vsel %vm2098, %v99, %v789
  %v2149 = vsel %vm2098, %v100, %v791
  %v2150 = vsel %vm2098, %v101, %v793
  %v2151 = vsel %vm2098, %v102, %v795
  %v2152 = vsel %vm2098, %v103, %v797
  %v2153 = vsel %vm2098, %v104, %v799
  %v2154 = vsel %vm2098, %v105, %v801
  %v2155 = vsel %vm2098, %v106, %v803
  %v2156 = vsel %vm2098, %v107, %v805
  %v2157 = vsel %vm2098, %v108, %v807
  %v2158 = vsel %vm2098, %v109, %v809
  %v2159 = vsel %vm2098, %v110, %v811
  %v2160 = vsel %vm2098, %v111, %v813
  %v2161 = vsel %vm2098, %v112, %v815
  %v2162 = vsel %vm2098, %v113, %v817
  %v2163 = vsel %vm2098, %v114, %v819
  %v2164 = vsel %vm2098, %v115, %v821
  %v2165 = vsel %vm2098, %v116, %v823
  %v2166 = vsel %vm2098, %v117, %v825
  %v2167 = vsel %vm2098, %v118, %v827
  %v2168 = vsel %vm2098, %v119, %v829
  %v2169 = vsel %vm2098, %v120, %v831
  %v2170 = vsel %vm2098, %v121, %v833
  %v2171 = vsel %vm2098, %v122, %v835
  %v2172 = vsel %vm2098, %v123, %v837
  %v2173 = vsel %vm2098, %v124, %v839
  %v2174 = vsel %vm2098, %v125, %v841
  %v2175 = vsel %vm2098, %v126, %v843
  %v2176 = vsel %vm2098, %v127, %v845
  %v2177 = vsel %vm2098, %v128, %v847
  %v2178 = vsel %vm2098, %v129, %v849
  %v2179 = vsel %vm2098, %v130, %v851
  %v2180 = vsel %vm2098, %v131, %v853
  %v2181 = vsel %vm2098, %v132, %v855
  %v2182 = vsel %vm2098, %v133, %v857
  %v2183 = vsel %vm2098, %v134, %v859
  %v2184 = vsel %vm2098, %v135, %v861
  %v2185 = vsel %vm2098, %v136, %v863
  %v2186 = vsel %vm2098, %v137, %v865
  %v2187 = vsel %vm2098, %v138, %v867
  %v2188 = vsel %vm2098, %v139, %v869
  %v2189 = vsel %vm2098, %v140, %v871
  %v2190 = vsel %vm2098, %v141, %v873
  %v2191 = vsel %vm2098, %v142, %v875
  %v2192 = vsel %vm2098, %v143, %v877
  %v2193 = vsel %vm2098, %v144, %v879
  %v2194 = vsel %vm2098, %v145, %v881
  %v2195 = vsel %vm2098, %v146, %v883
  %v2196 = vsel %vm2098, %v147, %v885
  %v2197 = vsel %vm2098, %v148, %v887
  %v2198 = vsel %vm2098, %v149, %v889
  %v2199 = vsel %vm2098, %v150, %v891
  %v2200 = vsel %vm2098, %v151, %v893
  %v2201 = vsel %vm2098, %v152, %v895
  %v2202 = vsel %vm2098, %v153, %v897
  %v2203 = vsel %vm2098, %v154, %v899
  %v2204 = vsel %vm2098, %v155, %v901
  %v2205 = vsel %vm2098, %v156, %v903
  %v2206 = vsel %vm2098, %v157, %v905
  %v2207 = vsel %vm2098, %v158, %v907
  %v2208 = vsel %vm2098, %v159, %v909
  %v2209 = vsel %vm2098, %v160, %v911
  %v2210 = vsel %vm2098, %v161, %v913
  %v2211 = vsel %vm2098, %v162, %v915
  %v2212 = vsel %vm2098, %v163, %v917
  %v2213 = vsel %vm2098, %v164, %v919
  %v2214 = vsel %vm2098, %v165, %v921
  %v2215 = vsel %vm2098, %v166, %v923
  %v2216 = vsel %vm2098, %v167, %v925
  %v2217 = vsel %vm2098, %v168, %v927
  %v2218 = vsel %vm2098, %v169, %v929
  %v2219 = vsel %vm2098, %v170, %v931
  %v2220 = vsel %vm2098, %v171, %v933
  %v2221 = vsel %vm2098, %v172, %v935
  %v2222 = vsel %vm2098, %v173, %v937
  %v2223 = vsel %vm2098, %v174, %v939
  %v2224 = vsel %vm2098, %v175, %v941
  %v2225 = vsel %vm2098, %v176, %v943
  %v2226 = vsel %vm2098, %v177, %v945
  %vm2227 = vcmask 261120
  %v2228 = vsel %vm2227, %v2099, %v1203
  %v2229 = vsel %vm2227, %v2100, %v1205
  %v2230 = vsel %vm2227, %v2101, %v1207
  %v2231 = vsel %vm2227, %v2102, %v1209
  %v2232 = vsel %vm2227, %v2103, %v1211
  %v2233 = vsel %vm2227, %v2104, %v1213
  %v2234 = vsel %vm2227, %v2105, %v1215
  %v2235 = vsel %vm2227, %v2106, %v1217
  %v2236 = vsel %vm2227, %v2107, %v1219
  %v2237 = vsel %vm2227, %v2108, %v1221
  %v2238 = vsel %vm2227, %v2109, %v1223
  %v2239 = vsel %vm2227, %v2110, %v1225
  %v2240 = vsel %vm2227, %v2111, %v1227
  %v2241 = vsel %vm2227, %v2112, %v1229
  %v2242 = vsel %vm2227, %v2113, %v1231
  %v2243 = vsel %vm2227, %v2114, %v1233
  %v2244 = vsel %vm2227, %v2115, %v1235
  %v2245 = vsel %vm2227, %v2116, %v1237
  %v2246 = vsel %vm2227, %v2117, %v1239
  %v2247 = vsel %vm2227, %v2118, %v1241
  %v2248 = vsel %vm2227, %v2119, %v1243
  %v2249 = vsel %vm2227, %v2120, %v1245
  %v2250 = vsel %vm2227, %v2121, %v1247
  %v2251 = vsel %vm2227, %v2122, %v1249
  %v2252 = vsel %vm2227, %v2123, %v1251
  %v2253 = vsel %vm2227, %v2124, %v1253
  %v2254 = vsel %vm2227, %v2125, %v1255
  %v2255 = vsel %vm2227, %v2126, %v1257
  %v2256 = vsel %vm2227, %v2127, %v1259
  %v2257 = vsel %vm2227, %v2128, %v1261
  %v2258 = vsel %vm2227, %v2129, %v1263
  %v2259 = vsel %vm2227, %v2130, %v1265
  %v2260 = vsel %vm2227, %v2131, %v1267
  %v2261 = vsel %vm2227, %v2132, %v1269
  %v2262 = vsel %vm2227, %v2133, %v1271
  %v2263 = vsel %vm2227, %v2134, %v1273
  %v2264 = vsel %vm2227, %v2135, %v1275
  %v2265 = vsel %vm2227, %v2136, %v1277
  %v2266 = vsel %vm2227, %v2137, %v1279
  %v2267 = vsel %vm2227, %v2138, %v1281
  %v2268 = vsel %vm2227, %v2139, %v1283
  %v2269 = vsel %vm2227, %v2140, %v1285
  %v2270 = vsel %vm2227, %v2141, %v1287
  %v2271 = vsel %vm2227, %v2142, %v1289
  %v2272 = vsel %vm2227, %v2143, %v1291
  %v2273 = vsel %vm2227, %v2144, %v1293
  %v2274 = vsel %vm2227, %v2145, %v1295
  %v2275 = vsel %vm2227, %v2146, %v1297
  %v2276 = vsel %vm2227, %v2147, %v1299
  %v2277 = vsel %vm2227, %v2148, %v1301
  %v2278 = vsel %vm2227, %v2149, %v1303
  %v2279 = vsel %vm2227, %v2150, %v1305
  %v2280 = vsel %vm2227, %v2151, %v1307
  %v2281 = vsel %vm2227, %v2152, %v1309
  %v2282 = vsel %vm2227, %v2153, %v1311
  %v2283 = vsel %vm2227, %v2154, %v1313
  %v2284 = vsel %vm2227, %v2155, %v1315
  %v2285 = vsel %vm2227, %v2156, %v1317
  %v2286 = vsel %vm2227, %v2157, %v1319
  %v2287 = vsel %vm2227, %v2158, %v1321
  %v2288 = vsel %vm2227, %v2159, %v1323
  %v2289 = vsel %vm2227, %v2160, %v1325
  %v2290 = vsel %vm2227, %v2161, %v1327
  %v2291 = vsel %vm2227, %v2162, %v1329
  %v2292 = vsel %vm2227, %v2163, %v1331
  %v2293 = vsel %vm2227, %v2164, %v1333
  %v2294 = vsel %vm2227, %v2165, %v1335
  %v2295 = vsel %vm2227, %v2166, %v1337
  %v2296 = vsel %vm2227, %v2167, %v1339
  %v2297 = vsel %vm2227, %v2168, %v1341
  %v2298 = vsel %vm2227, %v2169, %v1343
  %v2299 = vsel %vm2227, %v2170, %v1345
  %v2300 = vsel %vm2227, %v2171, %v1347
  %v2301 = vsel %vm2227, %v2172, %v1349
  %v2302 = vsel %vm2227, %v2173, %v1351
  %v2303 = vsel %vm2227, %v2174, %v1353
  %v2304 = vsel %vm2227, %v2175, %v1355
  %v2305 = vsel %vm2227, %v2176, %v1357
  %v2306 = vsel %vm2227, %v2177, %v1359
  %v2307 = vsel %vm2227, %v2178, %v1361
  %v2308 = vsel %vm2227, %v2179, %v1363
  %v2309 = vsel %vm2227, %v2180, %v1365
  %v2310 = vsel %vm2227, %v2181, %v1367
  %v2311 = vsel %vm2227, %v2182, %v1369
  %v2312 = vsel %vm2227, %v2183, %v1371
  %v2313 = vsel %vm2227, %v2184, %v1373
  %v2314 = vsel %vm2227, %v2185, %v1375
  %v2315 = vsel %vm2227, %v2186, %v1377
  %v2316 = vsel %vm2227, %v2187, %v1379
  %v2317 = vsel %vm2227, %v2188, %v1381
  %v2318 = vsel %vm2227, %v2189, %v1383
  %v2319 = vsel %vm2227, %v2190, %v1385
  %v2320 = vsel %vm2227, %v2191, %v1387
  %v2321 = vsel %vm2227, %v2192, %v1389
  %v2322 = vsel %vm2227, %v2193, %v1391
  %v2323 = vsel %vm2227, %v2194, %v1393
  %v2324 = vsel %vm2227, %v2195, %v1395
  %v2325 = vsel %vm2227, %v2196, %v1397
  %v2326 = vsel %vm2227, %v2197, %v1399
  %v2327 = vsel %vm2227, %v2198, %v1401
  %v2328 = vsel %vm2227, %v2199, %v1403
  %v2329 = vsel %vm2227, %v2200, %v1405
  %v2330 = vsel %vm2227, %v2201, %v1407
  %v2331 = vsel %vm2227, %v2202, %v1409
  %v2332 = vsel %vm2227, %v2203, %v1411
  %v2333 = vsel %vm2227, %v2204, %v1413
  %v2334 = vsel %vm2227, %v2205, %v1415
  %v2335 = vsel %vm2227, %v2206, %v1417
  %v2336 = vsel %vm2227, %v2207, %v1419
  %v2337 = vsel %vm2227, %v2208, %v1421
  %v2338 = vsel %vm2227, %v2209, %v1423
  %v2339 = vsel %vm2227, %v2210, %v1425
  %v2340 = vsel %vm2227, %v2211, %v1427
  %v2341 = vsel %vm2227, %v2212, %v1429
  %v2342 = vsel %vm2227, %v2213, %v1431
  %v2343 = vsel %vm2227, %v2214, %v1433
  %v2344 = vsel %vm2227, %v2215, %v1435
  %v2345 = vsel %vm2227, %v2216, %v1437
  %v2346 = vsel %vm2227, %v2217, %v1439
  %v2347 = vsel %vm2227, %v2218, %v1441
  %v2348 = vsel %vm2227, %v2219, %v1443
  %v2349 = vsel %vm2227, %v2220, %v1445
  %v2350 = vsel %vm2227, %v2221, %v1447
  %v2351 = vsel %vm2227, %v2222, %v1449
  %v2352 = vsel %vm2227, %v2223, %v1451
  %v2353 = vsel %vm2227, %v2224, %v1453
  %v2354 = vsel %vm2227, %v2225, %v1455
  %v2355 = vsel %vm2227, %v2226, %v1457
  %vm2356 = vcmask 392192
  %v2357 = vsel %vm2356, %v2228, %v1715
  %v2358 = vsel %vm2356, %v2229, %v1717
  %v2359 = vsel %vm2356, %v2230, %v1719
  %v2360 = vsel %vm2356, %v2231, %v1721
  %v2361 = vsel %vm2356, %v2232, %v1723
  %v2362 = vsel %vm2356, %v2233, %v1725
  %v2363 = vsel %vm2356, %v2234, %v1727
  %v2364 = vsel %vm2356, %v2235, %v1729
  %v2365 = vsel %vm2356, %v2236, %v1731
  %v2366 = vsel %vm2356, %v2237, %v1733
  %v2367 = vsel %vm2356, %v2238, %v1735
  %v2368 = vsel %vm2356, %v2239, %v1737
  %v2369 = vsel %vm2356, %v2240, %v1739
  %v2370 = vsel %vm2356, %v2241, %v1741
  %v2371 = vsel %vm2356, %v2242, %v1743
  %v2372 = vsel %vm2356, %v2243, %v1745
  %v2373 = vsel %vm2356, %v2244, %v1747
  %v2374 = vsel %vm2356, %v2245, %v1749
  %v2375 = vsel %vm2356, %v2246, %v1751
  %v2376 = vsel %vm2356, %v2247, %v1753
  %v2377 = vsel %vm2356, %v2248, %v1755
  %v2378 = vsel %vm2356, %v2249, %v1757
  %v2379 = vsel %vm2356, %v2250, %v1759
  %v2380 = vsel %vm2356, %v2251, %v1761
  %v2381 = vsel %vm2356, %v2252, %v1763
  %v2382 = vsel %vm2356, %v2253, %v1765
  %v2383 = vsel %vm2356, %v2254, %v1767
  %v2384 = vsel %vm2356, %v2255, %v1769
  %v2385 = vsel %vm2356, %v2256, %v1771
  %v2386 = vsel %vm2356, %v2257, %v1773
  %v2387 = vsel %vm2356, %v2258, %v1775
  %v2388 = vsel %vm2356, %v2259, %v1777
  %v2389 = vsel %vm2356, %v2260, %v1779
  %v2390 = vsel %vm2356, %v2261, %v1781
  %v2391 = vsel %vm2356, %v2262, %v1783
  %v2392 = vsel %vm2356, %v2263, %v1785
  %v2393 = vsel %vm2356, %v2264, %v1787
  %v2394 = vsel %vm2356, %v2265, %v1789
  %v2395 = vsel %vm2356, %v2266, %v1791
  %v2396 = vsel %vm2356, %v2267, %v1793
  %v2397 = vsel %vm2356, %v2268, %v1795
  %v2398 = vsel %vm2356, %v2269, %v1797
  %v2399 = vsel %vm2356, %v2270, %v1799
  %v2400 = vsel %vm2356, %v2271, %v1801
  %v2401 = vsel %vm2356, %v2272, %v1803
  %v2402 = vsel %vm2356, %v2273, %v1805
  %v2403 = vsel %vm2356, %v2274, %v1807
  %v2404 = vsel %vm2356, %v2275, %v1809
  %v2405 = vsel %vm2356, %v2276, %v1811
  %v2406 = vsel %vm2356, %v2277, %v1813
  %v2407 = vsel %vm2356, %v2278, %v1815
  %v2408 = vsel %vm2356, %v2279, %v1817
  %v2409 = vsel %vm2356, %v2280, %v1819
  %v2410 = vsel %vm2356, %v2281, %v1821
  %v2411 = vsel %vm2356, %v2282, %v1823
  %v2412 = vsel %vm2356, %v2283, %v1825
  %v2413 = vsel %vm2356, %v2284, %v1827
  %v2414 = vsel %vm2356, %v2285, %v1829
  %v2415 = vsel %vm2356, %v2286, %v1831
  %v2416 = vsel %vm2356, %v2287, %v1833
  %v2417 = vsel %vm2356, %v2288, %v1835
  %v2418 = vsel %vm2356, %v2289, %v1837
  %v2419 = vsel %vm2356, %v2290, %v1839
  %v2420 = vsel %vm2356, %v2291, %v1841
  %v2421 = vsel %vm2356, %v2292, %v1843
  %v2422 = vsel %vm2356, %v2293, %v1845
  %v2423 = vsel %vm2356, %v2294, %v1847
  %v2424 = vsel %vm2356, %v2295, %v1849
  %v2425 = vsel %vm2356, %v2296, %v1851
  %v2426 = vsel %vm2356, %v2297, %v1853
  %v2427 = vsel %vm2356, %v2298, %v1855
  %v2428 = vsel %vm2356, %v2299, %v1857
  %v2429 = vsel %vm2356, %v2300, %v1859
  %v2430 = vsel %vm2356, %v2301, %v1861
  %v2431 = vsel %vm2356, %v2302, %v1863
  %v2432 = vsel %vm2356, %v2303, %v1865
  %v2433 = vsel %vm2356, %v2304, %v1867
  %v2434 = vsel %vm2356, %v2305, %v1869
  %v2435 = vsel %vm2356, %v2306, %v1871
  %v2436 = vsel %vm2356, %v2307, %v1873
  %v2437 = vsel %vm2356, %v2308, %v1875
  %v2438 = vsel %vm2356, %v2309, %v1877
  %v2439 = vsel %vm2356, %v2310, %v1879
  %v2440 = vsel %vm2356, %v2311, %v1881
  %v2441 = vsel %vm2356, %v2312, %v1883
  %v2442 = vsel %vm2356, %v2313, %v1885
  %v2443 = vsel %vm2356, %v2314, %v1887
  %v2444 = vsel %vm2356, %v2315, %v1889
  %v2445 = vsel %vm2356, %v2316, %v1891
  %v2446 = vsel %vm2356, %v2317, %v1893
  %v2447 = vsel %vm2356, %v2318, %v1895
  %v2448 = vsel %vm2356, %v2319, %v1897
  %v2449 = vsel %vm2356, %v2320, %v1899
  %v2450 = vsel %vm2356, %v2321, %v1901
  %v2451 = vsel %vm2356, %v2322, %v1903
  %v2452 = vsel %vm2356, %v2323, %v1905
  %v2453 = vsel %vm2356, %v2324, %v1907
  %v2454 = vsel %vm2356, %v2325, %v1909
  %v2455 = vsel %vm2356, %v2326, %v1911
  %v2456 = vsel %vm2356, %v2327, %v1913
  %v2457 = vsel %vm2356, %v2328, %v1915
  %v2458 = vsel %vm2356, %v2329, %v1917
  %v2459 = vsel %vm2356, %v2330, %v1919
  %v2460 = vsel %vm2356, %v2331, %v1921
  %v2461 = vsel %vm2356, %v2332, %v1923
  %v2462 = vsel %vm2356, %v2333, %v1925
  %v2463 = vsel %vm2356, %v2334, %v1927
  %v2464 = vsel %vm2356, %v2335, %v1929
  %v2465 = vsel %vm2356, %v2336, %v1931
  %v2466 = vsel %vm2356, %v2337, %v1933
  %v2467 = vsel %vm2356, %v2338, %v1935
  %v2468 = vsel %vm2356, %v2339, %v1937
  %v2469 = vsel %vm2356, %v2340, %v1939
  %v2470 = vsel %vm2356, %v2341, %v1941
  %v2471 = vsel %vm2356, %v2342, %v1943
  %v2472 = vsel %vm2356, %v2343, %v1945
  %v2473 = vsel %vm2356, %v2344, %v1947
  %v2474 = vsel %vm2356, %v2345, %v1949
  %v2475 = vsel %vm2356, %v2346, %v1951
  %v2476 = vsel %vm2356, %v2347, %v1953
  %v2477 = vsel %vm2356, %v2348, %v1955
  %v2478 = vsel %vm2356, %v2349, %v1957
  %v2479 = vsel %vm2356, %v2350, %v1959
  %v2480 = vsel %vm2356, %v2351, %v1961
  %v2481 = vsel %vm2356, %v2352, %v1963
  %v2482 = vsel %vm2356, %v2353, %v1965
  %v2483 = vsel %vm2356, %v2354, %v1967
  %v2484 = vsel %vm2356, %v2355, %v1969
  %v2485 = vld [vmem:[%s1] sm:$0xff]
  %v2486 = vld [vmem:[%s1 + $0x8] sm:$0xff]
  %v2487 = vld [vmem:[%s1 + $0x10] sm:$0xff]
  %v2488 = vld [vmem:[%s1 + $0x18] sm:$0xff]
  %v2489 = vld [vmem:[%s1 + $0x20] sm:$0xff]
  %v2490 = vld [vmem:[%s1 + $0x28] sm:$0xff]
  %v2491 = vld [vmem:[%s1 + $0x30] sm:$0xff]
  %v2492 = vld [vmem:[%s1 + $0x38] sm:$0xff]
  %v2493 = vld [vmem:[%s2] sm:$0x1]
  %v2495 = vlaneseq
  %v2496 = vshrl.u32 %v2495, 7
  %v2497 = vsub.s32 0, %v2496
  %v2498 = vrot.slane %v2493, %v2497
  %vm2500 = vcmask 523264
  %v2502 = vsel %vm2500, %v2357, 0
  %v2505 = vsel %vm2500, %v2358, 0
  %v2508 = vsel %vm2500, %v2359, 0
  %v2511 = vsel %vm2500, %v2360, 0
  %v2514 = vsel %vm2500, %v2361, 0
  %v2517 = vsel %vm2500, %v2362, 0
  %v2520 = vsel %vm2500, %v2363, 0
  %v2523 = vsel %vm2500, %v2364, 0
  %v2526 = vsel %vm2500, %v2365, 0
  %v2529 = vsel %vm2500, %v2366, 0
  %v2532 = vsel %vm2500, %v2367, 0
  %v2535 = vsel %vm2500, %v2368, 0
  %v2538 = vsel %vm2500, %v2369, 0
  %v2541 = vsel %vm2500, %v2370, 0
  %v2544 = vsel %vm2500, %v2371, 0
  %v2547 = vsel %vm2500, %v2372, 0
  %v2550 = vsel %vm2500, %v2373, 0
  %v2553 = vsel %vm2500, %v2374, 0
  %v2556 = vsel %vm2500, %v2375, 0
  %v2559 = vsel %vm2500, %v2376, 0
  %v2562 = vsel %vm2500, %v2377, 0
  %v2565 = vsel %vm2500, %v2378, 0
  %v2568 = vsel %vm2500, %v2379, 0
  %v2571 = vsel %vm2500, %v2380, 0
  %v2574 = vsel %vm2500, %v2381, 0
  %v2577 = vsel %vm2500, %v2382, 0
  %v2580 = vsel %vm2500, %v2383, 0
  %v2583 = vsel %vm2500, %v2384, 0
  %v2586 = vsel %vm2500, %v2385, 0
  %v2589 = vsel %vm2500, %v2386, 0
  %v2592 = vsel %vm2500, %v2387, 0
  %v2595 = vsel %vm2500, %v2388, 0
  %v2598 = vsel %vm2500, %v2389, 0
  %v2601 = vsel %vm2500, %v2390, 0
  %v2604 = vsel %vm2500, %v2391, 0
  %v2607 = vsel %vm2500, %v2392, 0
  %v2610 = vsel %vm2500, %v2393, 0
  %v2613 = vsel %vm2500, %v2394, 0
  %v2616 = vsel %vm2500, %v2395, 0
  %v2619 = vsel %vm2500, %v2396, 0
  %v2622 = vsel %vm2500, %v2397, 0
  %v2625 = vsel %vm2500, %v2398, 0
  %v2628 = vsel %vm2500, %v2399, 0
  %v2631 = vsel %vm2500, %v2400, 0
  %v2634 = vsel %vm2500, %v2401, 0
  %v2637 = vsel %vm2500, %v2402, 0
  %v2640 = vsel %vm2500, %v2403, 0
  %v2643 = vsel %vm2500, %v2404, 0
  %v2646 = vsel %vm2500, %v2405, 0
  %v2649 = vsel %vm2500, %v2406, 0
  %v2652 = vsel %vm2500, %v2407, 0
  %v2655 = vsel %vm2500, %v2408, 0
  %v2658 = vsel %vm2500, %v2409, 0
  %v2661 = vsel %vm2500, %v2410, 0
  %v2664 = vsel %vm2500, %v2411, 0
  %v2667 = vsel %vm2500, %v2412, 0
  %v2670 = vsel %vm2500, %v2413, 0
  %v2673 = vsel %vm2500, %v2414, 0
  %v2676 = vsel %vm2500, %v2415, 0
  %v2679 = vsel %vm2500, %v2416, 0
  %v2682 = vsel %vm2500, %v2417, 0
  %v2685 = vsel %vm2500, %v2418, 0
  %v2688 = vsel %vm2500, %v2419, 0
  %v2691 = vsel %vm2500, %v2420, 0
  %v2694 = vsel %vm2500, %v2421, 0
  %v2697 = vsel %vm2500, %v2422, 0
  %v2700 = vsel %vm2500, %v2423, 0
  %v2703 = vsel %vm2500, %v2424, 0
  %v2706 = vsel %vm2500, %v2425, 0
  %v2709 = vsel %vm2500, %v2426, 0
  %v2712 = vsel %vm2500, %v2427, 0
  %v2715 = vsel %vm2500, %v2428, 0
  %v2718 = vsel %vm2500, %v2429, 0
  %v2721 = vsel %vm2500, %v2430, 0
  %v2724 = vsel %vm2500, %v2431, 0
  %v2727 = vsel %vm2500, %v2432, 0
  %v2730 = vsel %vm2500, %v2433, 0
  %v2733 = vsel %vm2500, %v2434, 0
  %v2736 = vsel %vm2500, %v2435, 0
  %v2739 = vsel %vm2500, %v2436, 0
  %v2742 = vsel %vm2500, %v2437, 0
  %v2745 = vsel %vm2500, %v2438, 0
  %v2748 = vsel %vm2500, %v2439, 0
  %v2751 = vsel %vm2500, %v2440, 0
  %v2754 = vsel %vm2500, %v2441, 0
  %v2757 = vsel %vm2500, %v2442, 0
  %v2760 = vsel %vm2500, %v2443, 0
  %v2763 = vsel %vm2500, %v2444, 0
  %v2766 = vsel %vm2500, %v2445, 0
  %v2769 = vsel %vm2500, %v2446, 0
  %v2772 = vsel %vm2500, %v2447, 0
  %v2775 = vsel %vm2500, %v2448, 0
  %v2778 = vsel %vm2500, %v2449, 0
  %v2781 = vsel %vm2500, %v2450, 0
  %v2784 = vsel %vm2500, %v2451, 0
  %v2787 = vsel %vm2500, %v2452, 0
  %v2790 = vsel %vm2500, %v2453, 0
  %v2793 = vsel %vm2500, %v2454, 0
  %v2796 = vsel %vm2500, %v2455, 0
  %v2799 = vsel %vm2500, %v2456, 0
  %v2802 = vsel %vm2500, %v2457, 0
  %v2805 = vsel %vm2500, %v2458, 0
  %v2808 = vsel %vm2500, %v2459, 0
  %v2811 = vsel %vm2500, %v2460, 0
  %v2814 = vsel %vm2500, %v2461, 0
  %v2817 = vsel %vm2500, %v2462, 0
  %v2820 = vsel %vm2500, %v2463, 0
  %v2823 = vsel %vm2500, %v2464, 0
  %v2826 = vsel %vm2500, %v2465, 0
  %v2829 = vsel %vm2500, %v2466, 0
  %v2832 = vsel %vm2500, %v2467, 0
  %v2835 = vsel %vm2500, %v2468, 0
  %v2838 = vsel %vm2500, %v2469, 0
  %v2841 = vsel %vm2500, %v2470, 0
  %v2844 = vsel %vm2500, %v2471, 0
  %v2847 = vsel %vm2500, %v2472, 0
  %v2850 = vsel %vm2500, %v2473, 0
  %v2853 = vsel %vm2500, %v2474, 0
  %v2856 = vsel %vm2500, %v2475, 0
  %v2859 = vsel %vm2500, %v2476, 0
  %v2862 = vsel %vm2500, %v2477, 0
  %v2865 = vsel %vm2500, %v2478, 0
  %v2868 = vsel %vm2500, %v2479, 0
  %v2871 = vsel %vm2500, %v2480, 0
  %v2874 = vsel %vm2500, %v2481, 0
  %v2877 = vsel %vm2500, %v2482, 0
  %v2880 = vsel %vm2500, %v2483, 0
  %v2883 = vsel %vm2500, %v2484, 0
  %2885 = vmatprep.subr.mxu0 0.0
  %2886 = vmatpush1.msra.mxu0 0.0
  %2887 = vmatprep.subr.mxu0 0.0
  %2888 = vmatpush1.msra.mxu0 0.0
  %2889 = vmatprep.subr.mxu0 0.0
  %2890 = vmatpush1.msra.mxu0 0.0
  %2891 = vmatprep.subr.mxu0 0.0
  %2892 = vmatpush1.msra.mxu0 0.0
  %2893 = vmatprep.subr.mxu0 0.0
  %2894 = vmatpush1.msra.mxu0 0.0
  %2895 = vmatprep.subr.mxu0 0.0
  %2896 = vmatpush1.msra.mxu0 0.0
  %2897 = vmatprep.subr.mxu0 0.0
  %2898 = vmatpush1.msra.mxu0 0.0
  %2899 = vmatprep.subr.mxu0 0.0
  %2900 = vmatpush1.msra.mxu0 0.0
  %2901 = vmatprep.subr.mxu0 0.0
  %2902 = vmatpush1.msra.mxu0 %v2492
  %2903 = vmatprep.subr.mxu0 0.0
  %2904 = vmatpush1.msra.mxu0 %v2491
  %2905 = vmatprep.subr.mxu0 0.0
  %2906 = vmatpush1.msra.mxu0 %v2490
  %2907 = vmatprep.subr.mxu0 0.0
  %2908 = vmatpush1.msra.mxu0 %v2489
  %2909 = vmatprep.subr.mxu0 0.0
  %2910 = vmatpush1.msra.mxu0 %v2488
  %2911 = vmatprep.subr.mxu0 0.0
  %2912 = vmatpush1.msra.mxu0 %v2487
  %2913 = vmatprep.subr.mxu0 0.0
  %2914 = vmatpush1.msra.mxu0 %v2486
  %2915 = vmatprep.subr.mxu0 0.0
  %2916 = vmatpush1.msra.mxu0 %v2485
  %2917 = vmatprep.subr.mxu0 0.0
  %2918 = vmatpush2.msra.mxu0 0.0
  %2919 = vmatprep.subr.mxu0 0.0
  %2920 = vmatpush2.msra.mxu0 0.0
  %2921 = vmatprep.subr.mxu0 0.0
  %2922 = vmatpush2.msra.mxu0 0.0
  %2923 = vmatprep.subr.mxu0 0.0
  %2924 = vmatpush2.msra.mxu0 0.0
  %2925 = vmatprep.subr.mxu0 0.0
  %2926 = vmatpush2.msra.mxu0 0.0
  %2927 = vmatprep.subr.mxu0 0.0
  %2928 = vmatpush2.msra.mxu0 0.0
  %2929 = vmatprep.subr.mxu0 0.0
  %2930 = vmatpush2.msra.mxu0 0.0
  %2931 = vmatprep.subr.mxu0 0.0
  %2932 = vmatpush2.msra.mxu0 0.0
  %2933 = vmatprep.subr.mxu0 0.0
  %2934 = vmatpush2.msra.mxu0 0.0
  %2935 = vmatprep.subr.mxu0 0.0
  %2936 = vmatpush2.msra.mxu0 0.0
  %2937 = vmatprep.subr.mxu0 0.0
  %2938 = vmatpush2.msra.mxu0 0.0
  %2939 = vmatprep.subr.mxu0 0.0
  %2940 = vmatpush2.msra.mxu0 0.0
  %2941 = vmatprep.subr.mxu0 0.0
  %2942 = vmatpush2.msra.mxu0 0.0
  %2943 = vmatprep.subr.mxu0 0.0
  %2944 = vmatpush2.msra.mxu0 0.0
  %2945 = vmatprep.subr.mxu0 0.0
  %2946 = vmatpush2.msra.mxu0 0.0
  %2947 = vmatprep.subr.mxu0 0.0
  %2948 = vmatpush2.msra.mxu0 0.0
  %2949 = vmatprep.mubr.f32.mxu0 0.0
  %2950 = vmatmul.mubr.f32.gmra.mxu0 %v2502
  %v2951 = vpop.f32.mrf.mxu0
  %v2952 = vadd.f32 %v2498, %v2951
  %v2953 = vpop.f32.mrf.mxu0
  %2954 = vmatprep.mubr.f32.mxu0 0.0
  %2955 = vmatmul.mubr.f32.gmra.mxu0 %v2505
  %v2956 = vpop.f32.mrf.mxu0
  %v2957 = vadd.f32 %v2498, %v2956
  %v2958 = vpop.f32.mrf.mxu0
  %2959 = vmatprep.mubr.f32.mxu0 0.0
  %2960 = vmatmul.mubr.f32.gmra.mxu0 %v2508
  %v2961 = vpop.f32.mrf.mxu0
  %v2962 = vadd.f32 %v2498, %v2961
  %v2963 = vpop.f32.mrf.mxu0
  %2964 = vmatprep.mubr.f32.mxu0 0.0
  %2965 = vmatmul.mubr.f32.gmra.mxu0 %v2511
  %v2966 = vpop.f32.mrf.mxu0
  %v2967 = vadd.f32 %v2498, %v2966
  %v2968 = vpop.f32.mrf.mxu0
  %2969 = vmatprep.mubr.f32.mxu0 0.0
  %2970 = vmatmul.mubr.f32.gmra.mxu0 %v2514
  %v2971 = vpop.f32.mrf.mxu0
  %v2972 = vadd.f32 %v2498, %v2971
  %v2973 = vpop.f32.mrf.mxu0
  %2974 = vmatprep.mubr.f32.mxu0 0.0
  %2975 = vmatmul.mubr.f32.gmra.mxu0 %v2517
  %v2976 = vpop.f32.mrf.mxu0
  %v2977 = vadd.f32 %v2498, %v2976
  %v2978 = vpop.f32.mrf.mxu0
  %2979 = vmatprep.mubr.f32.mxu0 0.0
  %2980 = vmatmul.mubr.f32.gmra.mxu0 %v2520
  %v2981 = vpop.f32.mrf.mxu0
  %v2982 = vadd.f32 %v2498, %v2981
  %v2983 = vpop.f32.mrf.mxu0
  %2984 = vmatprep.mubr.f32.mxu0 0.0
  %2985 = vmatmul.mubr.f32.gmra.mxu0 %v2523
  %v2986 = vpop.f32.mrf.mxu0
  %v2987 = vadd.f32 %v2498, %v2986
  %v2988 = vpop.f32.mrf.mxu0
  %2989 = vmatprep.mubr.f32.mxu0 0.0
  %2990 = vmatmul.mubr.f32.gmra.mxu0 %v2526
  %v2991 = vpop.f32.mrf.mxu0
  %v2992 = vadd.f32 %v2498, %v2991
  %v2993 = vpop.f32.mrf.mxu0
  %2994 = vmatprep.mubr.f32.mxu0 0.0
  %2995 = vmatmul.mubr.f32.gmra.mxu0 %v2529
  %v2996 = vpop.f32.mrf.mxu0
  %v2997 = vadd.f32 %v2498, %v2996
  %v2998 = vpop.f32.mrf.mxu0
  %2999 = vmatprep.mubr.f32.mxu0 0.0
  %3000 = vmatmul.mubr.f32.gmra.mxu0 %v2532
  %v3001 = vpop.f32.mrf.mxu0
  %v3002 = vadd.f32 %v2498, %v3001
  %v3003 = vpop.f32.mrf.mxu0
  %3004 = vmatprep.mubr.f32.mxu0 0.0
  %3005 = vmatmul.mubr.f32.gmra.mxu0 %v2535
  %v3006 = vpop.f32.mrf.mxu0
  %v3007 = vadd.f32 %v2498, %v3006
  %v3008 = vpop.f32.mrf.mxu0
  %3009 = vmatprep.mubr.f32.mxu0 0.0
  %3010 = vmatmul.mubr.f32.gmra.mxu0 %v2538
  %v3011 = vpop.f32.mrf.mxu0
  %v3012 = vadd.f32 %v2498, %v3011
  %v3013 = vpop.f32.mrf.mxu0
  %3014 = vmatprep.mubr.f32.mxu0 0.0
  %3015 = vmatmul.mubr.f32.gmra.mxu0 %v2541
  %v3016 = vpop.f32.mrf.mxu0
  %v3017 = vadd.f32 %v2498, %v3016
  %v3018 = vpop.f32.mrf.mxu0
  %3019 = vmatprep.mubr.f32.mxu0 0.0
  %3020 = vmatmul.mubr.f32.gmra.mxu0 %v2544
  %v3021 = vpop.f32.mrf.mxu0
  %v3022 = vadd.f32 %v2498, %v3021
  %v3023 = vpop.f32.mrf.mxu0
  %3024 = vmatprep.mubr.f32.mxu0 0.0
  %3025 = vmatmul.mubr.f32.gmra.mxu0 %v2547
  %v3026 = vpop.f32.mrf.mxu0
  %v3027 = vadd.f32 %v2498, %v3026
  %v3028 = vpop.f32.mrf.mxu0
  %3029 = vmatprep.mubr.f32.mxu0 0.0
  %3030 = vmatmul.mubr.f32.gmra.mxu0 %v2550
  %v3031 = vpop.f32.mrf.mxu0
  %v3032 = vadd.f32 %v2498, %v3031
  %v3033 = vpop.f32.mrf.mxu0
  %3034 = vmatprep.mubr.f32.mxu0 0.0
  %3035 = vmatmul.mubr.f32.gmra.mxu0 %v2553
  %v3036 = vpop.f32.mrf.mxu0
  %v3037 = vadd.f32 %v2498, %v3036
  %v3038 = vpop.f32.mrf.mxu0
  %3039 = vmatprep.mubr.f32.mxu0 0.0
  %3040 = vmatmul.mubr.f32.gmra.mxu0 %v2556
  %v3041 = vpop.f32.mrf.mxu0
  %v3042 = vadd.f32 %v2498, %v3041
  %v3043 = vpop.f32.mrf.mxu0
  %3044 = vmatprep.mubr.f32.mxu0 0.0
  %3045 = vmatmul.mubr.f32.gmra.mxu0 %v2559
  %v3046 = vpop.f32.mrf.mxu0
  %v3047 = vadd.f32 %v2498, %v3046
  %v3048 = vpop.f32.mrf.mxu0
  %3049 = vmatprep.mubr.f32.mxu0 0.0
  %3050 = vmatmul.mubr.f32.gmra.mxu0 %v2562
  %v3051 = vpop.f32.mrf.mxu0
  %v3052 = vadd.f32 %v2498, %v3051
  %v3053 = vpop.f32.mrf.mxu0
  %3054 = vmatprep.mubr.f32.mxu0 0.0
  %3055 = vmatmul.mubr.f32.gmra.mxu0 %v2565
  %v3056 = vpop.f32.mrf.mxu0
  %v3057 = vadd.f32 %v2498, %v3056
  %v3058 = vpop.f32.mrf.mxu0
  %3059 = vmatprep.mubr.f32.mxu0 0.0
  %3060 = vmatmul.mubr.f32.gmra.mxu0 %v2568
  %v3061 = vpop.f32.mrf.mxu0
  %v3062 = vadd.f32 %v2498, %v3061
  %v3063 = vpop.f32.mrf.mxu0
  %3064 = vmatprep.mubr.f32.mxu0 0.0
  %3065 = vmatmul.mubr.f32.gmra.mxu0 %v2571
  %v3066 = vpop.f32.mrf.mxu0
  %v3067 = vadd.f32 %v2498, %v3066
  %v3068 = vpop.f32.mrf.mxu0
  %3069 = vmatprep.mubr.f32.mxu0 0.0
  %3070 = vmatmul.mubr.f32.gmra.mxu0 %v2574
  %v3071 = vpop.f32.mrf.mxu0
  %v3072 = vadd.f32 %v2498, %v3071
  %v3073 = vpop.f32.mrf.mxu0
  %3074 = vmatprep.mubr.f32.mxu0 0.0
  %3075 = vmatmul.mubr.f32.gmra.mxu0 %v2577
  %v3076 = vpop.f32.mrf.mxu0
  %v3077 = vadd.f32 %v2498, %v3076
  %v3078 = vpop.f32.mrf.mxu0
  %3079 = vmatprep.mubr.f32.mxu0 0.0
  %3080 = vmatmul.mubr.f32.gmra.mxu0 %v2580
  %v3081 = vpop.f32.mrf.mxu0
  %v3082 = vadd.f32 %v2498, %v3081
  %v3083 = vpop.f32.mrf.mxu0
  %3084 = vmatprep.mubr.f32.mxu0 0.0
  %3085 = vmatmul.mubr.f32.gmra.mxu0 %v2583
  %v3086 = vpop.f32.mrf.mxu0
  %v3087 = vadd.f32 %v2498, %v3086
  %v3088 = vpop.f32.mrf.mxu0
  %3089 = vmatprep.mubr.f32.mxu0 0.0
  %3090 = vmatmul.mubr.f32.gmra.mxu0 %v2586
  %v3091 = vpop.f32.mrf.mxu0
  %v3092 = vadd.f32 %v2498, %v3091
  %v3093 = vpop.f32.mrf.mxu0
  %3094 = vmatprep.mubr.f32.mxu0 0.0
  %3095 = vmatmul.mubr.f32.gmra.mxu0 %v2589
  %v3096 = vpop.f32.mrf.mxu0
  %v3097 = vadd.f32 %v2498, %v3096
  %v3098 = vpop.f32.mrf.mxu0
  %3099 = vmatprep.mubr.f32.mxu0 0.0
  %3100 = vmatmul.mubr.f32.gmra.mxu0 %v2592
  %v3101 = vpop.f32.mrf.mxu0
  %v3102 = vadd.f32 %v2498, %v3101
  %v3103 = vpop.f32.mrf.mxu0
  %3104 = vmatprep.mubr.f32.mxu0 0.0
  %3105 = vmatmul.mubr.f32.gmra.mxu0 %v2595
  %v3106 = vpop.f32.mrf.mxu0
  %v3107 = vadd.f32 %v2498, %v3106
  %v3108 = vpop.f32.mrf.mxu0
  %3109 = vmatprep.mubr.f32.mxu0 0.0
  %3110 = vmatmul.mubr.f32.gmra.mxu0 %v2598
  %v3111 = vpop.f32.mrf.mxu0
  %v3112 = vadd.f32 %v2498, %v3111
  %v3113 = vpop.f32.mrf.mxu0
  %3114 = vmatprep.mubr.f32.mxu0 0.0
  %3115 = vmatmul.mubr.f32.gmra.mxu0 %v2601
  %v3116 = vpop.f32.mrf.mxu0
  %v3117 = vadd.f32 %v2498, %v3116
  %v3118 = vpop.f32.mrf.mxu0
  %3119 = vmatprep.mubr.f32.mxu0 0.0
  %3120 = vmatmul.mubr.f32.gmra.mxu0 %v2604
  %v3121 = vpop.f32.mrf.mxu0
  %v3122 = vadd.f32 %v2498, %v3121
  %v3123 = vpop.f32.mrf.mxu0
  %3124 = vmatprep.mubr.f32.mxu0 0.0
  %3125 = vmatmul.mubr.f32.gmra.mxu0 %v2607
  %v3126 = vpop.f32.mrf.mxu0
  %v3127 = vadd.f32 %v2498, %v3126
  %v3128 = vpop.f32.mrf.mxu0
  %3129 = vmatprep.mubr.f32.mxu0 0.0
  %3130 = vmatmul.mubr.f32.gmra.mxu0 %v2610
  %v3131 = vpop.f32.mrf.mxu0
  %v3132 = vadd.f32 %v2498, %v3131
  %v3133 = vpop.f32.mrf.mxu0
  %3134 = vmatprep.mubr.f32.mxu0 0.0
  %3135 = vmatmul.mubr.f32.gmra.mxu0 %v2613
  %v3136 = vpop.f32.mrf.mxu0
  %v3137 = vadd.f32 %v2498, %v3136
  %v3138 = vpop.f32.mrf.mxu0
  %3139 = vmatprep.mubr.f32.mxu0 0.0
  %3140 = vmatmul.mubr.f32.gmra.mxu0 %v2616
  %v3141 = vpop.f32.mrf.mxu0
  %v3142 = vadd.f32 %v2498, %v3141
  %v3143 = vpop.f32.mrf.mxu0
  %3144 = vmatprep.mubr.f32.mxu0 0.0
  %3145 = vmatmul.mubr.f32.gmra.mxu0 %v2619
  %v3146 = vpop.f32.mrf.mxu0
  %v3147 = vadd.f32 %v2498, %v3146
  %v3148 = vpop.f32.mrf.mxu0
  %3149 = vmatprep.mubr.f32.mxu0 0.0
  %3150 = vmatmul.mubr.f32.gmra.mxu0 %v2622
  %v3151 = vpop.f32.mrf.mxu0
  %v3152 = vadd.f32 %v2498, %v3151
  %v3153 = vpop.f32.mrf.mxu0
  %3154 = vmatprep.mubr.f32.mxu0 0.0
  %3155 = vmatmul.mubr.f32.gmra.mxu0 %v2625
  %v3156 = vpop.f32.mrf.mxu0
  %v3157 = vadd.f32 %v2498, %v3156
  %v3158 = vpop.f32.mrf.mxu0
  %3159 = vmatprep.mubr.f32.mxu0 0.0
  %3160 = vmatmul.mubr.f32.gmra.mxu0 %v2628
  %v3161 = vpop.f32.mrf.mxu0
  %v3162 = vadd.f32 %v2498, %v3161
  %v3163 = vpop.f32.mrf.mxu0
  %3164 = vmatprep.mubr.f32.mxu0 0.0
  %3165 = vmatmul.mubr.f32.gmra.mxu0 %v2631
  %v3166 = vpop.f32.mrf.mxu0
  %v3167 = vadd.f32 %v2498, %v3166
  %v3168 = vpop.f32.mrf.mxu0
  %3169 = vmatprep.mubr.f32.mxu0 0.0
  %3170 = vmatmul.mubr.f32.gmra.mxu0 %v2634
  %v3171 = vpop.f32.mrf.mxu0
  %v3172 = vadd.f32 %v2498, %v3171
  %v3173 = vpop.f32.mrf.mxu0
  %3174 = vmatprep.mubr.f32.mxu0 0.0
  %3175 = vmatmul.mubr.f32.gmra.mxu0 %v2637
  %v3176 = vpop.f32.mrf.mxu0
  %v3177 = vadd.f32 %v2498, %v3176
  %v3178 = vpop.f32.mrf.mxu0
  %3179 = vmatprep.mubr.f32.mxu0 0.0
  %3180 = vmatmul.mubr.f32.gmra.mxu0 %v2640
  %v3181 = vpop.f32.mrf.mxu0
  %v3182 = vadd.f32 %v2498, %v3181
  %v3183 = vpop.f32.mrf.mxu0
  %3184 = vmatprep.mubr.f32.mxu0 0.0
  %3185 = vmatmul.mubr.f32.gmra.mxu0 %v2643
  %v3186 = vpop.f32.mrf.mxu0
  %v3187 = vadd.f32 %v2498, %v3186
  %v3188 = vpop.f32.mrf.mxu0
  %3189 = vmatprep.mubr.f32.mxu0 0.0
  %3190 = vmatmul.mubr.f32.gmra.mxu0 %v2646
  %v3191 = vpop.f32.mrf.mxu0
  %v3192 = vadd.f32 %v2498, %v3191
  %v3193 = vpop.f32.mrf.mxu0
  %3194 = vmatprep.mubr.f32.mxu0 0.0
  %3195 = vmatmul.mubr.f32.gmra.mxu0 %v2649
  %v3196 = vpop.f32.mrf.mxu0
  %v3197 = vadd.f32 %v2498, %v3196
  %v3198 = vpop.f32.mrf.mxu0
  %3199 = vmatprep.mubr.f32.mxu0 0.0
  %3200 = vmatmul.mubr.f32.gmra.mxu0 %v2652
  %v3201 = vpop.f32.mrf.mxu0
  %v3202 = vadd.f32 %v2498, %v3201
  %v3203 = vpop.f32.mrf.mxu0
  %3204 = vmatprep.mubr.f32.mxu0 0.0
  %3205 = vmatmul.mubr.f32.gmra.mxu0 %v2655
  %v3206 = vpop.f32.mrf.mxu0
  %v3207 = vadd.f32 %v2498, %v3206
  %v3208 = vpop.f32.mrf.mxu0
  %3209 = vmatprep.mubr.f32.mxu0 0.0
  %3210 = vmatmul.mubr.f32.gmra.mxu0 %v2658
  %v3211 = vpop.f32.mrf.mxu0
  %v3212 = vadd.f32 %v2498, %v3211
  %v3213 = vpop.f32.mrf.mxu0
  %3214 = vmatprep.mubr.f32.mxu0 0.0
  %3215 = vmatmul.mubr.f32.gmra.mxu0 %v2661
  %v3216 = vpop.f32.mrf.mxu0
  %v3217 = vadd.f32 %v2498, %v3216
  %v3218 = vpop.f32.mrf.mxu0
  %3219 = vmatprep.mubr.f32.mxu0 0.0
  %3220 = vmatmul.mubr.f32.gmra.mxu0 %v2664
  %v3221 = vpop.f32.mrf.mxu0
  %v3222 = vadd.f32 %v2498, %v3221
  %v3223 = vpop.f32.mrf.mxu0
  %3224 = vmatprep.mubr.f32.mxu0 0.0
  %3225 = vmatmul.mubr.f32.gmra.mxu0 %v2667
  %v3226 = vpop.f32.mrf.mxu0
  %v3227 = vadd.f32 %v2498, %v3226
  %v3228 = vpop.f32.mrf.mxu0
  %3229 = vmatprep.mubr.f32.mxu0 0.0
  %3230 = vmatmul.mubr.f32.gmra.mxu0 %v2670
  %v3231 = vpop.f32.mrf.mxu0
  %v3232 = vadd.f32 %v2498, %v3231
  %v3233 = vpop.f32.mrf.mxu0
  %3234 = vmatprep.mubr.f32.mxu0 0.0
  %3235 = vmatmul.mubr.f32.gmra.mxu0 %v2673
  %v3236 = vpop.f32.mrf.mxu0
  %v3237 = vadd.f32 %v2498, %v3236
  %v3238 = vpop.f32.mrf.mxu0
  %3239 = vmatprep.mubr.f32.mxu0 0.0
  %3240 = vmatmul.mubr.f32.gmra.mxu0 %v2676
  %v3241 = vpop.f32.mrf.mxu0
  %v3242 = vadd.f32 %v2498, %v3241
  %v3243 = vpop.f32.mrf.mxu0
  %3244 = vmatprep.mubr.f32.mxu0 0.0
  %3245 = vmatmul.mubr.f32.gmra.mxu0 %v2679
  %v3246 = vpop.f32.mrf.mxu0
  %v3247 = vadd.f32 %v2498, %v3246
  %v3248 = vpop.f32.mrf.mxu0
  %3249 = vmatprep.mubr.f32.mxu0 0.0
  %3250 = vmatmul.mubr.f32.gmra.mxu0 %v2682
  %v3251 = vpop.f32.mrf.mxu0
  %v3252 = vadd.f32 %v2498, %v3251
  %v3253 = vpop.f32.mrf.mxu0
  %3254 = vmatprep.mubr.f32.mxu0 0.0
  %3255 = vmatmul.mubr.f32.gmra.mxu0 %v2685
  %v3256 = vpop.f32.mrf.mxu0
  %v3257 = vadd.f32 %v2498, %v3256
  %v3258 = vpop.f32.mrf.mxu0
  %3259 = vmatprep.mubr.f32.mxu0 0.0
  %3260 = vmatmul.mubr.f32.gmra.mxu0 %v2688
  %v3261 = vpop.f32.mrf.mxu0
  %v3262 = vadd.f32 %v2498, %v3261
  %v3263 = vpop.f32.mrf.mxu0
  %3264 = vmatprep.mubr.f32.mxu0 0.0
  %3265 = vmatmul.mubr.f32.gmra.mxu0 %v2691
  %v3266 = vpop.f32.mrf.mxu0
  %v3267 = vadd.f32 %v2498, %v3266
  %v3268 = vpop.f32.mrf.mxu0
  %3269 = vmatprep.mubr.f32.mxu0 0.0
  %3270 = vmatmul.mubr.f32.gmra.mxu0 %v2694
  %v3271 = vpop.f32.mrf.mxu0
  %v3272 = vadd.f32 %v2498, %v3271
  %v3273 = vpop.f32.mrf.mxu0
  %3274 = vmatprep.mubr.f32.mxu0 0.0
  %3275 = vmatmul.mubr.f32.gmra.mxu0 %v2697
  %v3276 = vpop.f32.mrf.mxu0
  %v3277 = vadd.f32 %v2498, %v3276
  %v3278 = vpop.f32.mrf.mxu0
  %3279 = vmatprep.mubr.f32.mxu0 0.0
  %3280 = vmatmul.mubr.f32.gmra.mxu0 %v2700
  %v3281 = vpop.f32.mrf.mxu0
  %v3282 = vadd.f32 %v2498, %v3281
  %v3283 = vpop.f32.mrf.mxu0
  %3284 = vmatprep.mubr.f32.mxu0 0.0
  %3285 = vmatmul.mubr.f32.gmra.mxu0 %v2703
  %v3286 = vpop.f32.mrf.mxu0
  %v3287 = vadd.f32 %v2498, %v3286
  %v3288 = vpop.f32.mrf.mxu0
  %3289 = vmatprep.mubr.f32.mxu0 0.0
  %3290 = vmatmul.mubr.f32.gmra.mxu0 %v2706
  %v3291 = vpop.f32.mrf.mxu0
  %v3292 = vadd.f32 %v2498, %v3291
  %v3293 = vpop.f32.mrf.mxu0
  %3294 = vmatprep.mubr.f32.mxu0 0.0
  %3295 = vmatmul.mubr.f32.gmra.mxu0 %v2709
  %v3296 = vpop.f32.mrf.mxu0
  %v3297 = vadd.f32 %v2498, %v3296
  %v3298 = vpop.f32.mrf.mxu0
  %3299 = vmatprep.mubr.f32.mxu0 0.0
  %3300 = vmatmul.mubr.f32.gmra.mxu0 %v2712
  %v3301 = vpop.f32.mrf.mxu0
  %v3302 = vadd.f32 %v2498, %v3301
  %v3303 = vpop.f32.mrf.mxu0
  %3304 = vmatprep.mubr.f32.mxu0 0.0
  %3305 = vmatmul.mubr.f32.gmra.mxu0 %v2715
  %v3306 = vpop.f32.mrf.mxu0
  %v3307 = vadd.f32 %v2498, %v3306
  %v3308 = vpop.f32.mrf.mxu0
  %3309 = vmatprep.mubr.f32.mxu0 0.0
  %3310 = vmatmul.mubr.f32.gmra.mxu0 %v2718
  %v3311 = vpop.f32.mrf.mxu0
  %v3312 = vadd.f32 %v2498, %v3311
  %v3313 = vpop.f32.mrf.mxu0
  %3314 = vmatprep.mubr.f32.mxu0 0.0
  %3315 = vmatmul.mubr.f32.gmra.mxu0 %v2721
  %v3316 = vpop.f32.mrf.mxu0
  %v3317 = vadd.f32 %v2498, %v3316
  %v3318 = vpop.f32.mrf.mxu0
  %3319 = vmatprep.mubr.f32.mxu0 0.0
  %3320 = vmatmul.mubr.f32.gmra.mxu0 %v2724
  %v3321 = vpop.f32.mrf.mxu0
  %v3322 = vadd.f32 %v2498, %v3321
  %v3323 = vpop.f32.mrf.mxu0
  %3324 = vmatprep.mubr.f32.mxu0 0.0
  %3325 = vmatmul.mubr.f32.gmra.mxu0 %v2727
  %v3326 = vpop.f32.mrf.mxu0
  %v3327 = vadd.f32 %v2498, %v3326
  %v3328 = vpop.f32.mrf.mxu0
  %3329 = vmatprep.mubr.f32.mxu0 0.0
  %3330 = vmatmul.mubr.f32.gmra.mxu0 %v2730
  %v3331 = vpop.f32.mrf.mxu0
  %v3332 = vadd.f32 %v2498, %v3331
  %v3333 = vpop.f32.mrf.mxu0
  %3334 = vmatprep.mubr.f32.mxu0 0.0
  %3335 = vmatmul.mubr.f32.gmra.mxu0 %v2733
  %v3336 = vpop.f32.mrf.mxu0
  %v3337 = vadd.f32 %v2498, %v3336
  %v3338 = vpop.f32.mrf.mxu0
  %3339 = vmatprep.mubr.f32.mxu0 0.0
  %3340 = vmatmul.mubr.f32.gmra.mxu0 %v2736
  %v3341 = vpop.f32.mrf.mxu0
  %v3342 = vadd.f32 %v2498, %v3341
  %v3343 = vpop.f32.mrf.mxu0
  %3344 = vmatprep.mubr.f32.mxu0 0.0
  %3345 = vmatmul.mubr.f32.gmra.mxu0 %v2739
  %v3346 = vpop.f32.mrf.mxu0
  %v3347 = vadd.f32 %v2498, %v3346
  %v3348 = vpop.f32.mrf.mxu0
  %3349 = vmatprep.mubr.f32.mxu0 0.0
  %3350 = vmatmul.mubr.f32.gmra.mxu0 %v2742
  %v3351 = vpop.f32.mrf.mxu0
  %v3352 = vadd.f32 %v2498, %v3351
  %v3353 = vpop.f32.mrf.mxu0
  %3354 = vmatprep.mubr.f32.mxu0 0.0
  %3355 = vmatmul.mubr.f32.gmra.mxu0 %v2745
  %v3356 = vpop.f32.mrf.mxu0
  %v3357 = vadd.f32 %v2498, %v3356
  %v3358 = vpop.f32.mrf.mxu0
  %3359 = vmatprep.mubr.f32.mxu0 0.0
  %3360 = vmatmul.mubr.f32.gmra.mxu0 %v2748
  %v3361 = vpop.f32.mrf.mxu0
  %v3362 = vadd.f32 %v2498, %v3361
  %v3363 = vpop.f32.mrf.mxu0
  %3364 = vmatprep.mubr.f32.mxu0 0.0
  %3365 = vmatmul.mubr.f32.gmra.mxu0 %v2751
  %v3366 = vpop.f32.mrf.mxu0
  %v3367 = vadd.f32 %v2498, %v3366
  %v3368 = vpop.f32.mrf.mxu0
  %3369 = vmatprep.mubr.f32.mxu0 0.0
  %3370 = vmatmul.mubr.f32.gmra.mxu0 %v2754
  %v3371 = vpop.f32.mrf.mxu0
  %v3372 = vadd.f32 %v2498, %v3371
  %v3373 = vpop.f32.mrf.mxu0
  %3374 = vmatprep.mubr.f32.mxu0 0.0
  %3375 = vmatmul.mubr.f32.gmra.mxu0 %v2757
  %v3376 = vpop.f32.mrf.mxu0
  %v3377 = vadd.f32 %v2498, %v3376
  %v3378 = vpop.f32.mrf.mxu0
  %3379 = vmatprep.mubr.f32.mxu0 0.0
  %3380 = vmatmul.mubr.f32.gmra.mxu0 %v2760
  %v3381 = vpop.f32.mrf.mxu0
  %v3382 = vadd.f32 %v2498, %v3381
  %v3383 = vpop.f32.mrf.mxu0
  %3384 = vmatprep.mubr.f32.mxu0 0.0
  %3385 = vmatmul.mubr.f32.gmra.mxu0 %v2763
  %v3386 = vpop.f32.mrf.mxu0
  %v3387 = vadd.f32 %v2498, %v3386
  %v3388 = vpop.f32.mrf.mxu0
  %3389 = vmatprep.mubr.f32.mxu0 0.0
  %3390 = vmatmul.mubr.f32.gmra.mxu0 %v2766
  %v3391 = vpop.f32.mrf.mxu0
  %v3392 = vadd.f32 %v2498, %v3391
  %v3393 = vpop.f32.mrf.mxu0
  %3394 = vmatprep.mubr.f32.mxu0 0.0
  %3395 = vmatmul.mubr.f32.gmra.mxu0 %v2769
  %v3396 = vpop.f32.mrf.mxu0
  %v3397 = vadd.f32 %v2498, %v3396
  %v3398 = vpop.f32.mrf.mxu0
  %3399 = vmatprep.mubr.f32.mxu0 0.0
  %3400 = vmatmul.mubr.f32.gmra.mxu0 %v2772
  %v3401 = vpop.f32.mrf.mxu0
  %v3402 = vadd.f32 %v2498, %v3401
  %v3403 = vpop.f32.mrf.mxu0
  %3404 = vmatprep.mubr.f32.mxu0 0.0
  %3405 = vmatmul.mubr.f32.gmra.mxu0 %v2775
  %v3406 = vpop.f32.mrf.mxu0
  %v3407 = vadd.f32 %v2498, %v3406
  %v3408 = vpop.f32.mrf.mxu0
  %3409 = vmatprep.mubr.f32.mxu0 0.0
  %3410 = vmatmul.mubr.f32.gmra.mxu0 %v2778
  %v3411 = vpop.f32.mrf.mxu0
  %v3412 = vadd.f32 %v2498, %v3411
  %v3413 = vpop.f32.mrf.mxu0
  %3414 = vmatprep.mubr.f32.mxu0 0.0
  %3415 = vmatmul.mubr.f32.gmra.mxu0 %v2781
  %v3416 = vpop.f32.mrf.mxu0
  %v3417 = vadd.f32 %v2498, %v3416
  %v3418 = vpop.f32.mrf.mxu0
  %3419 = vmatprep.mubr.f32.mxu0 0.0
  %3420 = vmatmul.mubr.f32.gmra.mxu0 %v2784
  %v3421 = vpop.f32.mrf.mxu0
  %v3422 = vadd.f32 %v2498, %v3421
  %v3423 = vpop.f32.mrf.mxu0
  %3424 = vmatprep.mubr.f32.mxu0 0.0
  %3425 = vmatmul.mubr.f32.gmra.mxu0 %v2787
  %v3426 = vpop.f32.mrf.mxu0
  %v3427 = vadd.f32 %v2498, %v3426
  %v3428 = vpop.f32.mrf.mxu0
  %3429 = vmatprep.mubr.f32.mxu0 0.0
  %3430 = vmatmul.mubr.f32.gmra.mxu0 %v2790
  %v3431 = vpop.f32.mrf.mxu0
  %v3432 = vadd.f32 %v2498, %v3431
  %v3433 = vpop.f32.mrf.mxu0
  %3434 = vmatprep.mubr.f32.mxu0 0.0
  %3435 = vmatmul.mubr.f32.gmra.mxu0 %v2793
  %v3436 = vpop.f32.mrf.mxu0
  %v3437 = vadd.f32 %v2498, %v3436
  %v3438 = vpop.f32.mrf.mxu0
  %3439 = vmatprep.mubr.f32.mxu0 0.0
  %3440 = vmatmul.mubr.f32.gmra.mxu0 %v2796
  %v3441 = vpop.f32.mrf.mxu0
  %v3442 = vadd.f32 %v2498, %v3441
  %v3443 = vpop.f32.mrf.mxu0
  %3444 = vmatprep.mubr.f32.mxu0 0.0
  %3445 = vmatmul.mubr.f32.gmra.mxu0 %v2799
  %v3446 = vpop.f32.mrf.mxu0
  %v3447 = vadd.f32 %v2498, %v3446
  %v3448 = vpop.f32.mrf.mxu0
  %3449 = vmatprep.mubr.f32.mxu0 0.0
  %3450 = vmatmul.mubr.f32.gmra.mxu0 %v2802
  %v3451 = vpop.f32.mrf.mxu0
  %v3452 = vadd.f32 %v2498, %v3451
  %v3453 = vpop.f32.mrf.mxu0
  %3454 = vmatprep.mubr.f32.mxu0 0.0
  %3455 = vmatmul.mubr.f32.gmra.mxu0 %v2805
  %v3456 = vpop.f32.mrf.mxu0
  %v3457 = vadd.f32 %v2498, %v3456
  %v3458 = vpop.f32.mrf.mxu0
  %3459 = vmatprep.mubr.f32.mxu0 0.0
  %3460 = vmatmul.mubr.f32.gmra.mxu0 %v2808
  %v3461 = vpop.f32.mrf.mxu0
  %v3462 = vadd.f32 %v2498, %v3461
  %v3463 = vpop.f32.mrf.mxu0
  %3464 = vmatprep.mubr.f32.mxu0 0.0
  %3465 = vmatmul.mubr.f32.gmra.mxu0 %v2811
  %v3466 = vpop.f32.mrf.mxu0
  %v3467 = vadd.f32 %v2498, %v3466
  %v3468 = vpop.f32.mrf.mxu0
  %3469 = vmatprep.mubr.f32.mxu0 0.0
  %3470 = vmatmul.mubr.f32.gmra.mxu0 %v2814
  %v3471 = vpop.f32.mrf.mxu0
  %v3472 = vadd.f32 %v2498, %v3471
  %v3473 = vpop.f32.mrf.mxu0
  %3474 = vmatprep.mubr.f32.mxu0 0.0
  %3475 = vmatmul.mubr.f32.gmra.mxu0 %v2817
  %v3476 = vpop.f32.mrf.mxu0
  %v3477 = vadd.f32 %v2498, %v3476
  %v3478 = vpop.f32.mrf.mxu0
  %3479 = vmatprep.mubr.f32.mxu0 0.0
  %3480 = vmatmul.mubr.f32.gmra.mxu0 %v2820
  %v3481 = vpop.f32.mrf.mxu0
  %v3482 = vadd.f32 %v2498, %v3481
  %v3483 = vpop.f32.mrf.mxu0
  %3484 = vmatprep.mubr.f32.mxu0 0.0
  %3485 = vmatmul.mubr.f32.gmra.mxu0 %v2823
  %v3486 = vpop.f32.mrf.mxu0
  %v3487 = vadd.f32 %v2498, %v3486
  %v3488 = vpop.f32.mrf.mxu0
  %3489 = vmatprep.mubr.f32.mxu0 0.0
  %3490 = vmatmul.mubr.f32.gmra.mxu0 %v2826
  %v3491 = vpop.f32.mrf.mxu0
  %v3492 = vadd.f32 %v2498, %v3491
  %v3493 = vpop.f32.mrf.mxu0
  %3494 = vmatprep.mubr.f32.mxu0 0.0
  %3495 = vmatmul.mubr.f32.gmra.mxu0 %v2829
  %v3496 = vpop.f32.mrf.mxu0
  %v3497 = vadd.f32 %v2498, %v3496
  %v3498 = vpop.f32.mrf.mxu0
  %3499 = vmatprep.mubr.f32.mxu0 0.0
  %3500 = vmatmul.mubr.f32.gmra.mxu0 %v2832
  %v3501 = vpop.f32.mrf.mxu0
  %v3502 = vadd.f32 %v2498, %v3501
  %v3503 = vpop.f32.mrf.mxu0
  %3504 = vmatprep.mubr.f32.mxu0 0.0
  %3505 = vmatmul.mubr.f32.gmra.mxu0 %v2835
  %v3506 = vpop.f32.mrf.mxu0
  %v3507 = vadd.f32 %v2498, %v3506
  %v3508 = vpop.f32.mrf.mxu0
  %3509 = vmatprep.mubr.f32.mxu0 0.0
  %3510 = vmatmul.mubr.f32.gmra.mxu0 %v2838
  %v3511 = vpop.f32.mrf.mxu0
  %v3512 = vadd.f32 %v2498, %v3511
  %v3513 = vpop.f32.mrf.mxu0
  %3514 = vmatprep.mubr.f32.mxu0 0.0
  %3515 = vmatmul.mubr.f32.gmra.mxu0 %v2841
  %v3516 = vpop.f32.mrf.mxu0
  %v3517 = vadd.f32 %v2498, %v3516
  %v3518 = vpop.f32.mrf.mxu0
  %3519 = vmatprep.mubr.f32.mxu0 0.0
  %3520 = vmatmul.mubr.f32.gmra.mxu0 %v2844
  %v3521 = vpop.f32.mrf.mxu0
  %v3522 = vadd.f32 %v2498, %v3521
  %v3523 = vpop.f32.mrf.mxu0
  %3524 = vmatprep.mubr.f32.mxu0 0.0
  %3525 = vmatmul.mubr.f32.gmra.mxu0 %v2847
  %v3526 = vpop.f32.mrf.mxu0
  %v3527 = vadd.f32 %v2498, %v3526
  %v3528 = vpop.f32.mrf.mxu0
  %3529 = vmatprep.mubr.f32.mxu0 0.0
  %3530 = vmatmul.mubr.f32.gmra.mxu0 %v2850
  %v3531 = vpop.f32.mrf.mxu0
  %v3532 = vadd.f32 %v2498, %v3531
  %v3533 = vpop.f32.mrf.mxu0
  %3534 = vmatprep.mubr.f32.mxu0 0.0
  %3535 = vmatmul.mubr.f32.gmra.mxu0 %v2853
  %v3536 = vpop.f32.mrf.mxu0
  %v3537 = vadd.f32 %v2498, %v3536
  %v3538 = vpop.f32.mrf.mxu0
  %3539 = vmatprep.mubr.f32.mxu0 0.0
  %3540 = vmatmul.mubr.f32.gmra.mxu0 %v2856
  %v3541 = vpop.f32.mrf.mxu0
  %v3542 = vadd.f32 %v2498, %v3541
  %v3543 = vpop.f32.mrf.mxu0
  %3544 = vmatprep.mubr.f32.mxu0 0.0
  %3545 = vmatmul.mubr.f32.gmra.mxu0 %v2859
  %v3546 = vpop.f32.mrf.mxu0
  %v3547 = vadd.f32 %v2498, %v3546
  %v3548 = vpop.f32.mrf.mxu0
  %3549 = vmatprep.mubr.f32.mxu0 0.0
  %3550 = vmatmul.mubr.f32.gmra.mxu0 %v2862
  %v3551 = vpop.f32.mrf.mxu0
  %v3552 = vadd.f32 %v2498, %v3551
  %v3553 = vpop.f32.mrf.mxu0
  %3554 = vmatprep.mubr.f32.mxu0 0.0
  %3555 = vmatmul.mubr.f32.gmra.mxu0 %v2865
  %v3556 = vpop.f32.mrf.mxu0
  %v3557 = vadd.f32 %v2498, %v3556
  %v3558 = vpop.f32.mrf.mxu0
  %3559 = vmatprep.mubr.f32.mxu0 0.0
  %3560 = vmatmul.mubr.f32.gmra.mxu0 %v2868
  %v3561 = vpop.f32.mrf.mxu0
  %v3562 = vadd.f32 %v2498, %v3561
  %v3563 = vpop.f32.mrf.mxu0
  %3564 = vmatprep.mubr.f32.mxu0 0.0
  %3565 = vmatmul.mubr.f32.gmra.mxu0 %v2871
  %v3566 = vpop.f32.mrf.mxu0
  %v3567 = vadd.f32 %v2498, %v3566
  %v3568 = vpop.f32.mrf.mxu0
  %3569 = vmatprep.mubr.f32.mxu0 0.0
  %3570 = vmatmul.mubr.f32.gmra.mxu0 %v2874
  %v3571 = vpop.f32.mrf.mxu0
  %v3572 = vadd.f32 %v2498, %v3571
  %v3573 = vpop.f32.mrf.mxu0
  %3574 = vmatprep.mubr.f32.mxu0 0.0
  %3575 = vmatmul.mubr.f32.gmra.mxu0 %v2877
  %v3576 = vpop.f32.mrf.mxu0
  %v3577 = vadd.f32 %v2498, %v3576
  %v3578 = vpop.f32.mrf.mxu0
  %3579 = vmatprep.mubr.f32.mxu0 0.0
  %3580 = vmatmul.mubr.f32.gmra.mxu0 %v2880
  %v3581 = vpop.f32.mrf.mxu0
  %v3582 = vadd.f32 %v2498, %v3581
  %v3583 = vpop.f32.mrf.mxu0
  %3584 = vmatprep.mubr.f32.mxu0 0.0
  %3585 = vmatmul.mubr.f32.gmra.mxu0 %v2883
  %v3586 = vpop.f32.mrf.mxu0
  %v3587 = vadd.f32 %v2498, %v3586
  %v3588 = vpop.f32.mrf.mxu0
  %3589 = vdwg.mxu0
  %v3590 = vmax.f32 %v2952, 0.0
  %v3591 = vmax.f32 %v2957, 0.0
  %v3592 = vmax.f32 %v2962, 0.0
  %v3593 = vmax.f32 %v2967, 0.0
  %v3594 = vmax.f32 %v2972, 0.0
  %v3595 = vmax.f32 %v2977, 0.0
  %v3596 = vmax.f32 %v2982, 0.0
  %v3597 = vmax.f32 %v2987, 0.0
  %v3598 = vmax.f32 %v2992, 0.0
  %v3599 = vmax.f32 %v2997, 0.0
  %v3600 = vmax.f32 %v3002, 0.0
  %v3601 = vmax.f32 %v3007, 0.0
  %v3602 = vmax.f32 %v3012, 0.0
  %v3603 = vmax.f32 %v3017, 0.0
  %v3604 = vmax.f32 %v3022, 0.0
  %v3605 = vmax.f32 %v3027, 0.0
  %v3606 = vmax.f32 %v3032, 0.0
  %v3607 = vmax.f32 %v3037, 0.0
  %v3608 = vmax.f32 %v3042, 0.0
  %v3609 = vmax.f32 %v3047, 0.0
  %v3610 = vmax.f32 %v3052, 0.0
  %v3611 = vmax.f32 %v3057, 0.0
  %v3612 = vmax.f32 %v3062, 0.0
  %v3613 = vmax.f32 %v3067, 0.0
  %v3614 = vmax.f32 %v3072, 0.0
  %v3615 = vmax.f32 %v3077, 0.0
  %v3616 = vmax.f32 %v3082, 0.0
  %v3617 = vmax.f32 %v3087, 0.0
  %v3618 = vmax.f32 %v3092, 0.0
  %v3619 = vmax.f32 %v3097, 0.0
  %v3620 = vmax.f32 %v3102, 0.0
  %v3621 = vmax.f32 %v3107, 0.0
  %v3622 = vmax.f32 %v3112, 0.0
  %v3623 = vmax.f32 %v3117, 0.0
  %v3624 = vmax.f32 %v3122, 0.0
  %v3625 = vmax.f32 %v3127, 0.0
  %v3626 = vmax.f32 %v3132, 0.0
  %v3627 = vmax.f32 %v3137, 0.0
  %v3628 = vmax.f32 %v3142, 0.0
  %v3629 = vmax.f32 %v3147, 0.0
  %v3630 = vmax.f32 %v3152, 0.0
  %v3631 = vmax.f32 %v3157, 0.0
  %v3632 = vmax.f32 %v3162, 0.0
  %v3633 = vmax.f32 %v3167, 0.0
  %v3634 = vmax.f32 %v3172, 0.0
  %v3635 = vmax.f32 %v3177, 0.0
  %v3636 = vmax.f32 %v3182, 0.0
  %v3637 = vmax.f32 %v3187, 0.0
  %v3638 = vmax.f32 %v3192, 0.0
  %v3639 = vmax.f32 %v3197, 0.0
  %v3640 = vmax.f32 %v3202, 0.0
  %v3641 = vmax.f32 %v3207, 0.0
  %v3642 = vmax.f32 %v3212, 0.0
  %v3643 = vmax.f32 %v3217, 0.0
  %v3644 = vmax.f32 %v3222, 0.0
  %v3645 = vmax.f32 %v3227, 0.0
  %v3646 = vmax.f32 %v3232, 0.0
  %v3647 = vmax.f32 %v3237, 0.0
  %v3648 = vmax.f32 %v3242, 0.0
  %v3649 = vmax.f32 %v3247, 0.0
  %v3650 = vmax.f32 %v3252, 0.0
  %v3651 = vmax.f32 %v3257, 0.0
  %v3652 = vmax.f32 %v3262, 0.0
  %v3653 = vmax.f32 %v3267, 0.0
  %v3654 = vmax.f32 %v3272, 0.0
  %v3655 = vmax.f32 %v3277, 0.0
  %v3656 = vmax.f32 %v3282, 0.0
  %v3657 = vmax.f32 %v3287, 0.0
  %v3658 = vmax.f32 %v3292, 0.0
  %v3659 = vmax.f32 %v3297, 0.0
  %v3660 = vmax.f32 %v3302, 0.0
  %v3661 = vmax.f32 %v3307, 0.0
  %v3662 = vmax.f32 %v3312, 0.0
  %v3663 = vmax.f32 %v3317, 0.0
  %v3664 = vmax.f32 %v3322, 0.0
  %v3665 = vmax.f32 %v3327, 0.0
  %v3666 = vmax.f32 %v3332, 0.0
  %v3667 = vmax.f32 %v3337, 0.0
  %v3668 = vmax.f32 %v3342, 0.0
  %v3669 = vmax.f32 %v3347, 0.0
  %v3670 = vmax.f32 %v3352, 0.0
  %v3671 = vmax.f32 %v3357, 0.0
  %v3672 = vmax.f32 %v3362, 0.0
  %v3673 = vmax.f32 %v3367, 0.0
  %v3674 = vmax.f32 %v3372, 0.0
  %v3675 = vmax.f32 %v3377, 0.0
  %v3676 = vmax.f32 %v3382, 0.0
  %v3677 = vmax.f32 %v3387, 0.0
  %v3678 = vmax.f32 %v3392, 0.0
  %v3679 = vmax.f32 %v3397, 0.0
  %v3680 = vmax.f32 %v3402, 0.0
  %v3681 = vmax.f32 %v3407, 0.0
  %v3682 = vmax.f32 %v3412, 0.0
  %v3683 = vmax.f32 %v3417, 0.0
  %v3684 = vmax.f32 %v3422, 0.0
  %v3685 = vmax.f32 %v3427, 0.0
  %v3686 = vmax.f32 %v3432, 0.0
  %v3687 = vmax.f32 %v3437, 0.0
  %v3688 = vmax.f32 %v3442, 0.0
  %v3689 = vmax.f32 %v3447, 0.0
  %v3690 = vmax.f32 %v3452, 0.0
  %v3691 = vmax.f32 %v3457, 0.0
  %v3692 = vmax.f32 %v3462, 0.0
  %v3693 = vmax.f32 %v3467, 0.0
  %v3694 = vmax.f32 %v3472, 0.0
  %v3695 = vmax.f32 %v3477, 0.0
  %v3696 = vmax.f32 %v3482, 0.0
  %v3697 = vmax.f32 %v3487, 0.0
  %v3698 = vmax.f32 %v3492, 0.0
  %v3699 = vmax.f32 %v3497, 0.0
  %v3700 = vmax.f32 %v3502, 0.0
  %v3701 = vmax.f32 %v3507, 0.0
  %v3702 = vmax.f32 %v3512, 0.0
  %v3703 = vmax.f32 %v3517, 0.0
  %v3704 = vmax.f32 %v3522, 0.0
  %v3705 = vmax.f32 %v3527, 0.0
  %v3706 = vmax.f32 %v3532, 0.0
  %v3707 = vmax.f32 %v3537, 0.0
  %v3708 = vmax.f32 %v3542, 0.0
  %v3709 = vmax.f32 %v3547, 0.0
  %v3710 = vmax.f32 %v3552, 0.0
  %v3711 = vmax.f32 %v3557, 0.0
  %v3712 = vmax.f32 %v3562, 0.0
  %v3713 = vmax.f32 %v3567, 0.0
  %v3714 = vmax.f32 %v3572, 0.0
  %v3715 = vmax.f32 %v3577, 0.0
  %v3716 = vmax.f32 %v3582, 0.0
  %v3717 = vmax.f32 %v3587, 0.0
  %3718 = vst.msk [vmem:[#allocation2] sm:$0xff] %vm2098, %v3590
  %3719 = vst.msk [vmem:[#allocation2 + $0x8] sm:$0xff] %vm2098, %v3591
  %3720 = vst.msk [vmem:[#allocation2 + $0x10] sm:$0xff] %vm2098, %v3592
  %3721 = vst.msk [vmem:[#allocation2 + $0x18] sm:$0xff] %vm2098, %v3593
  %3722 = vst.msk [vmem:[#allocation2 + $0x20] sm:$0xff] %vm2098, %v3594
  %3723 = vst.msk [vmem:[#allocation2 + $0x28] sm:$0xff] %vm2098, %v3595
  %3724 = vst.msk [vmem:[#allocation2 + $0x30] sm:$0xff] %vm2098, %v3596
  %3725 = vst.msk [vmem:[#allocation2 + $0x38] sm:$0xff] %vm2098, %v3597
  %3726 = vst.msk [vmem:[#allocation2 + $0x40] sm:$0xff] %vm2098, %v3598
  %3727 = vst.msk [vmem:[#allocation2 + $0x48] sm:$0xff] %vm2098, %v3599
  %3728 = vst.msk [vmem:[#allocation2 + $0x50] sm:$0xff] %vm2098, %v3600
  %3729 = vst.msk [vmem:[#allocation2 + $0x58] sm:$0xff] %vm2098, %v3601
  %3730 = vst.msk [vmem:[#allocation2 + $0x60] sm:$0xff] %vm2098, %v3602
  %3731 = vst.msk [vmem:[#allocation2 + $0x68] sm:$0xff] %vm2098, %v3603
  %3732 = vst.msk [vmem:[#allocation2 + $0x70] sm:$0xff] %vm2098, %v3604
  %3733 = vst.msk [vmem:[#allocation2 + $0x78] sm:$0xff] %vm2098, %v3605
  %3734 = vst.msk [vmem:[#allocation2 + $0x80] sm:$0xff] %vm2098, %v3606
  %3735 = vst.msk [vmem:[#allocation2 + $0x88] sm:$0xff] %vm2098, %v3607
  %3736 = vst.msk [vmem:[#allocation2 + $0x90] sm:$0xff] %vm2098, %v3608
  %3737 = vst.msk [vmem:[#allocation2 + $0x98] sm:$0xff] %vm2098, %v3609
  %3738 = vst.msk [vmem:[#allocation2 + $0xa0] sm:$0xff] %vm2098, %v3610
  %3739 = vst.msk [vmem:[#allocation2 + $0xa8] sm:$0xff] %vm2098, %v3611
  %3740 = vst.msk [vmem:[#allocation2 + $0xb0] sm:$0xff] %vm2098, %v3612
  %3741 = vst.msk [vmem:[#allocation2 + $0xb8] sm:$0xff] %vm2098, %v3613
  %3742 = vst.msk [vmem:[#allocation2 + $0xc0] sm:$0xff] %vm2098, %v3614
  %3743 = vst.msk [vmem:[#allocation2 + $0xc8] sm:$0xff] %vm2098, %v3615
  %3744 = vst.msk [vmem:[#allocation2 + $0xd0] sm:$0xff] %vm2098, %v3616
  %3745 = vst.msk [vmem:[#allocation2 + $0xd8] sm:$0xff] %vm2098, %v3617
  %3746 = vst.msk [vmem:[#allocation2 + $0xe0] sm:$0xff] %vm2098, %v3618
  %3747 = vst.msk [vmem:[#allocation2 + $0xe8] sm:$0xff] %vm2098, %v3619
  %3748 = vst.msk [vmem:[#allocation2 + $0xf0] sm:$0xff] %vm2098, %v3620
  %3749 = vst.msk [vmem:[#allocation2 + $0xf8] sm:$0xff] %vm2098, %v3621
  %3750 = vst.msk [vmem:[#allocation2 + $0x100] sm:$0xff] %vm2098, %v3622
  %3751 = vst.msk [vmem:[#allocation2 + $0x108] sm:$0xff] %vm2098, %v3623
  %3752 = vst.msk [vmem:[#allocation2 + $0x110] sm:$0xff] %vm2098, %v3624
  %3753 = vst.msk [vmem:[#allocation2 + $0x118] sm:$0xff] %vm2098, %v3625
  %3754 = vst.msk [vmem:[#allocation2 + $0x120] sm:$0xff] %vm2098, %v3626
  %3755 = vst.msk [vmem:[#allocation2 + $0x128] sm:$0xff] %vm2098, %v3627
  %3756 = vst.msk [vmem:[#allocation2 + $0x130] sm:$0xff] %vm2098, %v3628
  %3757 = vst.msk [vmem:[#allocation2 + $0x138] sm:$0xff] %vm2098, %v3629
  %3758 = vst.msk [vmem:[#allocation2 + $0x140] sm:$0xff] %vm2098, %v3630
  %3759 = vst.msk [vmem:[#allocation2 + $0x148] sm:$0xff] %vm2098, %v3631
  %3760 = vst.msk [vmem:[#allocation2 + $0x150] sm:$0xff] %vm2098, %v3632
  %3761 = vst.msk [vmem:[#allocation2 + $0x158] sm:$0xff] %vm2098, %v3633
  %3762 = vst.msk [vmem:[#allocation2 + $0x160] sm:$0xff] %vm2098, %v3634
  %3763 = vst.msk [vmem:[#allocation2 + $0x168] sm:$0xff] %vm2098, %v3635
  %3764 = vst.msk [vmem:[#allocation2 + $0x170] sm:$0xff] %vm2098, %v3636
  %3765 = vst.msk [vmem:[#allocation2 + $0x178] sm:$0xff] %vm2098, %v3637
  %3766 = vst.msk [vmem:[#allocation2 + $0x180] sm:$0xff] %vm2098, %v3638
  %3767 = vst.msk [vmem:[#allocation2 + $0x188] sm:$0xff] %vm2098, %v3639
  %3768 = vst.msk [vmem:[#allocation2 + $0x190] sm:$0xff] %vm2098, %v3640
  %3769 = vst.msk [vmem:[#allocation2 + $0x198] sm:$0xff] %vm2098, %v3641
  %3770 = vst.msk [vmem:[#allocation2 + $0x1a0] sm:$0xff] %vm2098, %v3642
  %3771 = vst.msk [vmem:[#allocation2 + $0x1a8] sm:$0xff] %vm2098, %v3643
  %3772 = vst.msk [vmem:[#allocation2 + $0x1b0] sm:$0xff] %vm2098, %v3644
  %3773 = vst.msk [vmem:[#allocation2 + $0x1b8] sm:$0xff] %vm2098, %v3645
  %3774 = vst.msk [vmem:[#allocation2 + $0x1c0] sm:$0xff] %vm2098, %v3646
  %3775 = vst.msk [vmem:[#allocation2 + $0x1c8] sm:$0xff] %vm2098, %v3647
  %3776 = vst.msk [vmem:[#allocation2 + $0x1d0] sm:$0xff] %vm2098, %v3648
  %3777 = vst.msk [vmem:[#allocation2 + $0x1d8] sm:$0xff] %vm2098, %v3649
  %3778 = vst.msk [vmem:[#allocation2 + $0x1e0] sm:$0xff] %vm2098, %v3650
  %3779 = vst.msk [vmem:[#allocation2 + $0x1e8] sm:$0xff] %vm2098, %v3651
  %3780 = vst.msk [vmem:[#allocation2 + $0x1f0] sm:$0xff] %vm2098, %v3652
  %3781 = vst.msk [vmem:[#allocation2 + $0x1f8] sm:$0xff] %vm2098, %v3653
  %3782 = vst.msk [vmem:[#allocation2 + $0x200] sm:$0xff] %vm2098, %v3654
  %3783 = vst.msk [vmem:[#allocation2 + $0x208] sm:$0xff] %vm2098, %v3655
  %3784 = vst.msk [vmem:[#allocation2 + $0x210] sm:$0xff] %vm2098, %v3656
  %3785 = vst.msk [vmem:[#allocation2 + $0x218] sm:$0xff] %vm2098, %v3657
  %3786 = vst.msk [vmem:[#allocation2 + $0x220] sm:$0xff] %vm2098, %v3658
  %3787 = vst.msk [vmem:[#allocation2 + $0x228] sm:$0xff] %vm2098, %v3659
  %3788 = vst.msk [vmem:[#allocation2 + $0x230] sm:$0xff] %vm2098, %v3660
  %3789 = vst.msk [vmem:[#allocation2 + $0x238] sm:$0xff] %vm2098, %v3661
  %3790 = vst.msk [vmem:[#allocation2 + $0x240] sm:$0xff] %vm2098, %v3662
  %3791 = vst.msk [vmem:[#allocation2 + $0x248] sm:$0xff] %vm2098, %v3663
  %3792 = vst.msk [vmem:[#allocation2 + $0x250] sm:$0xff] %vm2098, %v3664
  %3793 = vst.msk [vmem:[#allocation2 + $0x258] sm:$0xff] %vm2098, %v3665
  %3794 = vst.msk [vmem:[#allocation2 + $0x260] sm:$0xff] %vm2098, %v3666
  %3795 = vst.msk [vmem:[#allocation2 + $0x268] sm:$0xff] %vm2098, %v3667
  %3796 = vst.msk [vmem:[#allocation2 + $0x270] sm:$0xff] %vm2098, %v3668
  %3797 = vst.msk [vmem:[#allocation2 + $0x278] sm:$0xff] %vm2098, %v3669
  %3798 = vst.msk [vmem:[#allocation2 + $0x280] sm:$0xff] %vm2098, %v3670
  %3799 = vst.msk [vmem:[#allocation2 + $0x288] sm:$0xff] %vm2098, %v3671
  %3800 = vst.msk [vmem:[#allocation2 + $0x290] sm:$0xff] %vm2098, %v3672
  %3801 = vst.msk [vmem:[#allocation2 + $0x298] sm:$0xff] %vm2098, %v3673
  %3802 = vst.msk [vmem:[#allocation2 + $0x2a0] sm:$0xff] %vm2098, %v3674
  %3803 = vst.msk [vmem:[#allocation2 + $0x2a8] sm:$0xff] %vm2098, %v3675
  %3804 = vst.msk [vmem:[#allocation2 + $0x2b0] sm:$0xff] %vm2098, %v3676
  %3805 = vst.msk [vmem:[#allocation2 + $0x2b8] sm:$0xff] %vm2098, %v3677
  %3806 = vst.msk [vmem:[#allocation2 + $0x2c0] sm:$0xff] %vm2098, %v3678
  %3807 = vst.msk [vmem:[#allocation2 + $0x2c8] sm:$0xff] %vm2098, %v3679
  %3808 = vst.msk [vmem:[#allocation2 + $0x2d0] sm:$0xff] %vm2098, %v3680
  %3809 = vst.msk [vmem:[#allocation2 + $0x2d8] sm:$0xff] %vm2098, %v3681
  %3810 = vst.msk [vmem:[#allocation2 + $0x2e0] sm:$0xff] %vm2098, %v3682
  %3811 = vst.msk [vmem:[#allocation2 + $0x2e8] sm:$0xff] %vm2098, %v3683
  %3812 = vst.msk [vmem:[#allocation2 + $0x2f0] sm:$0xff] %vm2098, %v3684
  %3813 = vst.msk [vmem:[#allocation2 + $0x2f8] sm:$0xff] %vm2098, %v3685
  %3814 = vst.msk [vmem:[#allocation2 + $0x300] sm:$0xff] %vm2098, %v3686
  %3815 = vst.msk [vmem:[#allocation2 + $0x308] sm:$0xff] %vm2098, %v3687
  %3816 = vst.msk [vmem:[#allocation2 + $0x310] sm:$0xff] %vm2098, %v3688
  %3817 = vst.msk [vmem:[#allocation2 + $0x318] sm:$0xff] %vm2098, %v3689
  %3818 = vst.msk [vmem:[#allocation2 + $0x320] sm:$0xff] %vm2098, %v3690
  %3819 = vst.msk [vmem:[#allocation2 + $0x328] sm:$0xff] %vm2098, %v3691
  %3820 = vst.msk [vmem:[#allocation2 + $0x330] sm:$0xff] %vm2098, %v3692
  %3821 = vst.msk [vmem:[#allocation2 + $0x338] sm:$0xff] %vm2098, %v3693
  %3822 = vst.msk [vmem:[#allocation2 + $0x340] sm:$0xff] %vm2098, %v3694
  %3823 = vst.msk [vmem:[#allocation2 + $0x348] sm:$0xff] %vm2098, %v3695
  %3824 = vst.msk [vmem:[#allocation2 + $0x350] sm:$0xff] %vm2098, %v3696
  %3825 = vst.msk [vmem:[#allocation2 + $0x358] sm:$0xff] %vm2098, %v3697
  %3826 = vst.msk [vmem:[#allocation2 + $0x360] sm:$0xff] %vm2098, %v3698
  %3827 = vst.msk [vmem:[#allocation2 + $0x368] sm:$0xff] %vm2098, %v3699
  %3828 = vst.msk [vmem:[#allocation2 + $0x370] sm:$0xff] %vm2098, %v3700
  %3829 = vst.msk [vmem:[#allocation2 + $0x378] sm:$0xff] %vm2098, %v3701
  %3830 = vst.msk [vmem:[#allocation2 + $0x380] sm:$0xff] %vm2098, %v3702
  %3831 = vst.msk [vmem:[#allocation2 + $0x388] sm:$0xff] %vm2098, %v3703
  %3832 = vst.msk [vmem:[#allocation2 + $0x390] sm:$0xff] %vm2098, %v3704
  %3833 = vst.msk [vmem:[#allocation2 + $0x398] sm:$0xff] %vm2098, %v3705
  %3834 = vst.msk [vmem:[#allocation2 + $0x3a0] sm:$0xff] %vm2098, %v3706
  %3835 = vst.msk [vmem:[#allocation2 + $0x3a8] sm:$0xff] %vm2098, %v3707
  %3836 = vst.msk [vmem:[#allocation2 + $0x3b0] sm:$0xff] %vm2098, %v3708
  %3837 = vst.msk [vmem:[#allocation2 + $0x3b8] sm:$0xff] %vm2098, %v3709
  %3838 = vst.msk [vmem:[#allocation2 + $0x3c0] sm:$0xff] %vm2098, %v3710
  %3839 = vst.msk [vmem:[#allocation2 + $0x3c8] sm:$0xff] %vm2098, %v3711
  %3840 = vst.msk [vmem:[#allocation2 + $0x3d0] sm:$0xff] %vm2098, %v3712
  %3841 = vst.msk [vmem:[#allocation2 + $0x3d8] sm:$0xff] %vm2098, %v3713
  %3842 = vst.msk [vmem:[#allocation2 + $0x3e0] sm:$0xff] %vm2098, %v3714
  %3843 = vst.msk [vmem:[#allocation2 + $0x3e8] sm:$0xff] %vm2098, %v3715
  %3844 = vst.msk [vmem:[#allocation2 + $0x3f0] sm:$0xff] %vm2098, %v3716
  %3845 = vst.msk [vmem:[#allocation2 + $0x3f8] sm:$0xff] %vm2098, %v3717
  %v3846 = vld [vmem:[#allocation2] ss:$2 sm:$0xff]
  %s3847 = scalar_lea.vmem [#allocation2], 16
  %v3848 = vld [vmem:[%s3847] ss:$2 sm:$0xff]
  %s3849 = scalar_lea.vmem [#allocation2], 32
  %v3850 = vld [vmem:[%s3849] ss:$2 sm:$0xff]
  %s3851 = scalar_lea.vmem [#allocation2], 48
  %v3852 = vld [vmem:[%s3851] ss:$2 sm:$0xff]
  %s3853 = scalar_lea.vmem [#allocation2], 64
  %v3854 = vld [vmem:[%s3853] ss:$2 sm:$0xff]
  %s3855 = scalar_lea.vmem [#allocation2], 80
  %v3856 = vld [vmem:[%s3855] ss:$2 sm:$0xff]
  %s3857 = scalar_lea.vmem [#allocation2], 96
  %v3858 = vld [vmem:[%s3857] ss:$2 sm:$0xff]
  %s3859 = scalar_lea.vmem [#allocation2], 112
  %v3860 = vld [vmem:[%s3859] ss:$2 sm:$0xff]
  %s3861 = scalar_lea.vmem [#allocation2], 128
  %v3862 = vld [vmem:[%s3861] ss:$2 sm:$0xff]
  %s3863 = scalar_lea.vmem [#allocation2], 144
  %v3864 = vld [vmem:[%s3863] ss:$2 sm:$0xff]
  %s3865 = scalar_lea.vmem [#allocation2], 160
  %v3866 = vld [vmem:[%s3865] ss:$2 sm:$0xff]
  %s3867 = scalar_lea.vmem [#allocation2], 176
  %v3868 = vld [vmem:[%s3867] ss:$2 sm:$0xff]
  %s3869 = scalar_lea.vmem [#allocation2], 192
  %v3870 = vld [vmem:[%s3869] ss:$2 sm:$0xff]
  %s3871 = scalar_lea.vmem [#allocation2], 208
  %v3872 = vld [vmem:[%s3871] ss:$2 sm:$0xff]
  %s3873 = scalar_lea.vmem [#allocation2], 224
  %v3874 = vld [vmem:[%s3873] ss:$2 sm:$0xff]
  %s3875 = scalar_lea.vmem [#allocation2], 240
  %v3876 = vld [vmem:[%s3875] ss:$2 sm:$0xff]
  %s3877 = scalar_lea.vmem [#allocation2], 256
  %v3878 = vld [vmem:[%s3877] ss:$2 sm:$0xff]
  %s3879 = scalar_lea.vmem [#allocation2], 272
  %v3880 = vld [vmem:[%s3879] ss:$2 sm:$0xff]
  %s3881 = scalar_lea.vmem [#allocation2], 288
  %v3882 = vld [vmem:[%s3881] ss:$2 sm:$0xff]
  %s3883 = scalar_lea.vmem [#allocation2], 304
  %v3884 = vld [vmem:[%s3883] ss:$2 sm:$0xff]
  %s3885 = scalar_lea.vmem [#allocation2], 320
  %v3886 = vld [vmem:[%s3885] ss:$2 sm:$0xff]
  %s3887 = scalar_lea.vmem [#allocation2], 336
  %v3888 = vld [vmem:[%s3887] ss:$2 sm:$0xff]
  %s3889 = scalar_lea.vmem [#allocation2], 352
  %v3890 = vld [vmem:[%s3889] ss:$2 sm:$0xff]
  %s3891 = scalar_lea.vmem [#allocation2], 368
  %v3892 = vld [vmem:[%s3891] ss:$2 sm:$0xff]
  %s3893 = scalar_lea.vmem [#allocation2], 384
  %v3894 = vld [vmem:[%s3893] ss:$2 sm:$0xff]
  %s3895 = scalar_lea.vmem [#allocation2], 400
  %v3896 = vld [vmem:[%s3895] ss:$2 sm:$0xff]
  %s3897 = scalar_lea.vmem [#allocation2], 416
  %v3898 = vld [vmem:[%s3897] ss:$2 sm:$0xff]
  %s3899 = scalar_lea.vmem [#allocation2], 432
  %v3900 = vld [vmem:[%s3899] ss:$2 sm:$0xff]
  %s3901 = scalar_lea.vmem [#allocation2], 448
  %v3902 = vld [vmem:[%s3901] ss:$2 sm:$0xff]
  %s3903 = scalar_lea.vmem [#allocation2], 464
  %v3904 = vld [vmem:[%s3903] ss:$2 sm:$0xff]
  %s3905 = scalar_lea.vmem [#allocation2], 480
  %v3906 = vld [vmem:[%s3905] ss:$2 sm:$0xff]
  %s3907 = scalar_lea.vmem [#allocation2], 496
  %v3908 = vld [vmem:[%s3907] ss:$2 sm:$0xff]
  %s3909 = scalar_lea.vmem [#allocation2], 512
  %v3910 = vld [vmem:[%s3909] ss:$2 sm:$0xff]
  %s3911 = scalar_lea.vmem [#allocation2], 528
  %v3912 = vld [vmem:[%s3911] ss:$2 sm:$0xff]
  %s3913 = scalar_lea.vmem [#allocation2], 544
  %v3914 = vld [vmem:[%s3913] ss:$2 sm:$0xff]
  %s3915 = scalar_lea.vmem [#allocation2], 560
  %v3916 = vld [vmem:[%s3915] ss:$2 sm:$0xff]
  %s3917 = scalar_lea.vmem [#allocation2], 576
  %v3918 = vld [vmem:[%s3917] ss:$2 sm:$0xff]
  %s3919 = scalar_lea.vmem [#allocation2], 592
  %v3920 = vld [vmem:[%s3919] ss:$2 sm:$0xff]
  %s3921 = scalar_lea.vmem [#allocation2], 608
  %v3922 = vld [vmem:[%s3921] ss:$2 sm:$0xff]
  %s3923 = scalar_lea.vmem [#allocation2], 624
  %v3924 = vld [vmem:[%s3923] ss:$2 sm:$0xff]
  %s3925 = scalar_lea.vmem [#allocation2], 640
  %v3926 = vld [vmem:[%s3925] ss:$2 sm:$0xff]
  %s3927 = scalar_lea.vmem [#allocation2], 656
  %v3928 = vld [vmem:[%s3927] ss:$2 sm:$0xff]
  %s3929 = scalar_lea.vmem [#allocation2], 672
  %v3930 = vld [vmem:[%s3929] ss:$2 sm:$0xff]
  %s3931 = scalar_lea.vmem [#allocation2], 688
  %v3932 = vld [vmem:[%s3931] ss:$2 sm:$0xff]
  %s3933 = scalar_lea.vmem [#allocation2], 704
  %v3934 = vld [vmem:[%s3933] ss:$2 sm:$0xff]
  %s3935 = scalar_lea.vmem [#allocation2], 720
  %v3936 = vld [vmem:[%s3935] ss:$2 sm:$0xff]
  %s3937 = scalar_lea.vmem [#allocation2], 736
  %v3938 = vld [vmem:[%s3937] ss:$2 sm:$0xff]
  %s3939 = scalar_lea.vmem [#allocation2], 752
  %v3940 = vld [vmem:[%s3939] ss:$2 sm:$0xff]
  %s3941 = scalar_lea.vmem [#allocation2], 768
  %v3942 = vld [vmem:[%s3941] ss:$2 sm:$0xff]
  %s3943 = scalar_lea.vmem [#allocation2], 784
  %v3944 = vld [vmem:[%s3943] ss:$2 sm:$0xff]
  %s3945 = scalar_lea.vmem [#allocation2], 800
  %v3946 = vld [vmem:[%s3945] ss:$2 sm:$0xff]
  %s3947 = scalar_lea.vmem [#allocation2], 816
  %v3948 = vld [vmem:[%s3947] ss:$2 sm:$0xff]
  %s3949 = scalar_lea.vmem [#allocation2], 832
  %v3950 = vld [vmem:[%s3949] ss:$2 sm:$0xff]
  %s3951 = scalar_lea.vmem [#allocation2], 848
  %v3952 = vld [vmem:[%s3951] ss:$2 sm:$0xff]
  %s3953 = scalar_lea.vmem [#allocation2], 864
  %v3954 = vld [vmem:[%s3953] ss:$2 sm:$0xff]
  %s3955 = scalar_lea.vmem [#allocation2], 880
  %v3956 = vld [vmem:[%s3955] ss:$2 sm:$0xff]
  %s3957 = scalar_lea.vmem [#allocation2], 896
  %v3958 = vld [vmem:[%s3957] ss:$2 sm:$0xff]
  %s3959 = scalar_lea.vmem [#allocation2], 912
  %v3960 = vld [vmem:[%s3959] ss:$2 sm:$0xff]
  %s3961 = scalar_lea.vmem [#allocation2], 928
  %v3962 = vld [vmem:[%s3961] ss:$2 sm:$0xff]
  %s3963 = scalar_lea.vmem [#allocation2], 944
  %v3964 = vld [vmem:[%s3963] ss:$2 sm:$0xff]
  %s3965 = scalar_lea.vmem [#allocation2], 960
  %v3966 = vld [vmem:[%s3965] ss:$2 sm:$0xff]
  %s3967 = scalar_lea.vmem [#allocation2], 976
  %v3968 = vld [vmem:[%s3967] ss:$2 sm:$0xff]
  %s3969 = scalar_lea.vmem [#allocation2], 992
  %v3970 = vld [vmem:[%s3969] ss:$2 sm:$0xff]
  %s3971 = scalar_lea.vmem [#allocation2], 1008
  %v3972 = vld [vmem:[%s3971] ss:$2 sm:$0xff]
  %s3973 = scalar_lea.vmem [#allocation2], 1
  %v3974 = vld [vmem:[%s3973] ss:$2 sm:$0xff]
  %s3975 = scalar_lea.vmem [#allocation2], 17
  %v3976 = vld [vmem:[%s3975] ss:$2 sm:$0xff]
  %s3977 = scalar_lea.vmem [#allocation2], 33
  %v3978 = vld [vmem:[%s3977] ss:$2 sm:$0xff]
  %s3979 = scalar_lea.vmem [#allocation2], 49
  %v3980 = vld [vmem:[%s3979] ss:$2 sm:$0xff]
  %s3981 = scalar_lea.vmem [#allocation2], 65
  %v3982 = vld [vmem:[%s3981] ss:$2 sm:$0xff]
  %s3983 = scalar_lea.vmem [#allocation2], 81
  %v3984 = vld [vmem:[%s3983] ss:$2 sm:$0xff]
  %s3985 = scalar_lea.vmem [#allocation2], 97
  %v3986 = vld [vmem:[%s3985] ss:$2 sm:$0xff]
  %s3987 = scalar_lea.vmem [#allocation2], 113
  %v3988 = vld [vmem:[%s3987] ss:$2 sm:$0xff]
  %s3989 = scalar_lea.vmem [#allocation2], 129
  %v3990 = vld [vmem:[%s3989] ss:$2 sm:$0xff]
  %s3991 = scalar_lea.vmem [#allocation2], 145
  %v3992 = vld [vmem:[%s3991] ss:$2 sm:$0xff]
  %s3993 = scalar_lea.vmem [#allocation2], 161
  %v3994 = vld [vmem:[%s3993] ss:$2 sm:$0xff]
  %s3995 = scalar_lea.vmem [#allocation2], 177
  %v3996 = vld [vmem:[%s3995] ss:$2 sm:$0xff]
  %s3997 = scalar_lea.vmem [#allocation2], 193
  %v3998 = vld [vmem:[%s3997] ss:$2 sm:$0xff]
  %s3999 = scalar_lea.vmem [#allocation2], 209
  %v4000 = vld [vmem:[%s3999] ss:$2 sm:$0xff]
  %s4001 = scalar_lea.vmem [#allocation2], 225
  %v4002 = vld [vmem:[%s4001] ss:$2 sm:$0xff]
  %s4003 = scalar_lea.vmem [#allocation2], 241
  %v4004 = vld [vmem:[%s4003] ss:$2 sm:$0xff]
  %s4005 = scalar_lea.vmem [#allocation2], 257
  %v4006 = vld [vmem:[%s4005] ss:$2 sm:$0xff]
  %s4007 = scalar_lea.vmem [#allocation2], 273
  %v4008 = vld [vmem:[%s4007] ss:$2 sm:$0xff]
  %s4009 = scalar_lea.vmem [#allocation2], 289
  %v4010 = vld [vmem:[%s4009] ss:$2 sm:$0xff]
  %s4011 = scalar_lea.vmem [#allocation2], 305
  %v4012 = vld [vmem:[%s4011] ss:$2 sm:$0xff]
  %s4013 = scalar_lea.vmem [#allocation2], 321
  %v4014 = vld [vmem:[%s4013] ss:$2 sm:$0xff]
  %s4015 = scalar_lea.vmem [#allocation2], 337
  %v4016 = vld [vmem:[%s4015] ss:$2 sm:$0xff]
  %s4017 = scalar_lea.vmem [#allocation2], 353
  %v4018 = vld [vmem:[%s4017] ss:$2 sm:$0xff]
  %s4019 = scalar_lea.vmem [#allocation2], 369
  %v4020 = vld [vmem:[%s4019] ss:$2 sm:$0xff]
  %s4021 = scalar_lea.vmem [#allocation2], 385
  %v4022 = vld [vmem:[%s4021] ss:$2 sm:$0xff]
  %s4023 = scalar_lea.vmem [#allocation2], 401
  %v4024 = vld [vmem:[%s4023] ss:$2 sm:$0xff]
  %s4025 = scalar_lea.vmem [#allocation2], 417
  %v4026 = vld [vmem:[%s4025] ss:$2 sm:$0xff]
  %s4027 = scalar_lea.vmem [#allocation2], 433
  %v4028 = vld [vmem:[%s4027] ss:$2 sm:$0xff]
  %s4029 = scalar_lea.vmem [#allocation2], 449
  %v4030 = vld [vmem:[%s4029] ss:$2 sm:$0xff]
  %s4031 = scalar_lea.vmem [#allocation2], 465
  %v4032 = vld [vmem:[%s4031] ss:$2 sm:$0xff]
  %s4033 = scalar_lea.vmem [#allocation2], 481
  %v4034 = vld [vmem:[%s4033] ss:$2 sm:$0xff]
  %s4035 = scalar_lea.vmem [#allocation2], 497
  %v4036 = vld [vmem:[%s4035] ss:$2 sm:$0xff]
  %s4037 = scalar_lea.vmem [#allocation2], 513
  %v4038 = vld [vmem:[%s4037] ss:$2 sm:$0xff]
  %s4039 = scalar_lea.vmem [#allocation2], 529
  %v4040 = vld [vmem:[%s4039] ss:$2 sm:$0xff]
  %s4041 = scalar_lea.vmem [#allocation2], 545
  %v4042 = vld [vmem:[%s4041] ss:$2 sm:$0xff]
  %s4043 = scalar_lea.vmem [#allocation2], 561
  %v4044 = vld [vmem:[%s4043] ss:$2 sm:$0xff]
  %s4045 = scalar_lea.vmem [#allocation2], 577
  %v4046 = vld [vmem:[%s4045] ss:$2 sm:$0xff]
  %s4047 = scalar_lea.vmem [#allocation2], 593
  %v4048 = vld [vmem:[%s4047] ss:$2 sm:$0xff]
  %s4049 = scalar_lea.vmem [#allocation2], 609
  %v4050 = vld [vmem:[%s4049] ss:$2 sm:$0xff]
  %s4051 = scalar_lea.vmem [#allocation2], 625
  %v4052 = vld [vmem:[%s4051] ss:$2 sm:$0xff]
  %s4053 = scalar_lea.vmem [#allocation2], 641
  %v4054 = vld [vmem:[%s4053] ss:$2 sm:$0xff]
  %s4055 = scalar_lea.vmem [#allocation2], 657
  %v4056 = vld [vmem:[%s4055] ss:$2 sm:$0xff]
  %s4057 = scalar_lea.vmem [#allocation2], 673
  %v4058 = vld [vmem:[%s4057] ss:$2 sm:$0xff]
  %s4059 = scalar_lea.vmem [#allocation2], 689
  %v4060 = vld [vmem:[%s4059] ss:$2 sm:$0xff]
  %s4061 = scalar_lea.vmem [#allocation2], 705
  %v4062 = vld [vmem:[%s4061] ss:$2 sm:$0xff]
  %s4063 = scalar_lea.vmem [#allocation2], 721
  %v4064 = vld [vmem:[%s4063] ss:$2 sm:$0xff]
  %s4065 = scalar_lea.vmem [#allocation2], 737
  %v4066 = vld [vmem:[%s4065] ss:$2 sm:$0xff]
  %s4067 = scalar_lea.vmem [#allocation2], 753
  %v4068 = vld [vmem:[%s4067] ss:$2 sm:$0xff]
  %s4069 = scalar_lea.vmem [#allocation2], 769
  %v4070 = vld [vmem:[%s4069] ss:$2 sm:$0xff]
  %s4071 = scalar_lea.vmem [#allocation2], 785
  %v4072 = vld [vmem:[%s4071] ss:$2 sm:$0xff]
  %s4073 = scalar_lea.vmem [#allocation2], 801
  %v4074 = vld [vmem:[%s4073] ss:$2 sm:$0xff]
  %s4075 = scalar_lea.vmem [#allocation2], 817
  %v4076 = vld [vmem:[%s4075] ss:$2 sm:$0xff]
  %s4077 = scalar_lea.vmem [#allocation2], 833
  %v4078 = vld [vmem:[%s4077] ss:$2 sm:$0xff]
  %s4079 = scalar_lea.vmem [#allocation2], 849
  %v4080 = vld [vmem:[%s4079] ss:$2 sm:$0xff]
  %s4081 = scalar_lea.vmem [#allocation2], 865
  %v4082 = vld [vmem:[%s4081] ss:$2 sm:$0xff]
  %s4083 = scalar_lea.vmem [#allocation2], 881
  %v4084 = vld [vmem:[%s4083] ss:$2 sm:$0xff]
  %s4085 = scalar_lea.vmem [#allocation2], 897
  %v4086 = vld [vmem:[%s4085] ss:$2 sm:$0xff]
  %s4087 = scalar_lea.vmem [#allocation2], 913
  %v4088 = vld [vmem:[%s4087] ss:$2 sm:$0xff]
  %s4089 = scalar_lea.vmem [#allocation2], 929
  %v4090 = vld [vmem:[%s4089] ss:$2 sm:$0xff]
  %s4091 = scalar_lea.vmem [#allocation2], 945
  %v4092 = vld [vmem:[%s4091] ss:$2 sm:$0xff]
  %s4093 = scalar_lea.vmem [#allocation2], 961
  %v4094 = vld [vmem:[%s4093] ss:$2 sm:$0xff]
  %s4095 = scalar_lea.vmem [#allocation2], 977
  %v4096 = vld [vmem:[%s4095] ss:$2 sm:$0xff]
  %s4097 = scalar_lea.vmem [#allocation2], 993
  %v4098 = vld [vmem:[%s4097] ss:$2 sm:$0xff]
  %s4099 = scalar_lea.vmem [#allocation2], 1009
  %v4100 = vld [vmem:[%s4099] ss:$2 sm:$0xff]
  %v4101 = vmax.f32 %v3846, %v3974
  %v4102 = vmax.f32 %v3848, %v3976
  %v4103 = vmax.f32 %v3850, %v3978
  %v4104 = vmax.f32 %v3852, %v3980
  %v4105 = vmax.f32 %v3854, %v3982
  %v4106 = vmax.f32 %v3856, %v3984
  %v4107 = vmax.f32 %v3858, %v3986
  %v4108 = vmax.f32 %v3860, %v3988
  %v4109 = vmax.f32 %v3862, %v3990
  %v4110 = vmax.f32 %v3864, %v3992
  %v4111 = vmax.f32 %v3866, %v3994
  %v4112 = vmax.f32 %v3868, %v3996
  %v4113 = vmax.f32 %v3870, %v3998
  %v4114 = vmax.f32 %v3872, %v4000
  %v4115 = vmax.f32 %v3874, %v4002
  %v4116 = vmax.f32 %v3876, %v4004
  %v4117 = vmax.f32 %v3878, %v4006
  %v4118 = vmax.f32 %v3880, %v4008
  %v4119 = vmax.f32 %v3882, %v4010
  %v4120 = vmax.f32 %v3884, %v4012
  %v4121 = vmax.f32 %v3886, %v4014
  %v4122 = vmax.f32 %v3888, %v4016
  %v4123 = vmax.f32 %v3890, %v4018
  %v4124 = vmax.f32 %v3892, %v4020
  %v4125 = vmax.f32 %v3894, %v4022
  %v4126 = vmax.f32 %v3896, %v4024
  %v4127 = vmax.f32 %v3898, %v4026
  %v4128 = vmax.f32 %v3900, %v4028
  %v4129 = vmax.f32 %v3902, %v4030
  %v4130 = vmax.f32 %v3904, %v4032
  %v4131 = vmax.f32 %v3906, %v4034
  %v4132 = vmax.f32 %v3908, %v4036
  %v4133 = vmax.f32 %v3910, %v4038
  %v4134 = vmax.f32 %v3912, %v4040
  %v4135 = vmax.f32 %v3914, %v4042
  %v4136 = vmax.f32 %v3916, %v4044
  %v4137 = vmax.f32 %v3918, %v4046
  %v4138 = vmax.f32 %v3920, %v4048
  %v4139 = vmax.f32 %v3922, %v4050
  %v4140 = vmax.f32 %v3924, %v4052
  %v4141 = vmax.f32 %v3926, %v4054
  %v4142 = vmax.f32 %v3928, %v4056
  %v4143 = vmax.f32 %v3930, %v4058
  %v4144 = vmax.f32 %v3932, %v4060
  %v4145 = vmax.f32 %v3934, %v4062
  %v4146 = vmax.f32 %v3936, %v4064
  %v4147 = vmax.f32 %v3938, %v4066
  %v4148 = vmax.f32 %v3940, %v4068
  %v4149 = vmax.f32 %v3942, %v4070
  %v4150 = vmax.f32 %v3944, %v4072
  %v4151 = vmax.f32 %v3946, %v4074
  %v4152 = vmax.f32 %v3948, %v4076
  %v4153 = vmax.f32 %v3950, %v4078
  %v4154 = vmax.f32 %v3952, %v4080
  %v4155 = vmax.f32 %v3954, %v4082
  %v4156 = vmax.f32 %v3956, %v4084
  %v4157 = vmax.f32 %v3958, %v4086
  %v4158 = vmax.f32 %v3960, %v4088
  %v4159 = vmax.f32 %v3962, %v4090
  %v4160 = vmax.f32 %v3964, %v4092
  %v4161 = vmax.f32 %v3966, %v4094
  %v4162 = vmax.f32 %v3968, %v4096
  %v4163 = vmax.f32 %v3970, %v4098
  %v4164 = vmax.f32 %v3972, %v4100
  %v4165 = vld [vmem:[%s4] sm:$0x1]
  %vm4230 = vcmask 1040384
  %v4231 = vrot.slane %v4101, 7
  %v4232 = vrot.slane %v4102, 7
  %v4233 = vsel %vm4230, %v4231, %v4232
  %v4234 = vrot.slane %v4103, 7
  %v4235 = vsel %vm4230, %v4232, %v4234
  %v4236 = vrot.slane %v4104, 7
  %v4237 = vsel %vm4230, %v4234, %v4236
  %v4238 = vrot.slane %v4105, 7
  %v4239 = vsel %vm4230, %v4236, %v4238
  %v4240 = vrot.slane %v4106, 7
  %v4241 = vsel %vm4230, %v4238, %v4240
  %v4242 = vrot.slane %v4107, 7
  %v4243 = vsel %vm4230, %v4240, %v4242
  %v4244 = vrot.slane %v4108, 7
  %v4245 = vsel %vm4230, %v4242, %v4244
  %v4246 = vrot.slane %v4109, 7
  %v4247 = vrot.slane %v4110, 7
  %v4248 = vsel %vm4230, %v4246, %v4247
  %v4249 = vrot.slane %v4111, 7
  %v4250 = vsel %vm4230, %v4247, %v4249
  %v4251 = vrot.slane %v4112, 7
  %v4252 = vsel %vm4230, %v4249, %v4251
  %v4253 = vrot.slane %v4113, 7
  %v4254 = vsel %vm4230, %v4251, %v4253
  %v4255 = vrot.slane %v4114, 7
  %v4256 = vsel %vm4230, %v4253, %v4255
  %v4257 = vrot.slane %v4115, 7
  %v4258 = vsel %vm4230, %v4255, %v4257
  %v4259 = vrot.slane %v4116, 7
  %v4260 = vsel %vm4230, %v4257, %v4259
  %v4261 = vrot.slane %v4117, 7
  %v4262 = vrot.slane %v4118, 7
  %v4263 = vsel %vm4230, %v4261, %v4262
  %v4264 = vrot.slane %v4119, 7
  %v4265 = vsel %vm4230, %v4262, %v4264
  %v4266 = vrot.slane %v4120, 7
  %v4267 = vsel %vm4230, %v4264, %v4266
  %v4268 = vrot.slane %v4121, 7
  %v4269 = vsel %vm4230, %v4266, %v4268
  %v4270 = vrot.slane %v4122, 7
  %v4271 = vsel %vm4230, %v4268, %v4270
  %v4272 = vrot.slane %v4123, 7
  %v4273 = vsel %vm4230, %v4270, %v4272
  %v4274 = vrot.slane %v4124, 7
  %v4275 = vsel %vm4230, %v4272, %v4274
  %v4276 = vrot.slane %v4125, 7
  %v4277 = vrot.slane %v4126, 7
  %v4278 = vsel %vm4230, %v4276, %v4277
  %v4279 = vrot.slane %v4127, 7
  %v4280 = vsel %vm4230, %v4277, %v4279
  %v4281 = vrot.slane %v4128, 7
  %v4282 = vsel %vm4230, %v4279, %v4281
  %v4283 = vrot.slane %v4129, 7
  %v4284 = vsel %vm4230, %v4281, %v4283
  %v4285 = vrot.slane %v4130, 7
  %v4286 = vsel %vm4230, %v4283, %v4285
  %v4287 = vrot.slane %v4131, 7
  %v4288 = vsel %vm4230, %v4285, %v4287
  %v4289 = vrot.slane %v4132, 7
  %v4290 = vsel %vm4230, %v4287, %v4289
  %v4291 = vrot.slane %v4133, 7
  %v4292 = vrot.slane %v4134, 7
  %v4293 = vsel %vm4230, %v4291, %v4292
  %v4294 = vrot.slane %v4135, 7
  %v4295 = vsel %vm4230, %v4292, %v4294
  %v4296 = vrot.slane %v4136, 7
  %v4297 = vsel %vm4230, %v4294, %v4296
  %v4298 = vrot.slane %v4137, 7
  %v4299 = vsel %vm4230, %v4296, %v4298
  %v4300 = vrot.slane %v4138, 7
  %v4301 = vsel %vm4230, %v4298, %v4300
  %v4302 = vrot.slane %v4139, 7
  %v4303 = vsel %vm4230, %v4300, %v4302
  %v4304 = vrot.slane %v4140, 7
  %v4305 = vsel %vm4230, %v4302, %v4304
  %v4306 = vrot.slane %v4141, 7
  %v4307 = vrot.slane %v4142, 7
  %v4308 = vsel %vm4230, %v4306, %v4307
  %v4309 = vrot.slane %v4143, 7
  %v4310 = vsel %vm4230, %v4307, %v4309
  %v4311 = vrot.slane %v4144, 7
  %v4312 = vsel %vm4230, %v4309, %v4311
  %v4313 = vrot.slane %v4145, 7
  %v4314 = vsel %vm4230, %v4311, %v4313
  %v4315 = vrot.slane %v4146, 7
  %v4316 = vsel %vm4230, %v4313, %v4315
  %v4317 = vrot.slane %v4147, 7
  %v4318 = vsel %vm4230, %v4315, %v4317
  %v4319 = vrot.slane %v4148, 7
  %v4320 = vsel %vm4230, %v4317, %v4319
  %v4321 = vrot.slane %v4149, 7
  %v4322 = vrot.slane %v4150, 7
  %v4323 = vsel %vm4230, %v4321, %v4322
  %v4324 = vrot.slane %v4151, 7
  %v4325 = vsel %vm4230, %v4322, %v4324
  %v4326 = vrot.slane %v4152, 7
  %v4327 = vsel %vm4230, %v4324, %v4326
  %v4328 = vrot.slane %v4153, 7
  %v4329 = vsel %vm4230, %v4326, %v4328
  %v4330 = vrot.slane %v4154, 7
  %v4331 = vsel %vm4230, %v4328, %v4330
  %v4332 = vrot.slane %v4155, 7
  %v4333 = vsel %vm4230, %v4330, %v4332
  %v4334 = vrot.slane %v4156, 7
  %v4335 = vsel %vm4230, %v4332, %v4334
  %v4336 = vrot.slane %v4157, 7
  %v4337 = vrot.slane %v4158, 7
  %v4338 = vsel %vm4230, %v4336, %v4337
  %v4339 = vrot.slane %v4159, 7
  %v4340 = vsel %vm4230, %v4337, %v4339
  %v4341 = vrot.slane %v4160, 7
  %v4342 = vsel %vm4230, %v4339, %v4341
  %v4343 = vrot.slane %v4161, 7
  %v4344 = vsel %vm4230, %v4341, %v4343
  %v4345 = vrot.slane %v4162, 7
  %v4346 = vsel %vm4230, %v4343, %v4345
  %v4347 = vrot.slane %v4163, 7
  %v4348 = vsel %vm4230, %v4345, %v4347
  %v4349 = vrot.slane %v4164, 7
  %v4350 = vsel %vm4230, %v4347, %v4349
  %v4423 = vsel %vm4230, 0.0, %v4231
  %v4424 = vsel %vm4230, 0.0, %v4246
  %v4425 = vsel %vm4230, 0.0, %v4261
  %v4426 = vsel %vm4230, 0.0, %v4276
  %v4427 = vsel %vm4230, 0.0, %v4291
  %v4428 = vsel %vm4230, 0.0, %v4306
  %v4429 = vsel %vm4230, 0.0, %v4321
  %v4430 = vsel %vm4230, 0.0, %v4336
  %v4431 = vsel %vm4230, %v4244, 0.0
  %v4432 = vsel %vm4230, %v4259, 0.0
  %v4433 = vsel %vm4230, %v4274, 0.0
  %v4434 = vsel %vm4230, %v4289, 0.0
  %v4435 = vsel %vm4230, %v4304, 0.0
  %v4436 = vsel %vm4230, %v4319, 0.0
  %v4437 = vsel %vm4230, %v4334, 0.0
  %v4438 = vsel %vm4230, %v4349, 0.0
  %vm4455 = vcmask 1046528
  %v4456 = vrot.slane %v4423, 1
  %v4457 = vrot.slane %v4233, 1
  %v4458 = vsel %vm4455, %v4456, %v4457
  %v4459 = vrot.slane %v4235, 1
  %v4460 = vsel %vm4455, %v4457, %v4459
  %v4461 = vrot.slane %v4237, 1
  %v4462 = vsel %vm4455, %v4459, %v4461
  %v4463 = vrot.slane %v4239, 1
  %v4464 = vsel %vm4455, %v4461, %v4463
  %v4465 = vrot.slane %v4241, 1
  %v4466 = vsel %vm4455, %v4463, %v4465
  %v4467 = vrot.slane %v4243, 1
  %v4468 = vsel %vm4455, %v4465, %v4467
  %v4469 = vrot.slane %v4245, 1
  %v4470 = vsel %vm4455, %v4467, %v4469
  %v4471 = vrot.slane %v4431, 1
  %v4472 = vsel %vm4455, %v4469, %v4471
  %v4473 = vrot.slane %v4424, 1
  %v4474 = vrot.slane %v4248, 1
  %v4475 = vsel %vm4455, %v4473, %v4474
  %v4476 = vrot.slane %v4250, 1
  %v4477 = vsel %vm4455, %v4474, %v4476
  %v4478 = vrot.slane %v4252, 1
  %v4479 = vsel %vm4455, %v4476, %v4478
  %v4480 = vrot.slane %v4254, 1
  %v4481 = vsel %vm4455, %v4478, %v4480
  %v4482 = vrot.slane %v4256, 1
  %v4483 = vsel %vm4455, %v4480, %v4482
  %v4484 = vrot.slane %v4258, 1
  %v4485 = vsel %vm4455, %v4482, %v4484
  %v4486 = vrot.slane %v4260, 1
  %v4487 = vsel %vm4455, %v4484, %v4486
  %v4488 = vrot.slane %v4432, 1
  %v4489 = vsel %vm4455, %v4486, %v4488
  %v4490 = vrot.slane %v4425, 1
  %v4491 = vrot.slane %v4263, 1
  %v4492 = vsel %vm4455, %v4490, %v4491
  %v4493 = vrot.slane %v4265, 1
  %v4494 = vsel %vm4455, %v4491, %v4493
  %v4495 = vrot.slane %v4267, 1
  %v4496 = vsel %vm4455, %v4493, %v4495
  %v4497 = vrot.slane %v4269, 1
  %v4498 = vsel %vm4455, %v4495, %v4497
  %v4499 = vrot.slane %v4271, 1
  %v4500 = vsel %vm4455, %v4497, %v4499
  %v4501 = vrot.slane %v4273, 1
  %v4502 = vsel %vm4455, %v4499, %v4501
  %v4503 = vrot.slane %v4275, 1
  %v4504 = vsel %vm4455, %v4501, %v4503
  %v4505 = vrot.slane %v4433, 1
  %v4506 = vsel %vm4455, %v4503, %v4505
  %v4507 = vrot.slane %v4426, 1
  %v4508 = vrot.slane %v4278, 1
  %v4509 = vsel %vm4455, %v4507, %v4508
  %v4510 = vrot.slane %v4280, 1
  %v4511 = vsel %vm4455, %v4508, %v4510
  %v4512 = vrot.slane %v4282, 1
  %v4513 = vsel %vm4455, %v4510, %v4512
  %v4514 = vrot.slane %v4284, 1
  %v4515 = vsel %vm4455, %v4512, %v4514
  %v4516 = vrot.slane %v4286, 1
  %v4517 = vsel %vm4455, %v4514, %v4516
  %v4518 = vrot.slane %v4288, 1
  %v4519 = vsel %vm4455, %v4516, %v4518
  %v4520 = vrot.slane %v4290, 1
  %v4521 = vsel %vm4455, %v4518, %v4520
  %v4522 = vrot.slane %v4434, 1
  %v4523 = vsel %vm4455, %v4520, %v4522
  %v4524 = vrot.slane %v4427, 1
  %v4525 = vrot.slane %v4293, 1
  %v4526 = vsel %vm4455, %v4524, %v4525
  %v4527 = vrot.slane %v4295, 1
  %v4528 = vsel %vm4455, %v4525, %v4527
  %v4529 = vrot.slane %v4297, 1
  %v4530 = vsel %vm4455, %v4527, %v4529
  %v4531 = vrot.slane %v4299, 1
  %v4532 = vsel %vm4455, %v4529, %v4531
  %v4533 = vrot.slane %v4301, 1
  %v4534 = vsel %vm4455, %v4531, %v4533
  %v4535 = vrot.slane %v4303, 1
  %v4536 = vsel %vm4455, %v4533, %v4535
  %v4537 = vrot.slane %v4305, 1
  %v4538 = vsel %vm4455, %v4535, %v4537
  %v4539 = vrot.slane %v4435, 1
  %v4540 = vsel %vm4455, %v4537, %v4539
  %v4541 = vrot.slane %v4428, 1
  %v4542 = vrot.slane %v4308, 1
  %v4543 = vsel %vm4455, %v4541, %v4542
  %v4544 = vrot.slane %v4310, 1
  %v4545 = vsel %vm4455, %v4542, %v4544
  %v4546 = vrot.slane %v4312, 1
  %v4547 = vsel %vm4455, %v4544, %v4546
  %v4548 = vrot.slane %v4314, 1
  %v4549 = vsel %vm4455, %v4546, %v4548
  %v4550 = vrot.slane %v4316, 1
  %v4551 = vsel %vm4455, %v4548, %v4550
  %v4552 = vrot.slane %v4318, 1
  %v4553 = vsel %vm4455, %v4550, %v4552
  %v4554 = vrot.slane %v4320, 1
  %v4555 = vsel %vm4455, %v4552, %v4554
  %v4556 = vrot.slane %v4436, 1
  %v4557 = vsel %vm4455, %v4554, %v4556
  %v4558 = vrot.slane %v4429, 1
  %v4559 = vrot.slane %v4323, 1
  %v4560 = vsel %vm4455, %v4558, %v4559
  %v4561 = vrot.slane %v4325, 1
  %v4562 = vsel %vm4455, %v4559, %v4561
  %v4563 = vrot.slane %v4327, 1
  %v4564 = vsel %vm4455, %v4561, %v4563
  %v4565 = vrot.slane %v4329, 1
  %v4566 = vsel %vm4455, %v4563, %v4565
  %v4567 = vrot.slane %v4331, 1
  %v4568 = vsel %vm4455, %v4565, %v4567
  %v4569 = vrot.slane %v4333, 1
  %v4570 = vsel %vm4455, %v4567, %v4569
  %v4571 = vrot.slane %v4335, 1
  %v4572 = vsel %vm4455, %v4569, %v4571
  %v4573 = vrot.slane %v4437, 1
  %v4574 = vsel %vm4455, %v4571, %v4573
  %v4575 = vrot.slane %v4430, 1
  %v4576 = vrot.slane %v4338, 1
  %v4577 = vsel %vm4455, %v4575, %v4576
  %v4578 = vrot.slane %v4340, 1
  %v4579 = vsel %vm4455, %v4576, %v4578
  %v4580 = vrot.slane %v4342, 1
  %v4581 = vsel %vm4455, %v4578, %v4580
  %v4582 = vrot.slane %v4344, 1
  %v4583 = vsel %vm4455, %v4580, %v4582
  %v4584 = vrot.slane %v4346, 1
  %v4585 = vsel %vm4455, %v4582, %v4584
  %v4586 = vrot.slane %v4348, 1
  %v4587 = vsel %vm4455, %v4584, %v4586
  %v4588 = vrot.slane %v4350, 1
  %v4589 = vsel %vm4455, %v4586, %v4588
  %v4590 = vrot.slane %v4438, 1
  %v4591 = vsel %vm4455, %v4588, %v4590
  %4592 = vrot.lane.b32.xlu0 %v4458, 16
  %v4593 = vpop.permute.xlu0 %4592
  %4594 = vrot.lane.b32.xlu0 %v4460, 16
  %v4595 = vpop.permute.xlu0 %4594
  %4596 = vrot.lane.b32.xlu0 %v4462, 16
  %v4597 = vpop.permute.xlu0 %4596
  %4598 = vrot.lane.b32.xlu0 %v4464, 16
  %v4599 = vpop.permute.xlu0 %4598
  %4600 = vrot.lane.b32.xlu0 %v4466, 16
  %v4601 = vpop.permute.xlu0 %4600
  %4602 = vrot.lane.b32.xlu0 %v4468, 16
  %v4603 = vpop.permute.xlu0 %4602
  %4604 = vrot.lane.b32.xlu0 %v4470, 16
  %v4605 = vpop.permute.xlu0 %4604
  %4606 = vrot.lane.b32.xlu0 %v4472, 16
  %v4607 = vpop.permute.xlu0 %4606
  %4608 = vrot.lane.b32.xlu0 %v4475, 16
  %v4609 = vpop.permute.xlu0 %4608
  %4610 = vrot.lane.b32.xlu0 %v4477, 16
  %v4611 = vpop.permute.xlu0 %4610
  %4612 = vrot.lane.b32.xlu0 %v4479, 16
  %v4613 = vpop.permute.xlu0 %4612
  %4614 = vrot.lane.b32.xlu0 %v4481, 16
  %v4615 = vpop.permute.xlu0 %4614
  %4616 = vrot.lane.b32.xlu0 %v4483, 16
  %v4617 = vpop.permute.xlu0 %4616
  %4618 = vrot.lane.b32.xlu0 %v4485, 16
  %v4619 = vpop.permute.xlu0 %4618
  %4620 = vrot.lane.b32.xlu0 %v4487, 16
  %v4621 = vpop.permute.xlu0 %4620
  %4622 = vrot.lane.b32.xlu0 %v4489, 16
  %v4623 = vpop.permute.xlu0 %4622
  %4624 = vrot.lane.b32.xlu0 %v4492, 16
  %v4625 = vpop.permute.xlu0 %4624
  %4626 = vrot.lane.b32.xlu0 %v4494, 16
  %v4627 = vpop.permute.xlu0 %4626
  %4628 = vrot.lane.b32.xlu0 %v4496, 16
  %v4629 = vpop.permute.xlu0 %4628
  %4630 = vrot.lane.b32.xlu0 %v4498, 16
  %v4631 = vpop.permute.xlu0 %4630
  %4632 = vrot.lane.b32.xlu0 %v4500, 16
  %v4633 = vpop.permute.xlu0 %4632
  %4634 = vrot.lane.b32.xlu0 %v4502, 16
  %v4635 = vpop.permute.xlu0 %4634
  %4636 = vrot.lane.b32.xlu0 %v4504, 16
  %v4637 = vpop.permute.xlu0 %4636
  %4638 = vrot.lane.b32.xlu0 %v4506, 16
  %v4639 = vpop.permute.xlu0 %4638
  %4640 = vrot.lane.b32.xlu0 %v4509, 16
  %v4641 = vpop.permute.xlu0 %4640
  %4642 = vrot.lane.b32.xlu0 %v4511, 16
  %v4643 = vpop.permute.xlu0 %4642
  %4644 = vrot.lane.b32.xlu0 %v4513, 16
  %v4645 = vpop.permute.xlu0 %4644
  %4646 = vrot.lane.b32.xlu0 %v4515, 16
  %v4647 = vpop.permute.xlu0 %4646
  %4648 = vrot.lane.b32.xlu0 %v4517, 16
  %v4649 = vpop.permute.xlu0 %4648
  %4650 = vrot.lane.b32.xlu0 %v4519, 16
  %v4651 = vpop.permute.xlu0 %4650
  %4652 = vrot.lane.b32.xlu0 %v4521, 16
  %v4653 = vpop.permute.xlu0 %4652
  %4654 = vrot.lane.b32.xlu0 %v4523, 16
  %v4655 = vpop.permute.xlu0 %4654
  %4656 = vrot.lane.b32.xlu0 %v4526, 16
  %v4657 = vpop.permute.xlu0 %4656
  %4658 = vrot.lane.b32.xlu0 %v4528, 16
  %v4659 = vpop.permute.xlu0 %4658
  %4660 = vrot.lane.b32.xlu0 %v4530, 16
  %v4661 = vpop.permute.xlu0 %4660
  %4662 = vrot.lane.b32.xlu0 %v4532, 16
  %v4663 = vpop.permute.xlu0 %4662
  %4664 = vrot.lane.b32.xlu0 %v4534, 16
  %v4665 = vpop.permute.xlu0 %4664
  %4666 = vrot.lane.b32.xlu0 %v4536, 16
  %v4667 = vpop.permute.xlu0 %4666
  %4668 = vrot.lane.b32.xlu0 %v4538, 16
  %v4669 = vpop.permute.xlu0 %4668
  %4670 = vrot.lane.b32.xlu0 %v4540, 16
  %v4671 = vpop.permute.xlu0 %4670
  %4672 = vrot.lane.b32.xlu0 %v4543, 16
  %v4673 = vpop.permute.xlu0 %4672
  %4674 = vrot.lane.b32.xlu0 %v4545, 16
  %v4675 = vpop.permute.xlu0 %4674
  %4676 = vrot.lane.b32.xlu0 %v4547, 16
  %v4677 = vpop.permute.xlu0 %4676
  %4678 = vrot.lane.b32.xlu0 %v4549, 16
  %v4679 = vpop.permute.xlu0 %4678
  %4680 = vrot.lane.b32.xlu0 %v4551, 16
  %v4681 = vpop.permute.xlu0 %4680
  %4682 = vrot.lane.b32.xlu0 %v4553, 16
  %v4683 = vpop.permute.xlu0 %4682
  %4684 = vrot.lane.b32.xlu0 %v4555, 16
  %v4685 = vpop.permute.xlu0 %4684
  %4686 = vrot.lane.b32.xlu0 %v4557, 16
  %v4687 = vpop.permute.xlu0 %4686
  %4688 = vrot.lane.b32.xlu0 %v4560, 16
  %v4689 = vpop.permute.xlu0 %4688
  %4690 = vrot.lane.b32.xlu0 %v4562, 16
  %v4691 = vpop.permute.xlu0 %4690
  %4692 = vrot.lane.b32.xlu0 %v4564, 16
  %v4693 = vpop.permute.xlu0 %4692
  %4694 = vrot.lane.b32.xlu0 %v4566, 16
  %v4695 = vpop.permute.xlu0 %4694
  %4696 = vrot.lane.b32.xlu0 %v4568, 16
  %v4697 = vpop.permute.xlu0 %4696
  %4698 = vrot.lane.b32.xlu0 %v4570, 16
  %v4699 = vpop.permute.xlu0 %4698
  %4700 = vrot.lane.b32.xlu0 %v4572, 16
  %v4701 = vpop.permute.xlu0 %4700
  %4702 = vrot.lane.b32.xlu0 %v4574, 16
  %v4703 = vpop.permute.xlu0 %4702
  %4704 = vrot.lane.b32.xlu0 %v4577, 16
  %v4705 = vpop.permute.xlu0 %4704
  %4706 = vrot.lane.b32.xlu0 %v4579, 16
  %v4707 = vpop.permute.xlu0 %4706
  %4708 = vrot.lane.b32.xlu0 %v4581, 16
  %v4709 = vpop.permute.xlu0 %4708
  %4710 = vrot.lane.b32.xlu0 %v4583, 16
  %v4711 = vpop.permute.xlu0 %4710
  %4712 = vrot.lane.b32.xlu0 %v4585, 16
  %v4713 = vpop.permute.xlu0 %4712
  %4714 = vrot.lane.b32.xlu0 %v4587, 16
  %v4715 = vpop.permute.xlu0 %4714
  %4716 = vrot.lane.b32.xlu0 %v4589, 16
  %v4717 = vpop.permute.xlu0 %4716
  %4718 = vrot.lane.b32.xlu0 %v4591, 16
  %v4719 = vpop.permute.xlu0 %4718
  %vm4784 = vcmask 1045504
  %v4785 = vrot.slane %v4423, 2
  %v4786 = vrot.slane %v4233, 2
  %v4787 = vsel %vm4784, %v4785, %v4786
  %v4788 = vrot.slane %v4235, 2
  %v4789 = vsel %vm4784, %v4786, %v4788
  %v4790 = vrot.slane %v4237, 2
  %v4791 = vsel %vm4784, %v4788, %v4790
  %v4792 = vrot.slane %v4239, 2
  %v4793 = vsel %vm4784, %v4790, %v4792
  %v4794 = vrot.slane %v4241, 2
  %v4795 = vsel %vm4784, %v4792, %v4794
  %v4796 = vrot.slane %v4243, 2
  %v4797 = vsel %vm4784, %v4794, %v4796
  %v4798 = vrot.slane %v4245, 2
  %v4799 = vsel %vm4784, %v4796, %v4798
  %v4800 = vrot.slane %v4431, 2
  %v4801 = vsel %vm4784, %v4798, %v4800
  %v4802 = vrot.slane %v4424, 2
  %v4803 = vrot.slane %v4248, 2
  %v4804 = vsel %vm4784, %v4802, %v4803
  %v4805 = vrot.slane %v4250, 2
  %v4806 = vsel %vm4784, %v4803, %v4805
  %v4807 = vrot.slane %v4252, 2
  %v4808 = vsel %vm4784, %v4805, %v4807
  %v4809 = vrot.slane %v4254, 2
  %v4810 = vsel %vm4784, %v4807, %v4809
  %v4811 = vrot.slane %v4256, 2
  %v4812 = vsel %vm4784, %v4809, %v4811
  %v4813 = vrot.slane %v4258, 2
  %v4814 = vsel %vm4784, %v4811, %v4813
  %v4815 = vrot.slane %v4260, 2
  %v4816 = vsel %vm4784, %v4813, %v4815
  %v4817 = vrot.slane %v4432, 2
  %v4818 = vsel %vm4784, %v4815, %v4817
  %v4819 = vrot.slane %v4425, 2
  %v4820 = vrot.slane %v4263, 2
  %v4821 = vsel %vm4784, %v4819, %v4820
  %v4822 = vrot.slane %v4265, 2
  %v4823 = vsel %vm4784, %v4820, %v4822
  %v4824 = vrot.slane %v4267, 2
  %v4825 = vsel %vm4784, %v4822, %v4824
  %v4826 = vrot.slane %v4269, 2
  %v4827 = vsel %vm4784, %v4824, %v4826
  %v4828 = vrot.slane %v4271, 2
  %v4829 = vsel %vm4784, %v4826, %v4828
  %v4830 = vrot.slane %v4273, 2
  %v4831 = vsel %vm4784, %v4828, %v4830
  %v4832 = vrot.slane %v4275, 2
  %v4833 = vsel %vm4784, %v4830, %v4832
  %v4834 = vrot.slane %v4433, 2
  %v4835 = vsel %vm4784, %v4832, %v4834
  %v4836 = vrot.slane %v4426, 2
  %v4837 = vrot.slane %v4278, 2
  %v4838 = vsel %vm4784, %v4836, %v4837
  %v4839 = vrot.slane %v4280, 2
  %v4840 = vsel %vm4784, %v4837, %v4839
  %v4841 = vrot.slane %v4282, 2
  %v4842 = vsel %vm4784, %v4839, %v4841
  %v4843 = vrot.slane %v4284, 2
  %v4844 = vsel %vm4784, %v4841, %v4843
  %v4845 = vrot.slane %v4286, 2
  %v4846 = vsel %vm4784, %v4843, %v4845
  %v4847 = vrot.slane %v4288, 2
  %v4848 = vsel %vm4784, %v4845, %v4847
  %v4849 = vrot.slane %v4290, 2
  %v4850 = vsel %vm4784, %v4847, %v4849
  %v4851 = vrot.slane %v4434, 2
  %v4852 = vsel %vm4784, %v4849, %v4851
  %v4853 = vrot.slane %v4427, 2
  %v4854 = vrot.slane %v4293, 2
  %v4855 = vsel %vm4784, %v4853, %v4854
  %v4856 = vrot.slane %v4295, 2
  %v4857 = vsel %vm4784, %v4854, %v4856
  %v4858 = vrot.slane %v4297, 2
  %v4859 = vsel %vm4784, %v4856, %v4858
  %v4860 = vrot.slane %v4299, 2
  %v4861 = vsel %vm4784, %v4858, %v4860
  %v4862 = vrot.slane %v4301, 2
  %v4863 = vsel %vm4784, %v4860, %v4862
  %v4864 = vrot.slane %v4303, 2
  %v4865 = vsel %vm4784, %v4862, %v4864
  %v4866 = vrot.slane %v4305, 2
  %v4867 = vsel %vm4784, %v4864, %v4866
  %v4868 = vrot.slane %v4435, 2
  %v4869 = vsel %vm4784, %v4866, %v4868
  %v4870 = vrot.slane %v4428, 2
  %v4871 = vrot.slane %v4308, 2
  %v4872 = vsel %vm4784, %v4870, %v4871
  %v4873 = vrot.slane %v4310, 2
  %v4874 = vsel %vm4784, %v4871, %v4873
  %v4875 = vrot.slane %v4312, 2
  %v4876 = vsel %vm4784, %v4873, %v4875
  %v4877 = vrot.slane %v4314, 2
  %v4878 = vsel %vm4784, %v4875, %v4877
  %v4879 = vrot.slane %v4316, 2
  %v4880 = vsel %vm4784, %v4877, %v4879
  %v4881 = vrot.slane %v4318, 2
  %v4882 = vsel %vm4784, %v4879, %v4881
  %v4883 = vrot.slane %v4320, 2
  %v4884 = vsel %vm4784, %v4881, %v4883
  %v4885 = vrot.slane %v4436, 2
  %v4886 = vsel %vm4784, %v4883, %v4885
  %v4887 = vrot.slane %v4429, 2
  %v4888 = vrot.slane %v4323, 2
  %v4889 = vsel %vm4784, %v4887, %v4888
  %v4890 = vrot.slane %v4325, 2
  %v4891 = vsel %vm4784, %v4888, %v4890
  %v4892 = vrot.slane %v4327, 2
  %v4893 = vsel %vm4784, %v4890, %v4892
  %v4894 = vrot.slane %v4329, 2
  %v4895 = vsel %vm4784, %v4892, %v4894
  %v4896 = vrot.slane %v4331, 2
  %v4897 = vsel %vm4784, %v4894, %v4896
  %v4898 = vrot.slane %v4333, 2
  %v4899 = vsel %vm4784, %v4896, %v4898
  %v4900 = vrot.slane %v4335, 2
  %v4901 = vsel %vm4784, %v4898, %v4900
  %v4902 = vrot.slane %v4437, 2
  %v4903 = vsel %vm4784, %v4900, %v4902
  %v4904 = vrot.slane %v4430, 2
  %v4905 = vrot.slane %v4338, 2
  %v4906 = vsel %vm4784, %v4904, %v4905
  %v4907 = vrot.slane %v4340, 2
  %v4908 = vsel %vm4784, %v4905, %v4907
  %v4909 = vrot.slane %v4342, 2
  %v4910 = vsel %vm4784, %v4907, %v4909
  %v4911 = vrot.slane %v4344, 2
  %v4912 = vsel %vm4784, %v4909, %v4911
  %v4913 = vrot.slane %v4346, 2
  %v4914 = vsel %vm4784, %v4911, %v4913
  %v4915 = vrot.slane %v4348, 2
  %v4916 = vsel %vm4784, %v4913, %v4915
  %v4917 = vrot.slane %v4350, 2
  %v4918 = vsel %vm4784, %v4915, %v4917
  %v4919 = vrot.slane %v4438, 2
  %v4920 = vsel %vm4784, %v4917, %v4919
  %4921 = vrot.lane.b32.xlu0 %v4787, 32
  %v4922 = vpop.permute.xlu0 %4921
  %4923 = vrot.lane.b32.xlu0 %v4789, 32
  %v4924 = vpop.permute.xlu0 %4923
  %4925 = vrot.lane.b32.xlu0 %v4791, 32
  %v4926 = vpop.permute.xlu0 %4925
  %4927 = vrot.lane.b32.xlu0 %v4793, 32
  %v4928 = vpop.permute.xlu0 %4927
  %4929 = vrot.lane.b32.xlu0 %v4795, 32
  %v4930 = vpop.permute.xlu0 %4929
  %4931 = vrot.lane.b32.xlu0 %v4797, 32
  %v4932 = vpop.permute.xlu0 %4931
  %4933 = vrot.lane.b32.xlu0 %v4799, 32
  %v4934 = vpop.permute.xlu0 %4933
  %4935 = vrot.lane.b32.xlu0 %v4801, 32
  %v4936 = vpop.permute.xlu0 %4935
  %4937 = vrot.lane.b32.xlu0 %v4804, 32
  %v4938 = vpop.permute.xlu0 %4937
  %4939 = vrot.lane.b32.xlu0 %v4806, 32
  %v4940 = vpop.permute.xlu0 %4939
  %4941 = vrot.lane.b32.xlu0 %v4808, 32
  %v4942 = vpop.permute.xlu0 %4941
  %4943 = vrot.lane.b32.xlu0 %v4810, 32
  %v4944 = vpop.permute.xlu0 %4943
  %4945 = vrot.lane.b32.xlu0 %v4812, 32
  %v4946 = vpop.permute.xlu0 %4945
  %4947 = vrot.lane.b32.xlu0 %v4814, 32
  %v4948 = vpop.permute.xlu0 %4947
  %4949 = vrot.lane.b32.xlu0 %v4816, 32
  %v4950 = vpop.permute.xlu0 %4949
  %4951 = vrot.lane.b32.xlu0 %v4818, 32
  %v4952 = vpop.permute.xlu0 %4951
  %4953 = vrot.lane.b32.xlu0 %v4821, 32
  %v4954 = vpop.permute.xlu0 %4953
  %4955 = vrot.lane.b32.xlu0 %v4823, 32
  %v4956 = vpop.permute.xlu0 %4955
  %4957 = vrot.lane.b32.xlu0 %v4825, 32
  %v4958 = vpop.permute.xlu0 %4957
  %4959 = vrot.lane.b32.xlu0 %v4827, 32
  %v4960 = vpop.permute.xlu0 %4959
  %4961 = vrot.lane.b32.xlu0 %v4829, 32
  %v4962 = vpop.permute.xlu0 %4961
  %4963 = vrot.lane.b32.xlu0 %v4831, 32
  %v4964 = vpop.permute.xlu0 %4963
  %4965 = vrot.lane.b32.xlu0 %v4833, 32
  %v4966 = vpop.permute.xlu0 %4965
  %4967 = vrot.lane.b32.xlu0 %v4835, 32
  %v4968 = vpop.permute.xlu0 %4967
  %4969 = vrot.lane.b32.xlu0 %v4838, 32
  %v4970 = vpop.permute.xlu0 %4969
  %4971 = vrot.lane.b32.xlu0 %v4840, 32
  %v4972 = vpop.permute.xlu0 %4971
  %4973 = vrot.lane.b32.xlu0 %v4842, 32
  %v4974 = vpop.permute.xlu0 %4973
  %4975 = vrot.lane.b32.xlu0 %v4844, 32
  %v4976 = vpop.permute.xlu0 %4975
  %4977 = vrot.lane.b32.xlu0 %v4846, 32
  %v4978 = vpop.permute.xlu0 %4977
  %4979 = vrot.lane.b32.xlu0 %v4848, 32
  %v4980 = vpop.permute.xlu0 %4979
  %4981 = vrot.lane.b32.xlu0 %v4850, 32
  %v4982 = vpop.permute.xlu0 %4981
  %4983 = vrot.lane.b32.xlu0 %v4852, 32
  %v4984 = vpop.permute.xlu0 %4983
  %4985 = vrot.lane.b32.xlu0 %v4855, 32
  %v4986 = vpop.permute.xlu0 %4985
  %4987 = vrot.lane.b32.xlu0 %v4857, 32
  %v4988 = vpop.permute.xlu0 %4987
  %4989 = vrot.lane.b32.xlu0 %v4859, 32
  %v4990 = vpop.permute.xlu0 %4989
  %4991 = vrot.lane.b32.xlu0 %v4861, 32
  %v4992 = vpop.permute.xlu0 %4991
  %4993 = vrot.lane.b32.xlu0 %v4863, 32
  %v4994 = vpop.permute.xlu0 %4993
  %4995 = vrot.lane.b32.xlu0 %v4865, 32
  %v4996 = vpop.permute.xlu0 %4995
  %4997 = vrot.lane.b32.xlu0 %v4867, 32
  %v4998 = vpop.permute.xlu0 %4997
  %4999 = vrot.lane.b32.xlu0 %v4869, 32
  %v5000 = vpop.permute.xlu0 %4999
  %5001 = vrot.lane.b32.xlu0 %v4872, 32
  %v5002 = vpop.permute.xlu0 %5001
  %5003 = vrot.lane.b32.xlu0 %v4874, 32
  %v5004 = vpop.permute.xlu0 %5003
  %5005 = vrot.lane.b32.xlu0 %v4876, 32
  %v5006 = vpop.permute.xlu0 %5005
  %5007 = vrot.lane.b32.xlu0 %v4878, 32
  %v5008 = vpop.permute.xlu0 %5007
  %5009 = vrot.lane.b32.xlu0 %v4880, 32
  %v5010 = vpop.permute.xlu0 %5009
  %5011 = vrot.lane.b32.xlu0 %v4882, 32
  %v5012 = vpop.permute.xlu0 %5011
  %5013 = vrot.lane.b32.xlu0 %v4884, 32
  %v5014 = vpop.permute.xlu0 %5013
  %5015 = vrot.lane.b32.xlu0 %v4886, 32
  %v5016 = vpop.permute.xlu0 %5015
  %5017 = vrot.lane.b32.xlu0 %v4889, 32
  %v5018 = vpop.permute.xlu0 %5017
  %5019 = vrot.lane.b32.xlu0 %v4891, 32
  %v5020 = vpop.permute.xlu0 %5019
  %5021 = vrot.lane.b32.xlu0 %v4893, 32
  %v5022 = vpop.permute.xlu0 %5021
  %5023 = vrot.lane.b32.xlu0 %v4895, 32
  %v5024 = vpop.permute.xlu0 %5023
  %5025 = vrot.lane.b32.xlu0 %v4897, 32
  %v5026 = vpop.permute.xlu0 %5025
  %5027 = vrot.lane.b32.xlu0 %v4899, 32
  %v5028 = vpop.permute.xlu0 %5027
  %5029 = vrot.lane.b32.xlu0 %v4901, 32
  %v5030 = vpop.permute.xlu0 %5029
  %5031 = vrot.lane.b32.xlu0 %v4903, 32
  %v5032 = vpop.permute.xlu0 %5031
  %5033 = vrot.lane.b32.xlu0 %v4906, 32
  %v5034 = vpop.permute.xlu0 %5033
  %5035 = vrot.lane.b32.xlu0 %v4908, 32
  %v5036 = vpop.permute.xlu0 %5035
  %5037 = vrot.lane.b32.xlu0 %v4910, 32
  %v5038 = vpop.permute.xlu0 %5037
  %5039 = vrot.lane.b32.xlu0 %v4912, 32
  %v5040 = vpop.permute.xlu0 %5039
  %5041 = vrot.lane.b32.xlu0 %v4914, 32
  %v5042 = vpop.permute.xlu0 %5041
  %5043 = vrot.lane.b32.xlu0 %v4916, 32
  %v5044 = vpop.permute.xlu0 %5043
  %5045 = vrot.lane.b32.xlu0 %v4918, 32
  %v5046 = vpop.permute.xlu0 %5045
  %5047 = vrot.lane.b32.xlu0 %v4920, 32
  %v5048 = vpop.permute.xlu0 %5047
  %v5113 = vsel %vm2098, %v4423, %v4593
  %v5114 = vsel %vm2098, %v4233, %v4595
  %v5115 = vsel %vm2098, %v4235, %v4597
  %v5116 = vsel %vm2098, %v4237, %v4599
  %v5117 = vsel %vm2098, %v4239, %v4601
  %v5118 = vsel %vm2098, %v4241, %v4603
  %v5119 = vsel %vm2098, %v4243, %v4605
  %v5120 = vsel %vm2098, %v4245, %v4607
  %v5121 = vsel %vm2098, %v4424, %v4609
  %v5122 = vsel %vm2098, %v4248, %v4611
  %v5123 = vsel %vm2098, %v4250, %v4613
  %v5124 = vsel %vm2098, %v4252, %v4615
  %v5125 = vsel %vm2098, %v4254, %v4617
  %v5126 = vsel %vm2098, %v4256, %v4619
  %v5127 = vsel %vm2098, %v4258, %v4621
  %v5128 = vsel %vm2098, %v4260, %v4623
  %v5129 = vsel %vm2098, %v4425, %v4625
  %v5130 = vsel %vm2098, %v4263, %v4627
  %v5131 = vsel %vm2098, %v4265, %v4629
  %v5132 = vsel %vm2098, %v4267, %v4631
  %v5133 = vsel %vm2098, %v4269, %v4633
  %v5134 = vsel %vm2098, %v4271, %v4635
  %v5135 = vsel %vm2098, %v4273, %v4637
  %v5136 = vsel %vm2098, %v4275, %v4639
  %v5137 = vsel %vm2098, %v4426, %v4641
  %v5138 = vsel %vm2098, %v4278, %v4643
  %v5139 = vsel %vm2098, %v4280, %v4645
  %v5140 = vsel %vm2098, %v4282, %v4647
  %v5141 = vsel %vm2098, %v4284, %v4649
  %v5142 = vsel %vm2098, %v4286, %v4651
  %v5143 = vsel %vm2098, %v4288, %v4653
  %v5144 = vsel %vm2098, %v4290, %v4655
  %v5145 = vsel %vm2098, %v4427, %v4657
  %v5146 = vsel %vm2098, %v4293, %v4659
  %v5147 = vsel %vm2098, %v4295, %v4661
  %v5148 = vsel %vm2098, %v4297, %v4663
  %v5149 = vsel %vm2098, %v4299, %v4665
  %v5150 = vsel %vm2098, %v4301, %v4667
  %v5151 = vsel %vm2098, %v4303, %v4669
  %v5152 = vsel %vm2098, %v4305, %v4671
  %v5153 = vsel %vm2098, %v4428, %v4673
  %v5154 = vsel %vm2098, %v4308, %v4675
  %v5155 = vsel %vm2098, %v4310, %v4677
  %v5156 = vsel %vm2098, %v4312, %v4679
  %v5157 = vsel %vm2098, %v4314, %v4681
  %v5158 = vsel %vm2098, %v4316, %v4683
  %v5159 = vsel %vm2098, %v4318, %v4685
  %v5160 = vsel %vm2098, %v4320, %v4687
  %v5161 = vsel %vm2098, %v4429, %v4689
  %v5162 = vsel %vm2098, %v4323, %v4691
  %v5163 = vsel %vm2098, %v4325, %v4693
  %v5164 = vsel %vm2098, %v4327, %v4695
  %v5165 = vsel %vm2098, %v4329, %v4697
  %v5166 = vsel %vm2098, %v4331, %v4699
  %v5167 = vsel %vm2098, %v4333, %v4701
  %v5168 = vsel %vm2098, %v4335, %v4703
  %v5169 = vsel %vm2098, %v4430, %v4705
  %v5170 = vsel %vm2098, %v4338, %v4707
  %v5171 = vsel %vm2098, %v4340, %v4709
  %v5172 = vsel %vm2098, %v4342, %v4711
  %v5173 = vsel %vm2098, %v4344, %v4713
  %v5174 = vsel %vm2098, %v4346, %v4715
  %v5175 = vsel %vm2098, %v4348, %v4717
  %v5176 = vsel %vm2098, %v4350, %v4719
  %v5177 = vsel %vm2227, %v5113, %v4922
  %v5178 = vsel %vm2227, %v5114, %v4924
  %v5179 = vsel %vm2227, %v5115, %v4926
  %v5180 = vsel %vm2227, %v5116, %v4928
  %v5181 = vsel %vm2227, %v5117, %v4930
  %v5182 = vsel %vm2227, %v5118, %v4932
  %v5183 = vsel %vm2227, %v5119, %v4934
  %v5184 = vsel %vm2227, %v5120, %v4936
  %v5185 = vsel %vm2227, %v5121, %v4938
  %v5186 = vsel %vm2227, %v5122, %v4940
  %v5187 = vsel %vm2227, %v5123, %v4942
  %v5188 = vsel %vm2227, %v5124, %v4944
  %v5189 = vsel %vm2227, %v5125, %v4946
  %v5190 = vsel %vm2227, %v5126, %v4948
  %v5191 = vsel %vm2227, %v5127, %v4950
  %v5192 = vsel %vm2227, %v5128, %v4952
  %v5193 = vsel %vm2227, %v5129, %v4954
  %v5194 = vsel %vm2227, %v5130, %v4956
  %v5195 = vsel %vm2227, %v5131, %v4958
  %v5196 = vsel %vm2227, %v5132, %v4960
  %v5197 = vsel %vm2227, %v5133, %v4962
  %v5198 = vsel %vm2227, %v5134, %v4964
  %v5199 = vsel %vm2227, %v5135, %v4966
  %v5200 = vsel %vm2227, %v5136, %v4968
  %v5201 = vsel %vm2227, %v5137, %v4970
  %v5202 = vsel %vm2227, %v5138, %v4972
  %v5203 = vsel %vm2227, %v5139, %v4974
  %v5204 = vsel %vm2227, %v5140, %v4976
  %v5205 = vsel %vm2227, %v5141, %v4978
  %v5206 = vsel %vm2227, %v5142, %v4980
  %v5207 = vsel %vm2227, %v5143, %v4982
  %v5208 = vsel %vm2227, %v5144, %v4984
  %v5209 = vsel %vm2227, %v5145, %v4986
  %v5210 = vsel %vm2227, %v5146, %v4988
  %v5211 = vsel %vm2227, %v5147, %v4990
  %v5212 = vsel %vm2227, %v5148, %v4992
  %v5213 = vsel %vm2227, %v5149, %v4994
  %v5214 = vsel %vm2227, %v5150, %v4996
  %v5215 = vsel %vm2227, %v5151, %v4998
  %v5216 = vsel %vm2227, %v5152, %v5000
  %v5217 = vsel %vm2227, %v5153, %v5002
  %v5218 = vsel %vm2227, %v5154, %v5004
  %v5219 = vsel %vm2227, %v5155, %v5006
  %v5220 = vsel %vm2227, %v5156, %v5008
  %v5221 = vsel %vm2227, %v5157, %v5010
  %v5222 = vsel %vm2227, %v5158, %v5012
  %v5223 = vsel %vm2227, %v5159, %v5014
  %v5224 = vsel %vm2227, %v5160, %v5016
  %v5225 = vsel %vm2227, %v5161, %v5018
  %v5226 = vsel %vm2227, %v5162, %v5020
  %v5227 = vsel %vm2227, %v5163, %v5022
  %v5228 = vsel %vm2227, %v5164, %v5024
  %v5229 = vsel %vm2227, %v5165, %v5026
  %v5230 = vsel %vm2227, %v5166, %v5028
  %v5231 = vsel %vm2227, %v5167, %v5030
  %v5232 = vsel %vm2227, %v5168, %v5032
  %v5233 = vsel %vm2227, %v5169, %v5034
  %v5234 = vsel %vm2227, %v5170, %v5036
  %v5235 = vsel %vm2227, %v5171, %v5038
  %v5236 = vsel %vm2227, %v5172, %v5040
  %v5237 = vsel %vm2227, %v5173, %v5042
  %v5238 = vsel %vm2227, %v5174, %v5044
  %v5239 = vsel %vm2227, %v5175, %v5046
  %v5240 = vsel %vm2227, %v5176, %v5048
  %v5241 = vld [vmem:[%s3] sm:$0xff]
  %v5242 = vld [vmem:[%s3 + $0x8] sm:$0xff]
  %v5243 = vld [vmem:[%s3 + $0x10] sm:$0xff]
  %v5244 = vld [vmem:[%s3 + $0x18] sm:$0xff]
  %v5245 = vld [vmem:[%s3 + $0x20] sm:$0xff]
  %v5246 = vld [vmem:[%s3 + $0x28] sm:$0xff]
  %v5248 = vlaneseq
  %v5249 = vshrl.u32 %v5248, 7
  %v5250 = vsub.s32 0, %v5249
  %v5251 = vrot.slane %v4165, %v5250
  %v5254 = vsel %vm2356, %v5177, 0
  %v5257 = vsel %vm2356, %v5178, 0
  %v5260 = vsel %vm2356, %v5179, 0
  %v5263 = vsel %vm2356, %v5180, 0
  %v5266 = vsel %vm2356, %v5181, 0
  %v5269 = vsel %vm2356, %v5182, 0
  %v5272 = vsel %vm2356, %v5183, 0
  %v5275 = vsel %vm2356, %v5184, 0
  %v5278 = vsel %vm2356, %v5185, 0
  %v5281 = vsel %vm2356, %v5186, 0
  %v5284 = vsel %vm2356, %v5187, 0
  %v5287 = vsel %vm2356, %v5188, 0
  %v5290 = vsel %vm2356, %v5189, 0
  %v5293 = vsel %vm2356, %v5190, 0
  %v5296 = vsel %vm2356, %v5191, 0
  %v5299 = vsel %vm2356, %v5192, 0
  %v5302 = vsel %vm2356, %v5193, 0
  %v5305 = vsel %vm2356, %v5194, 0
  %v5308 = vsel %vm2356, %v5195, 0
  %v5311 = vsel %vm2356, %v5196, 0
  %v5314 = vsel %vm2356, %v5197, 0
  %v5317 = vsel %vm2356, %v5198, 0
  %v5320 = vsel %vm2356, %v5199, 0
  %v5323 = vsel %vm2356, %v5200, 0
  %v5326 = vsel %vm2356, %v5201, 0
  %v5329 = vsel %vm2356, %v5202, 0
  %v5332 = vsel %vm2356, %v5203, 0
  %v5335 = vsel %vm2356, %v5204, 0
  %v5338 = vsel %vm2356, %v5205, 0
  %v5341 = vsel %vm2356, %v5206, 0
  %v5344 = vsel %vm2356, %v5207, 0
  %v5347 = vsel %vm2356, %v5208, 0
  %v5350 = vsel %vm2356, %v5209, 0
  %v5353 = vsel %vm2356, %v5210, 0
  %v5356 = vsel %vm2356, %v5211, 0
  %v5359 = vsel %vm2356, %v5212, 0
  %v5362 = vsel %vm2356, %v5213, 0
  %v5365 = vsel %vm2356, %v5214, 0
  %v5368 = vsel %vm2356, %v5215, 0
  %v5371 = vsel %vm2356, %v5216, 0
  %v5374 = vsel %vm2356, %v5217, 0
  %v5377 = vsel %vm2356, %v5218, 0
  %v5380 = vsel %vm2356, %v5219, 0
  %v5383 = vsel %vm2356, %v5220, 0
  %v5386 = vsel %vm2356, %v5221, 0
  %v5389 = vsel %vm2356, %v5222, 0
  %v5392 = vsel %vm2356, %v5223, 0
  %v5395 = vsel %vm2356, %v5224, 0
  %v5398 = vsel %vm2356, %v5225, 0
  %v5401 = vsel %vm2356, %v5226, 0
  %v5404 = vsel %vm2356, %v5227, 0
  %v5407 = vsel %vm2356, %v5228, 0
  %v5410 = vsel %vm2356, %v5229, 0
  %v5413 = vsel %vm2356, %v5230, 0
  %v5416 = vsel %vm2356, %v5231, 0
  %v5419 = vsel %vm2356, %v5232, 0
  %v5422 = vsel %vm2356, %v5233, 0
  %v5425 = vsel %vm2356, %v5234, 0
  %v5428 = vsel %vm2356, %v5235, 0
  %v5431 = vsel %vm2356, %v5236, 0
  %v5434 = vsel %vm2356, %v5237, 0
  %v5437 = vsel %vm2356, %v5238, 0
  %v5440 = vsel %vm2356, %v5239, 0
  %v5443 = vsel %vm2356, %v5240, 0
  %5445 = vmatprep.subr.mxu0 0.0
  %5446 = vmatpush1.msra.mxu0 0.0
  %5447 = vmatprep.subr.mxu0 0.0
  %5448 = vmatpush1.msra.mxu0 0.0
  %5449 = vmatprep.subr.mxu0 0.0
  %5450 = vmatpush1.msra.mxu0 0.0
  %5451 = vmatprep.subr.mxu0 0.0
  %5452 = vmatpush1.msra.mxu0 0.0
  %5453 = vmatprep.subr.mxu0 0.0
  %5454 = vmatpush1.msra.mxu0 0.0
  %5455 = vmatprep.subr.mxu0 0.0
  %5456 = vmatpush1.msra.mxu0 0.0
  %5457 = vmatprep.subr.mxu0 0.0
  %5458 = vmatpush1.msra.mxu0 0.0
  %5459 = vmatprep.subr.mxu0 0.0
  %5460 = vmatpush1.msra.mxu0 0.0
  %5461 = vmatprep.subr.mxu0 0.0
  %5462 = vmatpush1.msra.mxu0 0.0
  %5463 = vmatprep.subr.mxu0 0.0
  %5464 = vmatpush1.msra.mxu0 0.0
  %5465 = vmatprep.subr.mxu0 0.0
  %5466 = vmatpush1.msra.mxu0 %v5246
  %5467 = vmatprep.subr.mxu0 0.0
  %5468 = vmatpush1.msra.mxu0 %v5245
  %5469 = vmatprep.subr.mxu0 0.0
  %5470 = vmatpush1.msra.mxu0 %v5244
  %5471 = vmatprep.subr.mxu0 0.0
  %5472 = vmatpush1.msra.mxu0 %v5243
  %5473 = vmatprep.subr.mxu0 0.0
  %5474 = vmatpush1.msra.mxu0 %v5242
  %5475 = vmatprep.subr.mxu0 0.0
  %5476 = vmatpush1.msra.mxu0 %v5241
  %5477 = vmatprep.subr.mxu0 0.0
  %5478 = vmatpush2.msra.mxu0 0.0
  %5479 = vmatprep.subr.mxu0 0.0
  %5480 = vmatpush2.msra.mxu0 0.0
  %5481 = vmatprep.subr.mxu0 0.0
  %5482 = vmatpush2.msra.mxu0 0.0
  %5483 = vmatprep.subr.mxu0 0.0
  %5484 = vmatpush2.msra.mxu0 0.0
  %5485 = vmatprep.subr.mxu0 0.0
  %5486 = vmatpush2.msra.mxu0 0.0
  %5487 = vmatprep.subr.mxu0 0.0
  %5488 = vmatpush2.msra.mxu0 0.0
  %5489 = vmatprep.subr.mxu0 0.0
  %5490 = vmatpush2.msra.mxu0 0.0
  %5491 = vmatprep.subr.mxu0 0.0
  %5492 = vmatpush2.msra.mxu0 0.0
  %5493 = vmatprep.subr.mxu0 0.0
  %5494 = vmatpush2.msra.mxu0 0.0
  %5495 = vmatprep.subr.mxu0 0.0
  %5496 = vmatpush2.msra.mxu0 0.0
  %5497 = vmatprep.subr.mxu0 0.0
  %5498 = vmatpush2.msra.mxu0 0.0
  %5499 = vmatprep.subr.mxu0 0.0
  %5500 = vmatpush2.msra.mxu0 0.0
  %5501 = vmatprep.subr.mxu0 0.0
  %5502 = vmatpush2.msra.mxu0 0.0
  %5503 = vmatprep.subr.mxu0 0.0
  %5504 = vmatpush2.msra.mxu0 0.0
  %5505 = vmatprep.subr.mxu0 0.0
  %5506 = vmatpush2.msra.mxu0 0.0
  %5507 = vmatprep.subr.mxu0 0.0
  %5508 = vmatpush2.msra.mxu0 0.0
  %5509 = vmatprep.mubr.f32.mxu0 0.0
  %5510 = vmatmul.mubr.f32.gmra.mxu0 %v5254
  %v5511 = vpop.f32.mrf.mxu0
  %v5512 = vadd.f32 %v5251, %v5511
  %v5513 = vpop.f32.mrf.mxu0
  %5514 = vmatprep.mubr.f32.mxu0 0.0
  %5515 = vmatmul.mubr.f32.gmra.mxu0 %v5257
  %v5516 = vpop.f32.mrf.mxu0
  %v5517 = vadd.f32 %v5251, %v5516
  %v5518 = vpop.f32.mrf.mxu0
  %5519 = vmatprep.mubr.f32.mxu0 0.0
  %5520 = vmatmul.mubr.f32.gmra.mxu0 %v5260
  %v5521 = vpop.f32.mrf.mxu0
  %v5522 = vadd.f32 %v5251, %v5521
  %v5523 = vpop.f32.mrf.mxu0
  %5524 = vmatprep.mubr.f32.mxu0 0.0
  %5525 = vmatmul.mubr.f32.gmra.mxu0 %v5263
  %v5526 = vpop.f32.mrf.mxu0
  %v5527 = vadd.f32 %v5251, %v5526
  %v5528 = vpop.f32.mrf.mxu0
  %5529 = vmatprep.mubr.f32.mxu0 0.0
  %5530 = vmatmul.mubr.f32.gmra.mxu0 %v5266
  %v5531 = vpop.f32.mrf.mxu0
  %v5532 = vadd.f32 %v5251, %v5531
  %v5533 = vpop.f32.mrf.mxu0
  %5534 = vmatprep.mubr.f32.mxu0 0.0
  %5535 = vmatmul.mubr.f32.gmra.mxu0 %v5269
  %v5536 = vpop.f32.mrf.mxu0
  %v5537 = vadd.f32 %v5251, %v5536
  %v5538 = vpop.f32.mrf.mxu0
  %5539 = vmatprep.mubr.f32.mxu0 0.0
  %5540 = vmatmul.mubr.f32.gmra.mxu0 %v5272
  %v5541 = vpop.f32.mrf.mxu0
  %v5542 = vadd.f32 %v5251, %v5541
  %v5543 = vpop.f32.mrf.mxu0
  %5544 = vmatprep.mubr.f32.mxu0 0.0
  %5545 = vmatmul.mubr.f32.gmra.mxu0 %v5275
  %v5546 = vpop.f32.mrf.mxu0
  %v5547 = vadd.f32 %v5251, %v5546
  %v5548 = vpop.f32.mrf.mxu0
  %5549 = vmatprep.mubr.f32.mxu0 0.0
  %5550 = vmatmul.mubr.f32.gmra.mxu0 %v5278
  %v5551 = vpop.f32.mrf.mxu0
  %v5552 = vadd.f32 %v5251, %v5551
  %v5553 = vpop.f32.mrf.mxu0
  %5554 = vmatprep.mubr.f32.mxu0 0.0
  %5555 = vmatmul.mubr.f32.gmra.mxu0 %v5281
  %v5556 = vpop.f32.mrf.mxu0
  %v5557 = vadd.f32 %v5251, %v5556
  %v5558 = vpop.f32.mrf.mxu0
  %5559 = vmatprep.mubr.f32.mxu0 0.0
  %5560 = vmatmul.mubr.f32.gmra.mxu0 %v5284
  %v5561 = vpop.f32.mrf.mxu0
  %v5562 = vadd.f32 %v5251, %v5561
  %v5563 = vpop.f32.mrf.mxu0
  %5564 = vmatprep.mubr.f32.mxu0 0.0
  %5565 = vmatmul.mubr.f32.gmra.mxu0 %v5287
  %v5566 = vpop.f32.mrf.mxu0
  %v5567 = vadd.f32 %v5251, %v5566
  %v5568 = vpop.f32.mrf.mxu0
  %5569 = vmatprep.mubr.f32.mxu0 0.0
  %5570 = vmatmul.mubr.f32.gmra.mxu0 %v5290
  %v5571 = vpop.f32.mrf.mxu0
  %v5572 = vadd.f32 %v5251, %v5571
  %v5573 = vpop.f32.mrf.mxu0
  %5574 = vmatprep.mubr.f32.mxu0 0.0
  %5575 = vmatmul.mubr.f32.gmra.mxu0 %v5293
  %v5576 = vpop.f32.mrf.mxu0
  %v5577 = vadd.f32 %v5251, %v5576
  %v5578 = vpop.f32.mrf.mxu0
  %5579 = vmatprep.mubr.f32.mxu0 0.0
  %5580 = vmatmul.mubr.f32.gmra.mxu0 %v5296
  %v5581 = vpop.f32.mrf.mxu0
  %v5582 = vadd.f32 %v5251, %v5581
  %v5583 = vpop.f32.mrf.mxu0
  %5584 = vmatprep.mubr.f32.mxu0 0.0
  %5585 = vmatmul.mubr.f32.gmra.mxu0 %v5299
  %v5586 = vpop.f32.mrf.mxu0
  %v5587 = vadd.f32 %v5251, %v5586
  %v5588 = vpop.f32.mrf.mxu0
  %5589 = vmatprep.mubr.f32.mxu0 0.0
  %5590 = vmatmul.mubr.f32.gmra.mxu0 %v5302
  %v5591 = vpop.f32.mrf.mxu0
  %v5592 = vadd.f32 %v5251, %v5591
  %v5593 = vpop.f32.mrf.mxu0
  %5594 = vmatprep.mubr.f32.mxu0 0.0
  %5595 = vmatmul.mubr.f32.gmra.mxu0 %v5305
  %v5596 = vpop.f32.mrf.mxu0
  %v5597 = vadd.f32 %v5251, %v5596
  %v5598 = vpop.f32.mrf.mxu0
  %5599 = vmatprep.mubr.f32.mxu0 0.0
  %5600 = vmatmul.mubr.f32.gmra.mxu0 %v5308
  %v5601 = vpop.f32.mrf.mxu0
  %v5602 = vadd.f32 %v5251, %v5601
  %v5603 = vpop.f32.mrf.mxu0
  %5604 = vmatprep.mubr.f32.mxu0 0.0
  %5605 = vmatmul.mubr.f32.gmra.mxu0 %v5311
  %v5606 = vpop.f32.mrf.mxu0
  %v5607 = vadd.f32 %v5251, %v5606
  %v5608 = vpop.f32.mrf.mxu0
  %5609 = vmatprep.mubr.f32.mxu0 0.0
  %5610 = vmatmul.mubr.f32.gmra.mxu0 %v5314
  %v5611 = vpop.f32.mrf.mxu0
  %v5612 = vadd.f32 %v5251, %v5611
  %v5613 = vpop.f32.mrf.mxu0
  %5614 = vmatprep.mubr.f32.mxu0 0.0
  %5615 = vmatmul.mubr.f32.gmra.mxu0 %v5317
  %v5616 = vpop.f32.mrf.mxu0
  %v5617 = vadd.f32 %v5251, %v5616
  %v5618 = vpop.f32.mrf.mxu0
  %5619 = vmatprep.mubr.f32.mxu0 0.0
  %5620 = vmatmul.mubr.f32.gmra.mxu0 %v5320
  %v5621 = vpop.f32.mrf.mxu0
  %v5622 = vadd.f32 %v5251, %v5621
  %v5623 = vpop.f32.mrf.mxu0
  %5624 = vmatprep.mubr.f32.mxu0 0.0
  %5625 = vmatmul.mubr.f32.gmra.mxu0 %v5323
  %v5626 = vpop.f32.mrf.mxu0
  %v5627 = vadd.f32 %v5251, %v5626
  %v5628 = vpop.f32.mrf.mxu0
  %5629 = vmatprep.mubr.f32.mxu0 0.0
  %5630 = vmatmul.mubr.f32.gmra.mxu0 %v5326
  %v5631 = vpop.f32.mrf.mxu0
  %v5632 = vadd.f32 %v5251, %v5631
  %v5633 = vpop.f32.mrf.mxu0
  %5634 = vmatprep.mubr.f32.mxu0 0.0
  %5635 = vmatmul.mubr.f32.gmra.mxu0 %v5329
  %v5636 = vpop.f32.mrf.mxu0
  %v5637 = vadd.f32 %v5251, %v5636
  %v5638 = vpop.f32.mrf.mxu0
  %5639 = vmatprep.mubr.f32.mxu0 0.0
  %5640 = vmatmul.mubr.f32.gmra.mxu0 %v5332
  %v5641 = vpop.f32.mrf.mxu0
  %v5642 = vadd.f32 %v5251, %v5641
  %v5643 = vpop.f32.mrf.mxu0
  %5644 = vmatprep.mubr.f32.mxu0 0.0
  %5645 = vmatmul.mubr.f32.gmra.mxu0 %v5335
  %v5646 = vpop.f32.mrf.mxu0
  %v5647 = vadd.f32 %v5251, %v5646
  %v5648 = vpop.f32.mrf.mxu0
  %5649 = vmatprep.mubr.f32.mxu0 0.0
  %5650 = vmatmul.mubr.f32.gmra.mxu0 %v5338
  %v5651 = vpop.f32.mrf.mxu0
  %v5652 = vadd.f32 %v5251, %v5651
  %v5653 = vpop.f32.mrf.mxu0
  %5654 = vmatprep.mubr.f32.mxu0 0.0
  %5655 = vmatmul.mubr.f32.gmra.mxu0 %v5341
  %v5656 = vpop.f32.mrf.mxu0
  %v5657 = vadd.f32 %v5251, %v5656
  %v5658 = vpop.f32.mrf.mxu0
  %5659 = vmatprep.mubr.f32.mxu0 0.0
  %5660 = vmatmul.mubr.f32.gmra.mxu0 %v5344
  %v5661 = vpop.f32.mrf.mxu0
  %v5662 = vadd.f32 %v5251, %v5661
  %v5663 = vpop.f32.mrf.mxu0
  %5664 = vmatprep.mubr.f32.mxu0 0.0
  %5665 = vmatmul.mubr.f32.gmra.mxu0 %v5347
  %v5666 = vpop.f32.mrf.mxu0
  %v5667 = vadd.f32 %v5251, %v5666
  %v5668 = vpop.f32.mrf.mxu0
  %5669 = vmatprep.mubr.f32.mxu0 0.0
  %5670 = vmatmul.mubr.f32.gmra.mxu0 %v5350
  %v5671 = vpop.f32.mrf.mxu0
  %v5672 = vadd.f32 %v5251, %v5671
  %v5673 = vpop.f32.mrf.mxu0
  %5674 = vmatprep.mubr.f32.mxu0 0.0
  %5675 = vmatmul.mubr.f32.gmra.mxu0 %v5353
  %v5676 = vpop.f32.mrf.mxu0
  %v5677 = vadd.f32 %v5251, %v5676
  %v5678 = vpop.f32.mrf.mxu0
  %5679 = vmatprep.mubr.f32.mxu0 0.0
  %5680 = vmatmul.mubr.f32.gmra.mxu0 %v5356
  %v5681 = vpop.f32.mrf.mxu0
  %v5682 = vadd.f32 %v5251, %v5681
  %v5683 = vpop.f32.mrf.mxu0
  %5684 = vmatprep.mubr.f32.mxu0 0.0
  %5685 = vmatmul.mubr.f32.gmra.mxu0 %v5359
  %v5686 = vpop.f32.mrf.mxu0
  %v5687 = vadd.f32 %v5251, %v5686
  %v5688 = vpop.f32.mrf.mxu0
  %5689 = vmatprep.mubr.f32.mxu0 0.0
  %5690 = vmatmul.mubr.f32.gmra.mxu0 %v5362
  %v5691 = vpop.f32.mrf.mxu0
  %v5692 = vadd.f32 %v5251, %v5691
  %v5693 = vpop.f32.mrf.mxu0
  %5694 = vmatprep.mubr.f32.mxu0 0.0
  %5695 = vmatmul.mubr.f32.gmra.mxu0 %v5365
  %v5696 = vpop.f32.mrf.mxu0
  %v5697 = vadd.f32 %v5251, %v5696
  %v5698 = vpop.f32.mrf.mxu0
  %5699 = vmatprep.mubr.f32.mxu0 0.0
  %5700 = vmatmul.mubr.f32.gmra.mxu0 %v5368
  %v5701 = vpop.f32.mrf.mxu0
  %v5702 = vadd.f32 %v5251, %v5701
  %v5703 = vpop.f32.mrf.mxu0
  %5704 = vmatprep.mubr.f32.mxu0 0.0
  %5705 = vmatmul.mubr.f32.gmra.mxu0 %v5371
  %v5706 = vpop.f32.mrf.mxu0
  %v5707 = vadd.f32 %v5251, %v5706
  %v5708 = vpop.f32.mrf.mxu0
  %5709 = vmatprep.mubr.f32.mxu0 0.0
  %5710 = vmatmul.mubr.f32.gmra.mxu0 %v5374
  %v5711 = vpop.f32.mrf.mxu0
  %v5712 = vadd.f32 %v5251, %v5711
  %v5713 = vpop.f32.mrf.mxu0
  %5714 = vmatprep.mubr.f32.mxu0 0.0
  %5715 = vmatmul.mubr.f32.gmra.mxu0 %v5377
  %v5716 = vpop.f32.mrf.mxu0
  %v5717 = vadd.f32 %v5251, %v5716
  %v5718 = vpop.f32.mrf.mxu0
  %5719 = vmatprep.mubr.f32.mxu0 0.0
  %5720 = vmatmul.mubr.f32.gmra.mxu0 %v5380
  %v5721 = vpop.f32.mrf.mxu0
  %v5722 = vadd.f32 %v5251, %v5721
  %v5723 = vpop.f32.mrf.mxu0
  %5724 = vmatprep.mubr.f32.mxu0 0.0
  %5725 = vmatmul.mubr.f32.gmra.mxu0 %v5383
  %v5726 = vpop.f32.mrf.mxu0
  %v5727 = vadd.f32 %v5251, %v5726
  %v5728 = vpop.f32.mrf.mxu0
  %5729 = vmatprep.mubr.f32.mxu0 0.0
  %5730 = vmatmul.mubr.f32.gmra.mxu0 %v5386
  %v5731 = vpop.f32.mrf.mxu0
  %v5732 = vadd.f32 %v5251, %v5731
  %v5733 = vpop.f32.mrf.mxu0
  %5734 = vmatprep.mubr.f32.mxu0 0.0
  %5735 = vmatmul.mubr.f32.gmra.mxu0 %v5389
  %v5736 = vpop.f32.mrf.mxu0
  %v5737 = vadd.f32 %v5251, %v5736
  %v5738 = vpop.f32.mrf.mxu0
  %5739 = vmatprep.mubr.f32.mxu0 0.0
  %5740 = vmatmul.mubr.f32.gmra.mxu0 %v5392
  %v5741 = vpop.f32.mrf.mxu0
  %v5742 = vadd.f32 %v5251, %v5741
  %v5743 = vpop.f32.mrf.mxu0
  %5744 = vmatprep.mubr.f32.mxu0 0.0
  %5745 = vmatmul.mubr.f32.gmra.mxu0 %v5395
  %v5746 = vpop.f32.mrf.mxu0
  %v5747 = vadd.f32 %v5251, %v5746
  %v5748 = vpop.f32.mrf.mxu0
  %5749 = vmatprep.mubr.f32.mxu0 0.0
  %5750 = vmatmul.mubr.f32.gmra.mxu0 %v5398
  %v5751 = vpop.f32.mrf.mxu0
  %v5752 = vadd.f32 %v5251, %v5751
  %v5753 = vpop.f32.mrf.mxu0
  %5754 = vmatprep.mubr.f32.mxu0 0.0
  %5755 = vmatmul.mubr.f32.gmra.mxu0 %v5401
  %v5756 = vpop.f32.mrf.mxu0
  %v5757 = vadd.f32 %v5251, %v5756
  %v5758 = vpop.f32.mrf.mxu0
  %5759 = vmatprep.mubr.f32.mxu0 0.0
  %5760 = vmatmul.mubr.f32.gmra.mxu0 %v5404
  %v5761 = vpop.f32.mrf.mxu0
  %v5762 = vadd.f32 %v5251, %v5761
  %v5763 = vpop.f32.mrf.mxu0
  %5764 = vmatprep.mubr.f32.mxu0 0.0
  %5765 = vmatmul.mubr.f32.gmra.mxu0 %v5407
  %v5766 = vpop.f32.mrf.mxu0
  %v5767 = vadd.f32 %v5251, %v5766
  %v5768 = vpop.f32.mrf.mxu0
  %5769 = vmatprep.mubr.f32.mxu0 0.0
  %5770 = vmatmul.mubr.f32.gmra.mxu0 %v5410
  %v5771 = vpop.f32.mrf.mxu0
  %v5772 = vadd.f32 %v5251, %v5771
  %v5773 = vpop.f32.mrf.mxu0
  %5774 = vmatprep.mubr.f32.mxu0 0.0
  %5775 = vmatmul.mubr.f32.gmra.mxu0 %v5413
  %v5776 = vpop.f32.mrf.mxu0
  %v5777 = vadd.f32 %v5251, %v5776
  %v5778 = vpop.f32.mrf.mxu0
  %5779 = vmatprep.mubr.f32.mxu0 0.0
  %5780 = vmatmul.mubr.f32.gmra.mxu0 %v5416
  %v5781 = vpop.f32.mrf.mxu0
  %v5782 = vadd.f32 %v5251, %v5781
  %v5783 = vpop.f32.mrf.mxu0
  %5784 = vmatprep.mubr.f32.mxu0 0.0
  %5785 = vmatmul.mubr.f32.gmra.mxu0 %v5419
  %v5786 = vpop.f32.mrf.mxu0
  %v5787 = vadd.f32 %v5251, %v5786
  %v5788 = vpop.f32.mrf.mxu0
  %5789 = vmatprep.mubr.f32.mxu0 0.0
  %5790 = vmatmul.mubr.f32.gmra.mxu0 %v5422
  %v5791 = vpop.f32.mrf.mxu0
  %v5792 = vadd.f32 %v5251, %v5791
  %v5793 = vpop.f32.mrf.mxu0
  %5794 = vmatprep.mubr.f32.mxu0 0.0
  %5795 = vmatmul.mubr.f32.gmra.mxu0 %v5425
  %v5796 = vpop.f32.mrf.mxu0
  %v5797 = vadd.f32 %v5251, %v5796
  %v5798 = vpop.f32.mrf.mxu0
  %5799 = vmatprep.mubr.f32.mxu0 0.0
  %5800 = vmatmul.mubr.f32.gmra.mxu0 %v5428
  %v5801 = vpop.f32.mrf.mxu0
  %v5802 = vadd.f32 %v5251, %v5801
  %v5803 = vpop.f32.mrf.mxu0
  %5804 = vmatprep.mubr.f32.mxu0 0.0
  %5805 = vmatmul.mubr.f32.gmra.mxu0 %v5431
  %v5806 = vpop.f32.mrf.mxu0
  %v5807 = vadd.f32 %v5251, %v5806
  %v5808 = vpop.f32.mrf.mxu0
  %5809 = vmatprep.mubr.f32.mxu0 0.0
  %5810 = vmatmul.mubr.f32.gmra.mxu0 %v5434
  %v5811 = vpop.f32.mrf.mxu0
  %v5812 = vadd.f32 %v5251, %v5811
  %v5813 = vpop.f32.mrf.mxu0
  %5814 = vmatprep.mubr.f32.mxu0 0.0
  %5815 = vmatmul.mubr.f32.gmra.mxu0 %v5437
  %v5816 = vpop.f32.mrf.mxu0
  %v5817 = vadd.f32 %v5251, %v5816
  %v5818 = vpop.f32.mrf.mxu0
  %5819 = vmatprep.mubr.f32.mxu0 0.0
  %5820 = vmatmul.mubr.f32.gmra.mxu0 %v5440
  %v5821 = vpop.f32.mrf.mxu0
  %v5822 = vadd.f32 %v5251, %v5821
  %v5823 = vpop.f32.mrf.mxu0
  %5824 = vmatprep.mubr.f32.mxu0 0.0
  %5825 = vmatmul.mubr.f32.gmra.mxu0 %v5443
  %v5826 = vpop.f32.mrf.mxu0
  %v5827 = vadd.f32 %v5251, %v5826
  %v5828 = vpop.f32.mrf.mxu0
  %5829 = vdwg.mxu0
  %v5830 = vmax.f32 %v5512, 0.0
  %v5831 = vmax.f32 %v5517, 0.0
  %v5832 = vmax.f32 %v5522, 0.0
  %v5833 = vmax.f32 %v5527, 0.0
  %v5834 = vmax.f32 %v5532, 0.0
  %v5835 = vmax.f32 %v5537, 0.0
  %v5836 = vmax.f32 %v5542, 0.0
  %v5837 = vmax.f32 %v5547, 0.0
  %v5838 = vmax.f32 %v5552, 0.0
  %v5839 = vmax.f32 %v5557, 0.0
  %v5840 = vmax.f32 %v5562, 0.0
  %v5841 = vmax.f32 %v5567, 0.0
  %v5842 = vmax.f32 %v5572, 0.0
  %v5843 = vmax.f32 %v5577, 0.0
  %v5844 = vmax.f32 %v5582, 0.0
  %v5845 = vmax.f32 %v5587, 0.0
  %v5846 = vmax.f32 %v5592, 0.0
  %v5847 = vmax.f32 %v5597, 0.0
  %v5848 = vmax.f32 %v5602, 0.0
  %v5849 = vmax.f32 %v5607, 0.0
  %v5850 = vmax.f32 %v5612, 0.0
  %v5851 = vmax.f32 %v5617, 0.0
  %v5852 = vmax.f32 %v5622, 0.0
  %v5853 = vmax.f32 %v5627, 0.0
  %v5854 = vmax.f32 %v5632, 0.0
  %v5855 = vmax.f32 %v5637, 0.0
  %v5856 = vmax.f32 %v5642, 0.0
  %v5857 = vmax.f32 %v5647, 0.0
  %v5858 = vmax.f32 %v5652, 0.0
  %v5859 = vmax.f32 %v5657, 0.0
  %v5860 = vmax.f32 %v5662, 0.0
  %v5861 = vmax.f32 %v5667, 0.0
  %v5862 = vmax.f32 %v5672, 0.0
  %v5863 = vmax.f32 %v5677, 0.0
  %v5864 = vmax.f32 %v5682, 0.0
  %v5865 = vmax.f32 %v5687, 0.0
  %v5866 = vmax.f32 %v5692, 0.0
  %v5867 = vmax.f32 %v5697, 0.0
  %v5868 = vmax.f32 %v5702, 0.0
  %v5869 = vmax.f32 %v5707, 0.0
  %v5870 = vmax.f32 %v5712, 0.0
  %v5871 = vmax.f32 %v5717, 0.0
  %v5872 = vmax.f32 %v5722, 0.0
  %v5873 = vmax.f32 %v5727, 0.0
  %v5874 = vmax.f32 %v5732, 0.0
  %v5875 = vmax.f32 %v5737, 0.0
  %v5876 = vmax.f32 %v5742, 0.0
  %v5877 = vmax.f32 %v5747, 0.0
  %v5878 = vmax.f32 %v5752, 0.0
  %v5879 = vmax.f32 %v5757, 0.0
  %v5880 = vmax.f32 %v5762, 0.0
  %v5881 = vmax.f32 %v5767, 0.0
  %v5882 = vmax.f32 %v5772, 0.0
  %v5883 = vmax.f32 %v5777, 0.0
  %v5884 = vmax.f32 %v5782, 0.0
  %v5885 = vmax.f32 %v5787, 0.0
  %v5886 = vmax.f32 %v5792, 0.0
  %v5887 = vmax.f32 %v5797, 0.0
  %v5888 = vmax.f32 %v5802, 0.0
  %v5889 = vmax.f32 %v5807, 0.0
  %v5890 = vmax.f32 %v5812, 0.0
  %v5891 = vmax.f32 %v5817, 0.0
  %v5892 = vmax.f32 %v5822, 0.0
  %v5893 = vmax.f32 %v5827, 0.0
  %5894 = vst.msk [vmem:[#allocation2] sm:$0xff] %vm2227, %v5830
  %5895 = vst.msk [vmem:[#allocation2 + $0x8] sm:$0xff] %vm2227, %v5831
  %5896 = vst.msk [vmem:[#allocation2 + $0x10] sm:$0xff] %vm2227, %v5832
  %5897 = vst.msk [vmem:[#allocation2 + $0x18] sm:$0xff] %vm2227, %v5833
  %5898 = vst.msk [vmem:[#allocation2 + $0x20] sm:$0xff] %vm2227, %v5834
  %5899 = vst.msk [vmem:[#allocation2 + $0x28] sm:$0xff] %vm2227, %v5835
  %5900 = vst.msk [vmem:[#allocation2 + $0x30] sm:$0xff] %vm2227, %v5836
  %5901 = vst.msk [vmem:[#allocation2 + $0x38] sm:$0xff] %vm2227, %v5837
  %5902 = vst.msk [vmem:[#allocation2 + $0x40] sm:$0xff] %vm2227, %v5838
  %5903 = vst.msk [vmem:[#allocation2 + $0x48] sm:$0xff] %vm2227, %v5839
  %5904 = vst.msk [vmem:[#allocation2 + $0x50] sm:$0xff] %vm2227, %v5840
  %5905 = vst.msk [vmem:[#allocation2 + $0x58] sm:$0xff] %vm2227, %v5841
  %5906 = vst.msk [vmem:[#allocation2 + $0x60] sm:$0xff] %vm2227, %v5842
  %5907 = vst.msk [vmem:[#allocation2 + $0x68] sm:$0xff] %vm2227, %v5843
  %5908 = vst.msk [vmem:[#allocation2 + $0x70] sm:$0xff] %vm2227, %v5844
  %5909 = vst.msk [vmem:[#allocation2 + $0x78] sm:$0xff] %vm2227, %v5845
  %5910 = vst.msk [vmem:[#allocation2 + $0x80] sm:$0xff] %vm2227, %v5846
  %5911 = vst.msk [vmem:[#allocation2 + $0x88] sm:$0xff] %vm2227, %v5847
  %5912 = vst.msk [vmem:[#allocation2 + $0x90] sm:$0xff] %vm2227, %v5848
  %5913 = vst.msk [vmem:[#allocation2 + $0x98] sm:$0xff] %vm2227, %v5849
  %5914 = vst.msk [vmem:[#allocation2 + $0xa0] sm:$0xff] %vm2227, %v5850
  %5915 = vst.msk [vmem:[#allocation2 + $0xa8] sm:$0xff] %vm2227, %v5851
  %5916 = vst.msk [vmem:[#allocation2 + $0xb0] sm:$0xff] %vm2227, %v5852
  %5917 = vst.msk [vmem:[#allocation2 + $0xb8] sm:$0xff] %vm2227, %v5853
  %5918 = vst.msk [vmem:[#allocation2 + $0xc0] sm:$0xff] %vm2227, %v5854
  %5919 = vst.msk [vmem:[#allocation2 + $0xc8] sm:$0xff] %vm2227, %v5855
  %5920 = vst.msk [vmem:[#allocation2 + $0xd0] sm:$0xff] %vm2227, %v5856
  %5921 = vst.msk [vmem:[#allocation2 + $0xd8] sm:$0xff] %vm2227, %v5857
  %5922 = vst.msk [vmem:[#allocation2 + $0xe0] sm:$0xff] %vm2227, %v5858
  %5923 = vst.msk [vmem:[#allocation2 + $0xe8] sm:$0xff] %vm2227, %v5859
  %5924 = vst.msk [vmem:[#allocation2 + $0xf0] sm:$0xff] %vm2227, %v5860
  %5925 = vst.msk [vmem:[#allocation2 + $0xf8] sm:$0xff] %vm2227, %v5861
  %5926 = vst.msk [vmem:[#allocation2 + $0x100] sm:$0xff] %vm2227, %v5862
  %5927 = vst.msk [vmem:[#allocation2 + $0x108] sm:$0xff] %vm2227, %v5863
  %5928 = vst.msk [vmem:[#allocation2 + $0x110] sm:$0xff] %vm2227, %v5864
  %5929 = vst.msk [vmem:[#allocation2 + $0x118] sm:$0xff] %vm2227, %v5865
  %5930 = vst.msk [vmem:[#allocation2 + $0x120] sm:$0xff] %vm2227, %v5866
  %5931 = vst.msk [vmem:[#allocation2 + $0x128] sm:$0xff] %vm2227, %v5867
  %5932 = vst.msk [vmem:[#allocation2 + $0x130] sm:$0xff] %vm2227, %v5868
  %5933 = vst.msk [vmem:[#allocation2 + $0x138] sm:$0xff] %vm2227, %v5869
  %5934 = vst.msk [vmem:[#allocation2 + $0x140] sm:$0xff] %vm2227, %v5870
  %5935 = vst.msk [vmem:[#allocation2 + $0x148] sm:$0xff] %vm2227, %v5871
  %5936 = vst.msk [vmem:[#allocation2 + $0x150] sm:$0xff] %vm2227, %v5872
  %5937 = vst.msk [vmem:[#allocation2 + $0x158] sm:$0xff] %vm2227, %v5873
  %5938 = vst.msk [vmem:[#allocation2 + $0x160] sm:$0xff] %vm2227, %v5874
  %5939 = vst.msk [vmem:[#allocation2 + $0x168] sm:$0xff] %vm2227, %v5875
  %5940 = vst.msk [vmem:[#allocation2 + $0x170] sm:$0xff] %vm2227, %v5876
  %5941 = vst.msk [vmem:[#allocation2 + $0x178] sm:$0xff] %vm2227, %v5877
  %5942 = vst.msk [vmem:[#allocation2 + $0x180] sm:$0xff] %vm2227, %v5878
  %5943 = vst.msk [vmem:[#allocation2 + $0x188] sm:$0xff] %vm2227, %v5879
  %5944 = vst.msk [vmem:[#allocation2 + $0x190] sm:$0xff] %vm2227, %v5880
  %5945 = vst.msk [vmem:[#allocation2 + $0x198] sm:$0xff] %vm2227, %v5881
  %5946 = vst.msk [vmem:[#allocation2 + $0x1a0] sm:$0xff] %vm2227, %v5882
  %5947 = vst.msk [vmem:[#allocation2 + $0x1a8] sm:$0xff] %vm2227, %v5883
  %5948 = vst.msk [vmem:[#allocation2 + $0x1b0] sm:$0xff] %vm2227, %v5884
  %5949 = vst.msk [vmem:[#allocation2 + $0x1b8] sm:$0xff] %vm2227, %v5885
  %5950 = vst.msk [vmem:[#allocation2 + $0x1c0] sm:$0xff] %vm2227, %v5886
  %5951 = vst.msk [vmem:[#allocation2 + $0x1c8] sm:$0xff] %vm2227, %v5887
  %5952 = vst.msk [vmem:[#allocation2 + $0x1d0] sm:$0xff] %vm2227, %v5888
  %5953 = vst.msk [vmem:[#allocation2 + $0x1d8] sm:$0xff] %vm2227, %v5889
  %5954 = vst.msk [vmem:[#allocation2 + $0x1e0] sm:$0xff] %vm2227, %v5890
  %5955 = vst.msk [vmem:[#allocation2 + $0x1e8] sm:$0xff] %vm2227, %v5891
  %5956 = vst.msk [vmem:[#allocation2 + $0x1f0] sm:$0xff] %vm2227, %v5892
  %5957 = vst.msk [vmem:[#allocation2 + $0x1f8] sm:$0xff] %vm2227, %v5893
  %v5958 = vld [vmem:[#allocation2] ss:$2 sm:$0xff]
  %v5959 = vld [vmem:[%s3847] ss:$2 sm:$0xff]
  %v5960 = vld [vmem:[%s3849] ss:$2 sm:$0xff]
  %v5961 = vld [vmem:[%s3851] ss:$2 sm:$0xff]
  %v5962 = vld [vmem:[%s3853] ss:$2 sm:$0xff]
  %v5963 = vld [vmem:[%s3855] ss:$2 sm:$0xff]
  %v5964 = vld [vmem:[%s3857] ss:$2 sm:$0xff]
  %v5965 = vld [vmem:[%s3859] ss:$2 sm:$0xff]
  %v5966 = vld [vmem:[%s3861] ss:$2 sm:$0xff]
  %v5967 = vld [vmem:[%s3863] ss:$2 sm:$0xff]
  %v5968 = vld [vmem:[%s3865] ss:$2 sm:$0xff]
  %v5969 = vld [vmem:[%s3867] ss:$2 sm:$0xff]
  %v5970 = vld [vmem:[%s3869] ss:$2 sm:$0xff]
  %v5971 = vld [vmem:[%s3871] ss:$2 sm:$0xff]
  %v5972 = vld [vmem:[%s3873] ss:$2 sm:$0xff]
  %v5973 = vld [vmem:[%s3875] ss:$2 sm:$0xff]
  %v5974 = vld [vmem:[%s3877] ss:$2 sm:$0xff]
  %v5975 = vld [vmem:[%s3879] ss:$2 sm:$0xff]
  %v5976 = vld [vmem:[%s3881] ss:$2 sm:$0xff]
  %v5977 = vld [vmem:[%s3883] ss:$2 sm:$0xff]
  %v5978 = vld [vmem:[%s3885] ss:$2 sm:$0xff]
  %v5979 = vld [vmem:[%s3887] ss:$2 sm:$0xff]
  %v5980 = vld [vmem:[%s3889] ss:$2 sm:$0xff]
  %v5981 = vld [vmem:[%s3891] ss:$2 sm:$0xff]
  %v5982 = vld [vmem:[%s3893] ss:$2 sm:$0xff]
  %v5983 = vld [vmem:[%s3895] ss:$2 sm:$0xff]
  %v5984 = vld [vmem:[%s3897] ss:$2 sm:$0xff]
  %v5985 = vld [vmem:[%s3899] ss:$2 sm:$0xff]
  %v5986 = vld [vmem:[%s3901] ss:$2 sm:$0xff]
  %v5987 = vld [vmem:[%s3903] ss:$2 sm:$0xff]
  %v5988 = vld [vmem:[%s3905] ss:$2 sm:$0xff]
  %v5989 = vld [vmem:[%s3907] ss:$2 sm:$0xff]
  %v5990 = vld [vmem:[%s3973] ss:$2 sm:$0xff]
  %v5991 = vld [vmem:[%s3975] ss:$2 sm:$0xff]
  %v5992 = vld [vmem:[%s3977] ss:$2 sm:$0xff]
  %v5993 = vld [vmem:[%s3979] ss:$2 sm:$0xff]
  %v5994 = vld [vmem:[%s3981] ss:$2 sm:$0xff]
  %v5995 = vld [vmem:[%s3983] ss:$2 sm:$0xff]
  %v5996 = vld [vmem:[%s3985] ss:$2 sm:$0xff]
  %v5997 = vld [vmem:[%s3987] ss:$2 sm:$0xff]
  %v5998 = vld [vmem:[%s3989] ss:$2 sm:$0xff]
  %v5999 = vld [vmem:[%s3991] ss:$2 sm:$0xff]
  %v6000 = vld [vmem:[%s3993] ss:$2 sm:$0xff]
  %v6001 = vld [vmem:[%s3995] ss:$2 sm:$0xff]
  %v6002 = vld [vmem:[%s3997] ss:$2 sm:$0xff]
  %v6003 = vld [vmem:[%s3999] ss:$2 sm:$0xff]
  %v6004 = vld [vmem:[%s4001] ss:$2 sm:$0xff]
  %v6005 = vld [vmem:[%s4003] ss:$2 sm:$0xff]
  %v6006 = vld [vmem:[%s4005] ss:$2 sm:$0xff]
  %v6007 = vld [vmem:[%s4007] ss:$2 sm:$0xff]
  %v6008 = vld [vmem:[%s4009] ss:$2 sm:$0xff]
  %v6009 = vld [vmem:[%s4011] ss:$2 sm:$0xff]
  %v6010 = vld [vmem:[%s4013] ss:$2 sm:$0xff]
  %v6011 = vld [vmem:[%s4015] ss:$2 sm:$0xff]
  %v6012 = vld [vmem:[%s4017] ss:$2 sm:$0xff]
  %v6013 = vld [vmem:[%s4019] ss:$2 sm:$0xff]
  %v6014 = vld [vmem:[%s4021] ss:$2 sm:$0xff]
  %v6015 = vld [vmem:[%s4023] ss:$2 sm:$0xff]
  %v6016 = vld [vmem:[%s4025] ss:$2 sm:$0xff]
  %v6017 = vld [vmem:[%s4027] ss:$2 sm:$0xff]
  %v6018 = vld [vmem:[%s4029] ss:$2 sm:$0xff]
  %v6019 = vld [vmem:[%s4031] ss:$2 sm:$0xff]
  %v6020 = vld [vmem:[%s4033] ss:$2 sm:$0xff]
  %v6021 = vld [vmem:[%s4035] ss:$2 sm:$0xff]
  %v6022 = vmax.f32 %v5958, %v5990
  %v6023 = vmax.f32 %v5959, %v5991
  %v6024 = vmax.f32 %v5960, %v5992
  %v6025 = vmax.f32 %v5961, %v5993
  %v6026 = vmax.f32 %v5962, %v5994
  %v6027 = vmax.f32 %v5963, %v5995
  %v6028 = vmax.f32 %v5964, %v5996
  %v6029 = vmax.f32 %v5965, %v5997
  %v6030 = vmax.f32 %v5966, %v5998
  %v6031 = vmax.f32 %v5967, %v5999
  %v6032 = vmax.f32 %v5968, %v6000
  %v6033 = vmax.f32 %v5969, %v6001
  %v6034 = vmax.f32 %v5970, %v6002
  %v6035 = vmax.f32 %v5971, %v6003
  %v6036 = vmax.f32 %v5972, %v6004
  %v6037 = vmax.f32 %v5973, %v6005
  %v6038 = vmax.f32 %v5974, %v6006
  %v6039 = vmax.f32 %v5975, %v6007
  %v6040 = vmax.f32 %v5976, %v6008
  %v6041 = vmax.f32 %v5977, %v6009
  %v6042 = vmax.f32 %v5978, %v6010
  %v6043 = vmax.f32 %v5979, %v6011
  %v6044 = vmax.f32 %v5980, %v6012
  %v6045 = vmax.f32 %v5981, %v6013
  %v6046 = vmax.f32 %v5982, %v6014
  %v6047 = vmax.f32 %v5983, %v6015
  %v6048 = vmax.f32 %v5984, %v6016
  %v6049 = vmax.f32 %v5985, %v6017
  %v6050 = vmax.f32 %v5986, %v6018
  %v6051 = vmax.f32 %v5987, %v6019
  %v6052 = vmax.f32 %v5988, %v6020
  %v6053 = vmax.f32 %v5989, %v6021
  %v6054 = vld [vmem:[%s6] sm:$0x1]
  %v6087 = vrot.slane %v6022, 7
  %v6088 = vrot.slane %v6023, 7
  %v6089 = vsel %vm4230, %v6087, %v6088
  %v6090 = vrot.slane %v6024, 7
  %v6091 = vsel %vm4230, %v6088, %v6090
  %v6092 = vrot.slane %v6025, 7
  %v6093 = vsel %vm4230, %v6090, %v6092
  %v6094 = vrot.slane %v6026, 7
  %v6095 = vrot.slane %v6027, 7
  %v6096 = vsel %vm4230, %v6094, %v6095
  %v6097 = vrot.slane %v6028, 7
  %v6098 = vsel %vm4230, %v6095, %v6097
  %v6099 = vrot.slane %v6029, 7
  %v6100 = vsel %vm4230, %v6097, %v6099
  %v6101 = vrot.slane %v6030, 7
  %v6102 = vrot.slane %v6031, 7
  %v6103 = vsel %vm4230, %v6101, %v6102
  %v6104 = vrot.slane %v6032, 7
  %v6105 = vsel %vm4230, %v6102, %v6104
  %v6106 = vrot.slane %v6033, 7
  %v6107 = vsel %vm4230, %v6104, %v6106
  %v6108 = vrot.slane %v6034, 7
  %v6109 = vrot.slane %v6035, 7
  %v6110 = vsel %vm4230, %v6108, %v6109
  %v6111 = vrot.slane %v6036, 7
  %v6112 = vsel %vm4230, %v6109, %v6111
  %v6113 = vrot.slane %v6037, 7
  %v6114 = vsel %vm4230, %v6111, %v6113
  %v6115 = vrot.slane %v6038, 7
  %v6116 = vrot.slane %v6039, 7
  %v6117 = vsel %vm4230, %v6115, %v6116
  %v6118 = vrot.slane %v6040, 7
  %v6119 = vsel %vm4230, %v6116, %v6118
  %v6120 = vrot.slane %v6041, 7
  %v6121 = vsel %vm4230, %v6118, %v6120
  %v6122 = vrot.slane %v6042, 7
  %v6123 = vrot.slane %v6043, 7
  %v6124 = vsel %vm4230, %v6122, %v6123
  %v6125 = vrot.slane %v6044, 7
  %v6126 = vsel %vm4230, %v6123, %v6125
  %v6127 = vrot.slane %v6045, 7
  %v6128 = vsel %vm4230, %v6125, %v6127
  %v6129 = vrot.slane %v6046, 7
  %v6130 = vrot.slane %v6047, 7
  %v6131 = vsel %vm4230, %v6129, %v6130
  %v6132 = vrot.slane %v6048, 7
  %v6133 = vsel %vm4230, %v6130, %v6132
  %v6134 = vrot.slane %v6049, 7
  %v6135 = vsel %vm4230, %v6132, %v6134
  %v6136 = vrot.slane %v6050, 7
  %v6137 = vrot.slane %v6051, 7
  %v6138 = vsel %vm4230, %v6136, %v6137
  %v6139 = vrot.slane %v6052, 7
  %v6140 = vsel %vm4230, %v6137, %v6139
  %v6141 = vrot.slane %v6053, 7
  %v6142 = vsel %vm4230, %v6139, %v6141
  %v6183 = vsel %vm4230, 0.0, %v6087
  %v6184 = vsel %vm4230, 0.0, %v6094
  %v6185 = vsel %vm4230, 0.0, %v6101
  %v6186 = vsel %vm4230, 0.0, %v6108
  %v6187 = vsel %vm4230, 0.0, %v6115
  %v6188 = vsel %vm4230, 0.0, %v6122
  %v6189 = vsel %vm4230, 0.0, %v6129
  %v6190 = vsel %vm4230, 0.0, %v6136
  %v6191 = vsel %vm4230, %v6092, 0.0
  %v6192 = vsel %vm4230, %v6099, 0.0
  %v6193 = vsel %vm4230, %v6106, 0.0
  %v6194 = vsel %vm4230, %v6113, 0.0
  %v6195 = vsel %vm4230, %v6120, 0.0
  %v6196 = vsel %vm4230, %v6127, 0.0
  %v6197 = vsel %vm4230, %v6134, 0.0
  %v6198 = vsel %vm4230, %v6141, 0.0
  %v6215 = vrot.slane %v6183, 1
  %v6216 = vrot.slane %v6089, 1
  %v6217 = vsel %vm4455, %v6215, %v6216
  %v6218 = vrot.slane %v6091, 1
  %v6219 = vsel %vm4455, %v6216, %v6218
  %v6220 = vrot.slane %v6093, 1
  %v6221 = vsel %vm4455, %v6218, %v6220
  %v6222 = vrot.slane %v6191, 1
  %v6223 = vsel %vm4455, %v6220, %v6222
  %v6224 = vrot.slane %v6184, 1
  %v6225 = vrot.slane %v6096, 1
  %v6226 = vsel %vm4455, %v6224, %v6225
  %v6227 = vrot.slane %v6098, 1
  %v6228 = vsel %vm4455, %v6225, %v6227
  %v6229 = vrot.slane %v6100, 1
  %v6230 = vsel %vm4455, %v6227, %v6229
  %v6231 = vrot.slane %v6192, 1
  %v6232 = vsel %vm4455, %v6229, %v6231
  %v6233 = vrot.slane %v6185, 1
  %v6234 = vrot.slane %v6103, 1
  %v6235 = vsel %vm4455, %v6233, %v6234
  %v6236 = vrot.slane %v6105, 1
  %v6237 = vsel %vm4455, %v6234, %v6236
  %v6238 = vrot.slane %v6107, 1
  %v6239 = vsel %vm4455, %v6236, %v6238
  %v6240 = vrot.slane %v6193, 1
  %v6241 = vsel %vm4455, %v6238, %v6240
  %v6242 = vrot.slane %v6186, 1
  %v6243 = vrot.slane %v6110, 1
  %v6244 = vsel %vm4455, %v6242, %v6243
  %v6245 = vrot.slane %v6112, 1
  %v6246 = vsel %vm4455, %v6243, %v6245
  %v6247 = vrot.slane %v6114, 1
  %v6248 = vsel %vm4455, %v6245, %v6247
  %v6249 = vrot.slane %v6194, 1
  %v6250 = vsel %vm4455, %v6247, %v6249
  %v6251 = vrot.slane %v6187, 1
  %v6252 = vrot.slane %v6117, 1
  %v6253 = vsel %vm4455, %v6251, %v6252
  %v6254 = vrot.slane %v6119, 1
  %v6255 = vsel %vm4455, %v6252, %v6254
  %v6256 = vrot.slane %v6121, 1
  %v6257 = vsel %vm4455, %v6254, %v6256
  %v6258 = vrot.slane %v6195, 1
  %v6259 = vsel %vm4455, %v6256, %v6258
  %v6260 = vrot.slane %v6188, 1
  %v6261 = vrot.slane %v6124, 1
  %v6262 = vsel %vm4455, %v6260, %v6261
  %v6263 = vrot.slane %v6126, 1
  %v6264 = vsel %vm4455, %v6261, %v6263
  %v6265 = vrot.slane %v6128, 1
  %v6266 = vsel %vm4455, %v6263, %v6265
  %v6267 = vrot.slane %v6196, 1
  %v6268 = vsel %vm4455, %v6265, %v6267
  %v6269 = vrot.slane %v6189, 1
  %v6270 = vrot.slane %v6131, 1
  %v6271 = vsel %vm4455, %v6269, %v6270
  %v6272 = vrot.slane %v6133, 1
  %v6273 = vsel %vm4455, %v6270, %v6272
  %v6274 = vrot.slane %v6135, 1
  %v6275 = vsel %vm4455, %v6272, %v6274
  %v6276 = vrot.slane %v6197, 1
  %v6277 = vsel %vm4455, %v6274, %v6276
  %v6278 = vrot.slane %v6190, 1
  %v6279 = vrot.slane %v6138, 1
  %v6280 = vsel %vm4455, %v6278, %v6279
  %v6281 = vrot.slane %v6140, 1
  %v6282 = vsel %vm4455, %v6279, %v6281
  %v6283 = vrot.slane %v6142, 1
  %v6284 = vsel %vm4455, %v6281, %v6283
  %v6285 = vrot.slane %v6198, 1
  %v6286 = vsel %vm4455, %v6283, %v6285
  %6287 = vrot.lane.b32.xlu0 %v6217, 32
  %v6288 = vpop.permute.xlu0 %6287
  %6289 = vrot.lane.b32.xlu0 %v6219, 32
  %v6290 = vpop.permute.xlu0 %6289
  %6291 = vrot.lane.b32.xlu0 %v6221, 32
  %v6292 = vpop.permute.xlu0 %6291
  %6293 = vrot.lane.b32.xlu0 %v6223, 32
  %v6294 = vpop.permute.xlu0 %6293
  %6295 = vrot.lane.b32.xlu0 %v6226, 32
  %v6296 = vpop.permute.xlu0 %6295
  %6297 = vrot.lane.b32.xlu0 %v6228, 32
  %v6298 = vpop.permute.xlu0 %6297
  %6299 = vrot.lane.b32.xlu0 %v6230, 32
  %v6300 = vpop.permute.xlu0 %6299
  %6301 = vrot.lane.b32.xlu0 %v6232, 32
  %v6302 = vpop.permute.xlu0 %6301
  %6303 = vrot.lane.b32.xlu0 %v6235, 32
  %v6304 = vpop.permute.xlu0 %6303
  %6305 = vrot.lane.b32.xlu0 %v6237, 32
  %v6306 = vpop.permute.xlu0 %6305
  %6307 = vrot.lane.b32.xlu0 %v6239, 32
  %v6308 = vpop.permute.xlu0 %6307
  %6309 = vrot.lane.b32.xlu0 %v6241, 32
  %v6310 = vpop.permute.xlu0 %6309
  %6311 = vrot.lane.b32.xlu0 %v6244, 32
  %v6312 = vpop.permute.xlu0 %6311
  %6313 = vrot.lane.b32.xlu0 %v6246, 32
  %v6314 = vpop.permute.xlu0 %6313
  %6315 = vrot.lane.b32.xlu0 %v6248, 32
  %v6316 = vpop.permute.xlu0 %6315
  %6317 = vrot.lane.b32.xlu0 %v6250, 32
  %v6318 = vpop.permute.xlu0 %6317
  %6319 = vrot.lane.b32.xlu0 %v6253, 32
  %v6320 = vpop.permute.xlu0 %6319
  %6321 = vrot.lane.b32.xlu0 %v6255, 32
  %v6322 = vpop.permute.xlu0 %6321
  %6323 = vrot.lane.b32.xlu0 %v6257, 32
  %v6324 = vpop.permute.xlu0 %6323
  %6325 = vrot.lane.b32.xlu0 %v6259, 32
  %v6326 = vpop.permute.xlu0 %6325
  %6327 = vrot.lane.b32.xlu0 %v6262, 32
  %v6328 = vpop.permute.xlu0 %6327
  %6329 = vrot.lane.b32.xlu0 %v6264, 32
  %v6330 = vpop.permute.xlu0 %6329
  %6331 = vrot.lane.b32.xlu0 %v6266, 32
  %v6332 = vpop.permute.xlu0 %6331
  %6333 = vrot.lane.b32.xlu0 %v6268, 32
  %v6334 = vpop.permute.xlu0 %6333
  %6335 = vrot.lane.b32.xlu0 %v6271, 32
  %v6336 = vpop.permute.xlu0 %6335
  %6337 = vrot.lane.b32.xlu0 %v6273, 32
  %v6338 = vpop.permute.xlu0 %6337
  %6339 = vrot.lane.b32.xlu0 %v6275, 32
  %v6340 = vpop.permute.xlu0 %6339
  %6341 = vrot.lane.b32.xlu0 %v6277, 32
  %v6342 = vpop.permute.xlu0 %6341
  %6343 = vrot.lane.b32.xlu0 %v6280, 32
  %v6344 = vpop.permute.xlu0 %6343
  %6345 = vrot.lane.b32.xlu0 %v6282, 32
  %v6346 = vpop.permute.xlu0 %6345
  %6347 = vrot.lane.b32.xlu0 %v6284, 32
  %v6348 = vpop.permute.xlu0 %6347
  %6349 = vrot.lane.b32.xlu0 %v6286, 32
  %v6350 = vpop.permute.xlu0 %6349
  %v6383 = vrot.slane %v6183, 2
  %v6384 = vrot.slane %v6089, 2
  %v6385 = vsel %vm4784, %v6383, %v6384
  %v6386 = vrot.slane %v6091, 2
  %v6387 = vsel %vm4784, %v6384, %v6386
  %v6388 = vrot.slane %v6093, 2
  %v6389 = vsel %vm4784, %v6386, %v6388
  %v6390 = vrot.slane %v6191, 2
  %v6391 = vsel %vm4784, %v6388, %v6390
  %v6392 = vrot.slane %v6184, 2
  %v6393 = vrot.slane %v6096, 2
  %v6394 = vsel %vm4784, %v6392, %v6393
  %v6395 = vrot.slane %v6098, 2
  %v6396 = vsel %vm4784, %v6393, %v6395
  %v6397 = vrot.slane %v6100, 2
  %v6398 = vsel %vm4784, %v6395, %v6397
  %v6399 = vrot.slane %v6192, 2
  %v6400 = vsel %vm4784, %v6397, %v6399
  %v6401 = vrot.slane %v6185, 2
  %v6402 = vrot.slane %v6103, 2
  %v6403 = vsel %vm4784, %v6401, %v6402
  %v6404 = vrot.slane %v6105, 2
  %v6405 = vsel %vm4784, %v6402, %v6404
  %v6406 = vrot.slane %v6107, 2
  %v6407 = vsel %vm4784, %v6404, %v6406
  %v6408 = vrot.slane %v6193, 2
  %v6409 = vsel %vm4784, %v6406, %v6408
  %v6410 = vrot.slane %v6186, 2
  %v6411 = vrot.slane %v6110, 2
  %v6412 = vsel %vm4784, %v6410, %v6411
  %v6413 = vrot.slane %v6112, 2
  %v6414 = vsel %vm4784, %v6411, %v6413
  %v6415 = vrot.slane %v6114, 2
  %v6416 = vsel %vm4784, %v6413, %v6415
  %v6417 = vrot.slane %v6194, 2
  %v6418 = vsel %vm4784, %v6415, %v6417
  %v6419 = vrot.slane %v6187, 2
  %v6420 = vrot.slane %v6117, 2
  %v6421 = vsel %vm4784, %v6419, %v6420
  %v6422 = vrot.slane %v6119, 2
  %v6423 = vsel %vm4784, %v6420, %v6422
  %v6424 = vrot.slane %v6121, 2
  %v6425 = vsel %vm4784, %v6422, %v6424
  %v6426 = vrot.slane %v6195, 2
  %v6427 = vsel %vm4784, %v6424, %v6426
  %v6428 = vrot.slane %v6188, 2
  %v6429 = vrot.slane %v6124, 2
  %v6430 = vsel %vm4784, %v6428, %v6429
  %v6431 = vrot.slane %v6126, 2
  %v6432 = vsel %vm4784, %v6429, %v6431
  %v6433 = vrot.slane %v6128, 2
  %v6434 = vsel %vm4784, %v6431, %v6433
  %v6435 = vrot.slane %v6196, 2
  %v6436 = vsel %vm4784, %v6433, %v6435
  %v6437 = vrot.slane %v6189, 2
  %v6438 = vrot.slane %v6131, 2
  %v6439 = vsel %vm4784, %v6437, %v6438
  %v6440 = vrot.slane %v6133, 2
  %v6441 = vsel %vm4784, %v6438, %v6440
  %v6442 = vrot.slane %v6135, 2
  %v6443 = vsel %vm4784, %v6440, %v6442
  %v6444 = vrot.slane %v6197, 2
  %v6445 = vsel %vm4784, %v6442, %v6444
  %v6446 = vrot.slane %v6190, 2
  %v6447 = vrot.slane %v6138, 2
  %v6448 = vsel %vm4784, %v6446, %v6447
  %v6449 = vrot.slane %v6140, 2
  %v6450 = vsel %vm4784, %v6447, %v6449
  %v6451 = vrot.slane %v6142, 2
  %v6452 = vsel %vm4784, %v6449, %v6451
  %v6453 = vrot.slane %v6198, 2
  %v6454 = vsel %vm4784, %v6451, %v6453
  %6455 = vrot.lane.b32.xlu0 %v6385, 64
  %v6456 = vpop.permute.xlu0 %6455
  %6457 = vrot.lane.b32.xlu0 %v6387, 64
  %v6458 = vpop.permute.xlu0 %6457
  %6459 = vrot.lane.b32.xlu0 %v6389, 64
  %v6460 = vpop.permute.xlu0 %6459
  %6461 = vrot.lane.b32.xlu0 %v6391, 64
  %v6462 = vpop.permute.xlu0 %6461
  %6463 = vrot.lane.b32.xlu0 %v6394, 64
  %v6464 = vpop.permute.xlu0 %6463
  %6465 = vrot.lane.b32.xlu0 %v6396, 64
  %v6466 = vpop.permute.xlu0 %6465
  %6467 = vrot.lane.b32.xlu0 %v6398, 64
  %v6468 = vpop.permute.xlu0 %6467
  %6469 = vrot.lane.b32.xlu0 %v6400, 64
  %v6470 = vpop.permute.xlu0 %6469
  %6471 = vrot.lane.b32.xlu0 %v6403, 64
  %v6472 = vpop.permute.xlu0 %6471
  %6473 = vrot.lane.b32.xlu0 %v6405, 64
  %v6474 = vpop.permute.xlu0 %6473
  %6475 = vrot.lane.b32.xlu0 %v6407, 64
  %v6476 = vpop.permute.xlu0 %6475
  %6477 = vrot.lane.b32.xlu0 %v6409, 64
  %v6478 = vpop.permute.xlu0 %6477
  %6479 = vrot.lane.b32.xlu0 %v6412, 64
  %v6480 = vpop.permute.xlu0 %6479
  %6481 = vrot.lane.b32.xlu0 %v6414, 64
  %v6482 = vpop.permute.xlu0 %6481
  %6483 = vrot.lane.b32.xlu0 %v6416, 64
  %v6484 = vpop.permute.xlu0 %6483
  %6485 = vrot.lane.b32.xlu0 %v6418, 64
  %v6486 = vpop.permute.xlu0 %6485
  %6487 = vrot.lane.b32.xlu0 %v6421, 64
  %v6488 = vpop.permute.xlu0 %6487
  %6489 = vrot.lane.b32.xlu0 %v6423, 64
  %v6490 = vpop.permute.xlu0 %6489
  %6491 = vrot.lane.b32.xlu0 %v6425, 64
  %v6492 = vpop.permute.xlu0 %6491
  %6493 = vrot.lane.b32.xlu0 %v6427, 64
  %v6494 = vpop.permute.xlu0 %6493
  %6495 = vrot.lane.b32.xlu0 %v6430, 64
  %v6496 = vpop.permute.xlu0 %6495
  %6497 = vrot.lane.b32.xlu0 %v6432, 64
  %v6498 = vpop.permute.xlu0 %6497
  %6499 = vrot.lane.b32.xlu0 %v6434, 64
  %v6500 = vpop.permute.xlu0 %6499
  %6501 = vrot.lane.b32.xlu0 %v6436, 64
  %v6502 = vpop.permute.xlu0 %6501
  %6503 = vrot.lane.b32.xlu0 %v6439, 64
  %v6504 = vpop.permute.xlu0 %6503
  %6505 = vrot.lane.b32.xlu0 %v6441, 64
  %v6506 = vpop.permute.xlu0 %6505
  %6507 = vrot.lane.b32.xlu0 %v6443, 64
  %v6508 = vpop.permute.xlu0 %6507
  %6509 = vrot.lane.b32.xlu0 %v6445, 64
  %v6510 = vpop.permute.xlu0 %6509
  %6511 = vrot.lane.b32.xlu0 %v6448, 64
  %v6512 = vpop.permute.xlu0 %6511
  %6513 = vrot.lane.b32.xlu0 %v6450, 64
  %v6514 = vpop.permute.xlu0 %6513
  %6515 = vrot.lane.b32.xlu0 %v6452, 64
  %v6516 = vpop.permute.xlu0 %6515
  %6517 = vrot.lane.b32.xlu0 %v6454, 64
  %v6518 = vpop.permute.xlu0 %6517
  %v6551 = vsel %vm2227, %v6183, %v6288
  %v6552 = vsel %vm2227, %v6089, %v6290
  %v6553 = vsel %vm2227, %v6091, %v6292
  %v6554 = vsel %vm2227, %v6093, %v6294
  %v6555 = vsel %vm2227, %v6184, %v6296
  %v6556 = vsel %vm2227, %v6096, %v6298
  %v6557 = vsel %vm2227, %v6098, %v6300
  %v6558 = vsel %vm2227, %v6100, %v6302
  %v6559 = vsel %vm2227, %v6185, %v6304
  %v6560 = vsel %vm2227, %v6103, %v6306
  %v6561 = vsel %vm2227, %v6105, %v6308
  %v6562 = vsel %vm2227, %v6107, %v6310
  %v6563 = vsel %vm2227, %v6186, %v6312
  %v6564 = vsel %vm2227, %v6110, %v6314
  %v6565 = vsel %vm2227, %v6112, %v6316
  %v6566 = vsel %vm2227, %v6114, %v6318
  %v6567 = vsel %vm2227, %v6187, %v6320
  %v6568 = vsel %vm2227, %v6117, %v6322
  %v6569 = vsel %vm2227, %v6119, %v6324
  %v6570 = vsel %vm2227, %v6121, %v6326
  %v6571 = vsel %vm2227, %v6188, %v6328
  %v6572 = vsel %vm2227, %v6124, %v6330
  %v6573 = vsel %vm2227, %v6126, %v6332
  %v6574 = vsel %vm2227, %v6128, %v6334
  %v6575 = vsel %vm2227, %v6189, %v6336
  %v6576 = vsel %vm2227, %v6131, %v6338
  %v6577 = vsel %vm2227, %v6133, %v6340
  %v6578 = vsel %vm2227, %v6135, %v6342
  %v6579 = vsel %vm2227, %v6190, %v6344
  %v6580 = vsel %vm2227, %v6138, %v6346
  %v6581 = vsel %vm2227, %v6140, %v6348
  %v6582 = vsel %vm2227, %v6142, %v6350
  %v6583 = vsel %vm2500, %v6551, %v6456
  %v6584 = vsel %vm2500, %v6552, %v6458
  %v6585 = vsel %vm2500, %v6553, %v6460
  %v6586 = vsel %vm2500, %v6554, %v6462
  %v6587 = vsel %vm2500, %v6555, %v6464
  %v6588 = vsel %vm2500, %v6556, %v6466
  %v6589 = vsel %vm2500, %v6557, %v6468
  %v6590 = vsel %vm2500, %v6558, %v6470
  %v6591 = vsel %vm2500, %v6559, %v6472
  %v6592 = vsel %vm2500, %v6560, %v6474
  %v6593 = vsel %vm2500, %v6561, %v6476
  %v6594 = vsel %vm2500, %v6562, %v6478
  %v6595 = vsel %vm2500, %v6563, %v6480
  %v6596 = vsel %vm2500, %v6564, %v6482
  %v6597 = vsel %vm2500, %v6565, %v6484
  %v6598 = vsel %vm2500, %v6566, %v6486
  %v6599 = vsel %vm2500, %v6567, %v6488
  %v6600 = vsel %vm2500, %v6568, %v6490
  %v6601 = vsel %vm2500, %v6569, %v6492
  %v6602 = vsel %vm2500, %v6570, %v6494
  %v6603 = vsel %vm2500, %v6571, %v6496
  %v6604 = vsel %vm2500, %v6572, %v6498
  %v6605 = vsel %vm2500, %v6573, %v6500
  %v6606 = vsel %vm2500, %v6574, %v6502
  %v6607 = vsel %vm2500, %v6575, %v6504
  %v6608 = vsel %vm2500, %v6576, %v6506
  %v6609 = vsel %vm2500, %v6577, %v6508
  %v6610 = vsel %vm2500, %v6578, %v6510
  %v6611 = vsel %vm2500, %v6579, %v6512
  %v6612 = vsel %vm2500, %v6580, %v6514
  %v6613 = vsel %vm2500, %v6581, %v6516
  %v6614 = vsel %vm2500, %v6582, %v6518
  %v6615 = vld [vmem:[%s5] sm:$0xff]
  %v6616 = vld [vmem:[%s5 + $0x8] sm:$0xff]
  %v6617 = vld [vmem:[%s5 + $0x10] sm:$0xff]
  %v6618 = vld [vmem:[%s5 + $0x18] sm:$0xff]
  %v6619 = vld [vmem:[%s5 + $0x20] sm:$0xff]
  %v6620 = vld [vmem:[%s5 + $0x28] sm:$0xff]
  %v6621 = vld [vmem:[%s5 + $0x30] sm:$0xff]
  %v6622 = vld [vmem:[%s5 + $0x38] sm:$0xff]
  %v6623 = vld [vmem:[%s5 + $0x40] sm:$0xff]
  %v6624 = vld [vmem:[%s5 + $0x48] sm:$0xff]
  %v6625 = vld [vmem:[%s5 + $0x50] sm:$0xff]
  %v6626 = vld [vmem:[%s5 + $0x58] sm:$0xff]
  %v6628 = vlaneseq
  %v6629 = vshrl.u32 %v6628, 7
  %v6630 = vsub.s32 0, %v6629
  %v6631 = vrot.slane %v6054, %v6630
  %vm6633 = vcmask 785408
  %v6635 = vsel %vm6633, %v6583, 0
  %v6638 = vsel %vm6633, %v6584, 0
  %v6641 = vsel %vm6633, %v6585, 0
  %v6644 = vsel %vm6633, %v6586, 0
  %v6647 = vsel %vm6633, %v6587, 0
  %v6650 = vsel %vm6633, %v6588, 0
  %v6653 = vsel %vm6633, %v6589, 0
  %v6656 = vsel %vm6633, %v6590, 0
  %v6659 = vsel %vm6633, %v6591, 0
  %v6662 = vsel %vm6633, %v6592, 0
  %v6665 = vsel %vm6633, %v6593, 0
  %v6668 = vsel %vm6633, %v6594, 0
  %v6671 = vsel %vm6633, %v6595, 0
  %v6674 = vsel %vm6633, %v6596, 0
  %v6677 = vsel %vm6633, %v6597, 0
  %v6680 = vsel %vm6633, %v6598, 0
  %v6683 = vsel %vm6633, %v6599, 0
  %v6686 = vsel %vm6633, %v6600, 0
  %v6689 = vsel %vm6633, %v6601, 0
  %v6692 = vsel %vm6633, %v6602, 0
  %v6695 = vsel %vm6633, %v6603, 0
  %v6698 = vsel %vm6633, %v6604, 0
  %v6701 = vsel %vm6633, %v6605, 0
  %v6704 = vsel %vm6633, %v6606, 0
  %v6707 = vsel %vm6633, %v6607, 0
  %v6710 = vsel %vm6633, %v6608, 0
  %v6713 = vsel %vm6633, %v6609, 0
  %v6716 = vsel %vm6633, %v6610, 0
  %v6719 = vsel %vm6633, %v6611, 0
  %v6722 = vsel %vm6633, %v6612, 0
  %v6725 = vsel %vm6633, %v6613, 0
  %v6728 = vsel %vm6633, %v6614, 0
  %6730 = vmatprep.subr.mxu0 0.0
  %6731 = vmatpush1.msra.mxu0 0.0
  %6732 = vmatprep.subr.mxu0 0.0
  %6733 = vmatpush1.msra.mxu0 0.0
  %6734 = vmatprep.subr.mxu0 0.0
  %6735 = vmatpush1.msra.mxu0 0.0
  %6736 = vmatprep.subr.mxu0 0.0
  %6737 = vmatpush1.msra.mxu0 0.0
  %6738 = vmatprep.subr.mxu0 0.0
  %6739 = vmatpush1.msra.mxu0 %v6626
  %6740 = vmatprep.subr.mxu0 0.0
  %6741 = vmatpush1.msra.mxu0 %v6625
  %6742 = vmatprep.subr.mxu0 0.0
  %6743 = vmatpush1.msra.mxu0 %v6624
  %6744 = vmatprep.subr.mxu0 0.0
  %6745 = vmatpush1.msra.mxu0 %v6623
  %6746 = vmatprep.subr.mxu0 0.0
  %6747 = vmatpush1.msra.mxu0 %v6622
  %6748 = vmatprep.subr.mxu0 0.0
  %6749 = vmatpush1.msra.mxu0 %v6621
  %6750 = vmatprep.subr.mxu0 0.0
  %6751 = vmatpush1.msra.mxu0 %v6620
  %6752 = vmatprep.subr.mxu0 0.0
  %6753 = vmatpush1.msra.mxu0 %v6619
  %6754 = vmatprep.subr.mxu0 0.0
  %6755 = vmatpush1.msra.mxu0 %v6618
  %6756 = vmatprep.subr.mxu0 0.0
  %6757 = vmatpush1.msra.mxu0 %v6617
  %6758 = vmatprep.subr.mxu0 0.0
  %6759 = vmatpush1.msra.mxu0 %v6616
  %6760 = vmatprep.subr.mxu0 0.0
  %6761 = vmatpush1.msra.mxu0 %v6615
  %6762 = vmatprep.subr.mxu0 0.0
  %6763 = vmatpush2.msra.mxu0 0.0
  %6764 = vmatprep.subr.mxu0 0.0
  %6765 = vmatpush2.msra.mxu0 0.0
  %6766 = vmatprep.subr.mxu0 0.0
  %6767 = vmatpush2.msra.mxu0 0.0
  %6768 = vmatprep.subr.mxu0 0.0
  %6769 = vmatpush2.msra.mxu0 0.0
  %6770 = vmatprep.subr.mxu0 0.0
  %6771 = vmatpush2.msra.mxu0 0.0
  %6772 = vmatprep.subr.mxu0 0.0
  %6773 = vmatpush2.msra.mxu0 0.0
  %6774 = vmatprep.subr.mxu0 0.0
  %6775 = vmatpush2.msra.mxu0 0.0
  %6776 = vmatprep.subr.mxu0 0.0
  %6777 = vmatpush2.msra.mxu0 0.0
  %6778 = vmatprep.subr.mxu0 0.0
  %6779 = vmatpush2.msra.mxu0 0.0
  %6780 = vmatprep.subr.mxu0 0.0
  %6781 = vmatpush2.msra.mxu0 0.0
  %6782 = vmatprep.subr.mxu0 0.0
  %6783 = vmatpush2.msra.mxu0 0.0
  %6784 = vmatprep.subr.mxu0 0.0
  %6785 = vmatpush2.msra.mxu0 0.0
  %6786 = vmatprep.subr.mxu0 0.0
  %6787 = vmatpush2.msra.mxu0 0.0
  %6788 = vmatprep.subr.mxu0 0.0
  %6789 = vmatpush2.msra.mxu0 0.0
  %6790 = vmatprep.subr.mxu0 0.0
  %6791 = vmatpush2.msra.mxu0 0.0
  %6792 = vmatprep.subr.mxu0 0.0
  %6793 = vmatpush2.msra.mxu0 0.0
  %6794 = vmatprep.mubr.f32.mxu0 0.0
  %6795 = vmatmul.mubr.f32.gmra.mxu0 %v6635
  %v6796 = vpop.f32.mrf.mxu0
  %v6797 = vadd.f32 %v6631, %v6796
  %v6798 = vpop.f32.mrf.mxu0
  %6799 = vmatprep.mubr.f32.mxu0 0.0
  %6800 = vmatmul.mubr.f32.gmra.mxu0 %v6638
  %v6801 = vpop.f32.mrf.mxu0
  %v6802 = vadd.f32 %v6631, %v6801
  %v6803 = vpop.f32.mrf.mxu0
  %6804 = vmatprep.mubr.f32.mxu0 0.0
  %6805 = vmatmul.mubr.f32.gmra.mxu0 %v6641
  %v6806 = vpop.f32.mrf.mxu0
  %v6807 = vadd.f32 %v6631, %v6806
  %v6808 = vpop.f32.mrf.mxu0
  %6809 = vmatprep.mubr.f32.mxu0 0.0
  %6810 = vmatmul.mubr.f32.gmra.mxu0 %v6644
  %v6811 = vpop.f32.mrf.mxu0
  %v6812 = vadd.f32 %v6631, %v6811
  %v6813 = vpop.f32.mrf.mxu0
  %6814 = vmatprep.mubr.f32.mxu0 0.0
  %6815 = vmatmul.mubr.f32.gmra.mxu0 %v6647
  %v6816 = vpop.f32.mrf.mxu0
  %v6817 = vadd.f32 %v6631, %v6816
  %v6818 = vpop.f32.mrf.mxu0
  %6819 = vmatprep.mubr.f32.mxu0 0.0
  %6820 = vmatmul.mubr.f32.gmra.mxu0 %v6650
  %v6821 = vpop.f32.mrf.mxu0
  %v6822 = vadd.f32 %v6631, %v6821
  %v6823 = vpop.f32.mrf.mxu0
  %6824 = vmatprep.mubr.f32.mxu0 0.0
  %6825 = vmatmul.mubr.f32.gmra.mxu0 %v6653
  %v6826 = vpop.f32.mrf.mxu0
  %v6827 = vadd.f32 %v6631, %v6826
  %v6828 = vpop.f32.mrf.mxu0
  %6829 = vmatprep.mubr.f32.mxu0 0.0
  %6830 = vmatmul.mubr.f32.gmra.mxu0 %v6656
  %v6831 = vpop.f32.mrf.mxu0
  %v6832 = vadd.f32 %v6631, %v6831
  %v6833 = vpop.f32.mrf.mxu0
  %6834 = vmatprep.mubr.f32.mxu0 0.0
  %6835 = vmatmul.mubr.f32.gmra.mxu0 %v6659
  %v6836 = vpop.f32.mrf.mxu0
  %v6837 = vadd.f32 %v6631, %v6836
  %v6838 = vpop.f32.mrf.mxu0
  %6839 = vmatprep.mubr.f32.mxu0 0.0
  %6840 = vmatmul.mubr.f32.gmra.mxu0 %v6662
  %v6841 = vpop.f32.mrf.mxu0
  %v6842 = vadd.f32 %v6631, %v6841
  %v6843 = vpop.f32.mrf.mxu0
  %6844 = vmatprep.mubr.f32.mxu0 0.0
  %6845 = vmatmul.mubr.f32.gmra.mxu0 %v6665
  %v6846 = vpop.f32.mrf.mxu0
  %v6847 = vadd.f32 %v6631, %v6846
  %v6848 = vpop.f32.mrf.mxu0
  %6849 = vmatprep.mubr.f32.mxu0 0.0
  %6850 = vmatmul.mubr.f32.gmra.mxu0 %v6668
  %v6851 = vpop.f32.mrf.mxu0
  %v6852 = vadd.f32 %v6631, %v6851
  %v6853 = vpop.f32.mrf.mxu0
  %6854 = vmatprep.mubr.f32.mxu0 0.0
  %6855 = vmatmul.mubr.f32.gmra.mxu0 %v6671
  %v6856 = vpop.f32.mrf.mxu0
  %v6857 = vadd.f32 %v6631, %v6856
  %v6858 = vpop.f32.mrf.mxu0
  %6859 = vmatprep.mubr.f32.mxu0 0.0
  %6860 = vmatmul.mubr.f32.gmra.mxu0 %v6674
  %v6861 = vpop.f32.mrf.mxu0
  %v6862 = vadd.f32 %v6631, %v6861
  %v6863 = vpop.f32.mrf.mxu0
  %6864 = vmatprep.mubr.f32.mxu0 0.0
  %6865 = vmatmul.mubr.f32.gmra.mxu0 %v6677
  %v6866 = vpop.f32.mrf.mxu0
  %v6867 = vadd.f32 %v6631, %v6866
  %v6868 = vpop.f32.mrf.mxu0
  %6869 = vmatprep.mubr.f32.mxu0 0.0
  %6870 = vmatmul.mubr.f32.gmra.mxu0 %v6680
  %v6871 = vpop.f32.mrf.mxu0
  %v6872 = vadd.f32 %v6631, %v6871
  %v6873 = vpop.f32.mrf.mxu0
  %6874 = vmatprep.mubr.f32.mxu0 0.0
  %6875 = vmatmul.mubr.f32.gmra.mxu0 %v6683
  %v6876 = vpop.f32.mrf.mxu0
  %v6877 = vadd.f32 %v6631, %v6876
  %v6878 = vpop.f32.mrf.mxu0
  %6879 = vmatprep.mubr.f32.mxu0 0.0
  %6880 = vmatmul.mubr.f32.gmra.mxu0 %v6686
  %v6881 = vpop.f32.mrf.mxu0
  %v6882 = vadd.f32 %v6631, %v6881
  %v6883 = vpop.f32.mrf.mxu0
  %6884 = vmatprep.mubr.f32.mxu0 0.0
  %6885 = vmatmul.mubr.f32.gmra.mxu0 %v6689
  %v6886 = vpop.f32.mrf.mxu0
  %v6887 = vadd.f32 %v6631, %v6886
  %v6888 = vpop.f32.mrf.mxu0
  %6889 = vmatprep.mubr.f32.mxu0 0.0
  %6890 = vmatmul.mubr.f32.gmra.mxu0 %v6692
  %v6891 = vpop.f32.mrf.mxu0
  %v6892 = vadd.f32 %v6631, %v6891
  %v6893 = vpop.f32.mrf.mxu0
  %6894 = vmatprep.mubr.f32.mxu0 0.0
  %6895 = vmatmul.mubr.f32.gmra.mxu0 %v6695
  %v6896 = vpop.f32.mrf.mxu0
  %v6897 = vadd.f32 %v6631, %v6896
  %v6898 = vpop.f32.mrf.mxu0
  %6899 = vmatprep.mubr.f32.mxu0 0.0
  %6900 = vmatmul.mubr.f32.gmra.mxu0 %v6698
  %v6901 = vpop.f32.mrf.mxu0
  %v6902 = vadd.f32 %v6631, %v6901
  %v6903 = vpop.f32.mrf.mxu0
  %6904 = vmatprep.mubr.f32.mxu0 0.0
  %6905 = vmatmul.mubr.f32.gmra.mxu0 %v6701
  %v6906 = vpop.f32.mrf.mxu0
  %v6907 = vadd.f32 %v6631, %v6906
  %v6908 = vpop.f32.mrf.mxu0
  %6909 = vmatprep.mubr.f32.mxu0 0.0
  %6910 = vmatmul.mubr.f32.gmra.mxu0 %v6704
  %v6911 = vpop.f32.mrf.mxu0
  %v6912 = vadd.f32 %v6631, %v6911
  %v6913 = vpop.f32.mrf.mxu0
  %6914 = vmatprep.mubr.f32.mxu0 0.0
  %6915 = vmatmul.mubr.f32.gmra.mxu0 %v6707
  %v6916 = vpop.f32.mrf.mxu0
  %v6917 = vadd.f32 %v6631, %v6916
  %v6918 = vpop.f32.mrf.mxu0
  %6919 = vmatprep.mubr.f32.mxu0 0.0
  %6920 = vmatmul.mubr.f32.gmra.mxu0 %v6710
  %v6921 = vpop.f32.mrf.mxu0
  %v6922 = vadd.f32 %v6631, %v6921
  %v6923 = vpop.f32.mrf.mxu0
  %6924 = vmatprep.mubr.f32.mxu0 0.0
  %6925 = vmatmul.mubr.f32.gmra.mxu0 %v6713
  %v6926 = vpop.f32.mrf.mxu0
  %v6927 = vadd.f32 %v6631, %v6926
  %v6928 = vpop.f32.mrf.mxu0
  %6929 = vmatprep.mubr.f32.mxu0 0.0
  %6930 = vmatmul.mubr.f32.gmra.mxu0 %v6716
  %v6931 = vpop.f32.mrf.mxu0
  %v6932 = vadd.f32 %v6631, %v6931
  %v6933 = vpop.f32.mrf.mxu0
  %6934 = vmatprep.mubr.f32.mxu0 0.0
  %6935 = vmatmul.mubr.f32.gmra.mxu0 %v6719
  %v6936 = vpop.f32.mrf.mxu0
  %v6937 = vadd.f32 %v6631, %v6936
  %v6938 = vpop.f32.mrf.mxu0
  %6939 = vmatprep.mubr.f32.mxu0 0.0
  %6940 = vmatmul.mubr.f32.gmra.mxu0 %v6722
  %v6941 = vpop.f32.mrf.mxu0
  %v6942 = vadd.f32 %v6631, %v6941
  %v6943 = vpop.f32.mrf.mxu0
  %6944 = vmatprep.mubr.f32.mxu0 0.0
  %6945 = vmatmul.mubr.f32.gmra.mxu0 %v6725
  %v6946 = vpop.f32.mrf.mxu0
  %v6947 = vadd.f32 %v6631, %v6946
  %v6948 = vpop.f32.mrf.mxu0
  %6949 = vmatprep.mubr.f32.mxu0 0.0
  %6950 = vmatmul.mubr.f32.gmra.mxu0 %v6728
  %v6951 = vpop.f32.mrf.mxu0
  %v6952 = vadd.f32 %v6631, %v6951
  %v6953 = vpop.f32.mrf.mxu0
  %6954 = vdwg.mxu0
  %v6955 = vmax.f32 %v6797, 0.0
  %v6956 = vmax.f32 %v6802, 0.0
  %v6957 = vmax.f32 %v6807, 0.0
  %v6958 = vmax.f32 %v6812, 0.0
  %v6959 = vmax.f32 %v6817, 0.0
  %v6960 = vmax.f32 %v6822, 0.0
  %v6961 = vmax.f32 %v6827, 0.0
  %v6962 = vmax.f32 %v6832, 0.0
  %v6963 = vmax.f32 %v6837, 0.0
  %v6964 = vmax.f32 %v6842, 0.0
  %v6965 = vmax.f32 %v6847, 0.0
  %v6966 = vmax.f32 %v6852, 0.0
  %v6967 = vmax.f32 %v6857, 0.0
  %v6968 = vmax.f32 %v6862, 0.0
  %v6969 = vmax.f32 %v6867, 0.0
  %v6970 = vmax.f32 %v6872, 0.0
  %v6971 = vmax.f32 %v6877, 0.0
  %v6972 = vmax.f32 %v6882, 0.0
  %v6973 = vmax.f32 %v6887, 0.0
  %v6974 = vmax.f32 %v6892, 0.0
  %v6975 = vmax.f32 %v6897, 0.0
  %v6976 = vmax.f32 %v6902, 0.0
  %v6977 = vmax.f32 %v6907, 0.0
  %v6978 = vmax.f32 %v6912, 0.0
  %v6979 = vmax.f32 %v6917, 0.0
  %v6980 = vmax.f32 %v6922, 0.0
  %v6981 = vmax.f32 %v6927, 0.0
  %v6982 = vmax.f32 %v6932, 0.0
  %v6983 = vmax.f32 %v6937, 0.0
  %v6984 = vmax.f32 %v6942, 0.0
  %v6985 = vmax.f32 %v6947, 0.0
  %v6986 = vmax.f32 %v6952, 0.0
  %6987 = vst.msk [vmem:[#allocation2] sm:$0xff] %vm2500, %v6955
  %6988 = vst.msk [vmem:[#allocation2 + $0x8] sm:$0xff] %vm2500, %v6956
  %6989 = vst.msk [vmem:[#allocation2 + $0x10] sm:$0xff] %vm2500, %v6957
  %6990 = vst.msk [vmem:[#allocation2 + $0x18] sm:$0xff] %vm2500, %v6958
  %6991 = vst.msk [vmem:[#allocation2 + $0x20] sm:$0xff] %vm2500, %v6959
  %6992 = vst.msk [vmem:[#allocation2 + $0x28] sm:$0xff] %vm2500, %v6960
  %6993 = vst.msk [vmem:[#allocation2 + $0x30] sm:$0xff] %vm2500, %v6961
  %6994 = vst.msk [vmem:[#allocation2 + $0x38] sm:$0xff] %vm2500, %v6962
  %6995 = vst.msk [vmem:[#allocation2 + $0x40] sm:$0xff] %vm2500, %v6963
  %6996 = vst.msk [vmem:[#allocation2 + $0x48] sm:$0xff] %vm2500, %v6964
  %6997 = vst.msk [vmem:[#allocation2 + $0x50] sm:$0xff] %vm2500, %v6965
  %6998 = vst.msk [vmem:[#allocation2 + $0x58] sm:$0xff] %vm2500, %v6966
  %6999 = vst.msk [vmem:[#allocation2 + $0x60] sm:$0xff] %vm2500, %v6967
  %7000 = vst.msk [vmem:[#allocation2 + $0x68] sm:$0xff] %vm2500, %v6968
  %7001 = vst.msk [vmem:[#allocation2 + $0x70] sm:$0xff] %vm2500, %v6969
  %7002 = vst.msk [vmem:[#allocation2 + $0x78] sm:$0xff] %vm2500, %v6970
  %7003 = vst.msk [vmem:[#allocation2 + $0x80] sm:$0xff] %vm2500, %v6971
  %7004 = vst.msk [vmem:[#allocation2 + $0x88] sm:$0xff] %vm2500, %v6972
  %7005 = vst.msk [vmem:[#allocation2 + $0x90] sm:$0xff] %vm2500, %v6973
  %7006 = vst.msk [vmem:[#allocation2 + $0x98] sm:$0xff] %vm2500, %v6974
  %7007 = vst.msk [vmem:[#allocation2 + $0xa0] sm:$0xff] %vm2500, %v6975
  %7008 = vst.msk [vmem:[#allocation2 + $0xa8] sm:$0xff] %vm2500, %v6976
  %7009 = vst.msk [vmem:[#allocation2 + $0xb0] sm:$0xff] %vm2500, %v6977
  %7010 = vst.msk [vmem:[#allocation2 + $0xb8] sm:$0xff] %vm2500, %v6978
  %7011 = vst.msk [vmem:[#allocation2 + $0xc0] sm:$0xff] %vm2500, %v6979
  %7012 = vst.msk [vmem:[#allocation2 + $0xc8] sm:$0xff] %vm2500, %v6980
  %7013 = vst.msk [vmem:[#allocation2 + $0xd0] sm:$0xff] %vm2500, %v6981
  %7014 = vst.msk [vmem:[#allocation2 + $0xd8] sm:$0xff] %vm2500, %v6982
  %7015 = vst.msk [vmem:[#allocation2 + $0xe0] sm:$0xff] %vm2500, %v6983
  %7016 = vst.msk [vmem:[#allocation2 + $0xe8] sm:$0xff] %vm2500, %v6984
  %7017 = vst.msk [vmem:[#allocation2 + $0xf0] sm:$0xff] %vm2500, %v6985
  %7018 = vst.msk [vmem:[#allocation2 + $0xf8] sm:$0xff] %vm2500, %v6986
  %v7019 = vld [vmem:[#allocation2] ss:$2 sm:$0xff]
  %v7020 = vld [vmem:[%s3847] ss:$2 sm:$0xff]
  %v7021 = vld [vmem:[%s3849] ss:$2 sm:$0xff]
  %v7022 = vld [vmem:[%s3851] ss:$2 sm:$0xff]
  %v7023 = vld [vmem:[%s3853] ss:$2 sm:$0xff]
  %v7024 = vld [vmem:[%s3855] ss:$2 sm:$0xff]
  %v7025 = vld [vmem:[%s3857] ss:$2 sm:$0xff]
  %v7026 = vld [vmem:[%s3859] ss:$2 sm:$0xff]
  %v7027 = vld [vmem:[%s3861] ss:$2 sm:$0xff]
  %v7028 = vld [vmem:[%s3863] ss:$2 sm:$0xff]
  %v7029 = vld [vmem:[%s3865] ss:$2 sm:$0xff]
  %v7030 = vld [vmem:[%s3867] ss:$2 sm:$0xff]
  %v7031 = vld [vmem:[%s3869] ss:$2 sm:$0xff]
  %v7032 = vld [vmem:[%s3871] ss:$2 sm:$0xff]
  %v7033 = vld [vmem:[%s3873] ss:$2 sm:$0xff]
  %v7034 = vld [vmem:[%s3875] ss:$2 sm:$0xff]
  %v7035 = vld [vmem:[%s3973] ss:$2 sm:$0xff]
  %v7036 = vld [vmem:[%s3975] ss:$2 sm:$0xff]
  %v7037 = vld [vmem:[%s3977] ss:$2 sm:$0xff]
  %v7038 = vld [vmem:[%s3979] ss:$2 sm:$0xff]
  %v7039 = vld [vmem:[%s3981] ss:$2 sm:$0xff]
  %v7040 = vld [vmem:[%s3983] ss:$2 sm:$0xff]
  %v7041 = vld [vmem:[%s3985] ss:$2 sm:$0xff]
  %v7042 = vld [vmem:[%s3987] ss:$2 sm:$0xff]
  %v7043 = vld [vmem:[%s3989] ss:$2 sm:$0xff]
  %v7044 = vld [vmem:[%s3991] ss:$2 sm:$0xff]
  %v7045 = vld [vmem:[%s3993] ss:$2 sm:$0xff]
  %v7046 = vld [vmem:[%s3995] ss:$2 sm:$0xff]
  %v7047 = vld [vmem:[%s3997] ss:$2 sm:$0xff]
  %v7048 = vld [vmem:[%s3999] ss:$2 sm:$0xff]
  %v7049 = vld [vmem:[%s4001] ss:$2 sm:$0xff]
  %v7050 = vld [vmem:[%s4003] ss:$2 sm:$0xff]
  %v7051 = vmax.f32 %v7019, %v7035
  %v7052 = vmax.f32 %v7020, %v7036
  %v7053 = vmax.f32 %v7021, %v7037
  %v7054 = vmax.f32 %v7022, %v7038
  %v7055 = vmax.f32 %v7023, %v7039
  %v7056 = vmax.f32 %v7024, %v7040
  %v7057 = vmax.f32 %v7025, %v7041
  %v7058 = vmax.f32 %v7026, %v7042
  %v7059 = vmax.f32 %v7027, %v7043
  %v7060 = vmax.f32 %v7028, %v7044
  %v7061 = vmax.f32 %v7029, %v7045
  %v7062 = vmax.f32 %v7030, %v7046
  %v7063 = vmax.f32 %v7031, %v7047
  %v7064 = vmax.f32 %v7032, %v7048
  %v7065 = vmax.f32 %v7033, %v7049
  %v7066 = vmax.f32 %v7034, %v7050
  %v7067 = vld [vmem:[%s8] sm:$0x1]
  %v7084 = vrot.slane %v7051, 7
  %v7085 = vrot.slane %v7052, 7
  %v7086 = vsel %vm4230, %v7084, %v7085
  %v7087 = vrot.slane %v7053, 7
  %v7088 = vrot.slane %v7054, 7
  %v7089 = vsel %vm4230, %v7087, %v7088
  %v7090 = vrot.slane %v7055, 7
  %v7091 = vrot.slane %v7056, 7
  %v7092 = vsel %vm4230, %v7090, %v7091
  %v7093 = vrot.slane %v7057, 7
  %v7094 = vrot.slane %v7058, 7
  %v7095 = vsel %vm4230, %v7093, %v7094
  %v7096 = vrot.slane %v7059, 7
  %v7097 = vrot.slane %v7060, 7
  %v7098 = vsel %vm4230, %v7096, %v7097
  %v7099 = vrot.slane %v7061, 7
  %v7100 = vrot.slane %v7062, 7
  %v7101 = vsel %vm4230, %v7099, %v7100
  %v7102 = vrot.slane %v7063, 7
  %v7103 = vrot.slane %v7064, 7
  %v7104 = vsel %vm4230, %v7102, %v7103
  %v7105 = vrot.slane %v7065, 7
  %v7106 = vrot.slane %v7066, 7
  %v7107 = vsel %vm4230, %v7105, %v7106
  %v7132 = vsel %vm4230, 0.0, %v7084
  %v7133 = vsel %vm4230, 0.0, %v7087
  %v7134 = vsel %vm4230, 0.0, %v7090
  %v7135 = vsel %vm4230, 0.0, %v7093
  %v7136 = vsel %vm4230, 0.0, %v7096
  %v7137 = vsel %vm4230, 0.0, %v7099
  %v7138 = vsel %vm4230, 0.0, %v7102
  %v7139 = vsel %vm4230, 0.0, %v7105
  %v7140 = vsel %vm4230, %v7085, 0.0
  %v7141 = vsel %vm4230, %v7088, 0.0
  %v7142 = vsel %vm4230, %v7091, 0.0
  %v7143 = vsel %vm4230, %v7094, 0.0
  %v7144 = vsel %vm4230, %v7097, 0.0
  %v7145 = vsel %vm4230, %v7100, 0.0
  %v7146 = vsel %vm4230, %v7103, 0.0
  %v7147 = vsel %vm4230, %v7106, 0.0
  %v7164 = vrot.slane %v7132, 1
  %v7165 = vrot.slane %v7086, 1
  %v7166 = vsel %vm4455, %v7164, %v7165
  %v7167 = vrot.slane %v7140, 1
  %v7168 = vsel %vm4455, %v7165, %v7167
  %v7169 = vrot.slane %v7133, 1
  %v7170 = vrot.slane %v7089, 1
  %v7171 = vsel %vm4455, %v7169, %v7170
  %v7172 = vrot.slane %v7141, 1
  %v7173 = vsel %vm4455, %v7170, %v7172
  %v7174 = vrot.slane %v7134, 1
  %v7175 = vrot.slane %v7092, 1
  %v7176 = vsel %vm4455, %v7174, %v7175
  %v7177 = vrot.slane %v7142, 1
  %v7178 = vsel %vm4455, %v7175, %v7177
  %v7179 = vrot.slane %v7135, 1
  %v7180 = vrot.slane %v7095, 1
  %v7181 = vsel %vm4455, %v7179, %v7180
  %v7182 = vrot.slane %v7143, 1
  %v7183 = vsel %vm4455, %v7180, %v7182
  %v7184 = vrot.slane %v7136, 1
  %v7185 = vrot.slane %v7098, 1
  %v7186 = vsel %vm4455, %v7184, %v7185
  %v7187 = vrot.slane %v7144, 1
  %v7188 = vsel %vm4455, %v7185, %v7187
  %v7189 = vrot.slane %v7137, 1
  %v7190 = vrot.slane %v7101, 1
  %v7191 = vsel %vm4455, %v7189, %v7190
  %v7192 = vrot.slane %v7145, 1
  %v7193 = vsel %vm4455, %v7190, %v7192
  %v7194 = vrot.slane %v7138, 1
  %v7195 = vrot.slane %v7104, 1
  %v7196 = vsel %vm4455, %v7194, %v7195
  %v7197 = vrot.slane %v7146, 1
  %v7198 = vsel %vm4455, %v7195, %v7197
  %v7199 = vrot.slane %v7139, 1
  %v7200 = vrot.slane %v7107, 1
  %v7201 = vsel %vm4455, %v7199, %v7200
  %v7202 = vrot.slane %v7147, 1
  %v7203 = vsel %vm4455, %v7200, %v7202
  %7204 = vrot.lane.b32.xlu0 %v7166, 64
  %v7205 = vpop.permute.xlu0 %7204
  %7206 = vrot.lane.b32.xlu0 %v7168, 64
  %v7207 = vpop.permute.xlu0 %7206
  %7208 = vrot.lane.b32.xlu0 %v7171, 64
  %v7209 = vpop.permute.xlu0 %7208
  %7210 = vrot.lane.b32.xlu0 %v7173, 64
  %v7211 = vpop.permute.xlu0 %7210
  %7212 = vrot.lane.b32.xlu0 %v7176, 64
  %v7213 = vpop.permute.xlu0 %7212
  %7214 = vrot.lane.b32.xlu0 %v7178, 64
  %v7215 = vpop.permute.xlu0 %7214
  %7216 = vrot.lane.b32.xlu0 %v7181, 64
  %v7217 = vpop.permute.xlu0 %7216
  %7218 = vrot.lane.b32.xlu0 %v7183, 64
  %v7219 = vpop.permute.xlu0 %7218
  %7220 = vrot.lane.b32.xlu0 %v7186, 64
  %v7221 = vpop.permute.xlu0 %7220
  %7222 = vrot.lane.b32.xlu0 %v7188, 64
  %v7223 = vpop.permute.xlu0 %7222
  %7224 = vrot.lane.b32.xlu0 %v7191, 64
  %v7225 = vpop.permute.xlu0 %7224
  %7226 = vrot.lane.b32.xlu0 %v7193, 64
  %v7227 = vpop.permute.xlu0 %7226
  %7228 = vrot.lane.b32.xlu0 %v7196, 64
  %v7229 = vpop.permute.xlu0 %7228
  %7230 = vrot.lane.b32.xlu0 %v7198, 64
  %v7231 = vpop.permute.xlu0 %7230
  %7232 = vrot.lane.b32.xlu0 %v7201, 64
  %v7233 = vpop.permute.xlu0 %7232
  %7234 = vrot.lane.b32.xlu0 %v7203, 64
  %v7235 = vpop.permute.xlu0 %7234
  %v7252 = vrot.slane %v7132, 2
  %v7253 = vrot.slane %v7086, 2
  %v7254 = vsel %vm4784, %v7252, %v7253
  %v7255 = vrot.slane %v7140, 2
  %v7256 = vsel %vm4784, %v7253, %v7255
  %v7257 = vrot.slane %v7133, 2
  %v7258 = vrot.slane %v7089, 2
  %v7259 = vsel %vm4784, %v7257, %v7258
  %v7260 = vrot.slane %v7141, 2
  %v7261 = vsel %vm4784, %v7258, %v7260
  %v7262 = vrot.slane %v7134, 2
  %v7263 = vrot.slane %v7092, 2
  %v7264 = vsel %vm4784, %v7262, %v7263
  %v7265 = vrot.slane %v7142, 2
  %v7266 = vsel %vm4784, %v7263, %v7265
  %v7267 = vrot.slane %v7135, 2
  %v7268 = vrot.slane %v7095, 2
  %v7269 = vsel %vm4784, %v7267, %v7268
  %v7270 = vrot.slane %v7143, 2
  %v7271 = vsel %vm4784, %v7268, %v7270
  %v7272 = vrot.slane %v7136, 2
  %v7273 = vrot.slane %v7098, 2
  %v7274 = vsel %vm4784, %v7272, %v7273
  %v7275 = vrot.slane %v7144, 2
  %v7276 = vsel %vm4784, %v7273, %v7275
  %v7277 = vrot.slane %v7137, 2
  %v7278 = vrot.slane %v7101, 2
  %v7279 = vsel %vm4784, %v7277, %v7278
  %v7280 = vrot.slane %v7145, 2
  %v7281 = vsel %vm4784, %v7278, %v7280
  %v7282 = vrot.slane %v7138, 2
  %v7283 = vrot.slane %v7104, 2
  %v7284 = vsel %vm4784, %v7282, %v7283
  %v7285 = vrot.slane %v7146, 2
  %v7286 = vsel %vm4784, %v7283, %v7285
  %v7287 = vrot.slane %v7139, 2
  %v7288 = vrot.slane %v7107, 2
  %v7289 = vsel %vm4784, %v7287, %v7288
  %v7290 = vrot.slane %v7147, 2
  %v7291 = vsel %vm4784, %v7288, %v7290
  %v7292 = vsel %vm2500, %v7132, %v7205
  %v7293 = vsel %vm2500, %v7086, %v7207
  %v7294 = vsel %vm2500, %v7133, %v7209
  %v7295 = vsel %vm2500, %v7089, %v7211
  %v7296 = vsel %vm2500, %v7134, %v7213
  %v7297 = vsel %vm2500, %v7092, %v7215
  %v7298 = vsel %vm2500, %v7135, %v7217
  %v7299 = vsel %vm2500, %v7095, %v7219
  %v7300 = vsel %vm2500, %v7136, %v7221
  %v7301 = vsel %vm2500, %v7098, %v7223
  %v7302 = vsel %vm2500, %v7137, %v7225
  %v7303 = vsel %vm2500, %v7101, %v7227
  %v7304 = vsel %vm2500, %v7138, %v7229
  %v7305 = vsel %vm2500, %v7104, %v7231
  %v7306 = vsel %vm2500, %v7139, %v7233
  %v7307 = vsel %vm2500, %v7107, %v7235
  %v7308 = vld [vmem:[%s7] sm:$0xff]
  %v7309 = vld [vmem:[%s7 + $0x8] sm:$0xff]
  %v7310 = vld [vmem:[%s7 + $0x10] sm:$0xff]
  %v7311 = vld [vmem:[%s7 + $0x18] sm:$0xff]
  %v7312 = vld [vmem:[%s7 + $0x20] sm:$0xff]
  %v7313 = vld [vmem:[%s7 + $0x28] sm:$0xff]
  %v7314 = vld [vmem:[%s7 + $0x30] sm:$0xff]
  %v7315 = vld [vmem:[%s7 + $0x38] sm:$0xff]
  %v7316 = vld [vmem:[%s7 + $0x40] sm:$0xff]
  %v7317 = vld [vmem:[%s7 + $0x48] sm:$0xff]
  %v7318 = vld [vmem:[%s7 + $0x50] sm:$0xff]
  %v7319 = vld [vmem:[%s7 + $0x58] sm:$0xff]
  %v7320 = vld [vmem:[%s7 + $0x60] sm:$0xff]
  %v7321 = vld [vmem:[%s7 + $0x68] sm:$0xff]
  %v7322 = vld [vmem:[%s7 + $0x70] sm:$0xff]
  %v7323 = vld [vmem:[%s7 + $0x78] sm:$0xff]
  %v7324 = vld [vmem:[%s7 + $0x80] sm:$0xff]
  %v7325 = vld [vmem:[%s7 + $0x88] sm:$0xff]
  %v7326 = vld [vmem:[%s7 + $0x90] sm:$0xff]
  %v7327 = vld [vmem:[%s7 + $0x98] sm:$0xff]
  %v7328 = vld [vmem:[%s7 + $0xa0] sm:$0xff]
  %v7329 = vld [vmem:[%s7 + $0xa8] sm:$0xff]
  %v7330 = vld [vmem:[%s7 + $0xb0] sm:$0xff]
  %v7331 = vld [vmem:[%s7 + $0xb8] sm:$0xff]
  %v7333 = vlaneseq
  %v7334 = vshrl.u32 %v7333, 7
  %v7335 = vsub.s32 0, %v7334
  %v7336 = vrot.slane %v7067, %v7335
  %v7338 = vsel %vm2500, %v7254, 0
  %v7340 = vsel %vm2500, %v7256, 0
  %v7342 = vsel %vm2500, %v7259, 0
  %v7344 = vsel %vm2500, %v7261, 0
  %v7346 = vsel %vm2500, %v7264, 0
  %v7348 = vsel %vm2500, %v7266, 0
  %v7350 = vsel %vm2500, %v7269, 0
  %v7352 = vsel %vm2500, %v7271, 0
  %v7354 = vsel %vm2500, %v7274, 0
  %v7356 = vsel %vm2500, %v7276, 0
  %v7358 = vsel %vm2500, %v7279, 0
  %v7360 = vsel %vm2500, %v7281, 0
  %v7362 = vsel %vm2500, %v7284, 0
  %v7364 = vsel %vm2500, %v7286, 0
  %v7366 = vsel %vm2500, %v7289, 0
  %v7368 = vsel %vm2500, %v7291, 0
  %7370 = vmatprep.subr.mxu0 0.0
  %7371 = vmatpush1.msra.mxu0 %v7323
  %7372 = vmatprep.subr.mxu0 0.0
  %7373 = vmatpush1.msra.mxu0 %v7322
  %7374 = vmatprep.subr.mxu0 0.0
  %7375 = vmatpush1.msra.mxu0 %v7321
  %7376 = vmatprep.subr.mxu0 0.0
  %7377 = vmatpush1.msra.mxu0 %v7320
  %7378 = vmatprep.subr.mxu0 0.0
  %7379 = vmatpush1.msra.mxu0 %v7319
  %7380 = vmatprep.subr.mxu0 0.0
  %7381 = vmatpush1.msra.mxu0 %v7318
  %7382 = vmatprep.subr.mxu0 0.0
  %7383 = vmatpush1.msra.mxu0 %v7317
  %7384 = vmatprep.subr.mxu0 0.0
  %7385 = vmatpush1.msra.mxu0 %v7316
  %7386 = vmatprep.subr.mxu0 0.0
  %7387 = vmatpush1.msra.mxu0 %v7315
  %7388 = vmatprep.subr.mxu0 0.0
  %7389 = vmatpush1.msra.mxu0 %v7314
  %7390 = vmatprep.subr.mxu0 0.0
  %7391 = vmatpush1.msra.mxu0 %v7313
  %7392 = vmatprep.subr.mxu0 0.0
  %7393 = vmatpush1.msra.mxu0 %v7312
  %7394 = vmatprep.subr.mxu0 0.0
  %7395 = vmatpush1.msra.mxu0 %v7311
  %7396 = vmatprep.subr.mxu0 0.0
  %7397 = vmatpush1.msra.mxu0 %v7310
  %7398 = vmatprep.subr.mxu0 0.0
  %7399 = vmatpush1.msra.mxu0 %v7309
  %7400 = vmatprep.subr.mxu0 0.0
  %7401 = vmatpush1.msra.mxu0 %v7308
  %7402 = vmatprep.subr.mxu0 0.0
  %7403 = vmatpush2.msra.mxu0 0.0
  %7404 = vmatprep.subr.mxu0 0.0
  %7405 = vmatpush2.msra.mxu0 0.0
  %7406 = vmatprep.subr.mxu0 0.0
  %7407 = vmatpush2.msra.mxu0 0.0
  %7408 = vmatprep.subr.mxu0 0.0
  %7409 = vmatpush2.msra.mxu0 0.0
  %7410 = vmatprep.subr.mxu0 0.0
  %7411 = vmatpush2.msra.mxu0 0.0
  %7412 = vmatprep.subr.mxu0 0.0
  %7413 = vmatpush2.msra.mxu0 0.0
  %7414 = vmatprep.subr.mxu0 0.0
  %7415 = vmatpush2.msra.mxu0 0.0
  %7416 = vmatprep.subr.mxu0 0.0
  %7417 = vmatpush2.msra.mxu0 0.0
  %7418 = vmatprep.subr.mxu0 0.0
  %7419 = vmatpush2.msra.mxu0 %v7331
  %7420 = vmatprep.subr.mxu0 0.0
  %7421 = vmatpush2.msra.mxu0 %v7330
  %7422 = vmatprep.subr.mxu0 0.0
  %7423 = vmatpush2.msra.mxu0 %v7329
  %7424 = vmatprep.subr.mxu0 0.0
  %7425 = vmatpush2.msra.mxu0 %v7328
  %7426 = vmatprep.subr.mxu0 0.0
  %7427 = vmatpush2.msra.mxu0 %v7327
  %7428 = vmatprep.subr.mxu0 0.0
  %7429 = vmatpush2.msra.mxu0 %v7326
  %7430 = vmatprep.subr.mxu0 0.0
  %7431 = vmatpush2.msra.mxu0 %v7325
  %7432 = vmatprep.subr.mxu0 0.0
  %7433 = vmatpush2.msra.mxu0 %v7324
  %7434 = vmatprep.mubr.f32.mxu0 %v7338
  %7435 = vmatmul.mubr.f32.gmra.mxu0 %v7292
  %v7436 = vpop.f32.mrf.mxu0
  %v7437 = vadd.f32 %v7336, %v7436
  %v7438 = vpop.f32.mrf.mxu0
  %7439 = vmatprep.mubr.f32.mxu0 %v7340
  %7440 = vmatmul.mubr.f32.gmra.mxu0 %v7293
  %v7441 = vpop.f32.mrf.mxu0
  %v7442 = vadd.f32 %v7336, %v7441
  %v7443 = vpop.f32.mrf.mxu0
  %7444 = vmatprep.mubr.f32.mxu0 %v7342
  %7445 = vmatmul.mubr.f32.gmra.mxu0 %v7294
  %v7446 = vpop.f32.mrf.mxu0
  %v7447 = vadd.f32 %v7336, %v7446
  %v7448 = vpop.f32.mrf.mxu0
  %7449 = vmatprep.mubr.f32.mxu0 %v7344
  %7450 = vmatmul.mubr.f32.gmra.mxu0 %v7295
  %v7451 = vpop.f32.mrf.mxu0
  %v7452 = vadd.f32 %v7336, %v7451
  %v7453 = vpop.f32.mrf.mxu0
  %7454 = vmatprep.mubr.f32.mxu0 %v7346
  %7455 = vmatmul.mubr.f32.gmra.mxu0 %v7296
  %v7456 = vpop.f32.mrf.mxu0
  %v7457 = vadd.f32 %v7336, %v7456
  %v7458 = vpop.f32.mrf.mxu0
  %7459 = vmatprep.mubr.f32.mxu0 %v7348
  %7460 = vmatmul.mubr.f32.gmra.mxu0 %v7297
  %v7461 = vpop.f32.mrf.mxu0
  %v7462 = vadd.f32 %v7336, %v7461
  %v7463 = vpop.f32.mrf.mxu0
  %7464 = vmatprep.mubr.f32.mxu0 %v7350
  %7465 = vmatmul.mubr.f32.gmra.mxu0 %v7298
  %v7466 = vpop.f32.mrf.mxu0
  %v7467 = vadd.f32 %v7336, %v7466
  %v7468 = vpop.f32.mrf.mxu0
  %7469 = vmatprep.mubr.f32.mxu0 %v7352
  %7470 = vmatmul.mubr.f32.gmra.mxu0 %v7299
  %v7471 = vpop.f32.mrf.mxu0
  %v7472 = vadd.f32 %v7336, %v7471
  %v7473 = vpop.f32.mrf.mxu0
  %7474 = vmatprep.mubr.f32.mxu0 %v7354
  %7475 = vmatmul.mubr.f32.gmra.mxu0 %v7300
  %v7476 = vpop.f32.mrf.mxu0
  %v7477 = vadd.f32 %v7336, %v7476
  %v7478 = vpop.f32.mrf.mxu0
  %7479 = vmatprep.mubr.f32.mxu0 %v7356
  %7480 = vmatmul.mubr.f32.gmra.mxu0 %v7301
  %v7481 = vpop.f32.mrf.mxu0
  %v7482 = vadd.f32 %v7336, %v7481
  %v7483 = vpop.f32.mrf.mxu0
  %7484 = vmatprep.mubr.f32.mxu0 %v7358
  %7485 = vmatmul.mubr.f32.gmra.mxu0 %v7302
  %v7486 = vpop.f32.mrf.mxu0
  %v7487 = vadd.f32 %v7336, %v7486
  %v7488 = vpop.f32.mrf.mxu0
  %7489 = vmatprep.mubr.f32.mxu0 %v7360
  %7490 = vmatmul.mubr.f32.gmra.mxu0 %v7303
  %v7491 = vpop.f32.mrf.mxu0
  %v7492 = vadd.f32 %v7336, %v7491
  %v7493 = vpop.f32.mrf.mxu0
  %7494 = vmatprep.mubr.f32.mxu0 %v7362
  %7495 = vmatmul.mubr.f32.gmra.mxu0 %v7304
  %v7496 = vpop.f32.mrf.mxu0
  %v7497 = vadd.f32 %v7336, %v7496
  %v7498 = vpop.f32.mrf.mxu0
  %7499 = vmatprep.mubr.f32.mxu0 %v7364
  %7500 = vmatmul.mubr.f32.gmra.mxu0 %v7305
  %v7501 = vpop.f32.mrf.mxu0
  %v7502 = vadd.f32 %v7336, %v7501
  %v7503 = vpop.f32.mrf.mxu0
  %7504 = vmatprep.mubr.f32.mxu0 %v7366
  %7505 = vmatmul.mubr.f32.gmra.mxu0 %v7306
  %v7506 = vpop.f32.mrf.mxu0
  %v7507 = vadd.f32 %v7336, %v7506
  %v7508 = vpop.f32.mrf.mxu0
  %7509 = vmatprep.mubr.f32.mxu0 %v7368
  %7510 = vmatmul.mubr.f32.gmra.mxu0 %v7307
  %v7511 = vpop.f32.mrf.mxu0
  %v7512 = vadd.f32 %v7336, %v7511
  %v7513 = vpop.f32.mrf.mxu0
  %7514 = vdwg.mxu0
  %v7515 = vmax.f32 %v7437, 0.0
  %v7516 = vmax.f32 %v7442, 0.0
  %v7517 = vmax.f32 %v7447, 0.0
  %v7518 = vmax.f32 %v7452, 0.0
  %v7519 = vmax.f32 %v7457, 0.0
  %v7520 = vmax.f32 %v7462, 0.0
  %v7521 = vmax.f32 %v7467, 0.0
  %v7522 = vmax.f32 %v7472, 0.0
  %v7523 = vmax.f32 %v7477, 0.0
  %v7524 = vmax.f32 %v7482, 0.0
  %v7525 = vmax.f32 %v7487, 0.0
  %v7526 = vmax.f32 %v7492, 0.0
  %v7527 = vmax.f32 %v7497, 0.0
  %v7528 = vmax.f32 %v7502, 0.0
  %v7529 = vmax.f32 %v7507, 0.0
  %v7530 = vmax.f32 %v7512, 0.0
  %7531 = vst.msk [vmem:[#allocation2] sm:$0xff] %vm2500, %v7515
  %7532 = vst.msk [vmem:[#allocation2 + $0x8] sm:$0xff] %vm2500, %v7516
  %7533 = vst.msk [vmem:[#allocation2 + $0x10] sm:$0xff] %vm2500, %v7517
  %7534 = vst.msk [vmem:[#allocation2 + $0x18] sm:$0xff] %vm2500, %v7518
  %7535 = vst.msk [vmem:[#allocation2 + $0x20] sm:$0xff] %vm2500, %v7519
  %7536 = vst.msk [vmem:[#allocation2 + $0x28] sm:$0xff] %vm2500, %v7520
  %7537 = vst.msk [vmem:[#allocation2 + $0x30] sm:$0xff] %vm2500, %v7521
  %7538 = vst.msk [vmem:[#allocation2 + $0x38] sm:$0xff] %vm2500, %v7522
  %7539 = vst.msk [vmem:[#allocation2 + $0x40] sm:$0xff] %vm2500, %v7523
  %7540 = vst.msk [vmem:[#allocation2 + $0x48] sm:$0xff] %vm2500, %v7524
  %7541 = vst.msk [vmem:[#allocation2 + $0x50] sm:$0xff] %vm2500, %v7525
  %7542 = vst.msk [vmem:[#allocation2 + $0x58] sm:$0xff] %vm2500, %v7526
  %7543 = vst.msk [vmem:[#allocation2 + $0x60] sm:$0xff] %vm2500, %v7527
  %7544 = vst.msk [vmem:[#allocation2 + $0x68] sm:$0xff] %vm2500, %v7528
  %7545 = vst.msk [vmem:[#allocation2 + $0x70] sm:$0xff] %vm2500, %v7529
  %7546 = vst.msk [vmem:[#allocation2 + $0x78] sm:$0xff] %vm2500, %v7530
  %v7547 = vld [vmem:[#allocation2] ss:$2 sm:$0xff]
  %v7548 = vld [vmem:[%s3847] ss:$2 sm:$0xff]
  %v7549 = vld [vmem:[%s3849] ss:$2 sm:$0xff]
  %v7550 = vld [vmem:[%s3851] ss:$2 sm:$0xff]
  %v7551 = vld [vmem:[%s3853] ss:$2 sm:$0xff]
  %v7552 = vld [vmem:[%s3855] ss:$2 sm:$0xff]
  %v7553 = vld [vmem:[%s3857] ss:$2 sm:$0xff]
  %v7554 = vld [vmem:[%s3859] ss:$2 sm:$0xff]
  %v7555 = vld [vmem:[%s3973] ss:$2 sm:$0xff]
  %v7556 = vld [vmem:[%s3975] ss:$2 sm:$0xff]
  %v7557 = vld [vmem:[%s3977] ss:$2 sm:$0xff]
  %v7558 = vld [vmem:[%s3979] ss:$2 sm:$0xff]
  %v7559 = vld [vmem:[%s3981] ss:$2 sm:$0xff]
  %v7560 = vld [vmem:[%s3983] ss:$2 sm:$0xff]
  %v7561 = vld [vmem:[%s3985] ss:$2 sm:$0xff]
  %v7562 = vld [vmem:[%s3987] ss:$2 sm:$0xff]
  %v7563 = vmax.f32 %v7547, %v7555
  %v7564 = vmax.f32 %v7548, %v7556
  %v7565 = vmax.f32 %v7549, %v7557
  %v7566 = vmax.f32 %v7550, %v7558
  %v7567 = vmax.f32 %v7551, %v7559
  %v7568 = vmax.f32 %v7552, %v7560
  %v7569 = vmax.f32 %v7553, %v7561
  %v7570 = vmax.f32 %v7554, %v7562
  %v7571 = vld [vmem:[%s10] sm:$0x1]
  %v7580 = vrot.slane %v7563, 1
  %v7581 = vrot.slane %v7564, 1
  %v7582 = vrot.slane %v7565, 1
  %v7583 = vrot.slane %v7566, 1
  %v7584 = vrot.slane %v7567, 1
  %v7585 = vrot.slane %v7568, 1
  %v7586 = vrot.slane %v7569, 1
  %v7587 = vrot.slane %v7570, 1
  %7588 = vrot.lane.b32.xlu0 %v7580, 64
  %v7589 = vpop.permute.xlu0 %7588
  %7590 = vrot.lane.b32.xlu0 %v7581, 64
  %v7591 = vpop.permute.xlu0 %7590
  %7592 = vrot.lane.b32.xlu0 %v7582, 64
  %v7593 = vpop.permute.xlu0 %7592
  %7594 = vrot.lane.b32.xlu0 %v7583, 64
  %v7595 = vpop.permute.xlu0 %7594
  %7596 = vrot.lane.b32.xlu0 %v7584, 64
  %v7597 = vpop.permute.xlu0 %7596
  %7598 = vrot.lane.b32.xlu0 %v7585, 64
  %v7599 = vpop.permute.xlu0 %7598
  %7600 = vrot.lane.b32.xlu0 %v7586, 64
  %v7601 = vpop.permute.xlu0 %7600
  %7602 = vrot.lane.b32.xlu0 %v7587, 64
  %v7603 = vpop.permute.xlu0 %7602
  %v7612 = vrot.slane %v7563, 2
  %v7613 = vrot.slane %v7564, 2
  %v7614 = vrot.slane %v7565, 2
  %v7615 = vrot.slane %v7566, 2
  %v7616 = vrot.slane %v7567, 2
  %v7617 = vrot.slane %v7568, 2
  %v7618 = vrot.slane %v7569, 2
  %v7619 = vrot.slane %v7570, 2
  %v7620 = vsel %vm2500, %v7563, %v7589
  %v7621 = vsel %vm2500, %v7564, %v7591
  %v7622 = vsel %vm2500, %v7565, %v7593
  %v7623 = vsel %vm2500, %v7566, %v7595
  %v7624 = vsel %vm2500, %v7567, %v7597
  %v7625 = vsel %vm2500, %v7568, %v7599
  %v7626 = vsel %vm2500, %v7569, %v7601
  %v7627 = vsel %vm2500, %v7570, %v7603
  %v7636 = vcombine.low %v7620, %v7612
  %v7637 = vcombine.high %v7620, %v7612
  %v7639 = vunpack.c.l.s4 1983009808
  %v7640 = vunpack.c.0.s8 %v7639
  %v7641 = vlaneseq
  %v7642 = vshrl.u32 %v7641, 7
  %v7643 = vsub.s32 %v7640, %v7642
  %v7644 = vrot.slane %v7636, %v7643
  %v7646 = vunpack.c.l.s4 1983009808
  %v7647 = vunpack.c.0.s8 %v7646
  %v7648 = vlaneseq
  %v7649 = vshrl.u32 %v7648, 7
  %v7650 = vsub.s32 %v7647, %v7649
  %v7651 = vrot.slane %v7637, %v7650
  %v7652 = vcombine.high %v7644, %v7644
  %v7653 = vcombine.low %v7621, %v7613
  %v7654 = vcombine.high %v7621, %v7613
  %v7656 = vunpack.c.l.s4 1983009808
  %v7657 = vunpack.c.0.s8 %v7656
  %v7658 = vlaneseq
  %v7659 = vshrl.u32 %v7658, 7
  %v7660 = vsub.s32 %v7657, %v7659
  %v7661 = vrot.slane %v7653, %v7660
  %v7663 = vunpack.c.l.s4 1983009808
  %v7664 = vunpack.c.0.s8 %v7663
  %v7665 = vlaneseq
  %v7666 = vshrl.u32 %v7665, 7
  %v7667 = vsub.s32 %v7664, %v7666
  %v7668 = vrot.slane %v7654, %v7667
  %v7669 = vcombine.high %v7661, %v7661
  %v7670 = vcombine.low %v7622, %v7614
  %v7671 = vcombine.high %v7622, %v7614
  %v7673 = vunpack.c.l.s4 1983009808
  %v7674 = vunpack.c.0.s8 %v7673
  %v7675 = vlaneseq
  %v7676 = vshrl.u32 %v7675, 7
  %v7677 = vsub.s32 %v7674, %v7676
  %v7678 = vrot.slane %v7670, %v7677
  %v7680 = vunpack.c.l.s4 1983009808
  %v7681 = vunpack.c.0.s8 %v7680
  %v7682 = vlaneseq
  %v7683 = vshrl.u32 %v7682, 7
  %v7684 = vsub.s32 %v7681, %v7683
  %v7685 = vrot.slane %v7671, %v7684
  %v7686 = vcombine.high %v7678, %v7678
  %v7687 = vcombine.low %v7623, %v7615
  %v7688 = vcombine.high %v7623, %v7615
  %v7690 = vunpack.c.l.s4 1983009808
  %v7691 = vunpack.c.0.s8 %v7690
  %v7692 = vlaneseq
  %v7693 = vshrl.u32 %v7692, 7
  %v7694 = vsub.s32 %v7691, %v7693
  %v7695 = vrot.slane %v7687, %v7694
  %v7697 = vunpack.c.l.s4 1983009808
  %v7698 = vunpack.c.0.s8 %v7697
  %v7699 = vlaneseq
  %v7700 = vshrl.u32 %v7699, 7
  %v7701 = vsub.s32 %v7698, %v7700
  %v7702 = vrot.slane %v7688, %v7701
  %v7703 = vcombine.high %v7695, %v7695
  %v7704 = vcombine.low %v7624, %v7616
  %v7705 = vcombine.high %v7624, %v7616
  %v7707 = vunpack.c.l.s4 1983009808
  %v7708 = vunpack.c.0.s8 %v7707
  %v7709 = vlaneseq
  %v7710 = vshrl.u32 %v7709, 7
  %v7711 = vsub.s32 %v7708, %v7710
  %v7712 = vrot.slane %v7704, %v7711
  %v7714 = vunpack.c.l.s4 1983009808
  %v7715 = vunpack.c.0.s8 %v7714
  %v7716 = vlaneseq
  %v7717 = vshrl.u32 %v7716, 7
  %v7718 = vsub.s32 %v7715, %v7717
  %v7719 = vrot.slane %v7705, %v7718
  %v7720 = vcombine.high %v7712, %v7712
  %v7721 = vcombine.low %v7625, %v7617
  %v7722 = vcombine.high %v7625, %v7617
  %v7724 = vunpack.c.l.s4 1983009808
  %v7725 = vunpack.c.0.s8 %v7724
  %v7726 = vlaneseq
  %v7727 = vshrl.u32 %v7726, 7
  %v7728 = vsub.s32 %v7725, %v7727
  %v7729 = vrot.slane %v7721, %v7728
  %v7731 = vunpack.c.l.s4 1983009808
  %v7732 = vunpack.c.0.s8 %v7731
  %v7733 = vlaneseq
  %v7734 = vshrl.u32 %v7733, 7
  %v7735 = vsub.s32 %v7732, %v7734
  %v7736 = vrot.slane %v7722, %v7735
  %v7737 = vcombine.high %v7729, %v7729
  %v7738 = vcombine.low %v7626, %v7618
  %v7739 = vcombine.high %v7626, %v7618
  %v7741 = vunpack.c.l.s4 1983009808
  %v7742 = vunpack.c.0.s8 %v7741
  %v7743 = vlaneseq
  %v7744 = vshrl.u32 %v7743, 7
  %v7745 = vsub.s32 %v7742, %v7744
  %v7746 = vrot.slane %v7738, %v7745
  %v7748 = vunpack.c.l.s4 1983009808
  %v7749 = vunpack.c.0.s8 %v7748
  %v7750 = vlaneseq
  %v7751 = vshrl.u32 %v7750, 7
  %v7752 = vsub.s32 %v7749, %v7751
  %v7753 = vrot.slane %v7739, %v7752
  %v7754 = vcombine.high %v7746, %v7746
  %v7755 = vcombine.low %v7627, %v7619
  %v7756 = vcombine.high %v7627, %v7619
  %v7758 = vunpack.c.l.s4 1983009808
  %v7759 = vunpack.c.0.s8 %v7758
  %v7760 = vlaneseq
  %v7761 = vshrl.u32 %v7760, 7
  %v7762 = vsub.s32 %v7759, %v7761
  %v7763 = vrot.slane %v7755, %v7762
  %v7765 = vunpack.c.l.s4 1983009808
  %v7766 = vunpack.c.0.s8 %v7765
  %v7767 = vlaneseq
  %v7768 = vshrl.u32 %v7767, 7
  %v7769 = vsub.s32 %v7766, %v7768
  %v7770 = vrot.slane %v7756, %v7769
  %v7771 = vcombine.high %v7763, %v7763
  %v7772 = vld [vmem:[%s9] sm:$0xff]
  %v7773 = vld [vmem:[%s9 + $0x8] sm:$0xff]
  %v7774 = vld [vmem:[%s9 + $0x10] sm:$0xff]
  %v7775 = vld [vmem:[%s9 + $0x18] sm:$0xff]
  %v7776 = vld [vmem:[%s9 + $0x20] sm:$0xff]
  %v7777 = vld [vmem:[%s9 + $0x28] sm:$0xff]
  %v7778 = vld [vmem:[%s9 + $0x30] sm:$0xff]
  %v7779 = vld [vmem:[%s9 + $0x38] sm:$0xff]
  %v7780 = vld [vmem:[%s9 + $0x40] sm:$0xff]
  %v7781 = vld [vmem:[%s9 + $0x48] sm:$0xff]
  %v7782 = vld [vmem:[%s9 + $0x50] sm:$0xff]
  %v7783 = vld [vmem:[%s9 + $0x58] sm:$0xff]
  %v7784 = vld [vmem:[%s9 + $0x60] sm:$0xff]
  %v7785 = vld [vmem:[%s9 + $0x68] sm:$0xff]
  %v7786 = vld [vmem:[%s9 + $0x70] sm:$0xff]
  %v7787 = vld [vmem:[%s9 + $0x78] sm:$0xff]
  %v7788 = vld [vmem:[%s9 + $0x80] sm:$0xff]
  %v7789 = vld [vmem:[%s9 + $0x88] sm:$0xff]
  %v7790 = vld [vmem:[%s9 + $0x90] sm:$0xff]
  %v7791 = vld [vmem:[%s9 + $0x98] sm:$0xff]
  %v7792 = vld [vmem:[%s9 + $0xa0] sm:$0xff]
  %v7793 = vld [vmem:[%s9 + $0xa8] sm:$0xff]
  %v7794 = vld [vmem:[%s9 + $0xb0] sm:$0xff]
  %v7795 = vld [vmem:[%s9 + $0xb8] sm:$0xff]
  %v7797 = vlaneseq
  %v7798 = vshrl.u32 %v7797, 7
  %v7799 = vsub.s32 0, %v7798
  %v7800 = vrot.slane %v7571, %v7799
  %v7802 = vcombine.low %v7644, %v7652
  %v7803 = vcombine.low %v7651, %v7661
  %v7805 = vunpack.c.l.s4 1983009808
  %v7806 = vunpack.c.0.s8 %v7805
  %v7807 = vlaneseq
  %v7808 = vshrl.u32 %v7807, 7
  %v7809 = vsub.s32 %v7806, %v7808
  %v7810 = vrot.slane %v7802, %v7809
  %v7812 = vunpack.c.l.s4 1983009808
  %v7813 = vunpack.c.0.s8 %v7812
  %v7814 = vlaneseq
  %v7815 = vshrl.u32 %v7814, 7
  %v7816 = vsub.s32 %v7813, %v7815
  %v7817 = vrot.slane %v7803, %v7816
  %v7818 = vcombine.low %v7810, %v7817
  %v7819 = vcombine.high %v7810, %v7817
  %v7820 = vcombine.low %v7669, %v7668
  %v7821 = vcombine.low %v7678, %v7686
  %v7823 = vunpack.c.l.s4 1983009808
  %v7824 = vunpack.c.0.s8 %v7823
  %v7825 = vlaneseq
  %v7826 = vshrl.u32 %v7825, 7
  %v7827 = vsub.s32 %v7824, %v7826
  %v7828 = vrot.slane %v7820, %v7827
  %v7830 = vunpack.c.l.s4 1983009808
  %v7831 = vunpack.c.0.s8 %v7830
  %v7832 = vlaneseq
  %v7833 = vshrl.u32 %v7832, 7
  %v7834 = vsub.s32 %v7831, %v7833
  %v7835 = vrot.slane %v7821, %v7834
  %v7836 = vcombine.low %v7828, %v7835
  %v7837 = vcombine.high %v7828, %v7835
  %v7838 = vcombine.low %v7685, %v7695
  %v7839 = vcombine.low %v7703, %v7702
  %v7841 = vunpack.c.l.s4 1983009808
  %v7842 = vunpack.c.0.s8 %v7841
  %v7843 = vlaneseq
  %v7844 = vshrl.u32 %v7843, 7
  %v7845 = vsub.s32 %v7842, %v7844
  %v7846 = vrot.slane %v7838, %v7845
  %v7848 = vunpack.c.l.s4 1983009808
  %v7849 = vunpack.c.0.s8 %v7848
  %v7850 = vlaneseq
  %v7851 = vshrl.u32 %v7850, 7
  %v7852 = vsub.s32 %v7849, %v7851
  %v7853 = vrot.slane %v7839, %v7852
  %v7854 = vcombine.low %v7846, %v7853
  %v7855 = vcombine.high %v7846, %v7853
  %v7856 = vcombine.low %v7712, %v7720
  %v7857 = vcombine.low %v7719, %v7729
  %v7859 = vunpack.c.l.s4 1983009808
  %v7860 = vunpack.c.0.s8 %v7859
  %v7861 = vlaneseq
  %v7862 = vshrl.u32 %v7861, 7
  %v7863 = vsub.s32 %v7860, %v7862
  %v7864 = vrot.slane %v7856, %v7863
  %v7866 = vunpack.c.l.s4 1983009808
  %v7867 = vunpack.c.0.s8 %v7866
  %v7868 = vlaneseq
  %v7869 = vshrl.u32 %v7868, 7
  %v7870 = vsub.s32 %v7867, %v7869
  %v7871 = vrot.slane %v7857, %v7870
  %v7872 = vcombine.low %v7864, %v7871
  %v7873 = vcombine.high %v7864, %v7871
  %v7874 = vcombine.low %v7737, %v7736
  %v7875 = vcombine.low %v7746, %v7754
  %v7877 = vunpack.c.l.s4 1983009808
  %v7878 = vunpack.c.0.s8 %v7877
  %v7879 = vlaneseq
  %v7880 = vshrl.u32 %v7879, 7
  %v7881 = vsub.s32 %v7878, %v7880
  %v7882 = vrot.slane %v7874, %v7881
  %v7884 = vunpack.c.l.s4 1983009808
  %v7885 = vunpack.c.0.s8 %v7884
  %v7886 = vlaneseq
  %v7887 = vshrl.u32 %v7886, 7
  %v7888 = vsub.s32 %v7885, %v7887
  %v7889 = vrot.slane %v7875, %v7888
  %v7890 = vcombine.low %v7882, %v7889
  %v7891 = vcombine.high %v7882, %v7889
  %v7892 = vcombine.low %v7753, %v7763
  %v7893 = vcombine.low %v7771, %v7770
  %v7895 = vunpack.c.l.s4 1983009808
  %v7896 = vunpack.c.0.s8 %v7895
  %v7897 = vlaneseq
  %v7898 = vshrl.u32 %v7897, 7
  %v7899 = vsub.s32 %v7896, %v7898
  %v7900 = vrot.slane %v7892, %v7899
  %v7902 = vunpack.c.l.s4 1983009808
  %v7903 = vunpack.c.0.s8 %v7902
  %v7904 = vlaneseq
  %v7905 = vshrl.u32 %v7904, 7
  %v7906 = vsub.s32 %v7903, %v7905
  %v7907 = vrot.slane %v7893, %v7906
  %v7908 = vcombine.low %v7900, %v7907
  %v7909 = vcombine.high %v7900, %v7907
  %v7916 = vsel %vm2500, %v7819, 0
  %v7918 = vsel %vm2500, %v7837, 0
  %v7920 = vsel %vm2500, %v7855, 0
  %v7922 = vsel %vm2500, %v7873, 0
  %v7924 = vsel %vm2500, %v7891, 0
  %v7926 = vsel %vm2500, %v7909, 0
  %7928 = vmatprep.subr.mxu0 0.0
  %7929 = vmatpush1.msra.mxu0 %v7787
  %7930 = vmatprep.subr.mxu0 0.0
  %7931 = vmatpush1.msra.mxu0 %v7786
  %7932 = vmatprep.subr.mxu0 0.0
  %7933 = vmatpush1.msra.mxu0 %v7785
  %7934 = vmatprep.subr.mxu0 0.0
  %7935 = vmatpush1.msra.mxu0 %v7784
  %7936 = vmatprep.subr.mxu0 0.0
  %7937 = vmatpush1.msra.mxu0 %v7783
  %7938 = vmatprep.subr.mxu0 0.0
  %7939 = vmatpush1.msra.mxu0 %v7782
  %7940 = vmatprep.subr.mxu0 0.0
  %7941 = vmatpush1.msra.mxu0 %v7781
  %7942 = vmatprep.subr.mxu0 0.0
  %7943 = vmatpush1.msra.mxu0 %v7780
  %7944 = vmatprep.subr.mxu0 0.0
  %7945 = vmatpush1.msra.mxu0 %v7779
  %7946 = vmatprep.subr.mxu0 0.0
  %7947 = vmatpush1.msra.mxu0 %v7778
  %7948 = vmatprep.subr.mxu0 0.0
  %7949 = vmatpush1.msra.mxu0 %v7777
  %7950 = vmatprep.subr.mxu0 0.0
  %7951 = vmatpush1.msra.mxu0 %v7776
  %7952 = vmatprep.subr.mxu0 0.0
  %7953 = vmatpush1.msra.mxu0 %v7775
  %7954 = vmatprep.subr.mxu0 0.0
  %7955 = vmatpush1.msra.mxu0 %v7774
  %7956 = vmatprep.subr.mxu0 0.0
  %7957 = vmatpush1.msra.mxu0 %v7773
  %7958 = vmatprep.subr.mxu0 0.0
  %7959 = vmatpush1.msra.mxu0 %v7772
  %7960 = vmatprep.subr.mxu0 0.0
  %7961 = vmatpush2.msra.mxu0 0.0
  %7962 = vmatprep.subr.mxu0 0.0
  %7963 = vmatpush2.msra.mxu0 0.0
  %7964 = vmatprep.subr.mxu0 0.0
  %7965 = vmatpush2.msra.mxu0 0.0
  %7966 = vmatprep.subr.mxu0 0.0
  %7967 = vmatpush2.msra.mxu0 0.0
  %7968 = vmatprep.subr.mxu0 0.0
  %7969 = vmatpush2.msra.mxu0 0.0
  %7970 = vmatprep.subr.mxu0 0.0
  %7971 = vmatpush2.msra.mxu0 0.0
  %7972 = vmatprep.subr.mxu0 0.0
  %7973 = vmatpush2.msra.mxu0 0.0
  %7974 = vmatprep.subr.mxu0 0.0
  %7975 = vmatpush2.msra.mxu0 0.0
  %7976 = vmatprep.subr.mxu0 0.0
  %7977 = vmatpush2.msra.mxu0 %v7795
  %7978 = vmatprep.subr.mxu0 0.0
  %7979 = vmatpush2.msra.mxu0 %v7794
  %7980 = vmatprep.subr.mxu0 0.0
  %7981 = vmatpush2.msra.mxu0 %v7793
  %7982 = vmatprep.subr.mxu0 0.0
  %7983 = vmatpush2.msra.mxu0 %v7792
  %7984 = vmatprep.subr.mxu0 0.0
  %7985 = vmatpush2.msra.mxu0 %v7791
  %7986 = vmatprep.subr.mxu0 0.0
  %7987 = vmatpush2.msra.mxu0 %v7790
  %7988 = vmatprep.subr.mxu0 0.0
  %7989 = vmatpush2.msra.mxu0 %v7789
  %7990 = vmatprep.subr.mxu0 0.0
  %7991 = vmatpush2.msra.mxu0 %v7788
  %7992 = vmatprep.mubr.f32.mxu0 %v7916
  %7993 = vmatmul.mubr.f32.gmra.mxu0 %v7818
  %v7994 = vpop.f32.mrf.mxu0
  %v7995 = vadd.f32 %v7800, %v7994
  %v7996 = vpop.f32.mrf.mxu0
  %7997 = vmatprep.mubr.f32.mxu0 %v7918
  %7998 = vmatmul.mubr.f32.gmra.mxu0 %v7836
  %v7999 = vpop.f32.mrf.mxu0
  %v8000 = vadd.f32 %v7800, %v7999
  %v8001 = vpop.f32.mrf.mxu0
  %8002 = vmatprep.mubr.f32.mxu0 %v7920
  %8003 = vmatmul.mubr.f32.gmra.mxu0 %v7854
  %v8004 = vpop.f32.mrf.mxu0
  %v8005 = vadd.f32 %v7800, %v8004
  %v8006 = vpop.f32.mrf.mxu0
  %8007 = vmatprep.mubr.f32.mxu0 %v7922
  %8008 = vmatmul.mubr.f32.gmra.mxu0 %v7872
  %v8009 = vpop.f32.mrf.mxu0
  %v8010 = vadd.f32 %v7800, %v8009
  %v8011 = vpop.f32.mrf.mxu0
  %8012 = vmatprep.mubr.f32.mxu0 %v7924
  %8013 = vmatmul.mubr.f32.gmra.mxu0 %v7890
  %v8014 = vpop.f32.mrf.mxu0
  %v8015 = vadd.f32 %v7800, %v8014
  %v8016 = vpop.f32.mrf.mxu0
  %8017 = vmatprep.mubr.f32.mxu0 %v7926
  %8018 = vmatmul.mubr.f32.gmra.mxu0 %v7908
  %v8019 = vpop.f32.mrf.mxu0
  %v8020 = vadd.f32 %v7800, %v8019
  %v8021 = vpop.f32.mrf.mxu0
  %8022 = vdwg.mxu0
  %v8023 = vmax.f32 %v7995, 0.0
  %v8024 = vmax.f32 %v8000, 0.0
  %v8025 = vmax.f32 %v8005, 0.0
  %v8026 = vmax.f32 %v8010, 0.0
  %v8027 = vmax.f32 %v8015, 0.0
  %v8028 = vmax.f32 %v8020, 0.0
  %8029 = vst.msk [vmem:[#allocation2] sm:$0xff] %vm2500, %v8023
  %8030 = vst.msk [vmem:[#allocation2 + $0x8] sm:$0xff] %vm2500, %v8024
  %8031 = vst.msk [vmem:[#allocation2 + $0x10] sm:$0xff] %vm2500, %v8025
  %8032 = vst.msk [vmem:[#allocation2 + $0x18] sm:$0xff] %vm2500, %v8026
  %8033 = vst.msk [vmem:[#allocation2 + $0x20] sm:$0xff] %vm2500, %v8027
  %8034 = vst.msk [vmem:[#allocation2 + $0x28] sm:$0xff] %vm2500, %v8028
  %v8035 = vld [vmem:[#allocation2] ss:$2 sm:$0xff]
  %v8036 = vld [vmem:[%s3847] ss:$2 sm:$0xff]
  %v8037 = vld [vmem:[%s3849] ss:$2 sm:$0xff]
  %v8038 = vld [vmem:[%s3973] ss:$2 sm:$0xff]
  %v8039 = vld [vmem:[%s3975] ss:$2 sm:$0xff]
  %v8040 = vld [vmem:[%s3977] ss:$2 sm:$0xff]
  %v8041 = vmax.f32 %v8035, %v8038
  %v8042 = vmax.f32 %v8036, %v8039
  %v8043 = vmax.f32 %v8037, %v8040
  %v8047 = vcombine.high %v8041, %v8041
  %v8049 = vunpack.c.l.s4 1966171168
  %v8050 = vunpack.c.0.s8 %v8049
  %v8051 = vlaneseq
  %v8052 = vshrl.u32 %v8051, 7
  %v8053 = vsub.s32 %v8050, %v8052
  %v8054 = vrot.slane %v8041, %v8053
  %v8056 = vunpack.c.l.s4 1966171168
  %v8057 = vunpack.c.0.s8 %v8056
  %v8058 = vlaneseq
  %v8059 = vshrl.u32 %v8058, 7
  %v8060 = vsub.s32 %v8057, %v8059
  %v8061 = vrot.slane %v8047, %v8060
  %v8062 = vcombine.high %v8054, %v8054
  %v8063 = vcombine.high %v8061, %v8061
  %v8065 = vunpack.c.l.s4 1966171168
  %v8066 = vunpack.c.0.s8 %v8065
  %v8067 = vlaneseq
  %v8068 = vshrl.u32 %v8067, 7
  %v8069 = vsub.s32 %v8066, %v8068
  %v8070 = vrot.slane %v8054, %v8069
  %v8072 = vunpack.c.l.s4 1966171168
  %v8073 = vunpack.c.0.s8 %v8072
  %v8074 = vlaneseq
  %v8075 = vshrl.u32 %v8074, 7
  %v8076 = vsub.s32 %v8073, %v8075
  %v8077 = vrot.slane %v8061, %v8076
  %v8079 = vunpack.c.l.s4 1966171168
  %v8080 = vunpack.c.0.s8 %v8079
  %v8081 = vlaneseq
  %v8082 = vshrl.u32 %v8081, 7
  %v8083 = vsub.s32 %v8080, %v8082
  %v8084 = vrot.slane %v8062, %v8083
  %v8086 = vunpack.c.l.s4 1966171168
  %v8087 = vunpack.c.0.s8 %v8086
  %v8088 = vlaneseq
  %v8089 = vshrl.u32 %v8088, 7
  %v8090 = vsub.s32 %v8087, %v8089
  %v8091 = vrot.slane %v8063, %v8090
  %v8092 = vcombine.high %v8070, %v8070
  %v8093 = vcombine.high %v8077, %v8077
  %v8094 = vcombine.high %v8084, %v8084
  %v8095 = vcombine.high %v8091, %v8091
  %v8096 = vcombine.high %v8042, %v8042
  %v8098 = vunpack.c.l.s4 1966171168
  %v8099 = vunpack.c.0.s8 %v8098
  %v8100 = vlaneseq
  %v8101 = vshrl.u32 %v8100, 7
  %v8102 = vsub.s32 %v8099, %v8101
  %v8103 = vrot.slane %v8042, %v8102
  %v8105 = vunpack.c.l.s4 1966171168
  %v8106 = vunpack.c.0.s8 %v8105
  %v8107 = vlaneseq
  %v8108 = vshrl.u32 %v8107, 7
  %v8109 = vsub.s32 %v8106, %v8108
  %v8110 = vrot.slane %v8096, %v8109
  %v8111 = vcombine.high %v8103, %v8103
  %v8112 = vcombine.high %v8110, %v8110
  %v8114 = vunpack.c.l.s4 1966171168
  %v8115 = vunpack.c.0.s8 %v8114
  %v8116 = vlaneseq
  %v8117 = vshrl.u32 %v8116, 7
  %v8118 = vsub.s32 %v8115, %v8117
  %v8119 = vrot.slane %v8103, %v8118
  %v8121 = vunpack.c.l.s4 1966171168
  %v8122 = vunpack.c.0.s8 %v8121
  %v8123 = vlaneseq
  %v8124 = vshrl.u32 %v8123, 7
  %v8125 = vsub.s32 %v8122, %v8124
  %v8126 = vrot.slane %v8110, %v8125
  %v8128 = vunpack.c.l.s4 1966171168
  %v8129 = vunpack.c.0.s8 %v8128
  %v8130 = vlaneseq
  %v8131 = vshrl.u32 %v8130, 7
  %v8132 = vsub.s32 %v8129, %v8131
  %v8133 = vrot.slane %v8111, %v8132
  %v8135 = vunpack.c.l.s4 1966171168
  %v8136 = vunpack.c.0.s8 %v8135
  %v8137 = vlaneseq
  %v8138 = vshrl.u32 %v8137, 7
  %v8139 = vsub.s32 %v8136, %v8138
  %v8140 = vrot.slane %v8112, %v8139
  %v8141 = vcombine.high %v8119, %v8119
  %v8142 = vcombine.high %v8126, %v8126
  %v8143 = vcombine.high %v8133, %v8133
  %v8144 = vcombine.high %v8140, %v8140
  %v8145 = vcombine.high %v8043, %v8043
  %v8147 = vunpack.c.l.s4 1966171168
  %v8148 = vunpack.c.0.s8 %v8147
  %v8149 = vlaneseq
  %v8150 = vshrl.u32 %v8149, 7
  %v8151 = vsub.s32 %v8148, %v8150
  %v8152 = vrot.slane %v8043, %v8151
  %v8154 = vunpack.c.l.s4 1966171168
  %v8155 = vunpack.c.0.s8 %v8154
  %v8156 = vlaneseq
  %v8157 = vshrl.u32 %v8156, 7
  %v8158 = vsub.s32 %v8155, %v8157
  %v8159 = vrot.slane %v8145, %v8158
  %v8160 = vcombine.high %v8152, %v8152
  %v8161 = vcombine.high %v8159, %v8159
  %v8163 = vunpack.c.l.s4 1966171168
  %v8164 = vunpack.c.0.s8 %v8163
  %v8165 = vlaneseq
  %v8166 = vshrl.u32 %v8165, 7
  %v8167 = vsub.s32 %v8164, %v8166
  %v8168 = vrot.slane %v8152, %v8167
  %v8170 = vunpack.c.l.s4 1966171168
  %v8171 = vunpack.c.0.s8 %v8170
  %v8172 = vlaneseq
  %v8173 = vshrl.u32 %v8172, 7
  %v8174 = vsub.s32 %v8171, %v8173
  %v8175 = vrot.slane %v8159, %v8174
  %v8177 = vunpack.c.l.s4 1966171168
  %v8178 = vunpack.c.0.s8 %v8177
  %v8179 = vlaneseq
  %v8180 = vshrl.u32 %v8179, 7
  %v8181 = vsub.s32 %v8178, %v8180
  %v8182 = vrot.slane %v8160, %v8181
  %v8184 = vunpack.c.l.s4 1966171168
  %v8185 = vunpack.c.0.s8 %v8184
  %v8186 = vlaneseq
  %v8187 = vshrl.u32 %v8186, 7
  %v8188 = vsub.s32 %v8185, %v8187
  %v8189 = vrot.slane %v8161, %v8188
  %v8190 = vcombine.high %v8168, %v8168
  %v8191 = vcombine.high %v8175, %v8175
  %v8192 = vcombine.high %v8182, %v8182
  %v8193 = vcombine.high %v8189, %v8189
  %v8194 = vcombine.low %v8070, %v8094
  %v8195 = vcombine.low %v8093, %v8133
  %v8196 = vcombine.low %v8126, %v8144
  %v8197 = vcombine.low %v8190, %v8189
  %v8199 = vunpack.c.l.s4 1966171168
  %v8200 = vunpack.c.0.s8 %v8199
  %v8201 = vlaneseq
  %v8202 = vshrl.u32 %v8201, 7
  %v8203 = vsub.s32 %v8200, %v8202
  %v8204 = vrot.slane %v8194, %v8203
  %v8206 = vunpack.c.l.s4 1966171168
  %v8207 = vunpack.c.0.s8 %v8206
  %v8208 = vlaneseq
  %v8209 = vshrl.u32 %v8208, 7
  %v8210 = vsub.s32 %v8207, %v8209
  %v8211 = vrot.slane %v8195, %v8210
  %v8213 = vunpack.c.l.s4 1966171168
  %v8214 = vunpack.c.0.s8 %v8213
  %v8215 = vlaneseq
  %v8216 = vshrl.u32 %v8215, 7
  %v8217 = vsub.s32 %v8214, %v8216
  %v8218 = vrot.slane %v8196, %v8217
  %v8220 = vunpack.c.l.s4 1966171168
  %v8221 = vunpack.c.0.s8 %v8220
  %v8222 = vlaneseq
  %v8223 = vshrl.u32 %v8222, 7
  %v8224 = vsub.s32 %v8221, %v8223
  %v8225 = vrot.slane %v8197, %v8224
  %v8226 = vcombine.low %v8204, %v8211
  %v8227 = vcombine.low %v8218, %v8225
  %v8229 = vunpack.c.l.s4 1966171168
  %v8230 = vunpack.c.0.s8 %v8229
  %v8231 = vlaneseq
  %v8232 = vshrl.u32 %v8231, 7
  %v8233 = vsub.s32 %v8230, %v8232
  %v8234 = vrot.slane %v8226, %v8233
  %v8236 = vunpack.c.l.s4 1966171168
  %v8237 = vunpack.c.0.s8 %v8236
  %v8238 = vlaneseq
  %v8239 = vshrl.u32 %v8238, 7
  %v8240 = vsub.s32 %v8237, %v8239
  %v8241 = vrot.slane %v8227, %v8240
  %v8242 = vcombine.low %v8234, %v8241
  %v8244 = vcombine.low %v8084, %v8077
  %v8245 = vcombine.low %v8095, %v8141
  %v8246 = vcombine.low %v8140, %v8168
  %v8247 = vcombine.low %v8192, %v8191
  %v8249 = vunpack.c.l.s4 1966171168
  %v8250 = vunpack.c.0.s8 %v8249
  %v8251 = vlaneseq
  %v8252 = vshrl.u32 %v8251, 7
  %v8253 = vsub.s32 %v8250, %v8252
  %v8254 = vrot.slane %v8244, %v8253
  %v8256 = vunpack.c.l.s4 1966171168
  %v8257 = vunpack.c.0.s8 %v8256
  %v8258 = vlaneseq
  %v8259 = vshrl.u32 %v8258, 7
  %v8260 = vsub.s32 %v8257, %v8259
  %v8261 = vrot.slane %v8245, %v8260
  %v8263 = vunpack.c.l.s4 1966171168
  %v8264 = vunpack.c.0.s8 %v8263
  %v8265 = vlaneseq
  %v8266 = vshrl.u32 %v8265, 7
  %v8267 = vsub.s32 %v8264, %v8266
  %v8268 = vrot.slane %v8246, %v8267
  %v8270 = vunpack.c.l.s4 1966171168
  %v8271 = vunpack.c.0.s8 %v8270
  %v8272 = vlaneseq
  %v8273 = vshrl.u32 %v8272, 7
  %v8274 = vsub.s32 %v8271, %v8273
  %v8275 = vrot.slane %v8247, %v8274
  %v8276 = vcombine.low %v8254, %v8261
  %v8277 = vcombine.low %v8268, %v8275
  %v8279 = vunpack.c.l.s4 1966171168
  %v8280 = vunpack.c.0.s8 %v8279
  %v8281 = vlaneseq
  %v8282 = vshrl.u32 %v8281, 7
  %v8283 = vsub.s32 %v8280, %v8282
  %v8284 = vrot.slane %v8276, %v8283
  %v8286 = vunpack.c.l.s4 1966171168
  %v8287 = vunpack.c.0.s8 %v8286
  %v8288 = vlaneseq
  %v8289 = vshrl.u32 %v8288, 7
  %v8290 = vsub.s32 %v8287, %v8289
  %v8291 = vrot.slane %v8277, %v8290
  %v8292 = vcombine.low %v8284, %v8291
  %8293 = vrot.lane.b32.xlu0 %v8292, 64
  %v8294 = vpop.permute.xlu0 %8293
  %v8296 = vcombine.low %v8092, %v8091
  %v8297 = vcombine.low %v8119, %v8143
  %v8298 = vcombine.low %v8142, %v8182
  %v8299 = vcombine.low %v8175, %v8193
  %v8301 = vunpack.c.l.s4 1966171168
  %v8302 = vunpack.c.0.s8 %v8301
  %v8303 = vlaneseq
  %v8304 = vshrl.u32 %v8303, 7
  %v8305 = vsub.s32 %v8302, %v8304
  %v8306 = vrot.slane %v8296, %v8305
  %v8308 = vunpack.c.l.s4 1966171168
  %v8309 = vunpack.c.0.s8 %v8308
  %v8310 = vlaneseq
  %v8311 = vshrl.u32 %v8310, 7
  %v8312 = vsub.s32 %v8309, %v8311
  %v8313 = vrot.slane %v8297, %v8312
  %v8315 = vunpack.c.l.s4 1966171168
  %v8316 = vunpack.c.0.s8 %v8315
  %v8317 = vlaneseq
  %v8318 = vshrl.u32 %v8317, 7
  %v8319 = vsub.s32 %v8316, %v8318
  %v8320 = vrot.slane %v8298, %v8319
  %v8322 = vunpack.c.l.s4 1966171168
  %v8323 = vunpack.c.0.s8 %v8322
  %v8324 = vlaneseq
  %v8325 = vshrl.u32 %v8324, 7
  %v8326 = vsub.s32 %v8323, %v8325
  %v8327 = vrot.slane %v8299, %v8326
  %v8328 = vcombine.low %v8306, %v8313
  %v8329 = vcombine.low %v8320, %v8327
  %v8331 = vunpack.c.l.s4 1966171168
  %v8332 = vunpack.c.0.s8 %v8331
  %v8333 = vlaneseq
  %v8334 = vshrl.u32 %v8333, 7
  %v8335 = vsub.s32 %v8332, %v8334
  %v8336 = vrot.slane %v8328, %v8335
  %v8338 = vunpack.c.l.s4 1966171168
  %v8339 = vunpack.c.0.s8 %v8338
  %v8340 = vlaneseq
  %v8341 = vshrl.u32 %v8340, 7
  %v8342 = vsub.s32 %v8339, %v8341
  %v8343 = vrot.slane %v8329, %v8342
  %v8344 = vcombine.low %v8336, %v8343
  %v8345 = vsel %vm2500, %v8242, %v8294
  %v8346 = vld [vmem:[%s11] sm:$0xff]
  %v8347 = vld [vmem:[%s11 + $0x8] sm:$0xff]
  %v8348 = vld [vmem:[%s11 + $0x10] sm:$0xff]
  %v8349 = vld [vmem:[%s11 + $0x18] sm:$0xff]
  %v8350 = vld [vmem:[%s11 + $0x20] sm:$0xff]
  %v8351 = vld [vmem:[%s11 + $0x28] sm:$0xff]
  %v8352 = vld [vmem:[%s11 + $0x30] sm:$0xff]
  %v8353 = vld [vmem:[%s11 + $0x38] sm:$0xff]
  %v8354 = vld [vmem:[%s11 + $0x40] sm:$0xff]
  %v8355 = vld [vmem:[%s11 + $0x48] sm:$0xff]
  %v8356 = vld [vmem:[%s11 + $0x50] sm:$0xff]
  %v8357 = vld [vmem:[%s11 + $0x58] sm:$0xff]
  %v8358 = vld [vmem:[%s11 + $0x60] sm:$0xff]
  %v8359 = vld [vmem:[%s11 + $0x68] sm:$0xff]
  %v8360 = vld [vmem:[%s11 + $0x70] sm:$0xff]
  %v8361 = vld [vmem:[%s11 + $0x78] sm:$0xff]
  %v8362 = vld [vmem:[%s11 + $0x80] sm:$0xff]
  %v8363 = vld [vmem:[%s11 + $0x88] sm:$0xff]
  %v8364 = vld [vmem:[%s11 + $0x90] sm:$0xff]
  %v8365 = vld [vmem:[%s11 + $0x98] sm:$0xff]
  %v8366 = vld [vmem:[%s11 + $0xa0] sm:$0xff]
  %v8367 = vld [vmem:[%s11 + $0xa8] sm:$0xff]
  %v8368 = vld [vmem:[%s11 + $0xb0] sm:$0xff]
  %v8369 = vld [vmem:[%s11 + $0xb8] sm:$0xff]
  %v8370 = vld [vmem:[%s12] sm:$0x1]
  %v8372 = vlaneseq
  %v8373 = vshrl.u32 %v8372, 7
  %v8374 = vsub.s32 0, %v8373
  %v8375 = vrot.slane %v8370, %v8374
  %v8377 = vsel %vm2500, %v8344, 0
  %8379 = vmatprep.subr.mxu0 0.0
  %8380 = vmatpush1.msra.mxu0 %v8361
  %8381 = vmatprep.subr.mxu0 0.0
  %8382 = vmatpush1.msra.mxu0 %v8360
  %8383 = vmatprep.subr.mxu0 0.0
  %8384 = vmatpush1.msra.mxu0 %v8359
  %8385 = vmatprep.subr.mxu0 0.0
  %8386 = vmatpush1.msra.mxu0 %v8358
  %8387 = vmatprep.subr.mxu0 0.0
  %8388 = vmatpush1.msra.mxu0 %v8357
  %8389 = vmatprep.subr.mxu0 0.0
  %8390 = vmatpush1.msra.mxu0 %v8356
  %8391 = vmatprep.subr.mxu0 0.0
  %8392 = vmatpush1.msra.mxu0 %v8355
  %8393 = vmatprep.subr.mxu0 0.0
  %8394 = vmatpush1.msra.mxu0 %v8354
  %8395 = vmatprep.subr.mxu0 0.0
  %8396 = vmatpush1.msra.mxu0 %v8353
  %8397 = vmatprep.subr.mxu0 0.0
  %8398 = vmatpush1.msra.mxu0 %v8352
  %8399 = vmatprep.subr.mxu0 0.0
  %8400 = vmatpush1.msra.mxu0 %v8351
  %8401 = vmatprep.subr.mxu0 0.0
  %8402 = vmatpush1.msra.mxu0 %v8350
  %8403 = vmatprep.subr.mxu0 0.0
  %8404 = vmatpush1.msra.mxu0 %v8349
  %8405 = vmatprep.subr.mxu0 0.0
  %8406 = vmatpush1.msra.mxu0 %v8348
  %8407 = vmatprep.subr.mxu0 0.0
  %8408 = vmatpush1.msra.mxu0 %v8347
  %8409 = vmatprep.subr.mxu0 0.0
  %8410 = vmatpush1.msra.mxu0 %v8346
  %8411 = vmatprep.subr.mxu0 0.0
  %8412 = vmatpush2.msra.mxu0 0.0
  %8413 = vmatprep.subr.mxu0 0.0
  %8414 = vmatpush2.msra.mxu0 0.0
  %8415 = vmatprep.subr.mxu0 0.0
  %8416 = vmatpush2.msra.mxu0 0.0
  %8417 = vmatprep.subr.mxu0 0.0
  %8418 = vmatpush2.msra.mxu0 0.0
  %8419 = vmatprep.subr.mxu0 0.0
  %8420 = vmatpush2.msra.mxu0 0.0
  %8421 = vmatprep.subr.mxu0 0.0
  %8422 = vmatpush2.msra.mxu0 0.0
  %8423 = vmatprep.subr.mxu0 0.0
  %8424 = vmatpush2.msra.mxu0 0.0
  %8425 = vmatprep.subr.mxu0 0.0
  %8426 = vmatpush2.msra.mxu0 0.0
  %8427 = vmatprep.subr.mxu0 0.0
  %8428 = vmatpush2.msra.mxu0 %v8369
  %8429 = vmatprep.subr.mxu0 0.0
  %8430 = vmatpush2.msra.mxu0 %v8368
  %8431 = vmatprep.subr.mxu0 0.0
  %8432 = vmatpush2.msra.mxu0 %v8367
  %8433 = vmatprep.subr.mxu0 0.0
  %8434 = vmatpush2.msra.mxu0 %v8366
  %8435 = vmatprep.subr.mxu0 0.0
  %8436 = vmatpush2.msra.mxu0 %v8365
  %8437 = vmatprep.subr.mxu0 0.0
  %8438 = vmatpush2.msra.mxu0 %v8364
  %8439 = vmatprep.subr.mxu0 0.0
  %8440 = vmatpush2.msra.mxu0 %v8363
  %8441 = vmatprep.subr.mxu0 0.0
  %8442 = vmatpush2.msra.mxu0 %v8362
  %8443 = vmatprep.mubr.f32.mxu0 %v8377
  %8444 = vmatmul.mubr.f32.gmra.mxu0 %v8345
  %v8445 = vpop.f32.mrf.mxu0
  %v8446 = vadd.f32 %v8375, %v8445
  %v8447 = vpop.f32.mrf.mxu0
  %8448 = vdwg.mxu0
  %v8449 = vmax.f32 %v8446, 0.0
  %v8450 = vld [vmem:[%s13] sm:$0xff]
  %v8451 = vld [vmem:[%s13 + $0x8] sm:$0xff]
  %v8452 = vld [vmem:[%s13 + $0x10] sm:$0xff]
  %v8453 = vld [vmem:[%s13 + $0x18] sm:$0xff]
  %v8454 = vld [vmem:[%s13 + $0x20] sm:$0xff]
  %v8455 = vld [vmem:[%s13 + $0x28] sm:$0xff]
  %v8456 = vld [vmem:[%s13 + $0x30] sm:$0xff]
  %v8457 = vld [vmem:[%s13 + $0x38] sm:$0xff]
  %v8458 = vld [vmem:[%s13 + $0x40] sm:$0xff]
  %v8459 = vld [vmem:[%s13 + $0x48] sm:$0xff]
  %v8460 = vld [vmem:[%s13 + $0x50] sm:$0xff]
  %v8461 = vld [vmem:[%s13 + $0x58] sm:$0xff]
  %v8462 = vld [vmem:[%s13 + $0x60] sm:$0xf]
  %v8463 = vld [vmem:[%s14] sm:$0x1]
  %v8465 = vlaneseq
  %v8466 = vshrl.u32 %v8465, 7
  %v8467 = vsub.s32 0, %v8466
  %v8468 = vrot.slane %v8463, %v8467
  %vm8470 = vcmask 818176
  %v8472 = vsel %vm8470, %v8449, 0
  %vm8474 = vcmask 1043456
  %v8476 = vsel %vm8474, %v8462, 0
  %8478 = vmatprep.subr.mxu0 0.0
  %8479 = vmatpush1.msra.mxu0 0.0
  %8480 = vmatprep.subr.mxu0 0.0
  %8481 = vmatpush1.msra.mxu0 0.0
  %8482 = vmatprep.subr.mxu0 0.0
  %8483 = vmatpush1.msra.mxu0 0.0
  %8484 = vmatprep.subr.mxu0 0.0
  %8485 = vmatpush1.msra.mxu0 %v8476
  %8486 = vmatprep.subr.mxu0 0.0
  %8487 = vmatpush1.msra.mxu0 %v8461
  %8488 = vmatprep.subr.mxu0 0.0
  %8489 = vmatpush1.msra.mxu0 %v8460
  %8490 = vmatprep.subr.mxu0 0.0
  %8491 = vmatpush1.msra.mxu0 %v8459
  %8492 = vmatprep.subr.mxu0 0.0
  %8493 = vmatpush1.msra.mxu0 %v8458
  %8494 = vmatprep.subr.mxu0 0.0
  %8495 = vmatpush1.msra.mxu0 %v8457
  %8496 = vmatprep.subr.mxu0 0.0
  %8497 = vmatpush1.msra.mxu0 %v8456
  %8498 = vmatprep.subr.mxu0 0.0
  %8499 = vmatpush1.msra.mxu0 %v8455
  %8500 = vmatprep.subr.mxu0 0.0
  %8501 = vmatpush1.msra.mxu0 %v8454
  %8502 = vmatprep.subr.mxu0 0.0
  %8503 = vmatpush1.msra.mxu0 %v8453
  %8504 = vmatprep.subr.mxu0 0.0
  %8505 = vmatpush1.msra.mxu0 %v8452
  %8506 = vmatprep.subr.mxu0 0.0
  %8507 = vmatpush1.msra.mxu0 %v8451
  %8508 = vmatprep.subr.mxu0 0.0
  %8509 = vmatpush1.msra.mxu0 %v8450
  %8510 = vmatprep.subr.mxu0 0.0
  %8511 = vmatpush2.msra.mxu0 0.0
  %8512 = vmatprep.subr.mxu0 0.0
  %8513 = vmatpush2.msra.mxu0 0.0
  %8514 = vmatprep.subr.mxu0 0.0
  %8515 = vmatpush2.msra.mxu0 0.0
  %8516 = vmatprep.subr.mxu0 0.0
  %8517 = vmatpush2.msra.mxu0 0.0
  %8518 = vmatprep.subr.mxu0 0.0
  %8519 = vmatpush2.msra.mxu0 0.0
  %8520 = vmatprep.subr.mxu0 0.0
  %8521 = vmatpush2.msra.mxu0 0.0
  %8522 = vmatprep.subr.mxu0 0.0
  %8523 = vmatpush2.msra.mxu0 0.0
  %8524 = vmatprep.subr.mxu0 0.0
  %8525 = vmatpush2.msra.mxu0 0.0
  %8526 = vmatprep.subr.mxu0 0.0
  %8527 = vmatpush2.msra.mxu0 0.0
  %8528 = vmatprep.subr.mxu0 0.0
  %8529 = vmatpush2.msra.mxu0 0.0
  %8530 = vmatprep.subr.mxu0 0.0
  %8531 = vmatpush2.msra.mxu0 0.0
  %8532 = vmatprep.subr.mxu0 0.0
  %8533 = vmatpush2.msra.mxu0 0.0
  %8534 = vmatprep.subr.mxu0 0.0
  %8535 = vmatpush2.msra.mxu0 0.0
  %8536 = vmatprep.subr.mxu0 0.0
  %8537 = vmatpush2.msra.mxu0 0.0
  %8538 = vmatprep.subr.mxu0 0.0
  %8539 = vmatpush2.msra.mxu0 0.0
  %8540 = vmatprep.subr.mxu0 0.0
  %8541 = vmatpush2.msra.mxu0 0.0
  %8542 = vmatprep.mubr.f32.mxu0 0.0
  %8543 = vmatmul.mubr.f32.gmra.mxu0 %v8472
  %v8544 = vpop.f32.mrf.mxu0
  %v8545 = vadd.f32 %v8468, %v8544
  %v8546 = vpop.f32.mrf.mxu0
  %8547 = vdwg.mxu0
  %vm8548 = vcmask 80896
  %8549 = vst.msk [vmem:[%s15] sm:$0xff] %vm8548, %v8545
  // Predicated region
  $region62: #{wdcnn_forward.1} parent=0 // pred_check
    _
  $region63: #{wdcnn_forward.1} parent=0 // pred_check_branch
    %8551 = sbr.rel (0) target = $region65
  $region64: #{wdcnn_forward.1} parent=0 // pred_region
    _
  $region65: #{wdcnn_forward.1} parent=0 // pred_fallthru
    _
  // Predicated region
  $region66: #{wdcnn_forward.1} parent=0 // pred_check
    _
  $region67: #{wdcnn_forward.1} parent=0 // pred_check_branch
    %8553 = sbr.rel (0) target = $region69
  $region68: #{wdcnn_forward.1} parent=0 // pred_region
    _
  $region69: #{wdcnn_forward.1} parent=0 // pred_fallthru
    _

</llo_original>
